<compile_context>
chip_gen: v5e
topology: v5e:2x2
jax: 0.10.0
libtpu: 0.0.40
codegen_flags: <defaults>
</compile_context>

<pallas_src>
import functools

import jax
import jax.numpy as jnp
from jax.experimental import pallas as pl
from jax.experimental.pallas import tpu as pltpu

_SUBLANE = 8
_LANE = 128


def _round_up(x, m):
    return (x + m - 1) // m * m


def _encoder_kernel(n_layers, hidden_dim, time_chunk, *refs):
    # refs layout:
    #   x_ref (Bp, Tc, F),
    #   [w_ih_l (F_in,4H), w_hh_l (H,4H), b_l (1,4H)] * n_layers,
    #   w_out (H, Vp), b_out (1, Vp),
    #   out_ref (Bp, Tc, Vp),
    #   h_scr (L, Bp, H), c_scr (L, Bp, H), hseq (Bp, Tc, H)
    x_ref = refs[0]
    layer_refs = refs[1:1 + 3 * n_layers]
    w_out_ref = refs[1 + 3 * n_layers]
    b_out_ref = refs[2 + 3 * n_layers]
    out_ref = refs[3 + 3 * n_layers]
    h_scr = refs[4 + 3 * n_layers]
    c_scr = refs[5 + 3 * n_layers]
    hseq = refs[6 + 3 * n_layers]

    H = hidden_dim
    Tc = time_chunk
    Bp = x_ref.shape[0]
    Vp = w_out_ref.shape[1]

    chunk = pl.program_id(0)

    @pl.when(chunk == 0)
    def _():
        h_scr[...] = jnp.zeros_like(h_scr)
        c_scr[...] = jnp.zeros_like(c_scr)

    inp_seq = x_ref[...]  # (Bp, Tc, F_in) : layer-0 input for this chunk

    for l in range(n_layers):
        w_ih = layer_refs[3 * l][...]      # (F_in, 4H), gate cols [i, f, o, g]
        w_hh = layer_refs[3 * l + 1][...]  # (H, 4H)
        b = layer_refs[3 * l + 2][...]     # (1, 4H)  (= b_ih + b_hh, reordered)
        f_in = w_ih.shape[0]

        # Hoisted input projection: one big MXU matmul for the whole chunk.
        gx = jnp.dot(inp_seq.reshape(Bp * Tc, f_in), w_ih,
                     preferred_element_type=jnp.float32) + b    # (Bp*Tc, 4H)
        gx = gx.reshape(Bp, Tc, 4 * H)

        # Serial recurrence: only the hidden-state matmul stays in the loop.
        h_prev = h_scr[l]                  # (Bp, H)
        c_prev = c_scr[l]                  # (Bp, H)
        for tt in range(Tc):               # static unroll (Tc is small)
            gates = gx[:, tt, :] + jnp.dot(
                h_prev, w_hh, preferred_element_type=jnp.float32)  # (Bp, 4H)
            # Gate columns are [i, f, o, g]: 2 fused activation launches.
            sig = jax.nn.sigmoid(gates[:, :3 * H])
            g_g = jnp.tanh(gates[:, 3 * H:])
            i_g = sig[:, 0 * H:1 * H]
            f_g = sig[:, 1 * H:2 * H]
            o_g = sig[:, 2 * H:3 * H]
            c_prev = f_g * c_prev + i_g * g_g
            h_prev = o_g * jnp.tanh(c_prev)
            hseq[:, tt, :] = h_prev
        h_scr[l] = h_prev
        c_scr[l] = c_prev

        inp_seq = hseq[...]                # (Bp, Tc, H) -> next layer's input

    # Final linear projection for the whole chunk; Vp is lane-dense (mult. 128).
    logits = jnp.dot(inp_seq.reshape(Bp * Tc, H), w_out_ref[...],
                     preferred_element_type=jnp.float32) + b_out_ref[...]
    out_ref[...] = logits.reshape(Bp, Tc, Vp)


def _reorder_gates_rows(w):
    """(4H, X) with PyTorch row-blocks [i, f, g, o] -> transposed (X, 4H) with
    column-blocks [i, f, o, g] (so sigmoid covers a contiguous 3H slab)."""
    i, f, g, o = jnp.split(w, 4, axis=0)
    return jnp.transpose(jnp.concatenate([i, f, o, g], axis=0))


def _reorder_gates_vec(b):
    i, f, g, o = jnp.split(b, 4, axis=0)
    return jnp.concatenate([i, f, o, g], axis=0)


def encoder_forward(x, params, *, time_chunk=8):
    """x: (B, T, F) float32 -> logits (B, T, V+1) float32."""
    B, T, F = x.shape
    n_layers = len(params["w_ih"])
    H = params["w_hh"][0].shape[1]
    V1 = params["w_out"].shape[0]

    Tc = _round_up(max(time_chunk, 1), _SUBLANE)
    Bp = _round_up(B, _SUBLANE)
    Tp = _round_up(T, Tc)
    Vp = _round_up(V1, _LANE)

    # Zero-pad batch / time; padded rows and timesteps are independent of the
    # real ones and are sliced off below (no wrapper-level transposes needed).
    xp = jnp.pad(x, ((0, Bp - B), (0, Tp - T), (0, 0)))

    inputs = [xp]
    in_specs = [pl.BlockSpec((Bp, Tc, F), lambda c: (0, c, 0))]

    weight_bytes = 0
    for l in range(n_layers):
        w_ih = _reorder_gates_rows(params["w_ih"][l])                 # (F_in, 4H)
        w_hh = _reorder_gates_rows(params["w_hh"][l])                 # (H, 4H)
        b = _reorder_gates_vec(params["b_ih"][l] + params["b_hh"][l])[None, :]
        inputs += [w_ih, w_hh, b]
        in_specs += [
            pl.BlockSpec(w_ih.shape, lambda c: (0, 0)),
            pl.BlockSpec(w_hh.shape, lambda c: (0, 0)),
            pl.BlockSpec(b.shape, lambda c: (0, 0)),
        ]
        weight_bytes += 4 * (w_ih.size + w_hh.size + b.size)

    w_out = jnp.pad(jnp.transpose(params["w_out"]), ((0, 0), (0, Vp - V1)))  # (H, Vp)
    b_out = jnp.pad(params["b_out"], (0, Vp - V1))[None, :]                  # (1, Vp)
    inputs += [w_out, b_out]
    in_specs += [
        pl.BlockSpec(w_out.shape, lambda c: (0, 0)),
        pl.BlockSpec(b_out.shape, lambda c: (0, 0)),
    ]
    weight_bytes += 4 * (w_out.size + b_out.size)

    # Rough VMEM budget: double-buffered chunk I/O + (double-buffered) weights
    # + scratch, with margin.  Kept well under every generation's physical VMEM.
    io_bytes = 4 * (Bp * Tc * F + Bp * Tc * Vp)
    scratch_bytes = 4 * (2 * n_layers * Bp * H + Bp * Tc * H)
    est = 2 * io_bytes + 2 * weight_bytes + scratch_bytes
    vmem_limit = int(min(max(2 * est, 32 * 2**20), 48 * 2**20))

    kernel = functools.partial(_encoder_kernel, n_layers, H, Tc)

    out_p = pl.pallas_call(
        kernel,
        out_shape=jax.ShapeDtypeStruct((Bp, Tp, Vp), jnp.float32),
        grid_spec=pltpu.PrefetchScalarGridSpec(
            num_scalar_prefetch=0,
            grid=(Tp // Tc,),
            in_specs=in_specs,
            out_specs=pl.BlockSpec((Bp, Tc, Vp), lambda c: (0, c, 0)),
            scratch_shapes=[
                pltpu.VMEM((n_layers, Bp, H), jnp.float32),  # h state per layer
                pltpu.VMEM((n_layers, Bp, H), jnp.float32),  # c state per layer
                pltpu.VMEM((Bp, Tc, H), jnp.float32),        # per-chunk hidden seq
            ],
        ),
        compiler_params=pltpu.CompilerParams(
            dimension_semantics=("arbitrary",),  # sequential carry over time chunks
            vmem_limit_bytes=vmem_limit,
        ),
    )(*inputs)

    return out_p[:B, :T, :V1]


def encoder_reference(x, params):
    """Pure-JAX reference (matches PyTorch nn.LSTM + Linear semantics)."""
    B, T, F = x.shape
    n_layers = len(params["w_ih"])
    H = params["w_hh"][0].shape[1]

    h = jnp.zeros((n_layers, B, H), jnp.float32)
    c = jnp.zeros((n_layers, B, H), jnp.float32)

    def step(carry, x_t):
        h, c = carry
        inp = x_t
        hs, cs = [], []
        for l in range(n_layers):
            gates = (inp @ params["w_ih"][l].T + params["b_ih"][l]
                     + h[l] @ params["w_hh"][l].T + params["b_hh"][l])
            i_g = jax.nn.sigmoid(gates[:, 0 * H:1 * H])
            f_g = jax.nn.sigmoid(gates[:, 1 * H:2 * H])
            g_g = jnp.tanh(gates[:, 2 * H:3 * H])
            o_g = jax.nn.sigmoid(gates[:, 3 * H:4 * H])
            c_new = f_g * c[l] + i_g * g_g
            h_new = o_g * jnp.tanh(c_new)
            hs.append(h_new)
            cs.append(c_new)
            inp = h_new
        return (jnp.stack(hs), jnp.stack(cs)), inp

    (_, _), ys = jax.lax.scan(step, (h, c), jnp.transpose(x, (1, 0, 2)))
    ys = jnp.transpose(ys, (1, 0, 2))  # (B, T, H)
    return ys @ params["w_out"].T + params["b_out"]


def init_params(key, input_dim, hidden_dim, output_dim, n_lstm_layers):
    """Deterministic parameter init (PyTorch-style uniform(-1/sqrt(H), 1/sqrt(H)))."""
    bound = 1.0 / jnp.sqrt(jnp.float32(hidden_dim))
    params = {"w_ih": [], "w_hh": [], "b_ih": [], "b_hh": []}
    for l in range(n_lstm_layers):
        f_in = input_dim if l == 0 else hidden_dim
        key, k1, k2, k3, k4 = jax.random.split(key, 5)
        params["w_ih"].append(jax.random.uniform(k1, (4 * hidden_dim, f_in),
                                                 jnp.float32, -bound, bound))
        params["w_hh"].append(jax.random.uniform(k2, (4 * hidden_dim, hidden_dim),
                                                 jnp.float32, -bound, bound))
        params["b_ih"].append(jax.random.uniform(k3, (4 * hidden_dim,),
                                                 jnp.float32, -bound, bound))
        params["b_hh"].append(jax.random.uniform(k4, (4 * hidden_dim,),
                                                 jnp.float32, -bound, bound))
    key, k5, k6 = jax.random.split(key, 3)
    params["w_out"] = jax.random.uniform(k5, (output_dim, hidden_dim),
                                         jnp.float32, -bound, bound)
    params["b_out"] = jax.random.uniform(k6, (output_dim,),
                                         jnp.float32, -bound, bound)
    return params


if __name__ == "__main__":
    B, T = 2, 20                       # exercises batch + time padding
    input_dim, hidden_dim, output_dim, n_lstm_layers = 32, 32, 16, 2

    key = jax.random.PRNGKey(0)
    key, kx = jax.random.split(key)
    x = jax.random.normal(kx, (B, T, input_dim), jnp.float32)

    params = init_params(key, input_dim, hidden_dim, output_dim, n_lstm_layers)

    logits = encoder_forward(x, params, time_chunk=8)
    logits = jax.block_until_ready(logits)

    ref = encoder_reference(x, params)
    assert logits.shape == (B, T, output_dim), logits.shape
    assert jnp.allclose(logits, ref, atol=2e-4, rtol=2e-4), (
        float(jnp.max(jnp.abs(logits - ref))))

    print("KERNEL_OK")
</pallas_src>

<mosaic_0001>
module attributes {stable_mosaic.version = 11 : i64} {
  func.func @_encoder_kernel(%arg0: i32, %arg1: memref<8x8x32xf32, #tpu.memory_space<vmem>>, %arg2: memref<32x128xf32, #tpu.memory_space<vmem>>, %arg3: memref<32x128xf32, #tpu.memory_space<vmem>>, %arg4: memref<1x128xf32, #tpu.memory_space<vmem>>, %arg5: memref<32x128xf32, #tpu.memory_space<vmem>>, %arg6: memref<32x128xf32, #tpu.memory_space<vmem>>, %arg7: memref<1x128xf32, #tpu.memory_space<vmem>>, %arg8: memref<32x128xf32, #tpu.memory_space<vmem>>, %arg9: memref<1x128xf32, #tpu.memory_space<vmem>>, %arg10: memref<8x8x128xf32, #tpu.memory_space<vmem>>, %arg11: memref<2x8x32xf32, #tpu.memory_space<vmem>>, %arg12: memref<2x8x32xf32, #tpu.memory_space<vmem>>, %arg13: memref<8x8x32xf32, #tpu.memory_space<vmem>>) attributes {dimension_semantics = [#tpu.dimension_semantics<arbitrary>], iteration_bounds = array<i64: 3>, scalar_prefetch = 0 : i64, scratch_operands = 3 : i64, tpu.core_type = #tpu.core_type<tc>, window_params = [{transform_indices = @transform_0, window_bounds = array<i64: 8, 8, 32>}, {pipeline_mode = #tpu.pipeline_mode<synchronous>, transform_indices = @transform_1, window_bounds = array<i64: 32, 128>}, {pipeline_mode = #tpu.pipeline_mode<synchronous>, transform_indices = @transform_2, window_bounds = array<i64: 32, 128>}, {pipeline_mode = #tpu.pipeline_mode<synchronous>, transform_indices = @transform_3, window_bounds = array<i64: 1, 128>}, {pipeline_mode = #tpu.pipeline_mode<synchronous>, transform_indices = @transform_4, window_bounds = array<i64: 32, 128>}, {pipeline_mode = #tpu.pipeline_mode<synchronous>, transform_indices = @transform_5, window_bounds = array<i64: 32, 128>}, {pipeline_mode = #tpu.pipeline_mode<synchronous>, transform_indices = @transform_6, window_bounds = array<i64: 1, 128>}, {pipeline_mode = #tpu.pipeline_mode<synchronous>, transform_indices = @transform_7, window_bounds = array<i64: 32, 128>}, {pipeline_mode = #tpu.pipeline_mode<synchronous>, transform_indices = @transform_8, window_bounds = array<i64: 1, 128>}, {transform_indices = @transform_9, window_bounds = array<i64: 8, 8, 128>}]} {
    %c0_i32 = arith.constant 0 : i32
    %0 = arith.cmpi eq, %arg0, %c0_i32 : i32
    %1 = arith.extui %0 : i1 to i32
    %c0_i32_0 = arith.constant 0 : i32
    %2 = arith.cmpi ne, %1, %c0_i32_0 : i32
    scf.if %2 {
      %cst_127 = arith.constant 0.000000e+00 : f32
      %418 = vector.broadcast %cst_127 : f32 to vector<2x8x32xf32>
      %c0_128 = arith.constant 0 : index
      %c0_129 = arith.constant 0 : index
      %c0_130 = arith.constant 0 : index
      %419 = vector.load %arg11[%c0_128, %c0_129, %c0_130] : memref<2x8x32xf32, #tpu.memory_space<vmem>>, vector<2x8x32xf32>
      tpu.vector_store %arg11[%c0_128, %c0_129, %c0_130], %418 {strides = array<i32>} : memref<2x8x32xf32, #tpu.memory_space<vmem>>, vector<2x8x32xf32>,
      %cst_131 = arith.constant 0.000000e+00 : f32
      %420 = vector.broadcast %cst_131 : f32 to vector<2x8x32xf32>
      %c0_132 = arith.constant 0 : index
      %c0_133 = arith.constant 0 : index
      %c0_134 = arith.constant 0 : index
      %421 = vector.load %arg12[%c0_132, %c0_133, %c0_134] : memref<2x8x32xf32, #tpu.memory_space<vmem>>, vector<2x8x32xf32>
      tpu.vector_store %arg12[%c0_132, %c0_133, %c0_134], %420 {strides = array<i32>} : memref<2x8x32xf32, #tpu.memory_space<vmem>>, vector<2x8x32xf32>,
    } else {
    }
    %c0 = arith.constant 0 : index
    %c0_1 = arith.constant 0 : index
    %c0_2 = arith.constant 0 : index
    %3 = vector.load %arg1[%c0, %c0_1, %c0_2] : memref<8x8x32xf32, #tpu.memory_space<vmem>>, vector<8x8x32xf32>
    %c0_3 = arith.constant 0 : index
    %c0_4 = arith.constant 0 : index
    %4 = vector.load %arg2[%c0_3, %c0_4] : memref<32x128xf32, #tpu.memory_space<vmem>>, vector<32x128xf32>
    %c0_5 = arith.constant 0 : index
    %c0_6 = arith.constant 0 : index
    %5 = vector.load %arg3[%c0_5, %c0_6] : memref<32x128xf32, #tpu.memory_space<vmem>>, vector<32x128xf32>
    %c0_7 = arith.constant 0 : index
    %c0_8 = arith.constant 0 : index
    %6 = vector.load %arg4[%c0_7, %c0_8] : memref<1x128xf32, #tpu.memory_space<vmem>>, vector<1x128xf32>
    %7 = vector.shape_cast %3 : vector<8x8x32xf32> to vector<64x32xf32>
    %cst = arith.constant dense<0.000000e+00> : vector<64x128xf32>
    %8 = tpu.matmul %7, %4, %cst {dimension_numbers = #tpu.dot_dimension_numbers<[1], [0], [0], [1], [0, 0, 1, 1], [], []>} : vector<64x32xf32>, vector<32x128xf32>, vector<64x128xf32> -> vector<64x128xf32>
    %9 = vector.broadcast %6 : vector<1x128xf32> to vector<64x128xf32>
    %10 = arith.addf %8, %9 : vector<64x128xf32>
    %11 = vector.shape_cast %10 : vector<64x128xf32> to vector<8x8x128xf32>
    %c0_9 = arith.constant 0 : index
    %c0_10 = arith.constant 0 : index
    %c0_11 = arith.constant 0 : index
    %12 = vector.load %arg11[%c0_9, %c0_10, %c0_11] : memref<2x8x32xf32, #tpu.memory_space<vmem>>, vector<1x8x32xf32>
    %13 = vector.shape_cast %12 : vector<1x8x32xf32> to vector<8x32xf32>
    %c0_12 = arith.constant 0 : index
    %c0_13 = arith.constant 0 : index
    %c0_14 = arith.constant 0 : index
    %14 = vector.load %arg12[%c0_12, %c0_13, %c0_14] : memref<2x8x32xf32, #tpu.memory_space<vmem>>, vector<1x8x32xf32>
    %15 = vector.shape_cast %14 : vector<1x8x32xf32> to vector<8x32xf32>
    %16 = vector.extract_strided_slice %11 {offsets = [0, 0, 0], sizes = [8, 1, 128], strides = [1, 1, 1]} : vector<8x8x128xf32> to vector<8x1x128xf32>
    %17 = vector.shape_cast %16 : vector<8x1x128xf32> to vector<8x128xf32>
    %cst_15 = arith.constant dense<0.000000e+00> : vector<8x128xf32>
    %18 = tpu.matmul %13, %5, %cst_15 {dimension_numbers = #tpu.dot_dimension_numbers<[1], [0], [0], [1], [0, 0, 1, 1], [], []>} : vector<8x32xf32>, vector<32x128xf32>, vector<8x128xf32> -> vector<8x128xf32>
    %19 = arith.addf %17, %18 : vector<8x128xf32>
    %20 = vector.extract_strided_slice %19 {offsets = [0, 0], sizes = [8, 96], strides = [1, 1]} : vector<8x128xf32> to vector<8x96xf32>
    %21 = arith.negf %20 : vector<8x96xf32>
    %22 = math.exp %21 : vector<8x96xf32>
    %cst_16 = arith.constant 1.000000e+00 : f32
    %23 = vector.broadcast %cst_16 : f32 to vector<8x96xf32>
    %24 = arith.addf %23, %22 : vector<8x96xf32>
    %25 = arith.divf %23, %24 : vector<8x96xf32>
    %26 = vector.extract_strided_slice %19 {offsets = [0, 96], sizes = [8, 32], strides = [1, 1]} : vector<8x128xf32> to vector<8x32xf32>
    %27 = math.tanh %26 : vector<8x32xf32>
    %28 = vector.extract_strided_slice %25 {offsets = [0, 0], sizes = [8, 32], strides = [1, 1]} : vector<8x96xf32> to vector<8x32xf32>
    %29 = vector.extract_strided_slice %25 {offsets = [0, 32], sizes = [8, 32], strides = [1, 1]} : vector<8x96xf32> to vector<8x32xf32>
    %30 = vector.extract_strided_slice %25 {offsets = [0, 64], sizes = [8, 32], strides = [1, 1]} : vector<8x96xf32> to vector<8x32xf32>
    %31 = arith.mulf %29, %15 : vector<8x32xf32>
    %32 = arith.mulf %28, %27 : vector<8x32xf32>
    %33 = arith.addf %31, %32 : vector<8x32xf32>
    %34 = math.tanh %33 : vector<8x32xf32>
    %35 = arith.mulf %30, %34 : vector<8x32xf32>
    %c0_17 = arith.constant 0 : index
    %c0_18 = arith.constant 0 : index
    %c0_19 = arith.constant 0 : index
    %36 = vector.load %arg13[%c0_17, %c0_18, %c0_19] : memref<8x8x32xf32, #tpu.memory_space<vmem>>, vector<8x1x32xf32>
    %37 = vector.shape_cast %36 : vector<8x1x32xf32> to vector<8x32xf32>
    %38 = vector.shape_cast %35 : vector<8x32xf32> to vector<8x1x32xf32>
    tpu.vector_store %arg13[%c0_17, %c0_18, %c0_19], %38 {strides = array<i32>} : memref<8x8x32xf32, #tpu.memory_space<vmem>>, vector<8x1x32xf32>,
    %39 = vector.extract_strided_slice %11 {offsets = [0, 1, 0], sizes = [8, 1, 128], strides = [1, 1, 1]} : vector<8x8x128xf32> to vector<8x1x128xf32>
    %40 = vector.shape_cast %39 : vector<8x1x128xf32> to vector<8x128xf32>
    %cst_20 = arith.constant dense<0.000000e+00> : vector<8x128xf32>
    %41 = tpu.matmul %35, %5, %cst_20 {dimension_numbers = #tpu.dot_dimension_numbers<[1], [0], [0], [1], [0, 0, 1, 1], [], []>} : vector<8x32xf32>, vector<32x128xf32>, vector<8x128xf32> -> vector<8x128xf32>
    %42 = arith.addf %40, %41 : vector<8x128xf32>
    %43 = vector.extract_strided_slice %42 {offsets = [0, 0], sizes = [8, 96], strides = [1, 1]} : vector<8x128xf32> to vector<8x96xf32>
    %44 = arith.negf %43 : vector<8x96xf32>
    %45 = math.exp %44 : vector<8x96xf32>
    %cst_21 = arith.constant 1.000000e+00 : f32
    %46 = vector.broadcast %cst_21 : f32 to vector<8x96xf32>
    %47 = arith.addf %46, %45 : vector<8x96xf32>
    %48 = arith.divf %46, %47 : vector<8x96xf32>
    %49 = vector.extract_strided_slice %42 {offsets = [0, 96], sizes = [8, 32], strides = [1, 1]} : vector<8x128xf32> to vector<8x32xf32>
    %50 = math.tanh %49 : vector<8x32xf32>
    %51 = vector.extract_strided_slice %48 {offsets = [0, 0], sizes = [8, 32], strides = [1, 1]} : vector<8x96xf32> to vector<8x32xf32>
    %52 = vector.extract_strided_slice %48 {offsets = [0, 32], sizes = [8, 32], strides = [1, 1]} : vector<8x96xf32> to vector<8x32xf32>
    %53 = vector.extract_strided_slice %48 {offsets = [0, 64], sizes = [8, 32], strides = [1, 1]} : vector<8x96xf32> to vector<8x32xf32>
    %54 = arith.mulf %52, %33 : vector<8x32xf32>
    %55 = arith.mulf %51, %50 : vector<8x32xf32>
    %56 = arith.addf %54, %55 : vector<8x32xf32>
    %57 = math.tanh %56 : vector<8x32xf32>
    %58 = arith.mulf %53, %57 : vector<8x32xf32>
    %c0_22 = arith.constant 0 : index
    %c1 = arith.constant 1 : index
    %c0_23 = arith.constant 0 : index
    %59 = vector.load %arg13[%c0_22, %c1, %c0_23] : memref<8x8x32xf32, #tpu.memory_space<vmem>>, vector<8x1x32xf32>
    %60 = vector.shape_cast %59 : vector<8x1x32xf32> to vector<8x32xf32>
    %61 = vector.shape_cast %58 : vector<8x32xf32> to vector<8x1x32xf32>
    tpu.vector_store %arg13[%c0_22, %c1, %c0_23], %61 {strides = array<i32>} : memref<8x8x32xf32, #tpu.memory_space<vmem>>, vector<8x1x32xf32>,
    %62 = vector.extract_strided_slice %11 {offsets = [0, 2, 0], sizes = [8, 1, 128], strides = [1, 1, 1]} : vector<8x8x128xf32> to vector<8x1x128xf32>
    %63 = vector.shape_cast %62 : vector<8x1x128xf32> to vector<8x128xf32>
    %cst_24 = arith.constant dense<0.000000e+00> : vector<8x128xf32>
    %64 = tpu.matmul %58, %5, %cst_24 {dimension_numbers = #tpu.dot_dimension_numbers<[1], [0], [0], [1], [0, 0, 1, 1], [], []>} : vector<8x32xf32>, vector<32x128xf32>, vector<8x128xf32> -> vector<8x128xf32>
    %65 = arith.addf %63, %64 : vector<8x128xf32>
    %66 = vector.extract_strided_slice %65 {offsets = [0, 0], sizes = [8, 96], strides = [1, 1]} : vector<8x128xf32> to vector<8x96xf32>
    %67 = arith.negf %66 : vector<8x96xf32>
    %68 = math.exp %67 : vector<8x96xf32>
    %cst_25 = arith.constant 1.000000e+00 : f32
    %69 = vector.broadcast %cst_25 : f32 to vector<8x96xf32>
    %70 = arith.addf %69, %68 : vector<8x96xf32>
    %71 = arith.divf %69, %70 : vector<8x96xf32>
    %72 = vector.extract_strided_slice %65 {offsets = [0, 96], sizes = [8, 32], strides = [1, 1]} : vector<8x128xf32> to vector<8x32xf32>
    %73 = math.tanh %72 : vector<8x32xf32>
    %74 = vector.extract_strided_slice %71 {offsets = [0, 0], sizes = [8, 32], strides = [1, 1]} : vector<8x96xf32> to vector<8x32xf32>
    %75 = vector.extract_strided_slice %71 {offsets = [0, 32], sizes = [8, 32], strides = [1, 1]} : vector<8x96xf32> to vector<8x32xf32>
    %76 = vector.extract_strided_slice %71 {offsets = [0, 64], sizes = [8, 32], strides = [1, 1]} : vector<8x96xf32> to vector<8x32xf32>
    %77 = arith.mulf %75, %56 : vector<8x32xf32>
    %78 = arith.mulf %74, %73 : vector<8x32xf32>
    %79 = arith.addf %77, %78 : vector<8x32xf32>
    %80 = math.tanh %79 : vector<8x32xf32>
    %81 = arith.mulf %76, %80 : vector<8x32xf32>
    %c0_26 = arith.constant 0 : index
    %c2 = arith.constant 2 : index
    %c0_27 = arith.constant 0 : index
    %82 = vector.load %arg13[%c0_26, %c2, %c0_27] : memref<8x8x32xf32, #tpu.memory_space<vmem>>, vector<8x1x32xf32>
    %83 = vector.shape_cast %82 : vector<8x1x32xf32> to vector<8x32xf32>
    %84 = vector.shape_cast %81 : vector<8x32xf32> to vector<8x1x32xf32>
    tpu.vector_store %arg13[%c0_26, %c2, %c0_27], %84 {strides = array<i32>} : memref<8x8x32xf32, #tpu.memory_space<vmem>>, vector<8x1x32xf32>,
    %85 = vector.extract_strided_slice %11 {offsets = [0, 3, 0], sizes = [8, 1, 128], strides = [1, 1, 1]} : vector<8x8x128xf32> to vector<8x1x128xf32>
    %86 = vector.shape_cast %85 : vector<8x1x128xf32> to vector<8x128xf32>
    %cst_28 = arith.constant dense<0.000000e+00> : vector<8x128xf32>
    %87 = tpu.matmul %81, %5, %cst_28 {dimension_numbers = #tpu.dot_dimension_numbers<[1], [0], [0], [1], [0, 0, 1, 1], [], []>} : vector<8x32xf32>, vector<32x128xf32>, vector<8x128xf32> -> vector<8x128xf32>
    %88 = arith.addf %86, %87 : vector<8x128xf32>
    %89 = vector.extract_strided_slice %88 {offsets = [0, 0], sizes = [8, 96], strides = [1, 1]} : vector<8x128xf32> to vector<8x96xf32>
    %90 = arith.negf %89 : vector<8x96xf32>
    %91 = math.exp %90 : vector<8x96xf32>
    %cst_29 = arith.constant 1.000000e+00 : f32
    %92 = vector.broadcast %cst_29 : f32 to vector<8x96xf32>
    %93 = arith.addf %92, %91 : vector<8x96xf32>
    %94 = arith.divf %92, %93 : vector<8x96xf32>
    %95 = vector.extract_strided_slice %88 {offsets = [0, 96], sizes = [8, 32], strides = [1, 1]} : vector<8x128xf32> to vector<8x32xf32>
    %96 = math.tanh %95 : vector<8x32xf32>
    %97 = vector.extract_strided_slice %94 {offsets = [0, 0], sizes = [8, 32], strides = [1, 1]} : vector<8x96xf32> to vector<8x32xf32>
    %98 = vector.extract_strided_slice %94 {offsets = [0, 32], sizes = [8, 32], strides = [1, 1]} : vector<8x96xf32> to vector<8x32xf32>
    %99 = vector.extract_strided_slice %94 {offsets = [0, 64], sizes = [8, 32], strides = [1, 1]} : vector<8x96xf32> to vector<8x32xf32>
    %100 = arith.mulf %98, %79 : vector<8x32xf32>
    %101 = arith.mulf %97, %96 : vector<8x32xf32>
    %102 = arith.addf %100, %101 : vector<8x32xf32>
    %103 = math.tanh %102 : vector<8x32xf32>
    %104 = arith.mulf %99, %103 : vector<8x32xf32>
    %c0_30 = arith.constant 0 : index
    %c3 = arith.constant 3 : index
    %c0_31 = arith.constant 0 : index
    %105 = vector.load %arg13[%c0_30, %c3, %c0_31] : memref<8x8x32xf32, #tpu.memory_space<vmem>>, vector<8x1x32xf32>
    %106 = vector.shape_cast %105 : vector<8x1x32xf32> to vector<8x32xf32>
    %107 = vector.shape_cast %104 : vector<8x32xf32> to vector<8x1x32xf32>
    tpu.vector_store %arg13[%c0_30, %c3, %c0_31], %107 {strides = array<i32>} : memref<8x8x32xf32, #tpu.memory_space<vmem>>, vector<8x1x32xf32>,
    %108 = vector.extract_strided_slice %11 {offsets = [0, 4, 0], sizes = [8, 1, 128], strides = [1, 1, 1]} : vector<8x8x128xf32> to vector<8x1x128xf32>
    %109 = vector.shape_cast %108 : vector<8x1x128xf32> to vector<8x128xf32>
    %cst_32 = arith.constant dense<0.000000e+00> : vector<8x128xf32>
    %110 = tpu.matmul %104, %5, %cst_32 {dimension_numbers = #tpu.dot_dimension_numbers<[1], [0], [0], [1], [0, 0, 1, 1], [], []>} : vector<8x32xf32>, vector<32x128xf32>, vector<8x128xf32> -> vector<8x128xf32>
    %111 = arith.addf %109, %110 : vector<8x128xf32>
    %112 = vector.extract_strided_slice %111 {offsets = [0, 0], sizes = [8, 96], strides = [1, 1]} : vector<8x128xf32> to vector<8x96xf32>
    %113 = arith.negf %112 : vector<8x96xf32>
    %114 = math.exp %113 : vector<8x96xf32>
    %cst_33 = arith.constant 1.000000e+00 : f32
    %115 = vector.broadcast %cst_33 : f32 to vector<8x96xf32>
    %116 = arith.addf %115, %114 : vector<8x96xf32>
    %117 = arith.divf %115, %116 : vector<8x96xf32>
    %118 = vector.extract_strided_slice %111 {offsets = [0, 96], sizes = [8, 32], strides = [1, 1]} : vector<8x128xf32> to vector<8x32xf32>
    %119 = math.tanh %118 : vector<8x32xf32>
    %120 = vector.extract_strided_slice %117 {offsets = [0, 0], sizes = [8, 32], strides = [1, 1]} : vector<8x96xf32> to vector<8x32xf32>
    %121 = vector.extract_strided_slice %117 {offsets = [0, 32], sizes = [8, 32], strides = [1, 1]} : vector<8x96xf32> to vector<8x32xf32>
    %122 = vector.extract_strided_slice %117 {offsets = [0, 64], sizes = [8, 32], strides = [1, 1]} : vector<8x96xf32> to vector<8x32xf32>
    %123 = arith.mulf %121, %102 : vector<8x32xf32>
    %124 = arith.mulf %120, %119 : vector<8x32xf32>
    %125 = arith.addf %123, %124 : vector<8x32xf32>
    %126 = math.tanh %125 : vector<8x32xf32>
    %127 = arith.mulf %122, %126 : vector<8x32xf32>
    %c0_34 = arith.constant 0 : index
    %c4 = arith.constant 4 : index
    %c0_35 = arith.constant 0 : index
    %128 = vector.load %arg13[%c0_34, %c4, %c0_35] : memref<8x8x32xf32, #tpu.memory_space<vmem>>, vector<8x1x32xf32>
    %129 = vector.shape_cast %128 : vector<8x1x32xf32> to vector<8x32xf32>
    %130 = vector.shape_cast %127 : vector<8x32xf32> to vector<8x1x32xf32>
    tpu.vector_store %arg13[%c0_34, %c4, %c0_35], %130 {strides = array<i32>} : memref<8x8x32xf32, #tpu.memory_space<vmem>>, vector<8x1x32xf32>,
    %131 = vector.extract_strided_slice %11 {offsets = [0, 5, 0], sizes = [8, 1, 128], strides = [1, 1, 1]} : vector<8x8x128xf32> to vector<8x1x128xf32>
    %132 = vector.shape_cast %131 : vector<8x1x128xf32> to vector<8x128xf32>
    %cst_36 = arith.constant dense<0.000000e+00> : vector<8x128xf32>
    %133 = tpu.matmul %127, %5, %cst_36 {dimension_numbers = #tpu.dot_dimension_numbers<[1], [0], [0], [1], [0, 0, 1, 1], [], []>} : vector<8x32xf32>, vector<32x128xf32>, vector<8x128xf32> -> vector<8x128xf32>
    %134 = arith.addf %132, %133 : vector<8x128xf32>
    %135 = vector.extract_strided_slice %134 {offsets = [0, 0], sizes = [8, 96], strides = [1, 1]} : vector<8x128xf32> to vector<8x96xf32>
    %136 = arith.negf %135 : vector<8x96xf32>
    %137 = math.exp %136 : vector<8x96xf32>
    %cst_37 = arith.constant 1.000000e+00 : f32
    %138 = vector.broadcast %cst_37 : f32 to vector<8x96xf32>
    %139 = arith.addf %138, %137 : vector<8x96xf32>
    %140 = arith.divf %138, %139 : vector<8x96xf32>
    %141 = vector.extract_strided_slice %134 {offsets = [0, 96], sizes = [8, 32], strides = [1, 1]} : vector<8x128xf32> to vector<8x32xf32>
    %142 = math.tanh %141 : vector<8x32xf32>
    %143 = vector.extract_strided_slice %140 {offsets = [0, 0], sizes = [8, 32], strides = [1, 1]} : vector<8x96xf32> to vector<8x32xf32>
    %144 = vector.extract_strided_slice %140 {offsets = [0, 32], sizes = [8, 32], strides = [1, 1]} : vector<8x96xf32> to vector<8x32xf32>
    %145 = vector.extract_strided_slice %140 {offsets = [0, 64], sizes = [8, 32], strides = [1, 1]} : vector<8x96xf32> to vector<8x32xf32>
    %146 = arith.mulf %144, %125 : vector<8x32xf32>
    %147 = arith.mulf %143, %142 : vector<8x32xf32>
    %148 = arith.addf %146, %147 : vector<8x32xf32>
    %149 = math.tanh %148 : vector<8x32xf32>
    %150 = arith.mulf %145, %149 : vector<8x32xf32>
    %c0_38 = arith.constant 0 : index
    %c5 = arith.constant 5 : index
    %c0_39 = arith.constant 0 : index
    %151 = vector.load %arg13[%c0_38, %c5, %c0_39] : memref<8x8x32xf32, #tpu.memory_space<vmem>>, vector<8x1x32xf32>
    %152 = vector.shape_cast %151 : vector<8x1x32xf32> to vector<8x32xf32>
    %153 = vector.shape_cast %150 : vector<8x32xf32> to vector<8x1x32xf32>
    tpu.vector_store %arg13[%c0_38, %c5, %c0_39], %153 {strides = array<i32>} : memref<8x8x32xf32, #tpu.memory_space<vmem>>, vector<8x1x32xf32>,
    %154 = vector.extract_strided_slice %11 {offsets = [0, 6, 0], sizes = [8, 1, 128], strides = [1, 1, 1]} : vector<8x8x128xf32> to vector<8x1x128xf32>
    %155 = vector.shape_cast %154 : vector<8x1x128xf32> to vector<8x128xf32>
    %cst_40 = arith.constant dense<0.000000e+00> : vector<8x128xf32>
    %156 = tpu.matmul %150, %5, %cst_40 {dimension_numbers = #tpu.dot_dimension_numbers<[1], [0], [0], [1], [0, 0, 1, 1], [], []>} : vector<8x32xf32>, vector<32x128xf32>, vector<8x128xf32> -> vector<8x128xf32>
    %157 = arith.addf %155, %156 : vector<8x128xf32>
    %158 = vector.extract_strided_slice %157 {offsets = [0, 0], sizes = [8, 96], strides = [1, 1]} : vector<8x128xf32> to vector<8x96xf32>
    %159 = arith.negf %158 : vector<8x96xf32>
    %160 = math.exp %159 : vector<8x96xf32>
    %cst_41 = arith.constant 1.000000e+00 : f32
    %161 = vector.broadcast %cst_41 : f32 to vector<8x96xf32>
    %162 = arith.addf %161, %160 : vector<8x96xf32>
    %163 = arith.divf %161, %162 : vector<8x96xf32>
    %164 = vector.extract_strided_slice %157 {offsets = [0, 96], sizes = [8, 32], strides = [1, 1]} : vector<8x128xf32> to vector<8x32xf32>
    %165 = math.tanh %164 : vector<8x32xf32>
    %166 = vector.extract_strided_slice %163 {offsets = [0, 0], sizes = [8, 32], strides = [1, 1]} : vector<8x96xf32> to vector<8x32xf32>
    %167 = vector.extract_strided_slice %163 {offsets = [0, 32], sizes = [8, 32], strides = [1, 1]} : vector<8x96xf32> to vector<8x32xf32>
    %168 = vector.extract_strided_slice %163 {offsets = [0, 64], sizes = [8, 32], strides = [1, 1]} : vector<8x96xf32> to vector<8x32xf32>
    %169 = arith.mulf %167, %148 : vector<8x32xf32>
    %170 = arith.mulf %166, %165 : vector<8x32xf32>
    %171 = arith.addf %169, %170 : vector<8x32xf32>
    %172 = math.tanh %171 : vector<8x32xf32>
    %173 = arith.mulf %168, %172 : vector<8x32xf32>
    %c0_42 = arith.constant 0 : index
    %c6 = arith.constant 6 : index
    %c0_43 = arith.constant 0 : index
    %174 = vector.load %arg13[%c0_42, %c6, %c0_43] : memref<8x8x32xf32, #tpu.memory_space<vmem>>, vector<8x1x32xf32>
    %175 = vector.shape_cast %174 : vector<8x1x32xf32> to vector<8x32xf32>
    %176 = vector.shape_cast %173 : vector<8x32xf32> to vector<8x1x32xf32>
    tpu.vector_store %arg13[%c0_42, %c6, %c0_43], %176 {strides = array<i32>} : memref<8x8x32xf32, #tpu.memory_space<vmem>>, vector<8x1x32xf32>,
    %177 = vector.extract_strided_slice %11 {offsets = [0, 7, 0], sizes = [8, 1, 128], strides = [1, 1, 1]} : vector<8x8x128xf32> to vector<8x1x128xf32>
    %178 = vector.shape_cast %177 : vector<8x1x128xf32> to vector<8x128xf32>
    %cst_44 = arith.constant dense<0.000000e+00> : vector<8x128xf32>
    %179 = tpu.matmul %173, %5, %cst_44 {dimension_numbers = #tpu.dot_dimension_numbers<[1], [0], [0], [1], [0, 0, 1, 1], [], []>} : vector<8x32xf32>, vector<32x128xf32>, vector<8x128xf32> -> vector<8x128xf32>
    %180 = arith.addf %178, %179 : vector<8x128xf32>
    %181 = vector.extract_strided_slice %180 {offsets = [0, 0], sizes = [8, 96], strides = [1, 1]} : vector<8x128xf32> to vector<8x96xf32>
    %182 = arith.negf %181 : vector<8x96xf32>
    %183 = math.exp %182 : vector<8x96xf32>
    %cst_45 = arith.constant 1.000000e+00 : f32
    %184 = vector.broadcast %cst_45 : f32 to vector<8x96xf32>
    %185 = arith.addf %184, %183 : vector<8x96xf32>
    %186 = arith.divf %184, %185 : vector<8x96xf32>
    %187 = vector.extract_strided_slice %180 {offsets = [0, 96], sizes = [8, 32], strides = [1, 1]} : vector<8x128xf32> to vector<8x32xf32>
    %188 = math.tanh %187 : vector<8x32xf32>
    %189 = vector.extract_strided_slice %186 {offsets = [0, 0], sizes = [8, 32], strides = [1, 1]} : vector<8x96xf32> to vector<8x32xf32>
    %190 = vector.extract_strided_slice %186 {offsets = [0, 32], sizes = [8, 32], strides = [1, 1]} : vector<8x96xf32> to vector<8x32xf32>
    %191 = vector.extract_strided_slice %186 {offsets = [0, 64], sizes = [8, 32], strides = [1, 1]} : vector<8x96xf32> to vector<8x32xf32>
    %192 = arith.mulf %190, %171 : vector<8x32xf32>
    %193 = arith.mulf %189, %188 : vector<8x32xf32>
    %194 = arith.addf %192, %193 : vector<8x32xf32>
    %195 = math.tanh %194 : vector<8x32xf32>
    %196 = arith.mulf %191, %195 : vector<8x32xf32>
    %c0_46 = arith.constant 0 : index
    %c7 = arith.constant 7 : index
    %c0_47 = arith.constant 0 : index
    %197 = vector.load %arg13[%c0_46, %c7, %c0_47] : memref<8x8x32xf32, #tpu.memory_space<vmem>>, vector<8x1x32xf32>
    %198 = vector.shape_cast %197 : vector<8x1x32xf32> to vector<8x32xf32>
    %199 = vector.shape_cast %196 : vector<8x32xf32> to vector<8x1x32xf32>
    tpu.vector_store %arg13[%c0_46, %c7, %c0_47], %199 {strides = array<i32>} : memref<8x8x32xf32, #tpu.memory_space<vmem>>, vector<8x1x32xf32>,
    %c0_48 = arith.constant 0 : index
    %c0_49 = arith.constant 0 : index
    %c0_50 = arith.constant 0 : index
    %200 = vector.load %arg11[%c0_48, %c0_49, %c0_50] : memref<2x8x32xf32, #tpu.memory_space<vmem>>, vector<1x8x32xf32>
    %201 = vector.shape_cast %200 : vector<1x8x32xf32> to vector<8x32xf32>
    %202 = vector.shape_cast %196 : vector<8x32xf32> to vector<1x8x32xf32>
    tpu.vector_store %arg11[%c0_48, %c0_49, %c0_50], %202 {strides = array<i32>} : memref<2x8x32xf32, #tpu.memory_space<vmem>>, vector<1x8x32xf32>,
    %c0_51 = arith.constant 0 : index
    %c0_52 = arith.constant 0 : index
    %c0_53 = arith.constant 0 : index
    %203 = vector.load %arg12[%c0_51, %c0_52, %c0_53] : memref<2x8x32xf32, #tpu.memory_space<vmem>>, vector<1x8x32xf32>
    %204 = vector.shape_cast %203 : vector<1x8x32xf32> to vector<8x32xf32>
    %205 = vector.shape_cast %194 : vector<8x32xf32> to vector<1x8x32xf32>
    tpu.vector_store %arg12[%c0_51, %c0_52, %c0_53], %205 {strides = array<i32>} : memref<2x8x32xf32, #tpu.memory_space<vmem>>, vector<1x8x32xf32>,
    %c0_54 = arith.constant 0 : index
    %c0_55 = arith.constant 0 : index
    %c0_56 = arith.constant 0 : index
    %206 = vector.load %arg13[%c0_54, %c0_55, %c0_56] : memref<8x8x32xf32, #tpu.memory_space<vmem>>, vector<8x8x32xf32>
    %c0_57 = arith.constant 0 : index
    %c0_58 = arith.constant 0 : index
    %207 = vector.load %arg5[%c0_57, %c0_58] : memref<32x128xf32, #tpu.memory_space<vmem>>, vector<32x128xf32>
    %c0_59 = arith.constant 0 : index
    %c0_60 = arith.constant 0 : index
    %208 = vector.load %arg6[%c0_59, %c0_60] : memref<32x128xf32, #tpu.memory_space<vmem>>, vector<32x128xf32>
    %c0_61 = arith.constant 0 : index
    %c0_62 = arith.constant 0 : index
    %209 = vector.load %arg7[%c0_61, %c0_62] : memref<1x128xf32, #tpu.memory_space<vmem>>, vector<1x128xf32>
    %210 = vector.shape_cast %206 : vector<8x8x32xf32> to vector<64x32xf32>
    %cst_63 = arith.constant dense<0.000000e+00> : vector<64x128xf32>
    %211 = tpu.matmul %210, %207, %cst_63 {dimension_numbers = #tpu.dot_dimension_numbers<[1], [0], [0], [1], [0, 0, 1, 1], [], []>} : vector<64x32xf32>, vector<32x128xf32>, vector<64x128xf32> -> vector<64x128xf32>
    %212 = vector.broadcast %209 : vector<1x128xf32> to vector<64x128xf32>
    %213 = arith.addf %211, %212 : vector<64x128xf32>
    %214 = vector.shape_cast %213 : vector<64x128xf32> to vector<8x8x128xf32>
    %c1_64 = arith.constant 1 : index
    %c0_65 = arith.constant 0 : index
    %c0_66 = arith.constant 0 : index
    %215 = vector.load %arg11[%c1_64, %c0_65, %c0_66] : memref<2x8x32xf32, #tpu.memory_space<vmem>>, vector<1x8x32xf32>
    %216 = vector.shape_cast %215 : vector<1x8x32xf32> to vector<8x32xf32>
    %c1_67 = arith.constant 1 : index
    %c0_68 = arith.constant 0 : index
    %c0_69 = arith.constant 0 : index
    %217 = vector.load %arg12[%c1_67, %c0_68, %c0_69] : memref<2x8x32xf32, #tpu.memory_space<vmem>>, vector<1x8x32xf32>
    %218 = vector.shape_cast %217 : vector<1x8x32xf32> to vector<8x32xf32>
    %219 = vector.extract_strided_slice %214 {offsets = [0, 0, 0], sizes = [8, 1, 128], strides = [1, 1, 1]} : vector<8x8x128xf32> to vector<8x1x128xf32>
    %220 = vector.shape_cast %219 : vector<8x1x128xf32> to vector<8x128xf32>
    %cst_70 = arith.constant dense<0.000000e+00> : vector<8x128xf32>
    %221 = tpu.matmul %216, %208, %cst_70 {dimension_numbers = #tpu.dot_dimension_numbers<[1], [0], [0], [1], [0, 0, 1, 1], [], []>} : vector<8x32xf32>, vector<32x128xf32>, vector<8x128xf32> -> vector<8x128xf32>
    %222 = arith.addf %220, %221 : vector<8x128xf32>
    %223 = vector.extract_strided_slice %222 {offsets = [0, 0], sizes = [8, 96], strides = [1, 1]} : vector<8x128xf32> to vector<8x96xf32>
    %224 = arith.negf %223 : vector<8x96xf32>
    %225 = math.exp %224 : vector<8x96xf32>
    %cst_71 = arith.constant 1.000000e+00 : f32
    %226 = vector.broadcast %cst_71 : f32 to vector<8x96xf32>
    %227 = arith.addf %226, %225 : vector<8x96xf32>
    %228 = arith.divf %226, %227 : vector<8x96xf32>
    %229 = vector.extract_strided_slice %222 {offsets = [0, 96], sizes = [8, 32], strides = [1, 1]} : vector<8x128xf32> to vector<8x32xf32>
    %230 = math.tanh %229 : vector<8x32xf32>
    %231 = vector.extract_strided_slice %228 {offsets = [0, 0], sizes = [8, 32], strides = [1, 1]} : vector<8x96xf32> to vector<8x32xf32>
    %232 = vector.extract_strided_slice %228 {offsets = [0, 32], sizes = [8, 32], strides = [1, 1]} : vector<8x96xf32> to vector<8x32xf32>
    %233 = vector.extract_strided_slice %228 {offsets = [0, 64], sizes = [8, 32], strides = [1, 1]} : vector<8x96xf32> to vector<8x32xf32>
    %234 = arith.mulf %232, %218 : vector<8x32xf32>
    %235 = arith.mulf %231, %230 : vector<8x32xf32>
    %236 = arith.addf %234, %235 : vector<8x32xf32>
    %237 = math.tanh %236 : vector<8x32xf32>
    %238 = arith.mulf %233, %237 : vector<8x32xf32>
    %c0_72 = arith.constant 0 : index
    %c0_73 = arith.constant 0 : index
    %c0_74 = arith.constant 0 : index
    %239 = vector.load %arg13[%c0_72, %c0_73, %c0_74] : memref<8x8x32xf32, #tpu.memory_space<vmem>>, vector<8x1x32xf32>
    %240 = vector.shape_cast %239 : vector<8x1x32xf32> to vector<8x32xf32>
    %241 = vector.shape_cast %238 : vector<8x32xf32> to vector<8x1x32xf32>
    tpu.vector_store %arg13[%c0_72, %c0_73, %c0_74], %241 {strides = array<i32>} : memref<8x8x32xf32, #tpu.memory_space<vmem>>, vector<8x1x32xf32>,
    %242 = vector.extract_strided_slice %214 {offsets = [0, 1, 0], sizes = [8, 1, 128], strides = [1, 1, 1]} : vector<8x8x128xf32> to vector<8x1x128xf32>
    %243 = vector.shape_cast %242 : vector<8x1x128xf32> to vector<8x128xf32>
    %cst_75 = arith.constant dense<0.000000e+00> : vector<8x128xf32>
    %244 = tpu.matmul %238, %208, %cst_75 {dimension_numbers = #tpu.dot_dimension_numbers<[1], [0], [0], [1], [0, 0, 1, 1], [], []>} : vector<8x32xf32>, vector<32x128xf32>, vector<8x128xf32> -> vector<8x128xf32>
    %245 = arith.addf %243, %244 : vector<8x128xf32>
    %246 = vector.extract_strided_slice %245 {offsets = [0, 0], sizes = [8, 96], strides = [1, 1]} : vector<8x128xf32> to vector<8x96xf32>
    %247 = arith.negf %246 : vector<8x96xf32>
    %248 = math.exp %247 : vector<8x96xf32>
    %cst_76 = arith.constant 1.000000e+00 : f32
    %249 = vector.broadcast %cst_76 : f32 to vector<8x96xf32>
    %250 = arith.addf %249, %248 : vector<8x96xf32>
    %251 = arith.divf %249, %250 : vector<8x96xf32>
    %252 = vector.extract_strided_slice %245 {offsets = [0, 96], sizes = [8, 32], strides = [1, 1]} : vector<8x128xf32> to vector<8x32xf32>
    %253 = math.tanh %252 : vector<8x32xf32>
    %254 = vector.extract_strided_slice %251 {offsets = [0, 0], sizes = [8, 32], strides = [1, 1]} : vector<8x96xf32> to vector<8x32xf32>
    %255 = vector.extract_strided_slice %251 {offsets = [0, 32], sizes = [8, 32], strides = [1, 1]} : vector<8x96xf32> to vector<8x32xf32>
    %256 = vector.extract_strided_slice %251 {offsets = [0, 64], sizes = [8, 32], strides = [1, 1]} : vector<8x96xf32> to vector<8x32xf32>
    %257 = arith.mulf %255, %236 : vector<8x32xf32>
    %258 = arith.mulf %254, %253 : vector<8x32xf32>
    %259 = arith.addf %257, %258 : vector<8x32xf32>
    %260 = math.tanh %259 : vector<8x32xf32>
    %261 = arith.mulf %256, %260 : vector<8x32xf32>
    %c0_77 = arith.constant 0 : index
    %c1_78 = arith.constant 1 : index
    %c0_79 = arith.constant 0 : index
    %262 = vector.load %arg13[%c0_77, %c1_78, %c0_79] : memref<8x8x32xf32, #tpu.memory_space<vmem>>, vector<8x1x32xf32>
    %263 = vector.shape_cast %262 : vector<8x1x32xf32> to vector<8x32xf32>
    %264 = vector.shape_cast %261 : vector<8x32xf32> to vector<8x1x32xf32>
    tpu.vector_store %arg13[%c0_77, %c1_78, %c0_79], %264 {strides = array<i32>} : memref<8x8x32xf32, #tpu.memory_space<vmem>>, vector<8x1x32xf32>,
    %265 = vector.extract_strided_slice %214 {offsets = [0, 2, 0], sizes = [8, 1, 128], strides = [1, 1, 1]} : vector<8x8x128xf32> to vector<8x1x128xf32>
    %266 = vector.shape_cast %265 : vector<8x1x128xf32> to vector<8x128xf32>
    %cst_80 = arith.constant dense<0.000000e+00> : vector<8x128xf32>
    %267 = tpu.matmul %261, %208, %cst_80 {dimension_numbers = #tpu.dot_dimension_numbers<[1], [0], [0], [1], [0, 0, 1, 1], [], []>} : vector<8x32xf32>, vector<32x128xf32>, vector<8x128xf32> -> vector<8x128xf32>
    %268 = arith.addf %266, %267 : vector<8x128xf32>
    %269 = vector.extract_strided_slice %268 {offsets = [0, 0], sizes = [8, 96], strides = [1, 1]} : vector<8x128xf32> to vector<8x96xf32>
    %270 = arith.negf %269 : vector<8x96xf32>
    %271 = math.exp %270 : vector<8x96xf32>
    %cst_81 = arith.constant 1.000000e+00 : f32
    %272 = vector.broadcast %cst_81 : f32 to vector<8x96xf32>
    %273 = arith.addf %272, %271 : vector<8x96xf32>
    %274 = arith.divf %272, %273 : vector<8x96xf32>
    %275 = vector.extract_strided_slice %268 {offsets = [0, 96], sizes = [8, 32], strides = [1, 1]} : vector<8x128xf32> to vector<8x32xf32>
    %276 = math.tanh %275 : vector<8x32xf32>
    %277 = vector.extract_strided_slice %274 {offsets = [0, 0], sizes = [8, 32], strides = [1, 1]} : vector<8x96xf32> to vector<8x32xf32>
    %278 = vector.extract_strided_slice %274 {offsets = [0, 32], sizes = [8, 32], strides = [1, 1]} : vector<8x96xf32> to vector<8x32xf32>
    %279 = vector.extract_strided_slice %274 {offsets = [0, 64], sizes = [8, 32], strides = [1, 1]} : vector<8x96xf32> to vector<8x32xf32>
    %280 = arith.mulf %278, %259 : vector<8x32xf32>
    %281 = arith.mulf %277, %276 : vector<8x32xf32>
    %282 = arith.addf %280, %281 : vector<8x32xf32>
    %283 = math.tanh %282 : vector<8x32xf32>
    %284 = arith.mulf %279, %283 : vector<8x32xf32>
    %c0_82 = arith.constant 0 : index
    %c2_83 = arith.constant 2 : index
    %c0_84 = arith.constant 0 : index
    %285 = vector.load %arg13[%c0_82, %c2_83, %c0_84] : memref<8x8x32xf32, #tpu.memory_space<vmem>>, vector<8x1x32xf32>
    %286 = vector.shape_cast %285 : vector<8x1x32xf32> to vector<8x32xf32>
    %287 = vector.shape_cast %284 : vector<8x32xf32> to vector<8x1x32xf32>
    tpu.vector_store %arg13[%c0_82, %c2_83, %c0_84], %287 {strides = array<i32>} : memref<8x8x32xf32, #tpu.memory_space<vmem>>, vector<8x1x32xf32>,
    %288 = vector.extract_strided_slice %214 {offsets = [0, 3, 0], sizes = [8, 1, 128], strides = [1, 1, 1]} : vector<8x8x128xf32> to vector<8x1x128xf32>
    %289 = vector.shape_cast %288 : vector<8x1x128xf32> to vector<8x128xf32>
    %cst_85 = arith.constant dense<0.000000e+00> : vector<8x128xf32>
    %290 = tpu.matmul %284, %208, %cst_85 {dimension_numbers = #tpu.dot_dimension_numbers<[1], [0], [0], [1], [0, 0, 1, 1], [], []>} : vector<8x32xf32>, vector<32x128xf32>, vector<8x128xf32> -> vector<8x128xf32>
    %291 = arith.addf %289, %290 : vector<8x128xf32>
    %292 = vector.extract_strided_slice %291 {offsets = [0, 0], sizes = [8, 96], strides = [1, 1]} : vector<8x128xf32> to vector<8x96xf32>
    %293 = arith.negf %292 : vector<8x96xf32>
    %294 = math.exp %293 : vector<8x96xf32>
    %cst_86 = arith.constant 1.000000e+00 : f32
    %295 = vector.broadcast %cst_86 : f32 to vector<8x96xf32>
    %296 = arith.addf %295, %294 : vector<8x96xf32>
    %297 = arith.divf %295, %296 : vector<8x96xf32>
    %298 = vector.extract_strided_slice %291 {offsets = [0, 96], sizes = [8, 32], strides = [1, 1]} : vector<8x128xf32> to vector<8x32xf32>
    %299 = math.tanh %298 : vector<8x32xf32>
    %300 = vector.extract_strided_slice %297 {offsets = [0, 0], sizes = [8, 32], strides = [1, 1]} : vector<8x96xf32> to vector<8x32xf32>
    %301 = vector.extract_strided_slice %297 {offsets = [0, 32], sizes = [8, 32], strides = [1, 1]} : vector<8x96xf32> to vector<8x32xf32>
    %302 = vector.extract_strided_slice %297 {offsets = [0, 64], sizes = [8, 32], strides = [1, 1]} : vector<8x96xf32> to vector<8x32xf32>
    %303 = arith.mulf %301, %282 : vector<8x32xf32>
    %304 = arith.mulf %300, %299 : vector<8x32xf32>
    %305 = arith.addf %303, %304 : vector<8x32xf32>
    %306 = math.tanh %305 : vector<8x32xf32>
    %307 = arith.mulf %302, %306 : vector<8x32xf32>
    %c0_87 = arith.constant 0 : index
    %c3_88 = arith.constant 3 : index
    %c0_89 = arith.constant 0 : index
    %308 = vector.load %arg13[%c0_87, %c3_88, %c0_89] : memref<8x8x32xf32, #tpu.memory_space<vmem>>, vector<8x1x32xf32>
    %309 = vector.shape_cast %308 : vector<8x1x32xf32> to vector<8x32xf32>
    %310 = vector.shape_cast %307 : vector<8x32xf32> to vector<8x1x32xf32>
    tpu.vector_store %arg13[%c0_87, %c3_88, %c0_89], %310 {strides = array<i32>} : memref<8x8x32xf32, #tpu.memory_space<vmem>>, vector<8x1x32xf32>,
    %311 = vector.extract_strided_slice %214 {offsets = [0, 4, 0], sizes = [8, 1, 128], strides = [1, 1, 1]} : vector<8x8x128xf32> to vector<8x1x128xf32>
    %312 = vector.shape_cast %311 : vector<8x1x128xf32> to vector<8x128xf32>
    %cst_90 = arith.constant dense<0.000000e+00> : vector<8x128xf32>
    %313 = tpu.matmul %307, %208, %cst_90 {dimension_numbers = #tpu.dot_dimension_numbers<[1], [0], [0], [1], [0, 0, 1, 1], [], []>} : vector<8x32xf32>, vector<32x128xf32>, vector<8x128xf32> -> vector<8x128xf32>
    %314 = arith.addf %312, %313 : vector<8x128xf32>
    %315 = vector.extract_strided_slice %314 {offsets = [0, 0], sizes = [8, 96], strides = [1, 1]} : vector<8x128xf32> to vector<8x96xf32>
    %316 = arith.negf %315 : vector<8x96xf32>
    %317 = math.exp %316 : vector<8x96xf32>
    %cst_91 = arith.constant 1.000000e+00 : f32
    %318 = vector.broadcast %cst_91 : f32 to vector<8x96xf32>
    %319 = arith.addf %318, %317 : vector<8x96xf32>
    %320 = arith.divf %318, %319 : vector<8x96xf32>
    %321 = vector.extract_strided_slice %314 {offsets = [0, 96], sizes = [8, 32], strides = [1, 1]} : vector<8x128xf32> to vector<8x32xf32>
    %322 = math.tanh %321 : vector<8x32xf32>
    %323 = vector.extract_strided_slice %320 {offsets = [0, 0], sizes = [8, 32], strides = [1, 1]} : vector<8x96xf32> to vector<8x32xf32>
    %324 = vector.extract_strided_slice %320 {offsets = [0, 32], sizes = [8, 32], strides = [1, 1]} : vector<8x96xf32> to vector<8x32xf32>
    %325 = vector.extract_strided_slice %320 {offsets = [0, 64], sizes = [8, 32], strides = [1, 1]} : vector<8x96xf32> to vector<8x32xf32>
    %326 = arith.mulf %324, %305 : vector<8x32xf32>
    %327 = arith.mulf %323, %322 : vector<8x32xf32>
    %328 = arith.addf %326, %327 : vector<8x32xf32>
    %329 = math.tanh %328 : vector<8x32xf32>
    %330 = arith.mulf %325, %329 : vector<8x32xf32>
    %c0_92 = arith.constant 0 : index
    %c4_93 = arith.constant 4 : index
    %c0_94 = arith.constant 0 : index
    %331 = vector.load %arg13[%c0_92, %c4_93, %c0_94] : memref<8x8x32xf32, #tpu.memory_space<vmem>>, vector<8x1x32xf32>
    %332 = vector.shape_cast %331 : vector<8x1x32xf32> to vector<8x32xf32>
    %333 = vector.shape_cast %330 : vector<8x32xf32> to vector<8x1x32xf32>
    tpu.vector_store %arg13[%c0_92, %c4_93, %c0_94], %333 {strides = array<i32>} : memref<8x8x32xf32, #tpu.memory_space<vmem>>, vector<8x1x32xf32>,
    %334 = vector.extract_strided_slice %214 {offsets = [0, 5, 0], sizes = [8, 1, 128], strides = [1, 1, 1]} : vector<8x8x128xf32> to vector<8x1x128xf32>
    %335 = vector.shape_cast %334 : vector<8x1x128xf32> to vector<8x128xf32>
    %cst_95 = arith.constant dense<0.000000e+00> : vector<8x128xf32>
    %336 = tpu.matmul %330, %208, %cst_95 {dimension_numbers = #tpu.dot_dimension_numbers<[1], [0], [0], [1], [0, 0, 1, 1], [], []>} : vector<8x32xf32>, vector<32x128xf32>, vector<8x128xf32> -> vector<8x128xf32>
    %337 = arith.addf %335, %336 : vector<8x128xf32>
    %338 = vector.extract_strided_slice %337 {offsets = [0, 0], sizes = [8, 96], strides = [1, 1]} : vector<8x128xf32> to vector<8x96xf32>
    %339 = arith.negf %338 : vector<8x96xf32>
    %340 = math.exp %339 : vector<8x96xf32>
    %cst_96 = arith.constant 1.000000e+00 : f32
    %341 = vector.broadcast %cst_96 : f32 to vector<8x96xf32>
    %342 = arith.addf %341, %340 : vector<8x96xf32>
    %343 = arith.divf %341, %342 : vector<8x96xf32>
    %344 = vector.extract_strided_slice %337 {offsets = [0, 96], sizes = [8, 32], strides = [1, 1]} : vector<8x128xf32> to vector<8x32xf32>
    %345 = math.tanh %344 : vector<8x32xf32>
    %346 = vector.extract_strided_slice %343 {offsets = [0, 0], sizes = [8, 32], strides = [1, 1]} : vector<8x96xf32> to vector<8x32xf32>
    %347 = vector.extract_strided_slice %343 {offsets = [0, 32], sizes = [8, 32], strides = [1, 1]} : vector<8x96xf32> to vector<8x32xf32>
    %348 = vector.extract_strided_slice %343 {offsets = [0, 64], sizes = [8, 32], strides = [1, 1]} : vector<8x96xf32> to vector<8x32xf32>
    %349 = arith.mulf %347, %328 : vector<8x32xf32>
    %350 = arith.mulf %346, %345 : vector<8x32xf32>
    %351 = arith.addf %349, %350 : vector<8x32xf32>
    %352 = math.tanh %351 : vector<8x32xf32>
    %353 = arith.mulf %348, %352 : vector<8x32xf32>
    %c0_97 = arith.constant 0 : index
    %c5_98 = arith.constant 5 : index
    %c0_99 = arith.constant 0 : index
    %354 = vector.load %arg13[%c0_97, %c5_98, %c0_99] : memref<8x8x32xf32, #tpu.memory_space<vmem>>, vector<8x1x32xf32>
    %355 = vector.shape_cast %354 : vector<8x1x32xf32> to vector<8x32xf32>
    %356 = vector.shape_cast %353 : vector<8x32xf32> to vector<8x1x32xf32>
    tpu.vector_store %arg13[%c0_97, %c5_98, %c0_99], %356 {strides = array<i32>} : memref<8x8x32xf32, #tpu.memory_space<vmem>>, vector<8x1x32xf32>,
    %357 = vector.extract_strided_slice %214 {offsets = [0, 6, 0], sizes = [8, 1, 128], strides = [1, 1, 1]} : vector<8x8x128xf32> to vector<8x1x128xf32>
    %358 = vector.shape_cast %357 : vector<8x1x128xf32> to vector<8x128xf32>
    %cst_100 = arith.constant dense<0.000000e+00> : vector<8x128xf32>
    %359 = tpu.matmul %353, %208, %cst_100 {dimension_numbers = #tpu.dot_dimension_numbers<[1], [0], [0], [1], [0, 0, 1, 1], [], []>} : vector<8x32xf32>, vector<32x128xf32>, vector<8x128xf32> -> vector<8x128xf32>
    %360 = arith.addf %358, %359 : vector<8x128xf32>
    %361 = vector.extract_strided_slice %360 {offsets = [0, 0], sizes = [8, 96], strides = [1, 1]} : vector<8x128xf32> to vector<8x96xf32>
    %362 = arith.negf %361 : vector<8x96xf32>
    %363 = math.exp %362 : vector<8x96xf32>
    %cst_101 = arith.constant 1.000000e+00 : f32
    %364 = vector.broadcast %cst_101 : f32 to vector<8x96xf32>
    %365 = arith.addf %364, %363 : vector<8x96xf32>
    %366 = arith.divf %364, %365 : vector<8x96xf32>
    %367 = vector.extract_strided_slice %360 {offsets = [0, 96], sizes = [8, 32], strides = [1, 1]} : vector<8x128xf32> to vector<8x32xf32>
    %368 = math.tanh %367 : vector<8x32xf32>
    %369 = vector.extract_strided_slice %366 {offsets = [0, 0], sizes = [8, 32], strides = [1, 1]} : vector<8x96xf32> to vector<8x32xf32>
    %370 = vector.extract_strided_slice %366 {offsets = [0, 32], sizes = [8, 32], strides = [1, 1]} : vector<8x96xf32> to vector<8x32xf32>
    %371 = vector.extract_strided_slice %366 {offsets = [0, 64], sizes = [8, 32], strides = [1, 1]} : vector<8x96xf32> to vector<8x32xf32>
    %372 = arith.mulf %370, %351 : vector<8x32xf32>
    %373 = arith.mulf %369, %368 : vector<8x32xf32>
    %374 = arith.addf %372, %373 : vector<8x32xf32>
    %375 = math.tanh %374 : vector<8x32xf32>
    %376 = arith.mulf %371, %375 : vector<8x32xf32>
    %c0_102 = arith.constant 0 : index
    %c6_103 = arith.constant 6 : index
    %c0_104 = arith.constant 0 : index
    %377 = vector.load %arg13[%c0_102, %c6_103, %c0_104] : memref<8x8x32xf32, #tpu.memory_space<vmem>>, vector<8x1x32xf32>
    %378 = vector.shape_cast %377 : vector<8x1x32xf32> to vector<8x32xf32>
    %379 = vector.shape_cast %376 : vector<8x32xf32> to vector<8x1x32xf32>
    tpu.vector_store %arg13[%c0_102, %c6_103, %c0_104], %379 {strides = array<i32>} : memref<8x8x32xf32, #tpu.memory_space<vmem>>, vector<8x1x32xf32>,
    %380 = vector.extract_strided_slice %214 {offsets = [0, 7, 0], sizes = [8, 1, 128], strides = [1, 1, 1]} : vector<8x8x128xf32> to vector<8x1x128xf32>
    %381 = vector.shape_cast %380 : vector<8x1x128xf32> to vector<8x128xf32>
    %cst_105 = arith.constant dense<0.000000e+00> : vector<8x128xf32>
    %382 = tpu.matmul %376, %208, %cst_105 {dimension_numbers = #tpu.dot_dimension_numbers<[1], [0], [0], [1], [0, 0, 1, 1], [], []>} : vector<8x32xf32>, vector<32x128xf32>, vector<8x128xf32> -> vector<8x128xf32>
    %383 = arith.addf %381, %382 : vector<8x128xf32>
    %384 = vector.extract_strided_slice %383 {offsets = [0, 0], sizes = [8, 96], strides = [1, 1]} : vector<8x128xf32> to vector<8x96xf32>
    %385 = arith.negf %384 : vector<8x96xf32>
    %386 = math.exp %385 : vector<8x96xf32>
    %cst_106 = arith.constant 1.000000e+00 : f32
    %387 = vector.broadcast %cst_106 : f32 to vector<8x96xf32>
    %388 = arith.addf %387, %386 : vector<8x96xf32>
    %389 = arith.divf %387, %388 : vector<8x96xf32>
    %390 = vector.extract_strided_slice %383 {offsets = [0, 96], sizes = [8, 32], strides = [1, 1]} : vector<8x128xf32> to vector<8x32xf32>
    %391 = math.tanh %390 : vector<8x32xf32>
    %392 = vector.extract_strided_slice %389 {offsets = [0, 0], sizes = [8, 32], strides = [1, 1]} : vector<8x96xf32> to vector<8x32xf32>
    %393 = vector.extract_strided_slice %389 {offsets = [0, 32], sizes = [8, 32], strides = [1, 1]} : vector<8x96xf32> to vector<8x32xf32>
    %394 = vector.extract_strided_slice %389 {offsets = [0, 64], sizes = [8, 32], strides = [1, 1]} : vector<8x96xf32> to vector<8x32xf32>
    %395 = arith.mulf %393, %374 : vector<8x32xf32>
    %396 = arith.mulf %392, %391 : vector<8x32xf32>
    %397 = arith.addf %395, %396 : vector<8x32xf32>
    %398 = math.tanh %397 : vector<8x32xf32>
    %399 = arith.mulf %394, %398 : vector<8x32xf32>
    %c0_107 = arith.constant 0 : index
    %c7_108 = arith.constant 7 : index
    %c0_109 = arith.constant 0 : index
    %400 = vector.load %arg13[%c0_107, %c7_108, %c0_109] : memref<8x8x32xf32, #tpu.memory_space<vmem>>, vector<8x1x32xf32>
    %401 = vector.shape_cast %400 : vector<8x1x32xf32> to vector<8x32xf32>
    %402 = vector.shape_cast %399 : vector<8x32xf32> to vector<8x1x32xf32>
    tpu.vector_store %arg13[%c0_107, %c7_108, %c0_109], %402 {strides = array<i32>} : memref<8x8x32xf32, #tpu.memory_space<vmem>>, vector<8x1x32xf32>,
    %c1_110 = arith.constant 1 : index
    %c0_111 = arith.constant 0 : index
    %c0_112 = arith.constant 0 : index
    %403 = vector.load %arg11[%c1_110, %c0_111, %c0_112] : memref<2x8x32xf32, #tpu.memory_space<vmem>>, vector<1x8x32xf32>
    %404 = vector.shape_cast %403 : vector<1x8x32xf32> to vector<8x32xf32>
    %405 = vector.shape_cast %399 : vector<8x32xf32> to vector<1x8x32xf32>
    tpu.vector_store %arg11[%c1_110, %c0_111, %c0_112], %405 {strides = array<i32>} : memref<2x8x32xf32, #tpu.memory_space<vmem>>, vector<1x8x32xf32>,
    %c1_113 = arith.constant 1 : index
    %c0_114 = arith.constant 0 : index
    %c0_115 = arith.constant 0 : index
    %406 = vector.load %arg12[%c1_113, %c0_114, %c0_115] : memref<2x8x32xf32, #tpu.memory_space<vmem>>, vector<1x8x32xf32>
    %407 = vector.shape_cast %406 : vector<1x8x32xf32> to vector<8x32xf32>
    %408 = vector.shape_cast %397 : vector<8x32xf32> to vector<1x8x32xf32>
    tpu.vector_store %arg12[%c1_113, %c0_114, %c0_115], %408 {strides = array<i32>} : memref<2x8x32xf32, #tpu.memory_space<vmem>>, vector<1x8x32xf32>,
    %c0_116 = arith.constant 0 : index
    %c0_117 = arith.constant 0 : index
    %c0_118 = arith.constant 0 : index
    %409 = vector.load %arg13[%c0_116, %c0_117, %c0_118] : memref<8x8x32xf32, #tpu.memory_space<vmem>>, vector<8x8x32xf32>
    %410 = vector.shape_cast %409 : vector<8x8x32xf32> to vector<64x32xf32>
    %c0_119 = arith.constant 0 : index
    %c0_120 = arith.constant 0 : index
    %411 = vector.load %arg8[%c0_119, %c0_120] : memref<32x128xf32, #tpu.memory_space<vmem>>, vector<32x128xf32>
    %cst_121 = arith.constant dense<0.000000e+00> : vector<64x128xf32>
    %412 = tpu.matmul %410, %411, %cst_121 {dimension_numbers = #tpu.dot_dimension_numbers<[1], [0], [0], [1], [0, 0, 1, 1], [], []>} : vector<64x32xf32>, vector<32x128xf32>, vector<64x128xf32> -> vector<64x128xf32>
    %c0_122 = arith.constant 0 : index
    %c0_123 = arith.constant 0 : index
    %413 = vector.load %arg9[%c0_122, %c0_123] : memref<1x128xf32, #tpu.memory_space<vmem>>, vector<1x128xf32>
    %414 = vector.broadcast %413 : vector<1x128xf32> to vector<64x128xf32>
    %415 = arith.addf %412, %414 : vector<64x128xf32>
    %416 = vector.shape_cast %415 : vector<64x128xf32> to vector<8x8x128xf32>
    %c0_124 = arith.constant 0 : index
    %c0_125 = arith.constant 0 : index
    %c0_126 = arith.constant 0 : index
    %417 = vector.load %arg10[%c0_124, %c0_125, %c0_126] : memref<8x8x128xf32, #tpu.memory_space<vmem>>, vector<8x8x128xf32>
    tpu.vector_store %arg10[%c0_124, %c0_125, %c0_126], %416 {strides = array<i32>} : memref<8x8x128xf32, #tpu.memory_space<vmem>>, vector<8x8x128xf32>,
    return
  }
  func.func @transform_0(%arg0: i32) -> (i32, i32, i32) {
    %c0_i32 = arith.constant 0 : i32
    %c0_i32_0 = arith.constant 0 : i32
    %c0_i32_1 = arith.constant 0 : i32
    return %c0_i32, %arg0, %c0_i32_0 : i32, i32, i32
  }
  func.func @transform_1(%arg0: i32) -> (i32, i32) {
    %c0_i32 = arith.constant 0 : i32
    %c0_i32_0 = arith.constant 0 : i32
    %c0_i32_1 = arith.constant 0 : i32
    return %c0_i32, %c0_i32_0 : i32, i32
  }
  func.func @transform_2(%arg0: i32) -> (i32, i32) {
    %c0_i32 = arith.constant 0 : i32
    %c0_i32_0 = arith.constant 0 : i32
    %c0_i32_1 = arith.constant 0 : i32
    return %c0_i32, %c0_i32_0 : i32, i32
  }
  func.func @transform_3(%arg0: i32) -> (i32, i32) {
    %c0_i32 = arith.constant 0 : i32
    %c0_i32_0 = arith.constant 0 : i32
    %c0_i32_1 = arith.constant 0 : i32
    return %c0_i32, %c0_i32_0 : i32, i32
  }
  func.func @transform_4(%arg0: i32) -> (i32, i32) {
    %c0_i32 = arith.constant 0 : i32
    %c0_i32_0 = arith.constant 0 : i32
    %c0_i32_1 = arith.constant 0 : i32
    return %c0_i32, %c0_i32_0 : i32, i32
  }
  func.func @transform_5(%arg0: i32) -> (i32, i32) {
    %c0_i32 = arith.constant 0 : i32
    %c0_i32_0 = arith.constant 0 : i32
    %c0_i32_1 = arith.constant 0 : i32
    return %c0_i32, %c0_i32_0 : i32, i32
  }
  func.func @transform_6(%arg0: i32) -> (i32, i32) {
    %c0_i32 = arith.constant 0 : i32
    %c0_i32_0 = arith.constant 0 : i32
    %c0_i32_1 = arith.constant 0 : i32
    return %c0_i32, %c0_i32_0 : i32, i32
  }
  func.func @transform_7(%arg0: i32) -> (i32, i32) {
    %c0_i32 = arith.constant 0 : i32
    %c0_i32_0 = arith.constant 0 : i32
    %c0_i32_1 = arith.constant 0 : i32
    return %c0_i32, %c0_i32_0 : i32, i32
  }
  func.func @transform_8(%arg0: i32) -> (i32, i32) {
    %c0_i32 = arith.constant 0 : i32
    %c0_i32_0 = arith.constant 0 : i32
    %c0_i32_1 = arith.constant 0 : i32
    return %c0_i32, %c0_i32_0 : i32, i32
  }
  func.func @transform_9(%arg0: i32) -> (i32, i32, i32) {
    %c0_i32 = arith.constant 0 : i32
    %c0_i32_0 = arith.constant 0 : i32
    %c0_i32_1 = arith.constant 0 : i32
    return %c0_i32, %arg0, %c0_i32_0 : i32, i32, i32
  }
}

</mosaic_0001>

<llo_original>
// kernel: tpu_custom_call.1
$region0: #{tpu_custom_call.1}
  #allocation0 [shape = 'u32[]', space=smem, size = 0x4, offset = 0x4, fixed_abs, tag = 'smem constant byte address 0x4 - core index']
  #allocation1 [shape = 'u32[72,128]{1,0:T(1,128)}', space=vmem, size = 0x9000, scoped, tag = 'internal scratch']
  #allocation2 [shape = 'f32[2,8,32]{2,1,0:T(8,128)}', space=vmem, size = 0x2000, scoped, tag = 'scratch operand']
  #allocation3 [shape = 'f32[2,8,32]{2,1,0:T(8,128)}', space=vmem, size = 0x2000, scoped, tag = 'scratch operand']
  #allocation4 [shape = 'f32[8,8,32]{2,1,0:T(8,128)}', space=vmem, size = 0x8000, scoped, tag = 'scratch operand']
  %s0 = inlined_call_operand.hbm [shape: f32[8,24,32], index: 0, kind: input, shape index: {}]
  %s1 = inlined_call_operand.hbm [shape: f32[32,128], index: 1, kind: input, shape index: {}]
  %s2 = inlined_call_operand.hbm [shape: f32[32,128], index: 2, kind: input, shape index: {}]
  %s3 = inlined_call_operand.vmem [shape: f32[1,128], index: 3, kind: input, shape index: {}]
  %s4 = inlined_call_operand.hbm [shape: f32[32,128], index: 4, kind: input, shape index: {}]
  %s5 = inlined_call_operand.hbm [shape: f32[32,128], index: 5, kind: input, shape index: {}]
  %s6 = inlined_call_operand.vmem [shape: f32[1,128], index: 6, kind: input, shape index: {}]
  %s7 = inlined_call_operand.hbm [shape: f32[32,128], index: 7, kind: input, shape index: {}]
  %s8 = inlined_call_operand.vmem [shape: f32[1,128], index: 8, kind: input, shape index: {}]
  %s9 = inlined_call_operand.hbm [shape: f32[8,24,128], index: 9, kind: output, shape index: {}]
  %s10 = sld [smem:[#allocation0]]
  $region97: #{tpu_custom_call.1} parent=0
    _
  %s12 = ssub.s32 1, %s10
  %s13 = scalar_select 0, %s12, %s10
  $region1: #{tpu_custom_call.1} parent=0
    #allocation5 [shape = 'u8[65536]{0}', space=vmem, size = 0x10000, scoped, tag = 'input window, operand 0']
    #allocation6 [shape = 's32[2]{0}', space=sflag, size = 0x8, scoped, tag = 'scoped memory for tpu_custom_call.1']
    #allocation7 [shape = 's32[2]{0}', space=sflag, size = 0x8, scoped, tag = 'scoped memory for tpu_custom_call.1']
    #allocation8 [shape = 'u8[16384]{0}', space=vmem, size = 0x4000, scoped, tag = 'input window, operand 1, single buffered']
    #allocation9 [shape = 's32[1]{0}', space=sflag, size = 0x4, scoped, tag = 'scoped memory for tpu_custom_call.1']
    #allocation10 [shape = 'u8[16384]{0}', space=vmem, size = 0x4000, scoped, tag = 'input window, operand 2, single buffered']
    #allocation11 [shape = 'u8[16384]{0}', space=vmem, size = 0x4000, scoped, tag = 'input window, operand 4, single buffered']
    #allocation12 [shape = 's32[1]{0}', space=sflag, size = 0x4, scoped, tag = 'scoped memory for tpu_custom_call.1']
    #allocation13 [shape = 'u8[16384]{0}', space=vmem, size = 0x4000, scoped, tag = 'input window, operand 5, single buffered']
    #allocation14 [shape = 'u8[16384]{0}', space=vmem, size = 0x4000, scoped, tag = 'input window, operand 7, single buffered']
    #allocation15 [shape = 's32[1]{0}', space=sflag, size = 0x4, scoped, tag = 'scoped memory for tpu_custom_call.1']
    #allocation16 [shape = 'u8[65536]{0}', space=vmem, size = 0x10000, scoped, tag = 'output window, operand 0']
    %14 = vsyncpa [#allocation6], 0
    %s15 = scalar_lea.sflag [#allocation6], 1
    %16 = vsyncpa %s15, 0
    %17 = vsyncpa [#allocation9], 0
    %18 = vsyncpa [#allocation12], 0
    %19 = vsyncpa [#allocation15], 0
    %20 = vsyncpa [#allocation7], 0
    %s21 = scalar_lea.sflag [#allocation7], 1
    %22 = vsyncpa %s21, 0
    loop: start=0, step=1, limit=5
    $region2: #{tpu_custom_call.1} parent=1 // loop_pre_header
      _
    $region3: #{tpu_custom_call.1} parent=1 // loop_header
      %s24 = sphi 0, %s28
      %p25 = scmp.ge.s32.totalorder %s24, 5
      %s34 = sphi 0, %s36
      %s37 = sphi 0, %s34
      %s38 = sphi 0, %s37
      %s54 = sphi 0, %s38
      %s58 = sphi 0, %s58
      %s60 = sphi 0, %s58
      %s61 = sphi 0, %s60
      %s75 = sphi 0, %s61
      %s79 = sphi 0, %s79
      %s81 = sphi 0, %s79
      %s82 = sphi 0, %s81
      %s96 = sphi 0, %s82
      %s100 = sphi 0, %s100
      %s102 = sphi 0, %s100
      %s103 = sphi 0, %s102
      %s117 = sphi 0, %s103
      %s121 = sphi 0, %s121
      %s123 = sphi 0, %s121
      %s124 = sphi 0, %s123
      %s138 = sphi 0, %s124
      %s142 = sphi 0, %s142
      %s144 = sphi 0, %s142
      %s145 = sphi 0, %s144
      %s159 = sphi 0, %s145
      %s163 = sphi 0, %s163
      %s165 = sphi 0, %s163
      %s166 = sphi 0, %s165
      %s180 = sphi 0, %s166
      %s184 = sphi 0, %s184
      %s186 = sphi 0, %s184
      %s187 = sphi 0, %s186
      %s201 = sphi 0, %s187
      %s205 = sphi 0, %s205
      %s207 = sphi 0, %s205
      %s208 = sphi 0, %s207
      %s222 = sphi 0, %s208
      %s228 = sphi 0, %s230
      %s231 = sphi 0, %s228
      %s232 = sphi 0, %s231
      %s248 = sphi 0, %s232
    $region4: #{tpu_custom_call.1} parent=1 // loop_header_branch
      %27 = sbr.rel (%p25) target = $region8
    $region5: #{tpu_custom_call.1} parent=1 // loop_body
      %s29 = ssub.s32 %s24, 1
      %s30 = ssub.s32 %s24, 2
      %s31 = sadd.s32 %s24, 1
      %s32 = ssub.s32 %s24, %s31
      %p33 = scmp.eq.s32.totalorder %s32, 0
      %s35 = sadd.s32 %s34, 1
      %s36 = scalar_select %p33, %s34, %s35
      %p39 = pneg %p33
      %p40 = scmp.eq.s32.totalorder %s24, 2
      %p41 = por %p39, %p40
      %p42 = scmp.ne.s32.totalorder %s34, %s37
      %p43 = scmp.eq.s32.totalorder %s24, 0
      %p44 = por %p42, %p43
      %p45 = scmp.ne.s32.totalorder %s34, %s37
      %p46 = scmp.eq.s32.totalorder %s29, 2
      %p47 = por %p45, %p46
      %p48 = scmp.ne.s32.totalorder %s37, %s38
      %p49 = scmp.eq.s32.totalorder %s29, 0
      %p50 = por %p48, %p49
      %p51 = scmp.ne.s32.totalorder %s37, %s38
      %p52 = scmp.eq.s32.totalorder %s30, 2
      %p53 = por %p51, %p52
      %p55 = scmp.ne.s32.totalorder %s38, %s54
      %p56 = scmp.eq.s32.totalorder %s30, 0
      %p57 = por %p55, %p56
      %s59 = sadd.s32 %s58, 1
      %p62 = scmp.eq.s32.totalorder %s24, 2
      %p63 = scmp.ne.s32.totalorder %s58, %s60
      %p64 = scmp.eq.s32.totalorder %s24, 0
      %p65 = por %p63, %p64
      %p66 = scmp.ne.s32.totalorder %s58, %s60
      %p67 = scmp.eq.s32.totalorder %s29, 2
      %p68 = por %p66, %p67
      %p69 = scmp.ne.s32.totalorder %s60, %s61
      %p70 = scmp.eq.s32.totalorder %s29, 0
      %p71 = por %p69, %p70
      %p72 = scmp.ne.s32.totalorder %s60, %s61
      %p73 = scmp.eq.s32.totalorder %s30, 2
      %p74 = por %p72, %p73
      %p76 = scmp.ne.s32.totalorder %s61, %s75
      %p77 = scmp.eq.s32.totalorder %s30, 0
      %p78 = por %p76, %p77
      %s80 = sadd.s32 %s79, 1
      %p83 = scmp.eq.s32.totalorder %s24, 2
      %p84 = scmp.ne.s32.totalorder %s79, %s81
      %p85 = scmp.eq.s32.totalorder %s24, 0
      %p86 = por %p84, %p85
      %p87 = scmp.ne.s32.totalorder %s79, %s81
      %p88 = scmp.eq.s32.totalorder %s29, 2
      %p89 = por %p87, %p88
      %p90 = scmp.ne.s32.totalorder %s81, %s82
      %p91 = scmp.eq.s32.totalorder %s29, 0
      %p92 = por %p90, %p91
      %p93 = scmp.ne.s32.totalorder %s81, %s82
      %p94 = scmp.eq.s32.totalorder %s30, 2
      %p95 = por %p93, %p94
      %p97 = scmp.ne.s32.totalorder %s82, %s96
      %p98 = scmp.eq.s32.totalorder %s30, 0
      %p99 = por %p97, %p98
      %s101 = sadd.s32 %s100, 1
      %p104 = scmp.eq.s32.totalorder %s24, 2
      %p105 = scmp.ne.s32.totalorder %s100, %s102
      %p106 = scmp.eq.s32.totalorder %s24, 0
      %p107 = por %p105, %p106
      %p108 = scmp.ne.s32.totalorder %s100, %s102
      %p109 = scmp.eq.s32.totalorder %s29, 2
      %p110 = por %p108, %p109
      %p111 = scmp.ne.s32.totalorder %s102, %s103
      %p112 = scmp.eq.s32.totalorder %s29, 0
      %p113 = por %p111, %p112
      %p114 = scmp.ne.s32.totalorder %s102, %s103
      %p115 = scmp.eq.s32.totalorder %s30, 2
      %p116 = por %p114, %p115
      %p118 = scmp.ne.s32.totalorder %s103, %s117
      %p119 = scmp.eq.s32.totalorder %s30, 0
      %p120 = por %p118, %p119
      %s122 = sadd.s32 %s121, 1
      %p125 = scmp.eq.s32.totalorder %s24, 2
      %p126 = scmp.ne.s32.totalorder %s121, %s123
      %p127 = scmp.eq.s32.totalorder %s24, 0
      %p128 = por %p126, %p127
      %p129 = scmp.ne.s32.totalorder %s121, %s123
      %p130 = scmp.eq.s32.totalorder %s29, 2
      %p131 = por %p129, %p130
      %p132 = scmp.ne.s32.totalorder %s123, %s124
      %p133 = scmp.eq.s32.totalorder %s29, 0
      %p134 = por %p132, %p133
      %p135 = scmp.ne.s32.totalorder %s123, %s124
      %p136 = scmp.eq.s32.totalorder %s30, 2
      %p137 = por %p135, %p136
      %p139 = scmp.ne.s32.totalorder %s124, %s138
      %p140 = scmp.eq.s32.totalorder %s30, 0
      %p141 = por %p139, %p140
      %s143 = sadd.s32 %s142, 1
      %p146 = scmp.eq.s32.totalorder %s24, 2
      %p147 = scmp.ne.s32.totalorder %s142, %s144
      %p148 = scmp.eq.s32.totalorder %s24, 0
      %p149 = por %p147, %p148
      %p150 = scmp.ne.s32.totalorder %s142, %s144
      %p151 = scmp.eq.s32.totalorder %s29, 2
      %p152 = por %p150, %p151
      %p153 = scmp.ne.s32.totalorder %s144, %s145
      %p154 = scmp.eq.s32.totalorder %s29, 0
      %p155 = por %p153, %p154
      %p156 = scmp.ne.s32.totalorder %s144, %s145
      %p157 = scmp.eq.s32.totalorder %s30, 2
      %p158 = por %p156, %p157
      %p160 = scmp.ne.s32.totalorder %s145, %s159
      %p161 = scmp.eq.s32.totalorder %s30, 0
      %p162 = por %p160, %p161
      %s164 = sadd.s32 %s163, 1
      %p167 = scmp.eq.s32.totalorder %s24, 2
      %p168 = scmp.ne.s32.totalorder %s163, %s165
      %p169 = scmp.eq.s32.totalorder %s24, 0
      %p170 = por %p168, %p169
      %p171 = scmp.ne.s32.totalorder %s163, %s165
      %p172 = scmp.eq.s32.totalorder %s29, 2
      %p173 = por %p171, %p172
      %p174 = scmp.ne.s32.totalorder %s165, %s166
      %p175 = scmp.eq.s32.totalorder %s29, 0
      %p176 = por %p174, %p175
      %p177 = scmp.ne.s32.totalorder %s165, %s166
      %p178 = scmp.eq.s32.totalorder %s30, 2
      %p179 = por %p177, %p178
      %p181 = scmp.ne.s32.totalorder %s166, %s180
      %p182 = scmp.eq.s32.totalorder %s30, 0
      %p183 = por %p181, %p182
      %s185 = sadd.s32 %s184, 1
      %p188 = scmp.eq.s32.totalorder %s24, 2
      %p189 = scmp.ne.s32.totalorder %s184, %s186
      %p190 = scmp.eq.s32.totalorder %s24, 0
      %p191 = por %p189, %p190
      %p192 = scmp.ne.s32.totalorder %s184, %s186
      %p193 = scmp.eq.s32.totalorder %s29, 2
      %p194 = por %p192, %p193
      %p195 = scmp.ne.s32.totalorder %s186, %s187
      %p196 = scmp.eq.s32.totalorder %s29, 0
      %p197 = por %p195, %p196
      %p198 = scmp.ne.s32.totalorder %s186, %s187
      %p199 = scmp.eq.s32.totalorder %s30, 2
      %p200 = por %p198, %p199
      %p202 = scmp.ne.s32.totalorder %s187, %s201
      %p203 = scmp.eq.s32.totalorder %s30, 0
      %p204 = por %p202, %p203
      %s206 = sadd.s32 %s205, 1
      %p209 = scmp.eq.s32.totalorder %s24, 2
      %p210 = scmp.ne.s32.totalorder %s205, %s207
      %p211 = scmp.eq.s32.totalorder %s24, 0
      %p212 = por %p210, %p211
      %p213 = scmp.ne.s32.totalorder %s205, %s207
      %p214 = scmp.eq.s32.totalorder %s29, 2
      %p215 = por %p213, %p214
      %p216 = scmp.ne.s32.totalorder %s207, %s208
      %p217 = scmp.eq.s32.totalorder %s29, 0
      %p218 = por %p216, %p217
      %p219 = scmp.ne.s32.totalorder %s207, %s208
      %p220 = scmp.eq.s32.totalorder %s30, 2
      %p221 = por %p219, %p220
      %p223 = scmp.ne.s32.totalorder %s208, %s222
      %p224 = scmp.eq.s32.totalorder %s30, 0
      %p225 = por %p223, %p224
      %s226 = ssub.s32 %s24, %s31
      %p227 = scmp.eq.s32.totalorder %s226, 0
      %s229 = sadd.s32 %s228, 1
      %s230 = scalar_select %p227, %s228, %s229
      %p233 = pneg %p227
      %p234 = scmp.eq.s32.totalorder %s24, 2
      %p235 = por %p233, %p234
      %p236 = scmp.ne.s32.totalorder %s228, %s231
      %p237 = scmp.eq.s32.totalorder %s24, 0
      %p238 = por %p236, %p237
      %p239 = scmp.ne.s32.totalorder %s228, %s231
      %p240 = scmp.eq.s32.totalorder %s29, 2
      %p241 = por %p239, %p240
      %p242 = scmp.ne.s32.totalorder %s231, %s232
      %p243 = scmp.eq.s32.totalorder %s29, 0
      %p244 = por %p242, %p243
      %p245 = scmp.ne.s32.totalorder %s231, %s232
      %p246 = scmp.eq.s32.totalorder %s30, 2
      %p247 = por %p245, %p246
      %p249 = scmp.ne.s32.totalorder %s232, %s248
      %p250 = scmp.eq.s32.totalorder %s30, 0
      %p251 = por %p249, %p250
      %p252 = scmp.le.s32.totalorder 1, %s24
      %p253 = scmp.lt.s32.totalorder %s24, 4
      %p254 = pnand %p252, %p253
      %p255 = pneg %p254
      // Predicated region
      $region9: #{tpu_custom_call.1} parent=5 // pred_check
        _
      $region10: #{tpu_custom_call.1} parent=5 // pred_check_branch
        %257 = sbr.rel (%p254) target = $region12
      $region11: #{tpu_custom_call.1} parent=5 // pred_region
        %s258 = ssub.s32 %s24, 1
        // Predicated region
        $region13: #{tpu_custom_call.1} parent=11 // pred_check
          %p259 = pneg %p71
        $region14: #{tpu_custom_call.1} parent=11 // pred_check_branch
          %261 = sbr.rel (%p259) target = $region16
        $region15: #{tpu_custom_call.1} parent=11 // pred_region
          %263 = vsyncadd [#allocation9], 0
          %s264 = sshll.u32 %s1, 4
          %s265 = int_to_ptr.hbm [resolvable:$true] %s264
          %s266 = sshll.u32 [#allocation8], 4
          %s267 = int_to_ptr.vmem [resolvable:$true] %s266
          %272 = dma.hbm_to_vmem [thread:$0]  %s265, 512, %s267, [#allocation9], 128, 128, 8
        $region16: #{tpu_custom_call.1} parent=11 // pred_fallthru
          _
        // Predicated region
        $region17: #{tpu_custom_call.1} parent=11 // pred_check
          %p273 = pneg %p92
        $region18: #{tpu_custom_call.1} parent=11 // pred_check_branch
          %275 = sbr.rel (%p273) target = $region20
        $region19: #{tpu_custom_call.1} parent=11 // pred_region
          %277 = vsyncadd [#allocation9], 0
          %s278 = sshll.u32 %s2, 4
          %s279 = int_to_ptr.hbm [resolvable:$true] %s278
          %s280 = sshll.u32 [#allocation10], 4
          %s281 = int_to_ptr.vmem [resolvable:$true] %s280
          %286 = dma.hbm_to_vmem [thread:$0]  %s279, 512, %s281, [#allocation9], 128, 128, 8
        $region20: #{tpu_custom_call.1} parent=11 // pred_fallthru
          _
        // Predicated region
        $region21: #{tpu_custom_call.1} parent=11 // pred_check
          %p287 = pneg %p113
        $region22: #{tpu_custom_call.1} parent=11 // pred_check_branch
          %289 = sbr.rel (%p287) target = $region24
        $region23: #{tpu_custom_call.1} parent=11 // pred_region
          _
        $region24: #{tpu_custom_call.1} parent=11 // pred_fallthru
          _
        // Predicated region
        $region25: #{tpu_custom_call.1} parent=11 // pred_check
          %p290 = pneg %p134
        $region26: #{tpu_custom_call.1} parent=11 // pred_check_branch
          %292 = sbr.rel (%p290) target = $region28
        $region27: #{tpu_custom_call.1} parent=11 // pred_region
          %294 = vsyncadd [#allocation12], 0
          %s295 = sshll.u32 %s4, 4
          %s296 = int_to_ptr.hbm [resolvable:$true] %s295
          %s297 = sshll.u32 [#allocation11], 4
          %s298 = int_to_ptr.vmem [resolvable:$true] %s297
          %303 = dma.hbm_to_vmem [thread:$0]  %s296, 512, %s298, [#allocation12], 128, 128, 8
        $region28: #{tpu_custom_call.1} parent=11 // pred_fallthru
          _
        // Predicated region
        $region29: #{tpu_custom_call.1} parent=11 // pred_check
          %p304 = pneg %p155
        $region30: #{tpu_custom_call.1} parent=11 // pred_check_branch
          %306 = sbr.rel (%p304) target = $region32
        $region31: #{tpu_custom_call.1} parent=11 // pred_region
          %308 = vsyncadd [#allocation12], 0
          %s309 = sshll.u32 %s5, 4
          %s310 = int_to_ptr.hbm [resolvable:$true] %s309
          %s311 = sshll.u32 [#allocation13], 4
          %s312 = int_to_ptr.vmem [resolvable:$true] %s311
          %317 = dma.hbm_to_vmem [thread:$0]  %s310, 512, %s312, [#allocation12], 128, 128, 8
        $region32: #{tpu_custom_call.1} parent=11 // pred_fallthru
          _
        // Predicated region
        $region33: #{tpu_custom_call.1} parent=11 // pred_check
          %p318 = pneg %p176
        $region34: #{tpu_custom_call.1} parent=11 // pred_check_branch
          %320 = sbr.rel (%p318) target = $region36
        $region35: #{tpu_custom_call.1} parent=11 // pred_region
          _
        $region36: #{tpu_custom_call.1} parent=11 // pred_fallthru
          _
        // Predicated region
        $region37: #{tpu_custom_call.1} parent=11 // pred_check
          %p321 = pneg %p197
        $region38: #{tpu_custom_call.1} parent=11 // pred_check_branch
          %323 = sbr.rel (%p321) target = $region40
        $region39: #{tpu_custom_call.1} parent=11 // pred_region
          %325 = vsyncadd [#allocation15], 0
          %s326 = sshll.u32 %s7, 4
          %s327 = int_to_ptr.hbm [resolvable:$true] %s326
          %s328 = sshll.u32 [#allocation14], 4
          %s329 = int_to_ptr.vmem [resolvable:$true] %s328
          %334 = dma.hbm_to_vmem [thread:$0]  %s327, 512, %s329, [#allocation15], 128, 128, 8
        $region40: #{tpu_custom_call.1} parent=11 // pred_fallthru
          _
        // Predicated region
        $region41: #{tpu_custom_call.1} parent=11 // pred_check
          %p335 = pneg %p218
        $region42: #{tpu_custom_call.1} parent=11 // pred_check_branch
          %337 = sbr.rel (%p335) target = $region44
        $region43: #{tpu_custom_call.1} parent=11 // pred_region
          _
        $region44: #{tpu_custom_call.1} parent=11 // pred_fallthru
          _
      $region12: #{tpu_custom_call.1} parent=5 // pred_fallthru
        _
      %p338 = scmp.lt.s32.totalorder %s24, 3
      // Predicated region
      $region45: #{tpu_custom_call.1} parent=5 // pred_check
        %p339 = pneg %p338
      $region46: #{tpu_custom_call.1} parent=5 // pred_check_branch
        %341 = sbr.rel (%p339) target = $region48
      $region47: #{tpu_custom_call.1} parent=5 // pred_region
        // Predicated region
        $region49: #{tpu_custom_call.1} parent=47 // pred_check
          %p342 = pneg %p44
        $region50: #{tpu_custom_call.1} parent=47 // pred_check_branch
          %344 = sbr.rel (%p342) target = $region52
        $region51: #{tpu_custom_call.1} parent=47 // pred_region
          %s345 = sand.u32 %s34, 1
          %s346 = scalar_lea.sflag [#allocation6], %s345
          %s347 = sand.u32 %s34, 1
          %s348 = smul.addr %s347, 64
          %s349 = scalar_lea.vmem [#allocation5], %s348
          %351 = vsyncadd %s346, 0
          %s352 = smul.addr %s24, 8
          %s353 = scalar_lea.hbm %s0, %s352
          %s354 = sshll.u32 %s353, 4
          %s355 = int_to_ptr.hbm [resolvable:$true] %s354
          %s356 = sshll.u32 %s349, 4
          %s357 = int_to_ptr.vmem [resolvable:$true] %s356
          %362 = dma.hbm_to_vmem [thread:$0]  %s355, 1024, %s357, %s346, 384, 128, 8
        $region52: #{tpu_custom_call.1} parent=47 // pred_fallthru
          _
      $region48: #{tpu_custom_call.1} parent=5 // pred_fallthru
        _
      %p363 = scmp.le.s32.totalorder 1, %s24
      %p364 = scmp.lt.s32.totalorder %s24, 4
      %p365 = pnand %p363, %p364
      %p366 = pneg %p365
      // Predicated region
      $region53: #{tpu_custom_call.1} parent=5 // pred_check
        _
      $region54: #{tpu_custom_call.1} parent=5 // pred_check_branch
        %368 = sbr.rel (%p365) target = $region56
      $region55: #{tpu_custom_call.1} parent=5 // pred_region
        %s369 = ssub.s32 %s24, 1
        %s370 = sand.u32 %s37, 1
        %s371 = scalar_lea.sflag [#allocation6], %s370
        %s372 = sand.u32 %s37, 1
        %s373 = smul.addr %s372, 64
        %s374 = scalar_lea.vmem [#allocation5], %s373
        // Predicated region
        $region57: #{tpu_custom_call.1} parent=55 // pred_check
          %p375 = pneg %p50
        $region58: #{tpu_custom_call.1} parent=55 // pred_check_branch
          %377 = sbr.rel (%p375) target = $region60
        $region59: #{tpu_custom_call.1} parent=55 // pred_region
          %379 = dma.done %s371, 1024
        $region60: #{tpu_custom_call.1} parent=55 // pred_fallthru
          _
        // Predicated region
        $region61: #{tpu_custom_call.1} parent=55 // pred_check
          %p380 = pneg %p71
        $region62: #{tpu_custom_call.1} parent=55 // pred_check_branch
          %382 = sbr.rel (%p380) target = $region64
        $region63: #{tpu_custom_call.1} parent=55 // pred_region
          %384 = dma.done [#allocation9], 512
        $region64: #{tpu_custom_call.1} parent=55 // pred_fallthru
          _
        // Predicated region
        $region65: #{tpu_custom_call.1} parent=55 // pred_check
          %p385 = pneg %p92
        $region66: #{tpu_custom_call.1} parent=55 // pred_check_branch
          %387 = sbr.rel (%p385) target = $region68
        $region67: #{tpu_custom_call.1} parent=55 // pred_region
          %389 = dma.done [#allocation9], 512
        $region68: #{tpu_custom_call.1} parent=55 // pred_fallthru
          _
        // Predicated region
        $region69: #{tpu_custom_call.1} parent=55 // pred_check
          %p390 = pneg %p134
        $region70: #{tpu_custom_call.1} parent=55 // pred_check_branch
          %392 = sbr.rel (%p390) target = $region72
        $region71: #{tpu_custom_call.1} parent=55 // pred_region
          %394 = dma.done [#allocation12], 512
        $region72: #{tpu_custom_call.1} parent=55 // pred_fallthru
          _
        // Predicated region
        $region73: #{tpu_custom_call.1} parent=55 // pred_check
          %p395 = pneg %p155
        $region74: #{tpu_custom_call.1} parent=55 // pred_check_branch
          %397 = sbr.rel (%p395) target = $region76
        $region75: #{tpu_custom_call.1} parent=55 // pred_region
          %399 = dma.done [#allocation12], 512
        $region76: #{tpu_custom_call.1} parent=55 // pred_fallthru
          _
        // Predicated region
        $region77: #{tpu_custom_call.1} parent=55 // pred_check
          %p400 = pneg %p197
        $region78: #{tpu_custom_call.1} parent=55 // pred_check_branch
          %402 = sbr.rel (%p400) target = $region80
        $region79: #{tpu_custom_call.1} parent=55 // pred_region
          %404 = dma.done [#allocation15], 512
        $region80: #{tpu_custom_call.1} parent=55 // pred_fallthru
          _
        %s405 = sand.u32 %s37, 1
        %s406 = scalar_lea.sflag [#allocation6], %s405
        %s407 = sand.u32 %s37, 1
        %s408 = smul.addr %s407, 64
        %s409 = scalar_lea.vmem [#allocation5], %s408
        %p410 = pneg %p50
        %p411 = pneg %p47
        %p412 = pneg %p71
        %p413 = pneg %p68
        %p414 = pneg %p92
        %p415 = pneg %p89
        %p416 = pneg %p113
        %p417 = pneg %p110
        %p418 = pneg %p134
        %p419 = pneg %p131
        %p420 = pneg %p155
        %p421 = pneg %p152
        %p422 = pneg %p176
        %p423 = pneg %p173
        %p424 = pneg %p197
        %p425 = pneg %p194
        %p426 = pneg %p218
        %p427 = pneg %p215
        %p428 = pneg %p244
        %p429 = pneg %p241
        %s430 = sand.u32 %s231, 1
        %s431 = scalar_lea.sflag [#allocation7], %s430
        %s432 = sand.u32 %s231, 1
        %s433 = smul.addr %s432, 64
        %s434 = scalar_lea.vmem [#allocation16], %s433
        %p435 = scmp.eq.s32.totalorder %s29, 0
        // Predicated region
        $region81: #{tpu_custom_call.1} parent=55 // pred_check
          %p436 = pneg %p435
        $region82: #{tpu_custom_call.1} parent=55 // pred_check_branch
          %438 = sbr.rel (%p436) target = $region84
        $region83: #{tpu_custom_call.1} parent=55 // pred_region
          %vm439 = vcmask 261120
          %440 = vst.msk [vmem:[#allocation2] sm:$0xff] %vm439, 0.0
          %441 = vst.msk [vmem:[#allocation2 + $0x8] sm:$0xff] %vm439, 0.0
          %442 = vst.msk [vmem:[#allocation3] sm:$0xff] %vm439, 0.0
          %443 = vst.msk [vmem:[#allocation3 + $0x8] sm:$0xff] %vm439, 0.0
        $region84: #{tpu_custom_call.1} parent=55 // pred_fallthru
          _
        %v444 = vld [vmem:[%s374] sm:$0xff]
        %v445 = vld [vmem:[%s374 + $0x8] sm:$0xff]
        %v446 = vld [vmem:[%s374 + $0x10] sm:$0xff]
        %v447 = vld [vmem:[%s374 + $0x18] sm:$0xff]
        %v448 = vld [vmem:[%s374 + $0x20] sm:$0xff]
        %v449 = vld [vmem:[%s374 + $0x28] sm:$0xff]
        %v450 = vld [vmem:[%s374 + $0x30] sm:$0xff]
        %v451 = vld [vmem:[%s374 + $0x38] sm:$0xff]
        %v452 = vld [vmem:[#allocation8] sm:$0xff]
        %v453 = vld [vmem:[#allocation8 + $0x8] sm:$0xff]
        %v454 = vld [vmem:[#allocation8 + $0x10] sm:$0xff]
        %v455 = vld [vmem:[#allocation8 + $0x18] sm:$0xff]
        %v456 = vld [vmem:[#allocation10] sm:$0xff]
        %v457 = vld [vmem:[#allocation10 + $0x8] sm:$0xff]
        %v458 = vld [vmem:[#allocation10 + $0x10] sm:$0xff]
        %v459 = vld [vmem:[#allocation10 + $0x18] sm:$0xff]
        %v460 = vld [vmem:[%s3] sm:$0x1]
        %v462 = vperm.slane %v460, 0
        %vm464 = vcmask 261120
        %v466 = vsel %vm464, %v444, 0
        %v469 = vsel %vm464, %v445, 0
        %v472 = vsel %vm464, %v446, 0
        %v475 = vsel %vm464, %v447, 0
        %v478 = vsel %vm464, %v448, 0
        %v481 = vsel %vm464, %v449, 0
        %v484 = vsel %vm464, %v450, 0
        %v487 = vsel %vm464, %v451, 0
        %489 = vmatpush.msra.mxu0 0.0
        %490 = vmatpush.msra.mxu0 0.0
        %491 = vmatpush.msra.mxu0 0.0
        %492 = vmatpush.msra.mxu0 0.0
        %493 = vmatpush.msra.mxu0 0.0
        %494 = vmatpush.msra.mxu0 0.0
        %495 = vmatpush.msra.mxu0 0.0
        %496 = vmatpush.msra.mxu0 0.0
        %497 = vmatpush.msra.mxu0 0.0
        %498 = vmatpush.msra.mxu0 0.0
        %499 = vmatpush.msra.mxu0 0.0
        %500 = vmatpush.msra.mxu0 0.0
        %501 = vmatpush.msra.mxu0 %v455
        %502 = vmatpush.msra.mxu0 %v454
        %503 = vmatpush.msra.mxu0 %v453
        %504 = vmatpush.msra.mxu0 %v452
        %505 = vmatmul.f32.gmra.mxu0 %v466
        %v506 = vpop.f32.mrf.mxu0
        %v507 = vadd.f32 %v462, %v506
        %508 = vmatmul.f32.gmra.mxu0 %v469
        %v509 = vpop.f32.mrf.mxu0
        %v510 = vadd.f32 %v462, %v509
        %511 = vmatmul.f32.gmra.mxu0 %v472
        %v512 = vpop.f32.mrf.mxu0
        %v513 = vadd.f32 %v462, %v512
        %514 = vmatmul.f32.gmra.mxu0 %v475
        %v515 = vpop.f32.mrf.mxu0
        %v516 = vadd.f32 %v462, %v515
        %517 = vmatmul.f32.gmra.mxu0 %v478
        %v518 = vpop.f32.mrf.mxu0
        %v519 = vadd.f32 %v462, %v518
        %520 = vmatmul.f32.gmra.mxu0 %v481
        %v521 = vpop.f32.mrf.mxu0
        %v522 = vadd.f32 %v462, %v521
        %523 = vmatmul.f32.gmra.mxu0 %v484
        %v524 = vpop.f32.mrf.mxu0
        %v525 = vadd.f32 %v462, %v524
        %526 = vmatmul.f32.gmra.mxu0 %v487
        %v527 = vpop.f32.mrf.mxu0
        %v528 = vadd.f32 %v462, %v527
        %529 = vdwg.mxu0
        %v530 = vld [vmem:[#allocation2] sm:$0xff]
        %v531 = vld [vmem:[#allocation3] sm:$0xff]
        %v533 = vsel %vm464, %v530, 0
        %535 = vmatpush.msra.mxu0 0.0
        %536 = vmatpush.msra.mxu0 0.0
        %537 = vmatpush.msra.mxu0 0.0
        %538 = vmatpush.msra.mxu0 0.0
        %539 = vmatpush.msra.mxu0 0.0
        %540 = vmatpush.msra.mxu0 0.0
        %541 = vmatpush.msra.mxu0 0.0
        %542 = vmatpush.msra.mxu0 0.0
        %543 = vmatpush.msra.mxu0 0.0
        %544 = vmatpush.msra.mxu0 0.0
        %545 = vmatpush.msra.mxu0 0.0
        %546 = vmatpush.msra.mxu0 0.0
        %547 = vmatpush.msra.mxu0 %v459
        %548 = vmatpush.msra.mxu0 %v458
        %549 = vmatpush.msra.mxu0 %v457
        %550 = vmatpush.msra.mxu0 %v456
        %551 = vmatmul.f32.gmra.mxu0 %v533
        %v552 = vpop.f32.mrf.mxu0
        %v553 = vadd.f32 0.0, %v552
        %554 = vdwg.mxu0
        %v556 = vrot.slane %v553, 1
        %v557 = vrot.slane %v553, 2
        %v558 = vrot.slane %v553, 3
        %v559 = vrot.slane %v553, 4
        %v560 = vrot.slane %v553, 5
        %v561 = vrot.slane %v553, 6
        %v562 = vrot.slane %v553, 7
        %v571 = vadd.f32 %v507, %v553
        %v572 = vadd.f32 %v510, %v556
        %v573 = vadd.f32 %v513, %v557
        %v574 = vadd.f32 %v516, %v558
        %v575 = vadd.f32 %v519, %v559
        %v576 = vadd.f32 %v522, %v560
        %v577 = vadd.f32 %v525, %v561
        %v578 = vadd.f32 %v528, %v562
        %v579 = vxor.u32 %v571, 2147483648
        %v580 = vxor.u32 %v572, 2147483648
        %v581 = vxor.u32 %v573, 2147483648
        %v582 = vxor.u32 %v574, 2147483648
        %v583 = vxor.u32 %v575, 2147483648
        %v584 = vxor.u32 %v576, 2147483648
        %v585 = vxor.u32 %v577, 2147483648
        %v586 = vxor.u32 %v578, 2147483648
        %v587 = vmul.f32 %v579, 1.442695
        %v588 = vpow.pop %v587
        %v589 = vmul.f32 %v580, 1.442695
        %v590 = vpow.pop %v589
        %v591 = vmul.f32 %v581, 1.442695
        %v592 = vpow.pop %v591
        %v593 = vmul.f32 %v582, 1.442695
        %v594 = vpow.pop %v593
        %v595 = vmul.f32 %v583, 1.442695
        %v596 = vpow.pop %v595
        %v597 = vmul.f32 %v584, 1.442695
        %v598 = vpow.pop %v597
        %v599 = vmul.f32 %v585, 1.442695
        %v600 = vpow.pop %v599
        %v601 = vmul.f32 %v586, 1.442695
        %v602 = vpow.pop %v601
        %v603 = vadd.f32 %v588, 1.0
        %v604 = vadd.f32 %v590, 1.0
        %v605 = vadd.f32 %v592, 1.0
        %v606 = vadd.f32 %v594, 1.0
        %v607 = vadd.f32 %v596, 1.0
        %v608 = vadd.f32 %v598, 1.0
        %v609 = vadd.f32 %v600, 1.0
        %v610 = vadd.f32 %v602, 1.0
        %v611 = vrcp.pop %v603
        %v612 = vmul.f32 %v603, %v611
        %v613 = vsub.f32 1.0, %v612
        %v614 = vmul.f32 %v611, %v613
        %v615 = vadd.f32 %v611, %v614
        %vm616 = vweird.f32 %v603
        %vm617 = vweird.f32 %v611
        %vm618 = vmor %vm616, %vm617
        %v619 = vsel %vm618, %v611, %v615
        %v620 = vand.u32 2147483647, %v603
        %vm621 = vcmp.eq.f32.partialorder %v620, 8.507059e+37
        %v622 = vand.u32 %v603, 2147483648
        %v623 = vor.u32 1.1754944e-38, %v622
        %v624 = vsel %vm621, %v623, %v619
        %v625 = vmul.f32 1.0, %v624
        %v626 = vrcp.pop %v604
        %v627 = vmul.f32 %v604, %v626
        %v628 = vsub.f32 1.0, %v627
        %v629 = vmul.f32 %v626, %v628
        %v630 = vadd.f32 %v626, %v629
        %vm631 = vweird.f32 %v604
        %vm632 = vweird.f32 %v626
        %vm633 = vmor %vm631, %vm632
        %v634 = vsel %vm633, %v626, %v630
        %v635 = vand.u32 2147483647, %v604
        %vm636 = vcmp.eq.f32.partialorder %v635, 8.507059e+37
        %v637 = vand.u32 %v604, 2147483648
        %v638 = vor.u32 1.1754944e-38, %v637
        %v639 = vsel %vm636, %v638, %v634
        %v640 = vmul.f32 1.0, %v639
        %v641 = vrcp.pop %v605
        %v642 = vmul.f32 %v605, %v641
        %v643 = vsub.f32 1.0, %v642
        %v644 = vmul.f32 %v641, %v643
        %v645 = vadd.f32 %v641, %v644
        %vm646 = vweird.f32 %v605
        %vm647 = vweird.f32 %v641
        %vm648 = vmor %vm646, %vm647
        %v649 = vsel %vm648, %v641, %v645
        %v650 = vand.u32 2147483647, %v605
        %vm651 = vcmp.eq.f32.partialorder %v650, 8.507059e+37
        %v652 = vand.u32 %v605, 2147483648
        %v653 = vor.u32 1.1754944e-38, %v652
        %v654 = vsel %vm651, %v653, %v649
        %v655 = vmul.f32 1.0, %v654
        %v656 = vrcp.pop %v606
        %v657 = vmul.f32 %v606, %v656
        %v658 = vsub.f32 1.0, %v657
        %v659 = vmul.f32 %v656, %v658
        %v660 = vadd.f32 %v656, %v659
        %vm661 = vweird.f32 %v606
        %vm662 = vweird.f32 %v656
        %vm663 = vmor %vm661, %vm662
        %v664 = vsel %vm663, %v656, %v660
        %v665 = vand.u32 2147483647, %v606
        %vm666 = vcmp.eq.f32.partialorder %v665, 8.507059e+37
        %v667 = vand.u32 %v606, 2147483648
        %v668 = vor.u32 1.1754944e-38, %v667
        %v669 = vsel %vm666, %v668, %v664
        %v670 = vmul.f32 1.0, %v669
        %v671 = vrcp.pop %v607
        %v672 = vmul.f32 %v607, %v671
        %v673 = vsub.f32 1.0, %v672
        %v674 = vmul.f32 %v671, %v673
        %v675 = vadd.f32 %v671, %v674
        %vm676 = vweird.f32 %v607
        %vm677 = vweird.f32 %v671
        %vm678 = vmor %vm676, %vm677
        %v679 = vsel %vm678, %v671, %v675
        %v680 = vand.u32 2147483647, %v607
        %vm681 = vcmp.eq.f32.partialorder %v680, 8.507059e+37
        %v682 = vand.u32 %v607, 2147483648
        %v683 = vor.u32 1.1754944e-38, %v682
        %v684 = vsel %vm681, %v683, %v679
        %v685 = vmul.f32 1.0, %v684
        %v686 = vrcp.pop %v608
        %v687 = vmul.f32 %v608, %v686
        %v688 = vsub.f32 1.0, %v687
        %v689 = vmul.f32 %v686, %v688
        %v690 = vadd.f32 %v686, %v689
        %vm691 = vweird.f32 %v608
        %vm692 = vweird.f32 %v686
        %vm693 = vmor %vm691, %vm692
        %v694 = vsel %vm693, %v686, %v690
        %v695 = vand.u32 2147483647, %v608
        %vm696 = vcmp.eq.f32.partialorder %v695, 8.507059e+37
        %v697 = vand.u32 %v608, 2147483648
        %v698 = vor.u32 1.1754944e-38, %v697
        %v699 = vsel %vm696, %v698, %v694
        %v700 = vmul.f32 1.0, %v699
        %v701 = vrcp.pop %v609
        %v702 = vmul.f32 %v609, %v701
        %v703 = vsub.f32 1.0, %v702
        %v704 = vmul.f32 %v701, %v703
        %v705 = vadd.f32 %v701, %v704
        %vm706 = vweird.f32 %v609
        %vm707 = vweird.f32 %v701
        %vm708 = vmor %vm706, %vm707
        %v709 = vsel %vm708, %v701, %v705
        %v710 = vand.u32 2147483647, %v609
        %vm711 = vcmp.eq.f32.partialorder %v710, 8.507059e+37
        %v712 = vand.u32 %v609, 2147483648
        %v713 = vor.u32 1.1754944e-38, %v712
        %v714 = vsel %vm711, %v713, %v709
        %v715 = vmul.f32 1.0, %v714
        %v716 = vrcp.pop %v610
        %v717 = vmul.f32 %v610, %v716
        %v718 = vsub.f32 1.0, %v717
        %v719 = vmul.f32 %v716, %v718
        %v720 = vadd.f32 %v716, %v719
        %vm721 = vweird.f32 %v610
        %vm722 = vweird.f32 %v716
        %vm723 = vmor %vm721, %vm722
        %v724 = vsel %vm723, %v716, %v720
        %v725 = vand.u32 2147483647, %v610
        %vm726 = vcmp.eq.f32.partialorder %v725, 8.507059e+37
        %v727 = vand.u32 %v610, 2147483648
        %v728 = vor.u32 1.1754944e-38, %v727
        %v729 = vsel %vm726, %v728, %v724
        %v730 = vmul.f32 1.0, %v729
        %v731 = vtanh.pop %v571
        %v732 = vtanh.pop %v572
        %v733 = vtanh.pop %v573
        %v734 = vtanh.pop %v574
        %v735 = vtanh.pop %v575
        %v736 = vtanh.pop %v576
        %v737 = vtanh.pop %v577
        %v738 = vtanh.pop %v578
        %v740 = vrot.slane %v531, 1
        %v741 = vrot.slane %v531, 2
        %v742 = vrot.slane %v531, 3
        %v743 = vrot.slane %v531, 4
        %v744 = vrot.slane %v531, 5
        %v745 = vrot.slane %v531, 6
        %v746 = vrot.slane %v531, 7
        %747 = vrot.lane.b32.xlu0 %v531, 32
        %v748 = vpop.permute.xlu0 %747
        %749 = vrot.lane.b32.xlu0 %v740, 32
        %v750 = vpop.permute.xlu0 %749
        %751 = vrot.lane.b32.xlu0 %v741, 32
        %v752 = vpop.permute.xlu0 %751
        %753 = vrot.lane.b32.xlu0 %v742, 32
        %v754 = vpop.permute.xlu0 %753
        %755 = vrot.lane.b32.xlu0 %v743, 32
        %v756 = vpop.permute.xlu0 %755
        %757 = vrot.lane.b32.xlu0 %v744, 32
        %v758 = vpop.permute.xlu0 %757
        %759 = vrot.lane.b32.xlu0 %v745, 32
        %v760 = vpop.permute.xlu0 %759
        %761 = vrot.lane.b32.xlu0 %v746, 32
        %v762 = vpop.permute.xlu0 %761
        %v771 = vmul.f32 %v625, %v748
        %v772 = vmul.f32 %v640, %v750
        %v773 = vmul.f32 %v655, %v752
        %v774 = vmul.f32 %v670, %v754
        %v775 = vmul.f32 %v685, %v756
        %v776 = vmul.f32 %v700, %v758
        %v777 = vmul.f32 %v715, %v760
        %v778 = vmul.f32 %v730, %v762
        %787 = vrot.lane.b32.xlu0 %v731, 32
        %v788 = vpop.permute.xlu0 %787
        %789 = vrot.lane.b32.xlu0 %v732, 32
        %v790 = vpop.permute.xlu0 %789
        %791 = vrot.lane.b32.xlu0 %v733, 32
        %v792 = vpop.permute.xlu0 %791
        %793 = vrot.lane.b32.xlu0 %v734, 32
        %v794 = vpop.permute.xlu0 %793
        %795 = vrot.lane.b32.xlu0 %v735, 32
        %v796 = vpop.permute.xlu0 %795
        %797 = vrot.lane.b32.xlu0 %v736, 32
        %v798 = vpop.permute.xlu0 %797
        %799 = vrot.lane.b32.xlu0 %v737, 32
        %v800 = vpop.permute.xlu0 %799
        %801 = vrot.lane.b32.xlu0 %v738, 32
        %v802 = vpop.permute.xlu0 %801
        %v811 = vmul.f32 %v625, %v788
        %v812 = vmul.f32 %v640, %v790
        %v813 = vmul.f32 %v655, %v792
        %v814 = vmul.f32 %v670, %v794
        %v815 = vmul.f32 %v685, %v796
        %v816 = vmul.f32 %v700, %v798
        %v817 = vmul.f32 %v715, %v800
        %v818 = vmul.f32 %v730, %v802
        %827 = vrot.lane.b32.xlu0 %v811, 32
        %v828 = vpop.permute.xlu0 %827
        %829 = vrot.lane.b32.xlu0 %v812, 32
        %v830 = vpop.permute.xlu0 %829
        %831 = vrot.lane.b32.xlu0 %v813, 32
        %v832 = vpop.permute.xlu0 %831
        %833 = vrot.lane.b32.xlu0 %v814, 32
        %v834 = vpop.permute.xlu0 %833
        %835 = vrot.lane.b32.xlu0 %v815, 32
        %v836 = vpop.permute.xlu0 %835
        %837 = vrot.lane.b32.xlu0 %v816, 32
        %v838 = vpop.permute.xlu0 %837
        %839 = vrot.lane.b32.xlu0 %v817, 32
        %v840 = vpop.permute.xlu0 %839
        %841 = vrot.lane.b32.xlu0 %v818, 32
        %v842 = vpop.permute.xlu0 %841
        %v851 = vadd.f32 %v771, %v828
        %v852 = vadd.f32 %v772, %v830
        %v853 = vadd.f32 %v773, %v832
        %v854 = vadd.f32 %v774, %v834
        %v855 = vadd.f32 %v775, %v836
        %v856 = vadd.f32 %v776, %v838
        %v857 = vadd.f32 %v777, %v840
        %v858 = vadd.f32 %v778, %v842
        %v859 = vtanh.pop %v851
        %v860 = vtanh.pop %v852
        %v861 = vtanh.pop %v853
        %v862 = vtanh.pop %v854
        %v863 = vtanh.pop %v855
        %v864 = vtanh.pop %v856
        %v865 = vtanh.pop %v857
        %v866 = vtanh.pop %v858
        %875 = vrot.lane.b32.xlu0 %v859, 32
        %v876 = vpop.permute.xlu0 %875
        %877 = vrot.lane.b32.xlu0 %v860, 32
        %v878 = vpop.permute.xlu0 %877
        %879 = vrot.lane.b32.xlu0 %v861, 32
        %v880 = vpop.permute.xlu0 %879
        %881 = vrot.lane.b32.xlu0 %v862, 32
        %v882 = vpop.permute.xlu0 %881
        %883 = vrot.lane.b32.xlu0 %v863, 32
        %v884 = vpop.permute.xlu0 %883
        %885 = vrot.lane.b32.xlu0 %v864, 32
        %v886 = vpop.permute.xlu0 %885
        %887 = vrot.lane.b32.xlu0 %v865, 32
        %v888 = vpop.permute.xlu0 %887
        %889 = vrot.lane.b32.xlu0 %v866, 32
        %v890 = vpop.permute.xlu0 %889
        %v899 = vmul.f32 %v625, %v876
        %v900 = vmul.f32 %v640, %v878
        %v901 = vmul.f32 %v655, %v880
        %v902 = vmul.f32 %v670, %v882
        %v903 = vmul.f32 %v685, %v884
        %v904 = vmul.f32 %v700, %v886
        %v905 = vmul.f32 %v715, %v888
        %v906 = vmul.f32 %v730, %v890
        %915 = vrot.lane.b32.xlu0 %v899, 64
        %v916 = vpop.permute.xlu0 %915
        %917 = vrot.lane.b32.xlu0 %v900, 64
        %v918 = vpop.permute.xlu0 %917
        %919 = vrot.lane.b32.xlu0 %v901, 64
        %v920 = vpop.permute.xlu0 %919
        %921 = vrot.lane.b32.xlu0 %v902, 64
        %v922 = vpop.permute.xlu0 %921
        %923 = vrot.lane.b32.xlu0 %v903, 64
        %v924 = vpop.permute.xlu0 %923
        %925 = vrot.lane.b32.xlu0 %v904, 64
        %v926 = vpop.permute.xlu0 %925
        %927 = vrot.lane.b32.xlu0 %v905, 64
        %v928 = vpop.permute.xlu0 %927
        %929 = vrot.lane.b32.xlu0 %v906, 64
        %v930 = vpop.permute.xlu0 %929
        %vm939 = vcmask 253952
        %940 = vst.msk [vmem:[#allocation4] sm:$0x1] %vm939, %v916
        %941 = vst.msk [vmem:[#allocation4 + $0x8] sm:$0x1] %vm939, %v918
        %942 = vst.msk [vmem:[#allocation4 + $0x10] sm:$0x1] %vm939, %v920
        %943 = vst.msk [vmem:[#allocation4 + $0x18] sm:$0x1] %vm939, %v922
        %944 = vst.msk [vmem:[#allocation4 + $0x20] sm:$0x1] %vm939, %v924
        %945 = vst.msk [vmem:[#allocation4 + $0x28] sm:$0x1] %vm939, %v926
        %946 = vst.msk [vmem:[#allocation4 + $0x30] sm:$0x1] %vm939, %v928
        %947 = vst.msk [vmem:[#allocation4 + $0x38] sm:$0x1] %vm939, %v930
        %v948 = vrot.slane %v900, 7
        %vm949 = vcmask 1041409
        %v950 = vsel %vm949, %v948, %v899
        %v951 = vrot.slane %v901, 6
        %vm952 = vcmask 1042434
        %v953 = vsel %vm952, %v951, %v950
        %v954 = vrot.slane %v902, 5
        %vm955 = vcmask 1043459
        %v956 = vsel %vm955, %v954, %v953
        %v957 = vrot.slane %v903, 4
        %vm958 = vcmask 1044484
        %v959 = vsel %vm958, %v957, %v956
        %v960 = vrot.slane %v904, 3
        %vm961 = vcmask 1045509
        %v962 = vsel %vm961, %v960, %v959
        %v963 = vrot.slane %v905, 2
        %vm964 = vcmask 1046534
        %v965 = vsel %vm964, %v963, %v962
        %v966 = vrot.slane %v906, 1
        %vm967 = vcmask 1047559
        %v968 = vsel %vm967, %v966, %v965
        %969 = vrot.lane.b32.xlu0 %v968, 64
        %v970 = vpop.permute.xlu0 %969
        %v971 = vsel %vm464, %v970, 0
        %973 = vmatpush.msra.mxu0 0.0
        %974 = vmatpush.msra.mxu0 0.0
        %975 = vmatpush.msra.mxu0 0.0
        %976 = vmatpush.msra.mxu0 0.0
        %977 = vmatpush.msra.mxu0 0.0
        %978 = vmatpush.msra.mxu0 0.0
        %979 = vmatpush.msra.mxu0 0.0
        %980 = vmatpush.msra.mxu0 0.0
        %981 = vmatpush.msra.mxu0 0.0
        %982 = vmatpush.msra.mxu0 0.0
        %983 = vmatpush.msra.mxu0 0.0
        %984 = vmatpush.msra.mxu0 0.0
        %985 = vmatpush.msra.mxu0 %v459
        %986 = vmatpush.msra.mxu0 %v458
        %987 = vmatpush.msra.mxu0 %v457
        %988 = vmatpush.msra.mxu0 %v456
        %989 = vmatmul.f32.gmra.mxu0 %v971
        %v990 = vpop.f32.mrf.mxu0
        %v991 = vadd.f32 0.0, %v990
        %992 = vdwg.mxu0
        %v994 = vrot.slane %v991, 7
        %v995 = vrot.slane %v991, 1
        %v996 = vrot.slane %v991, 2
        %v997 = vrot.slane %v991, 3
        %v998 = vrot.slane %v991, 4
        %v999 = vrot.slane %v991, 5
        %v1000 = vrot.slane %v991, 6
        %v1009 = vadd.f32 %v507, %v994
        %v1010 = vadd.f32 %v510, %v991
        %v1011 = vadd.f32 %v513, %v995
        %v1012 = vadd.f32 %v516, %v996
        %v1013 = vadd.f32 %v519, %v997
        %v1014 = vadd.f32 %v522, %v998
        %v1015 = vadd.f32 %v525, %v999
        %v1016 = vadd.f32 %v528, %v1000
        %v1017 = vxor.u32 %v1009, 2147483648
        %v1018 = vxor.u32 %v1010, 2147483648
        %v1019 = vxor.u32 %v1011, 2147483648
        %v1020 = vxor.u32 %v1012, 2147483648
        %v1021 = vxor.u32 %v1013, 2147483648
        %v1022 = vxor.u32 %v1014, 2147483648
        %v1023 = vxor.u32 %v1015, 2147483648
        %v1024 = vxor.u32 %v1016, 2147483648
        %v1025 = vmul.f32 %v1017, 1.442695
        %v1026 = vpow.pop %v1025
        %v1027 = vmul.f32 %v1018, 1.442695
        %v1028 = vpow.pop %v1027
        %v1029 = vmul.f32 %v1019, 1.442695
        %v1030 = vpow.pop %v1029
        %v1031 = vmul.f32 %v1020, 1.442695
        %v1032 = vpow.pop %v1031
        %v1033 = vmul.f32 %v1021, 1.442695
        %v1034 = vpow.pop %v1033
        %v1035 = vmul.f32 %v1022, 1.442695
        %v1036 = vpow.pop %v1035
        %v1037 = vmul.f32 %v1023, 1.442695
        %v1038 = vpow.pop %v1037
        %v1039 = vmul.f32 %v1024, 1.442695
        %v1040 = vpow.pop %v1039
        %v1041 = vadd.f32 %v1026, 1.0
        %v1042 = vadd.f32 %v1028, 1.0
        %v1043 = vadd.f32 %v1030, 1.0
        %v1044 = vadd.f32 %v1032, 1.0
        %v1045 = vadd.f32 %v1034, 1.0
        %v1046 = vadd.f32 %v1036, 1.0
        %v1047 = vadd.f32 %v1038, 1.0
        %v1048 = vadd.f32 %v1040, 1.0
        %v1049 = vrcp.pop %v1041
        %v1050 = vmul.f32 %v1041, %v1049
        %v1051 = vsub.f32 1.0, %v1050
        %v1052 = vmul.f32 %v1049, %v1051
        %v1053 = vadd.f32 %v1049, %v1052
        %vm1054 = vweird.f32 %v1041
        %vm1055 = vweird.f32 %v1049
        %vm1056 = vmor %vm1054, %vm1055
        %v1057 = vsel %vm1056, %v1049, %v1053
        %v1058 = vand.u32 2147483647, %v1041
        %vm1059 = vcmp.eq.f32.partialorder %v1058, 8.507059e+37
        %v1060 = vand.u32 %v1041, 2147483648
        %v1061 = vor.u32 1.1754944e-38, %v1060
        %v1062 = vsel %vm1059, %v1061, %v1057
        %v1063 = vmul.f32 1.0, %v1062
        %v1064 = vrcp.pop %v1042
        %v1065 = vmul.f32 %v1042, %v1064
        %v1066 = vsub.f32 1.0, %v1065
        %v1067 = vmul.f32 %v1064, %v1066
        %v1068 = vadd.f32 %v1064, %v1067
        %vm1069 = vweird.f32 %v1042
        %vm1070 = vweird.f32 %v1064
        %vm1071 = vmor %vm1069, %vm1070
        %v1072 = vsel %vm1071, %v1064, %v1068
        %v1073 = vand.u32 2147483647, %v1042
        %vm1074 = vcmp.eq.f32.partialorder %v1073, 8.507059e+37
        %v1075 = vand.u32 %v1042, 2147483648
        %v1076 = vor.u32 1.1754944e-38, %v1075
        %v1077 = vsel %vm1074, %v1076, %v1072
        %v1078 = vmul.f32 1.0, %v1077
        %v1079 = vrcp.pop %v1043
        %v1080 = vmul.f32 %v1043, %v1079
        %v1081 = vsub.f32 1.0, %v1080
        %v1082 = vmul.f32 %v1079, %v1081
        %v1083 = vadd.f32 %v1079, %v1082
        %vm1084 = vweird.f32 %v1043
        %vm1085 = vweird.f32 %v1079
        %vm1086 = vmor %vm1084, %vm1085
        %v1087 = vsel %vm1086, %v1079, %v1083
        %v1088 = vand.u32 2147483647, %v1043
        %vm1089 = vcmp.eq.f32.partialorder %v1088, 8.507059e+37
        %v1090 = vand.u32 %v1043, 2147483648
        %v1091 = vor.u32 1.1754944e-38, %v1090
        %v1092 = vsel %vm1089, %v1091, %v1087
        %v1093 = vmul.f32 1.0, %v1092
        %v1094 = vrcp.pop %v1044
        %v1095 = vmul.f32 %v1044, %v1094
        %v1096 = vsub.f32 1.0, %v1095
        %v1097 = vmul.f32 %v1094, %v1096
        %v1098 = vadd.f32 %v1094, %v1097
        %vm1099 = vweird.f32 %v1044
        %vm1100 = vweird.f32 %v1094
        %vm1101 = vmor %vm1099, %vm1100
        %v1102 = vsel %vm1101, %v1094, %v1098
        %v1103 = vand.u32 2147483647, %v1044
        %vm1104 = vcmp.eq.f32.partialorder %v1103, 8.507059e+37
        %v1105 = vand.u32 %v1044, 2147483648
        %v1106 = vor.u32 1.1754944e-38, %v1105
        %v1107 = vsel %vm1104, %v1106, %v1102
        %v1108 = vmul.f32 1.0, %v1107
        %v1109 = vrcp.pop %v1045
        %v1110 = vmul.f32 %v1045, %v1109
        %v1111 = vsub.f32 1.0, %v1110
        %v1112 = vmul.f32 %v1109, %v1111
        %v1113 = vadd.f32 %v1109, %v1112
        %vm1114 = vweird.f32 %v1045
        %vm1115 = vweird.f32 %v1109
        %vm1116 = vmor %vm1114, %vm1115
        %v1117 = vsel %vm1116, %v1109, %v1113
        %v1118 = vand.u32 2147483647, %v1045
        %vm1119 = vcmp.eq.f32.partialorder %v1118, 8.507059e+37
        %v1120 = vand.u32 %v1045, 2147483648
        %v1121 = vor.u32 1.1754944e-38, %v1120
        %v1122 = vsel %vm1119, %v1121, %v1117
        %v1123 = vmul.f32 1.0, %v1122
        %v1124 = vrcp.pop %v1046
        %v1125 = vmul.f32 %v1046, %v1124
        %v1126 = vsub.f32 1.0, %v1125
        %v1127 = vmul.f32 %v1124, %v1126
        %v1128 = vadd.f32 %v1124, %v1127
        %vm1129 = vweird.f32 %v1046
        %vm1130 = vweird.f32 %v1124
        %vm1131 = vmor %vm1129, %vm1130
        %v1132 = vsel %vm1131, %v1124, %v1128
        %v1133 = vand.u32 2147483647, %v1046
        %vm1134 = vcmp.eq.f32.partialorder %v1133, 8.507059e+37
        %v1135 = vand.u32 %v1046, 2147483648
        %v1136 = vor.u32 1.1754944e-38, %v1135
        %v1137 = vsel %vm1134, %v1136, %v1132
        %v1138 = vmul.f32 1.0, %v1137
        %v1139 = vrcp.pop %v1047
        %v1140 = vmul.f32 %v1047, %v1139
        %v1141 = vsub.f32 1.0, %v1140
        %v1142 = vmul.f32 %v1139, %v1141
        %v1143 = vadd.f32 %v1139, %v1142
        %vm1144 = vweird.f32 %v1047
        %vm1145 = vweird.f32 %v1139
        %vm1146 = vmor %vm1144, %vm1145
        %v1147 = vsel %vm1146, %v1139, %v1143
        %v1148 = vand.u32 2147483647, %v1047
        %vm1149 = vcmp.eq.f32.partialorder %v1148, 8.507059e+37
        %v1150 = vand.u32 %v1047, 2147483648
        %v1151 = vor.u32 1.1754944e-38, %v1150
        %v1152 = vsel %vm1149, %v1151, %v1147
        %v1153 = vmul.f32 1.0, %v1152
        %v1154 = vrcp.pop %v1048
        %v1155 = vmul.f32 %v1048, %v1154
        %v1156 = vsub.f32 1.0, %v1155
        %v1157 = vmul.f32 %v1154, %v1156
        %v1158 = vadd.f32 %v1154, %v1157
        %vm1159 = vweird.f32 %v1048
        %vm1160 = vweird.f32 %v1154
        %vm1161 = vmor %vm1159, %vm1160
        %v1162 = vsel %vm1161, %v1154, %v1158
        %v1163 = vand.u32 2147483647, %v1048
        %vm1164 = vcmp.eq.f32.partialorder %v1163, 8.507059e+37
        %v1165 = vand.u32 %v1048, 2147483648
        %v1166 = vor.u32 1.1754944e-38, %v1165
        %v1167 = vsel %vm1164, %v1166, %v1162
        %v1168 = vmul.f32 1.0, %v1167
        %v1169 = vtanh.pop %v1009
        %v1170 = vtanh.pop %v1010
        %v1171 = vtanh.pop %v1011
        %v1172 = vtanh.pop %v1012
        %v1173 = vtanh.pop %v1013
        %v1174 = vtanh.pop %v1014
        %v1175 = vtanh.pop %v1015
        %v1176 = vtanh.pop %v1016
        %v1185 = vrot.slane %v851, 7
        %v1186 = vrot.slane %v852, 7
        %v1187 = vrot.slane %v853, 7
        %v1188 = vrot.slane %v854, 7
        %v1189 = vrot.slane %v855, 7
        %v1190 = vrot.slane %v856, 7
        %v1191 = vrot.slane %v857, 7
        %v1192 = vrot.slane %v858, 7
        %v1201 = vmul.f32 %v1063, %v1185
        %v1202 = vmul.f32 %v1078, %v1186
        %v1203 = vmul.f32 %v1093, %v1187
        %v1204 = vmul.f32 %v1108, %v1188
        %v1205 = vmul.f32 %v1123, %v1189
        %v1206 = vmul.f32 %v1138, %v1190
        %v1207 = vmul.f32 %v1153, %v1191
        %v1208 = vmul.f32 %v1168, %v1192
        %1217 = vrot.lane.b32.xlu0 %v1169, 32
        %v1218 = vpop.permute.xlu0 %1217
        %1219 = vrot.lane.b32.xlu0 %v1170, 32
        %v1220 = vpop.permute.xlu0 %1219
        %1221 = vrot.lane.b32.xlu0 %v1171, 32
        %v1222 = vpop.permute.xlu0 %1221
        %1223 = vrot.lane.b32.xlu0 %v1172, 32
        %v1224 = vpop.permute.xlu0 %1223
        %1225 = vrot.lane.b32.xlu0 %v1173, 32
        %v1226 = vpop.permute.xlu0 %1225
        %1227 = vrot.lane.b32.xlu0 %v1174, 32
        %v1228 = vpop.permute.xlu0 %1227
        %1229 = vrot.lane.b32.xlu0 %v1175, 32
        %v1230 = vpop.permute.xlu0 %1229
        %1231 = vrot.lane.b32.xlu0 %v1176, 32
        %v1232 = vpop.permute.xlu0 %1231
        %v1241 = vmul.f32 %v1063, %v1218
        %v1242 = vmul.f32 %v1078, %v1220
        %v1243 = vmul.f32 %v1093, %v1222
        %v1244 = vmul.f32 %v1108, %v1224
        %v1245 = vmul.f32 %v1123, %v1226
        %v1246 = vmul.f32 %v1138, %v1228
        %v1247 = vmul.f32 %v1153, %v1230
        %v1248 = vmul.f32 %v1168, %v1232
        %1257 = vrot.lane.b32.xlu0 %v1241, 32
        %v1258 = vpop.permute.xlu0 %1257
        %1259 = vrot.lane.b32.xlu0 %v1242, 32
        %v1260 = vpop.permute.xlu0 %1259
        %1261 = vrot.lane.b32.xlu0 %v1243, 32
        %v1262 = vpop.permute.xlu0 %1261
        %1263 = vrot.lane.b32.xlu0 %v1244, 32
        %v1264 = vpop.permute.xlu0 %1263
        %1265 = vrot.lane.b32.xlu0 %v1245, 32
        %v1266 = vpop.permute.xlu0 %1265
        %1267 = vrot.lane.b32.xlu0 %v1246, 32
        %v1268 = vpop.permute.xlu0 %1267
        %1269 = vrot.lane.b32.xlu0 %v1247, 32
        %v1270 = vpop.permute.xlu0 %1269
        %1271 = vrot.lane.b32.xlu0 %v1248, 32
        %v1272 = vpop.permute.xlu0 %1271
        %v1281 = vadd.f32 %v1201, %v1258
        %v1282 = vadd.f32 %v1202, %v1260
        %v1283 = vadd.f32 %v1203, %v1262
        %v1284 = vadd.f32 %v1204, %v1264
        %v1285 = vadd.f32 %v1205, %v1266
        %v1286 = vadd.f32 %v1206, %v1268
        %v1287 = vadd.f32 %v1207, %v1270
        %v1288 = vadd.f32 %v1208, %v1272
        %v1289 = vtanh.pop %v1281
        %v1290 = vtanh.pop %v1282
        %v1291 = vtanh.pop %v1283
        %v1292 = vtanh.pop %v1284
        %v1293 = vtanh.pop %v1285
        %v1294 = vtanh.pop %v1286
        %v1295 = vtanh.pop %v1287
        %v1296 = vtanh.pop %v1288
        %1305 = vrot.lane.b32.xlu0 %v1289, 32
        %v1306 = vpop.permute.xlu0 %1305
        %1307 = vrot.lane.b32.xlu0 %v1290, 32
        %v1308 = vpop.permute.xlu0 %1307
        %1309 = vrot.lane.b32.xlu0 %v1291, 32
        %v1310 = vpop.permute.xlu0 %1309
        %1311 = vrot.lane.b32.xlu0 %v1292, 32
        %v1312 = vpop.permute.xlu0 %1311
        %1313 = vrot.lane.b32.xlu0 %v1293, 32
        %v1314 = vpop.permute.xlu0 %1313
        %1315 = vrot.lane.b32.xlu0 %v1294, 32
        %v1316 = vpop.permute.xlu0 %1315
        %1317 = vrot.lane.b32.xlu0 %v1295, 32
        %v1318 = vpop.permute.xlu0 %1317
        %1319 = vrot.lane.b32.xlu0 %v1296, 32
        %v1320 = vpop.permute.xlu0 %1319
        %v1329 = vmul.f32 %v1063, %v1306
        %v1330 = vmul.f32 %v1078, %v1308
        %v1331 = vmul.f32 %v1093, %v1310
        %v1332 = vmul.f32 %v1108, %v1312
        %v1333 = vmul.f32 %v1123, %v1314
        %v1334 = vmul.f32 %v1138, %v1316
        %v1335 = vmul.f32 %v1153, %v1318
        %v1336 = vmul.f32 %v1168, %v1320
        %1345 = vrot.lane.b32.xlu0 %v1329, 64
        %v1346 = vpop.permute.xlu0 %1345
        %1347 = vrot.lane.b32.xlu0 %v1330, 64
        %v1348 = vpop.permute.xlu0 %1347
        %1349 = vrot.lane.b32.xlu0 %v1331, 64
        %v1350 = vpop.permute.xlu0 %1349
        %1351 = vrot.lane.b32.xlu0 %v1332, 64
        %v1352 = vpop.permute.xlu0 %1351
        %1353 = vrot.lane.b32.xlu0 %v1333, 64
        %v1354 = vpop.permute.xlu0 %1353
        %1355 = vrot.lane.b32.xlu0 %v1334, 64
        %v1356 = vpop.permute.xlu0 %1355
        %1357 = vrot.lane.b32.xlu0 %v1335, 64
        %v1358 = vpop.permute.xlu0 %1357
        %1359 = vrot.lane.b32.xlu0 %v1336, 64
        %v1360 = vpop.permute.xlu0 %1359
        %vm1369 = vcmask 254977
        %1370 = vst.msk [vmem:[#allocation4] sm:$0x2] %vm1369, %v1346
        %1371 = vst.msk [vmem:[#allocation4 + $0x8] sm:$0x2] %vm1369, %v1348
        %1372 = vst.msk [vmem:[#allocation4 + $0x10] sm:$0x2] %vm1369, %v1350
        %1373 = vst.msk [vmem:[#allocation4 + $0x18] sm:$0x2] %vm1369, %v1352
        %1374 = vst.msk [vmem:[#allocation4 + $0x20] sm:$0x2] %vm1369, %v1354
        %1375 = vst.msk [vmem:[#allocation4 + $0x28] sm:$0x2] %vm1369, %v1356
        %1376 = vst.msk [vmem:[#allocation4 + $0x30] sm:$0x2] %vm1369, %v1358
        %1377 = vst.msk [vmem:[#allocation4 + $0x38] sm:$0x2] %vm1369, %v1360
        %v1378 = vrot.slane %v1329, 1
        %v1379 = vsel %vm949, %v1330, %v1378
        %v1380 = vrot.slane %v1331, 7
        %v1381 = vsel %vm952, %v1380, %v1379
        %v1382 = vrot.slane %v1332, 6
        %v1383 = vsel %vm955, %v1382, %v1381
        %v1384 = vrot.slane %v1333, 5
        %v1385 = vsel %vm958, %v1384, %v1383
        %v1386 = vrot.slane %v1334, 4
        %v1387 = vsel %vm961, %v1386, %v1385
        %v1388 = vrot.slane %v1335, 3
        %v1389 = vsel %vm964, %v1388, %v1387
        %v1390 = vrot.slane %v1336, 2
        %v1391 = vsel %vm967, %v1390, %v1389
        %1392 = vrot.lane.b32.xlu0 %v1391, 64
        %v1393 = vpop.permute.xlu0 %1392
        %v1394 = vsel %vm464, %v1393, 0
        %1396 = vmatpush.msra.mxu0 0.0
        %1397 = vmatpush.msra.mxu0 0.0
        %1398 = vmatpush.msra.mxu0 0.0
        %1399 = vmatpush.msra.mxu0 0.0
        %1400 = vmatpush.msra.mxu0 0.0
        %1401 = vmatpush.msra.mxu0 0.0
        %1402 = vmatpush.msra.mxu0 0.0
        %1403 = vmatpush.msra.mxu0 0.0
        %1404 = vmatpush.msra.mxu0 0.0
        %1405 = vmatpush.msra.mxu0 0.0
        %1406 = vmatpush.msra.mxu0 0.0
        %1407 = vmatpush.msra.mxu0 0.0
        %1408 = vmatpush.msra.mxu0 %v459
        %1409 = vmatpush.msra.mxu0 %v458
        %1410 = vmatpush.msra.mxu0 %v457
        %1411 = vmatpush.msra.mxu0 %v456
        %1412 = vmatmul.f32.gmra.mxu0 %v1394
        %v1413 = vpop.f32.mrf.mxu0
        %v1414 = vadd.f32 0.0, %v1413
        %1415 = vdwg.mxu0
        %v1417 = vrot.slane %v1414, 6
        %v1418 = vrot.slane %v1414, 7
        %v1419 = vrot.slane %v1414, 1
        %v1420 = vrot.slane %v1414, 2
        %v1421 = vrot.slane %v1414, 3
        %v1422 = vrot.slane %v1414, 4
        %v1423 = vrot.slane %v1414, 5
        %v1432 = vadd.f32 %v507, %v1417
        %v1433 = vadd.f32 %v510, %v1418
        %v1434 = vadd.f32 %v513, %v1414
        %v1435 = vadd.f32 %v516, %v1419
        %v1436 = vadd.f32 %v519, %v1420
        %v1437 = vadd.f32 %v522, %v1421
        %v1438 = vadd.f32 %v525, %v1422
        %v1439 = vadd.f32 %v528, %v1423
        %v1440 = vxor.u32 %v1432, 2147483648
        %v1441 = vxor.u32 %v1433, 2147483648
        %v1442 = vxor.u32 %v1434, 2147483648
        %v1443 = vxor.u32 %v1435, 2147483648
        %v1444 = vxor.u32 %v1436, 2147483648
        %v1445 = vxor.u32 %v1437, 2147483648
        %v1446 = vxor.u32 %v1438, 2147483648
        %v1447 = vxor.u32 %v1439, 2147483648
        %v1448 = vmul.f32 %v1440, 1.442695
        %v1449 = vpow.pop %v1448
        %v1450 = vmul.f32 %v1441, 1.442695
        %v1451 = vpow.pop %v1450
        %v1452 = vmul.f32 %v1442, 1.442695
        %v1453 = vpow.pop %v1452
        %v1454 = vmul.f32 %v1443, 1.442695
        %v1455 = vpow.pop %v1454
        %v1456 = vmul.f32 %v1444, 1.442695
        %v1457 = vpow.pop %v1456
        %v1458 = vmul.f32 %v1445, 1.442695
        %v1459 = vpow.pop %v1458
        %v1460 = vmul.f32 %v1446, 1.442695
        %v1461 = vpow.pop %v1460
        %v1462 = vmul.f32 %v1447, 1.442695
        %v1463 = vpow.pop %v1462
        %v1464 = vadd.f32 %v1449, 1.0
        %v1465 = vadd.f32 %v1451, 1.0
        %v1466 = vadd.f32 %v1453, 1.0
        %v1467 = vadd.f32 %v1455, 1.0
        %v1468 = vadd.f32 %v1457, 1.0
        %v1469 = vadd.f32 %v1459, 1.0
        %v1470 = vadd.f32 %v1461, 1.0
        %v1471 = vadd.f32 %v1463, 1.0
        %v1472 = vrcp.pop %v1464
        %v1473 = vmul.f32 %v1464, %v1472
        %v1474 = vsub.f32 1.0, %v1473
        %v1475 = vmul.f32 %v1472, %v1474
        %v1476 = vadd.f32 %v1472, %v1475
        %vm1477 = vweird.f32 %v1464
        %vm1478 = vweird.f32 %v1472
        %vm1479 = vmor %vm1477, %vm1478
        %v1480 = vsel %vm1479, %v1472, %v1476
        %v1481 = vand.u32 2147483647, %v1464
        %vm1482 = vcmp.eq.f32.partialorder %v1481, 8.507059e+37
        %v1483 = vand.u32 %v1464, 2147483648
        %v1484 = vor.u32 1.1754944e-38, %v1483
        %v1485 = vsel %vm1482, %v1484, %v1480
        %v1486 = vmul.f32 1.0, %v1485
        %v1487 = vrcp.pop %v1465
        %v1488 = vmul.f32 %v1465, %v1487
        %v1489 = vsub.f32 1.0, %v1488
        %v1490 = vmul.f32 %v1487, %v1489
        %v1491 = vadd.f32 %v1487, %v1490
        %vm1492 = vweird.f32 %v1465
        %vm1493 = vweird.f32 %v1487
        %vm1494 = vmor %vm1492, %vm1493
        %v1495 = vsel %vm1494, %v1487, %v1491
        %v1496 = vand.u32 2147483647, %v1465
        %vm1497 = vcmp.eq.f32.partialorder %v1496, 8.507059e+37
        %v1498 = vand.u32 %v1465, 2147483648
        %v1499 = vor.u32 1.1754944e-38, %v1498
        %v1500 = vsel %vm1497, %v1499, %v1495
        %v1501 = vmul.f32 1.0, %v1500
        %v1502 = vrcp.pop %v1466
        %v1503 = vmul.f32 %v1466, %v1502
        %v1504 = vsub.f32 1.0, %v1503
        %v1505 = vmul.f32 %v1502, %v1504
        %v1506 = vadd.f32 %v1502, %v1505
        %vm1507 = vweird.f32 %v1466
        %vm1508 = vweird.f32 %v1502
        %vm1509 = vmor %vm1507, %vm1508
        %v1510 = vsel %vm1509, %v1502, %v1506
        %v1511 = vand.u32 2147483647, %v1466
        %vm1512 = vcmp.eq.f32.partialorder %v1511, 8.507059e+37
        %v1513 = vand.u32 %v1466, 2147483648
        %v1514 = vor.u32 1.1754944e-38, %v1513
        %v1515 = vsel %vm1512, %v1514, %v1510
        %v1516 = vmul.f32 1.0, %v1515
        %v1517 = vrcp.pop %v1467
        %v1518 = vmul.f32 %v1467, %v1517
        %v1519 = vsub.f32 1.0, %v1518
        %v1520 = vmul.f32 %v1517, %v1519
        %v1521 = vadd.f32 %v1517, %v1520
        %vm1522 = vweird.f32 %v1467
        %vm1523 = vweird.f32 %v1517
        %vm1524 = vmor %vm1522, %vm1523
        %v1525 = vsel %vm1524, %v1517, %v1521
        %v1526 = vand.u32 2147483647, %v1467
        %vm1527 = vcmp.eq.f32.partialorder %v1526, 8.507059e+37
        %v1528 = vand.u32 %v1467, 2147483648
        %v1529 = vor.u32 1.1754944e-38, %v1528
        %v1530 = vsel %vm1527, %v1529, %v1525
        %v1531 = vmul.f32 1.0, %v1530
        %v1532 = vrcp.pop %v1468
        %v1533 = vmul.f32 %v1468, %v1532
        %v1534 = vsub.f32 1.0, %v1533
        %v1535 = vmul.f32 %v1532, %v1534
        %v1536 = vadd.f32 %v1532, %v1535
        %vm1537 = vweird.f32 %v1468
        %vm1538 = vweird.f32 %v1532
        %vm1539 = vmor %vm1537, %vm1538
        %v1540 = vsel %vm1539, %v1532, %v1536
        %v1541 = vand.u32 2147483647, %v1468
        %vm1542 = vcmp.eq.f32.partialorder %v1541, 8.507059e+37
        %v1543 = vand.u32 %v1468, 2147483648
        %v1544 = vor.u32 1.1754944e-38, %v1543
        %v1545 = vsel %vm1542, %v1544, %v1540
        %v1546 = vmul.f32 1.0, %v1545
        %v1547 = vrcp.pop %v1469
        %v1548 = vmul.f32 %v1469, %v1547
        %v1549 = vsub.f32 1.0, %v1548
        %v1550 = vmul.f32 %v1547, %v1549
        %v1551 = vadd.f32 %v1547, %v1550
        %vm1552 = vweird.f32 %v1469
        %vm1553 = vweird.f32 %v1547
        %vm1554 = vmor %vm1552, %vm1553
        %v1555 = vsel %vm1554, %v1547, %v1551
        %v1556 = vand.u32 2147483647, %v1469
        %vm1557 = vcmp.eq.f32.partialorder %v1556, 8.507059e+37
        %v1558 = vand.u32 %v1469, 2147483648
        %v1559 = vor.u32 1.1754944e-38, %v1558
        %v1560 = vsel %vm1557, %v1559, %v1555
        %v1561 = vmul.f32 1.0, %v1560
        %v1562 = vrcp.pop %v1470
        %v1563 = vmul.f32 %v1470, %v1562
        %v1564 = vsub.f32 1.0, %v1563
        %v1565 = vmul.f32 %v1562, %v1564
        %v1566 = vadd.f32 %v1562, %v1565
        %vm1567 = vweird.f32 %v1470
        %vm1568 = vweird.f32 %v1562
        %vm1569 = vmor %vm1567, %vm1568
        %v1570 = vsel %vm1569, %v1562, %v1566
        %v1571 = vand.u32 2147483647, %v1470
        %vm1572 = vcmp.eq.f32.partialorder %v1571, 8.507059e+37
        %v1573 = vand.u32 %v1470, 2147483648
        %v1574 = vor.u32 1.1754944e-38, %v1573
        %v1575 = vsel %vm1572, %v1574, %v1570
        %v1576 = vmul.f32 1.0, %v1575
        %v1577 = vrcp.pop %v1471
        %v1578 = vmul.f32 %v1471, %v1577
        %v1579 = vsub.f32 1.0, %v1578
        %v1580 = vmul.f32 %v1577, %v1579
        %v1581 = vadd.f32 %v1577, %v1580
        %vm1582 = vweird.f32 %v1471
        %vm1583 = vweird.f32 %v1577
        %vm1584 = vmor %vm1582, %vm1583
        %v1585 = vsel %vm1584, %v1577, %v1581
        %v1586 = vand.u32 2147483647, %v1471
        %vm1587 = vcmp.eq.f32.partialorder %v1586, 8.507059e+37
        %v1588 = vand.u32 %v1471, 2147483648
        %v1589 = vor.u32 1.1754944e-38, %v1588
        %v1590 = vsel %vm1587, %v1589, %v1585
        %v1591 = vmul.f32 1.0, %v1590
        %v1592 = vtanh.pop %v1432
        %v1593 = vtanh.pop %v1433
        %v1594 = vtanh.pop %v1434
        %v1595 = vtanh.pop %v1435
        %v1596 = vtanh.pop %v1436
        %v1597 = vtanh.pop %v1437
        %v1598 = vtanh.pop %v1438
        %v1599 = vtanh.pop %v1439
        %v1608 = vrot.slane %v1281, 7
        %v1609 = vrot.slane %v1282, 7
        %v1610 = vrot.slane %v1283, 7
        %v1611 = vrot.slane %v1284, 7
        %v1612 = vrot.slane %v1285, 7
        %v1613 = vrot.slane %v1286, 7
        %v1614 = vrot.slane %v1287, 7
        %v1615 = vrot.slane %v1288, 7
        %v1624 = vmul.f32 %v1486, %v1608
        %v1625 = vmul.f32 %v1501, %v1609
        %v1626 = vmul.f32 %v1516, %v1610
        %v1627 = vmul.f32 %v1531, %v1611
        %v1628 = vmul.f32 %v1546, %v1612
        %v1629 = vmul.f32 %v1561, %v1613
        %v1630 = vmul.f32 %v1576, %v1614
        %v1631 = vmul.f32 %v1591, %v1615
        %1640 = vrot.lane.b32.xlu0 %v1592, 32
        %v1641 = vpop.permute.xlu0 %1640
        %1642 = vrot.lane.b32.xlu0 %v1593, 32
        %v1643 = vpop.permute.xlu0 %1642
        %1644 = vrot.lane.b32.xlu0 %v1594, 32
        %v1645 = vpop.permute.xlu0 %1644
        %1646 = vrot.lane.b32.xlu0 %v1595, 32
        %v1647 = vpop.permute.xlu0 %1646
        %1648 = vrot.lane.b32.xlu0 %v1596, 32
        %v1649 = vpop.permute.xlu0 %1648
        %1650 = vrot.lane.b32.xlu0 %v1597, 32
        %v1651 = vpop.permute.xlu0 %1650
        %1652 = vrot.lane.b32.xlu0 %v1598, 32
        %v1653 = vpop.permute.xlu0 %1652
        %1654 = vrot.lane.b32.xlu0 %v1599, 32
        %v1655 = vpop.permute.xlu0 %1654
        %v1664 = vmul.f32 %v1486, %v1641
        %v1665 = vmul.f32 %v1501, %v1643
        %v1666 = vmul.f32 %v1516, %v1645
        %v1667 = vmul.f32 %v1531, %v1647
        %v1668 = vmul.f32 %v1546, %v1649
        %v1669 = vmul.f32 %v1561, %v1651
        %v1670 = vmul.f32 %v1576, %v1653
        %v1671 = vmul.f32 %v1591, %v1655
        %1680 = vrot.lane.b32.xlu0 %v1664, 32
        %v1681 = vpop.permute.xlu0 %1680
        %1682 = vrot.lane.b32.xlu0 %v1665, 32
        %v1683 = vpop.permute.xlu0 %1682
        %1684 = vrot.lane.b32.xlu0 %v1666, 32
        %v1685 = vpop.permute.xlu0 %1684
        %1686 = vrot.lane.b32.xlu0 %v1667, 32
        %v1687 = vpop.permute.xlu0 %1686
        %1688 = vrot.lane.b32.xlu0 %v1668, 32
        %v1689 = vpop.permute.xlu0 %1688
        %1690 = vrot.lane.b32.xlu0 %v1669, 32
        %v1691 = vpop.permute.xlu0 %1690
        %1692 = vrot.lane.b32.xlu0 %v1670, 32
        %v1693 = vpop.permute.xlu0 %1692
        %1694 = vrot.lane.b32.xlu0 %v1671, 32
        %v1695 = vpop.permute.xlu0 %1694
        %v1704 = vadd.f32 %v1624, %v1681
        %v1705 = vadd.f32 %v1625, %v1683
        %v1706 = vadd.f32 %v1626, %v1685
        %v1707 = vadd.f32 %v1627, %v1687
        %v1708 = vadd.f32 %v1628, %v1689
        %v1709 = vadd.f32 %v1629, %v1691
        %v1710 = vadd.f32 %v1630, %v1693
        %v1711 = vadd.f32 %v1631, %v1695
        %v1712 = vtanh.pop %v1704
        %v1713 = vtanh.pop %v1705
        %v1714 = vtanh.pop %v1706
        %v1715 = vtanh.pop %v1707
        %v1716 = vtanh.pop %v1708
        %v1717 = vtanh.pop %v1709
        %v1718 = vtanh.pop %v1710
        %v1719 = vtanh.pop %v1711
        %1728 = vrot.lane.b32.xlu0 %v1712, 32
        %v1729 = vpop.permute.xlu0 %1728
        %1730 = vrot.lane.b32.xlu0 %v1713, 32
        %v1731 = vpop.permute.xlu0 %1730
        %1732 = vrot.lane.b32.xlu0 %v1714, 32
        %v1733 = vpop.permute.xlu0 %1732
        %1734 = vrot.lane.b32.xlu0 %v1715, 32
        %v1735 = vpop.permute.xlu0 %1734
        %1736 = vrot.lane.b32.xlu0 %v1716, 32
        %v1737 = vpop.permute.xlu0 %1736
        %1738 = vrot.lane.b32.xlu0 %v1717, 32
        %v1739 = vpop.permute.xlu0 %1738
        %1740 = vrot.lane.b32.xlu0 %v1718, 32
        %v1741 = vpop.permute.xlu0 %1740
        %1742 = vrot.lane.b32.xlu0 %v1719, 32
        %v1743 = vpop.permute.xlu0 %1742
        %v1752 = vmul.f32 %v1486, %v1729
        %v1753 = vmul.f32 %v1501, %v1731
        %v1754 = vmul.f32 %v1516, %v1733
        %v1755 = vmul.f32 %v1531, %v1735
        %v1756 = vmul.f32 %v1546, %v1737
        %v1757 = vmul.f32 %v1561, %v1739
        %v1758 = vmul.f32 %v1576, %v1741
        %v1759 = vmul.f32 %v1591, %v1743
        %1768 = vrot.lane.b32.xlu0 %v1752, 64
        %v1769 = vpop.permute.xlu0 %1768
        %1770 = vrot.lane.b32.xlu0 %v1753, 64
        %v1771 = vpop.permute.xlu0 %1770
        %1772 = vrot.lane.b32.xlu0 %v1754, 64
        %v1773 = vpop.permute.xlu0 %1772
        %1774 = vrot.lane.b32.xlu0 %v1755, 64
        %v1775 = vpop.permute.xlu0 %1774
        %1776 = vrot.lane.b32.xlu0 %v1756, 64
        %v1777 = vpop.permute.xlu0 %1776
        %1778 = vrot.lane.b32.xlu0 %v1757, 64
        %v1779 = vpop.permute.xlu0 %1778
        %1780 = vrot.lane.b32.xlu0 %v1758, 64
        %v1781 = vpop.permute.xlu0 %1780
        %1782 = vrot.lane.b32.xlu0 %v1759, 64
        %v1783 = vpop.permute.xlu0 %1782
        %vm1792 = vcmask 256002
        %1793 = vst.msk [vmem:[#allocation4] sm:$0x4] %vm1792, %v1769
        %1794 = vst.msk [vmem:[#allocation4 + $0x8] sm:$0x4] %vm1792, %v1771
        %1795 = vst.msk [vmem:[#allocation4 + $0x10] sm:$0x4] %vm1792, %v1773
        %1796 = vst.msk [vmem:[#allocation4 + $0x18] sm:$0x4] %vm1792, %v1775
        %1797 = vst.msk [vmem:[#allocation4 + $0x20] sm:$0x4] %vm1792, %v1777
        %1798 = vst.msk [vmem:[#allocation4 + $0x28] sm:$0x4] %vm1792, %v1779
        %1799 = vst.msk [vmem:[#allocation4 + $0x30] sm:$0x4] %vm1792, %v1781
        %1800 = vst.msk [vmem:[#allocation4 + $0x38] sm:$0x4] %vm1792, %v1783
        %v1801 = vrot.slane %v1752, 2
        %v1802 = vrot.slane %v1753, 1
        %v1803 = vsel %vm949, %v1802, %v1801
        %v1804 = vsel %vm952, %v1754, %v1803
        %v1805 = vrot.slane %v1755, 7
        %v1806 = vsel %vm955, %v1805, %v1804
        %v1807 = vrot.slane %v1756, 6
        %v1808 = vsel %vm958, %v1807, %v1806
        %v1809 = vrot.slane %v1757, 5
        %v1810 = vsel %vm961, %v1809, %v1808
        %v1811 = vrot.slane %v1758, 4
        %v1812 = vsel %vm964, %v1811, %v1810
        %v1813 = vrot.slane %v1759, 3
        %v1814 = vsel %vm967, %v1813, %v1812
        %1815 = vrot.lane.b32.xlu0 %v1814, 64
        %v1816 = vpop.permute.xlu0 %1815
        %v1817 = vsel %vm464, %v1816, 0
        %1819 = vmatpush.msra.mxu0 0.0
        %1820 = vmatpush.msra.mxu0 0.0
        %1821 = vmatpush.msra.mxu0 0.0
        %1822 = vmatpush.msra.mxu0 0.0
        %1823 = vmatpush.msra.mxu0 0.0
        %1824 = vmatpush.msra.mxu0 0.0
        %1825 = vmatpush.msra.mxu0 0.0
        %1826 = vmatpush.msra.mxu0 0.0
        %1827 = vmatpush.msra.mxu0 0.0
        %1828 = vmatpush.msra.mxu0 0.0
        %1829 = vmatpush.msra.mxu0 0.0
        %1830 = vmatpush.msra.mxu0 0.0
        %1831 = vmatpush.msra.mxu0 %v459
        %1832 = vmatpush.msra.mxu0 %v458
        %1833 = vmatpush.msra.mxu0 %v457
        %1834 = vmatpush.msra.mxu0 %v456
        %1835 = vmatmul.f32.gmra.mxu0 %v1817
        %v1836 = vpop.f32.mrf.mxu0
        %v1837 = vadd.f32 0.0, %v1836
        %1838 = vdwg.mxu0
        %v1840 = vrot.slane %v1837, 5
        %v1841 = vrot.slane %v1837, 6
        %v1842 = vrot.slane %v1837, 7
        %v1843 = vrot.slane %v1837, 1
        %v1844 = vrot.slane %v1837, 2
        %v1845 = vrot.slane %v1837, 3
        %v1846 = vrot.slane %v1837, 4
        %v1855 = vadd.f32 %v507, %v1840
        %v1856 = vadd.f32 %v510, %v1841
        %v1857 = vadd.f32 %v513, %v1842
        %v1858 = vadd.f32 %v516, %v1837
        %v1859 = vadd.f32 %v519, %v1843
        %v1860 = vadd.f32 %v522, %v1844
        %v1861 = vadd.f32 %v525, %v1845
        %v1862 = vadd.f32 %v528, %v1846
        %v1863 = vxor.u32 %v1855, 2147483648
        %v1864 = vxor.u32 %v1856, 2147483648
        %v1865 = vxor.u32 %v1857, 2147483648
        %v1866 = vxor.u32 %v1858, 2147483648
        %v1867 = vxor.u32 %v1859, 2147483648
        %v1868 = vxor.u32 %v1860, 2147483648
        %v1869 = vxor.u32 %v1861, 2147483648
        %v1870 = vxor.u32 %v1862, 2147483648
        %v1871 = vmul.f32 %v1863, 1.442695
        %v1872 = vpow.pop %v1871
        %v1873 = vmul.f32 %v1864, 1.442695
        %v1874 = vpow.pop %v1873
        %v1875 = vmul.f32 %v1865, 1.442695
        %v1876 = vpow.pop %v1875
        %v1877 = vmul.f32 %v1866, 1.442695
        %v1878 = vpow.pop %v1877
        %v1879 = vmul.f32 %v1867, 1.442695
        %v1880 = vpow.pop %v1879
        %v1881 = vmul.f32 %v1868, 1.442695
        %v1882 = vpow.pop %v1881
        %v1883 = vmul.f32 %v1869, 1.442695
        %v1884 = vpow.pop %v1883
        %v1885 = vmul.f32 %v1870, 1.442695
        %v1886 = vpow.pop %v1885
        %v1887 = vadd.f32 %v1872, 1.0
        %v1888 = vadd.f32 %v1874, 1.0
        %v1889 = vadd.f32 %v1876, 1.0
        %v1890 = vadd.f32 %v1878, 1.0
        %v1891 = vadd.f32 %v1880, 1.0
        %v1892 = vadd.f32 %v1882, 1.0
        %v1893 = vadd.f32 %v1884, 1.0
        %v1894 = vadd.f32 %v1886, 1.0
        %v1895 = vrcp.pop %v1887
        %v1896 = vmul.f32 %v1887, %v1895
        %v1897 = vsub.f32 1.0, %v1896
        %v1898 = vmul.f32 %v1895, %v1897
        %v1899 = vadd.f32 %v1895, %v1898
        %vm1900 = vweird.f32 %v1887
        %vm1901 = vweird.f32 %v1895
        %vm1902 = vmor %vm1900, %vm1901
        %v1903 = vsel %vm1902, %v1895, %v1899
        %v1904 = vand.u32 2147483647, %v1887
        %vm1905 = vcmp.eq.f32.partialorder %v1904, 8.507059e+37
        %v1906 = vand.u32 %v1887, 2147483648
        %v1907 = vor.u32 1.1754944e-38, %v1906
        %v1908 = vsel %vm1905, %v1907, %v1903
        %v1909 = vmul.f32 1.0, %v1908
        %v1910 = vrcp.pop %v1888
        %v1911 = vmul.f32 %v1888, %v1910
        %v1912 = vsub.f32 1.0, %v1911
        %v1913 = vmul.f32 %v1910, %v1912
        %v1914 = vadd.f32 %v1910, %v1913
        %vm1915 = vweird.f32 %v1888
        %vm1916 = vweird.f32 %v1910
        %vm1917 = vmor %vm1915, %vm1916
        %v1918 = vsel %vm1917, %v1910, %v1914
        %v1919 = vand.u32 2147483647, %v1888
        %vm1920 = vcmp.eq.f32.partialorder %v1919, 8.507059e+37
        %v1921 = vand.u32 %v1888, 2147483648
        %v1922 = vor.u32 1.1754944e-38, %v1921
        %v1923 = vsel %vm1920, %v1922, %v1918
        %v1924 = vmul.f32 1.0, %v1923
        %v1925 = vrcp.pop %v1889
        %v1926 = vmul.f32 %v1889, %v1925
        %v1927 = vsub.f32 1.0, %v1926
        %v1928 = vmul.f32 %v1925, %v1927
        %v1929 = vadd.f32 %v1925, %v1928
        %vm1930 = vweird.f32 %v1889
        %vm1931 = vweird.f32 %v1925
        %vm1932 = vmor %vm1930, %vm1931
        %v1933 = vsel %vm1932, %v1925, %v1929
        %v1934 = vand.u32 2147483647, %v1889
        %vm1935 = vcmp.eq.f32.partialorder %v1934, 8.507059e+37
        %v1936 = vand.u32 %v1889, 2147483648
        %v1937 = vor.u32 1.1754944e-38, %v1936
        %v1938 = vsel %vm1935, %v1937, %v1933
        %v1939 = vmul.f32 1.0, %v1938
        %v1940 = vrcp.pop %v1890
        %v1941 = vmul.f32 %v1890, %v1940
        %v1942 = vsub.f32 1.0, %v1941
        %v1943 = vmul.f32 %v1940, %v1942
        %v1944 = vadd.f32 %v1940, %v1943
        %vm1945 = vweird.f32 %v1890
        %vm1946 = vweird.f32 %v1940
        %vm1947 = vmor %vm1945, %vm1946
        %v1948 = vsel %vm1947, %v1940, %v1944
        %v1949 = vand.u32 2147483647, %v1890
        %vm1950 = vcmp.eq.f32.partialorder %v1949, 8.507059e+37
        %v1951 = vand.u32 %v1890, 2147483648
        %v1952 = vor.u32 1.1754944e-38, %v1951
        %v1953 = vsel %vm1950, %v1952, %v1948
        %v1954 = vmul.f32 1.0, %v1953
        %v1955 = vrcp.pop %v1891
        %v1956 = vmul.f32 %v1891, %v1955
        %v1957 = vsub.f32 1.0, %v1956
        %v1958 = vmul.f32 %v1955, %v1957
        %v1959 = vadd.f32 %v1955, %v1958
        %vm1960 = vweird.f32 %v1891
        %vm1961 = vweird.f32 %v1955
        %vm1962 = vmor %vm1960, %vm1961
        %v1963 = vsel %vm1962, %v1955, %v1959
        %v1964 = vand.u32 2147483647, %v1891
        %vm1965 = vcmp.eq.f32.partialorder %v1964, 8.507059e+37
        %v1966 = vand.u32 %v1891, 2147483648
        %v1967 = vor.u32 1.1754944e-38, %v1966
        %v1968 = vsel %vm1965, %v1967, %v1963
        %v1969 = vmul.f32 1.0, %v1968
        %v1970 = vrcp.pop %v1892
        %v1971 = vmul.f32 %v1892, %v1970
        %v1972 = vsub.f32 1.0, %v1971
        %v1973 = vmul.f32 %v1970, %v1972
        %v1974 = vadd.f32 %v1970, %v1973
        %vm1975 = vweird.f32 %v1892
        %vm1976 = vweird.f32 %v1970
        %vm1977 = vmor %vm1975, %vm1976
        %v1978 = vsel %vm1977, %v1970, %v1974
        %v1979 = vand.u32 2147483647, %v1892
        %vm1980 = vcmp.eq.f32.partialorder %v1979, 8.507059e+37
        %v1981 = vand.u32 %v1892, 2147483648
        %v1982 = vor.u32 1.1754944e-38, %v1981
        %v1983 = vsel %vm1980, %v1982, %v1978
        %v1984 = vmul.f32 1.0, %v1983
        %v1985 = vrcp.pop %v1893
        %v1986 = vmul.f32 %v1893, %v1985
        %v1987 = vsub.f32 1.0, %v1986
        %v1988 = vmul.f32 %v1985, %v1987
        %v1989 = vadd.f32 %v1985, %v1988
        %vm1990 = vweird.f32 %v1893
        %vm1991 = vweird.f32 %v1985
        %vm1992 = vmor %vm1990, %vm1991
        %v1993 = vsel %vm1992, %v1985, %v1989
        %v1994 = vand.u32 2147483647, %v1893
        %vm1995 = vcmp.eq.f32.partialorder %v1994, 8.507059e+37
        %v1996 = vand.u32 %v1893, 2147483648
        %v1997 = vor.u32 1.1754944e-38, %v1996
        %v1998 = vsel %vm1995, %v1997, %v1993
        %v1999 = vmul.f32 1.0, %v1998
        %v2000 = vrcp.pop %v1894
        %v2001 = vmul.f32 %v1894, %v2000
        %v2002 = vsub.f32 1.0, %v2001
        %v2003 = vmul.f32 %v2000, %v2002
        %v2004 = vadd.f32 %v2000, %v2003
        %vm2005 = vweird.f32 %v1894
        %vm2006 = vweird.f32 %v2000
        %vm2007 = vmor %vm2005, %vm2006
        %v2008 = vsel %vm2007, %v2000, %v2004
        %v2009 = vand.u32 2147483647, %v1894
        %vm2010 = vcmp.eq.f32.partialorder %v2009, 8.507059e+37
        %v2011 = vand.u32 %v1894, 2147483648
        %v2012 = vor.u32 1.1754944e-38, %v2011
        %v2013 = vsel %vm2010, %v2012, %v2008
        %v2014 = vmul.f32 1.0, %v2013
        %v2015 = vtanh.pop %v1855
        %v2016 = vtanh.pop %v1856
        %v2017 = vtanh.pop %v1857
        %v2018 = vtanh.pop %v1858
        %v2019 = vtanh.pop %v1859
        %v2020 = vtanh.pop %v1860
        %v2021 = vtanh.pop %v1861
        %v2022 = vtanh.pop %v1862
        %v2031 = vrot.slane %v1704, 7
        %v2032 = vrot.slane %v1705, 7
        %v2033 = vrot.slane %v1706, 7
        %v2034 = vrot.slane %v1707, 7
        %v2035 = vrot.slane %v1708, 7
        %v2036 = vrot.slane %v1709, 7
        %v2037 = vrot.slane %v1710, 7
        %v2038 = vrot.slane %v1711, 7
        %v2047 = vmul.f32 %v1909, %v2031
        %v2048 = vmul.f32 %v1924, %v2032
        %v2049 = vmul.f32 %v1939, %v2033
        %v2050 = vmul.f32 %v1954, %v2034
        %v2051 = vmul.f32 %v1969, %v2035
        %v2052 = vmul.f32 %v1984, %v2036
        %v2053 = vmul.f32 %v1999, %v2037
        %v2054 = vmul.f32 %v2014, %v2038
        %2063 = vrot.lane.b32.xlu0 %v2015, 32
        %v2064 = vpop.permute.xlu0 %2063
        %2065 = vrot.lane.b32.xlu0 %v2016, 32
        %v2066 = vpop.permute.xlu0 %2065
        %2067 = vrot.lane.b32.xlu0 %v2017, 32
        %v2068 = vpop.permute.xlu0 %2067
        %2069 = vrot.lane.b32.xlu0 %v2018, 32
        %v2070 = vpop.permute.xlu0 %2069
        %2071 = vrot.lane.b32.xlu0 %v2019, 32
        %v2072 = vpop.permute.xlu0 %2071
        %2073 = vrot.lane.b32.xlu0 %v2020, 32
        %v2074 = vpop.permute.xlu0 %2073
        %2075 = vrot.lane.b32.xlu0 %v2021, 32
        %v2076 = vpop.permute.xlu0 %2075
        %2077 = vrot.lane.b32.xlu0 %v2022, 32
        %v2078 = vpop.permute.xlu0 %2077
        %v2087 = vmul.f32 %v1909, %v2064
        %v2088 = vmul.f32 %v1924, %v2066
        %v2089 = vmul.f32 %v1939, %v2068
        %v2090 = vmul.f32 %v1954, %v2070
        %v2091 = vmul.f32 %v1969, %v2072
        %v2092 = vmul.f32 %v1984, %v2074
        %v2093 = vmul.f32 %v1999, %v2076
        %v2094 = vmul.f32 %v2014, %v2078
        %2103 = vrot.lane.b32.xlu0 %v2087, 32
        %v2104 = vpop.permute.xlu0 %2103
        %2105 = vrot.lane.b32.xlu0 %v2088, 32
        %v2106 = vpop.permute.xlu0 %2105
        %2107 = vrot.lane.b32.xlu0 %v2089, 32
        %v2108 = vpop.permute.xlu0 %2107
        %2109 = vrot.lane.b32.xlu0 %v2090, 32
        %v2110 = vpop.permute.xlu0 %2109
        %2111 = vrot.lane.b32.xlu0 %v2091, 32
        %v2112 = vpop.permute.xlu0 %2111
        %2113 = vrot.lane.b32.xlu0 %v2092, 32
        %v2114 = vpop.permute.xlu0 %2113
        %2115 = vrot.lane.b32.xlu0 %v2093, 32
        %v2116 = vpop.permute.xlu0 %2115
        %2117 = vrot.lane.b32.xlu0 %v2094, 32
        %v2118 = vpop.permute.xlu0 %2117
        %v2127 = vadd.f32 %v2047, %v2104
        %v2128 = vadd.f32 %v2048, %v2106
        %v2129 = vadd.f32 %v2049, %v2108
        %v2130 = vadd.f32 %v2050, %v2110
        %v2131 = vadd.f32 %v2051, %v2112
        %v2132 = vadd.f32 %v2052, %v2114
        %v2133 = vadd.f32 %v2053, %v2116
        %v2134 = vadd.f32 %v2054, %v2118
        %v2135 = vtanh.pop %v2127
        %v2136 = vtanh.pop %v2128
        %v2137 = vtanh.pop %v2129
        %v2138 = vtanh.pop %v2130
        %v2139 = vtanh.pop %v2131
        %v2140 = vtanh.pop %v2132
        %v2141 = vtanh.pop %v2133
        %v2142 = vtanh.pop %v2134
        %2151 = vrot.lane.b32.xlu0 %v2135, 32
        %v2152 = vpop.permute.xlu0 %2151
        %2153 = vrot.lane.b32.xlu0 %v2136, 32
        %v2154 = vpop.permute.xlu0 %2153
        %2155 = vrot.lane.b32.xlu0 %v2137, 32
        %v2156 = vpop.permute.xlu0 %2155
        %2157 = vrot.lane.b32.xlu0 %v2138, 32
        %v2158 = vpop.permute.xlu0 %2157
        %2159 = vrot.lane.b32.xlu0 %v2139, 32
        %v2160 = vpop.permute.xlu0 %2159
        %2161 = vrot.lane.b32.xlu0 %v2140, 32
        %v2162 = vpop.permute.xlu0 %2161
        %2163 = vrot.lane.b32.xlu0 %v2141, 32
        %v2164 = vpop.permute.xlu0 %2163
        %2165 = vrot.lane.b32.xlu0 %v2142, 32
        %v2166 = vpop.permute.xlu0 %2165
        %v2175 = vmul.f32 %v1909, %v2152
        %v2176 = vmul.f32 %v1924, %v2154
        %v2177 = vmul.f32 %v1939, %v2156
        %v2178 = vmul.f32 %v1954, %v2158
        %v2179 = vmul.f32 %v1969, %v2160
        %v2180 = vmul.f32 %v1984, %v2162
        %v2181 = vmul.f32 %v1999, %v2164
        %v2182 = vmul.f32 %v2014, %v2166
        %2191 = vrot.lane.b32.xlu0 %v2175, 64
        %v2192 = vpop.permute.xlu0 %2191
        %2193 = vrot.lane.b32.xlu0 %v2176, 64
        %v2194 = vpop.permute.xlu0 %2193
        %2195 = vrot.lane.b32.xlu0 %v2177, 64
        %v2196 = vpop.permute.xlu0 %2195
        %2197 = vrot.lane.b32.xlu0 %v2178, 64
        %v2198 = vpop.permute.xlu0 %2197
        %2199 = vrot.lane.b32.xlu0 %v2179, 64
        %v2200 = vpop.permute.xlu0 %2199
        %2201 = vrot.lane.b32.xlu0 %v2180, 64
        %v2202 = vpop.permute.xlu0 %2201
        %2203 = vrot.lane.b32.xlu0 %v2181, 64
        %v2204 = vpop.permute.xlu0 %2203
        %2205 = vrot.lane.b32.xlu0 %v2182, 64
        %v2206 = vpop.permute.xlu0 %2205
        %vm2215 = vcmask 257027
        %2216 = vst.msk [vmem:[#allocation4] sm:$0x8] %vm2215, %v2192
        %2217 = vst.msk [vmem:[#allocation4 + $0x8] sm:$0x8] %vm2215, %v2194
        %2218 = vst.msk [vmem:[#allocation4 + $0x10] sm:$0x8] %vm2215, %v2196
        %2219 = vst.msk [vmem:[#allocation4 + $0x18] sm:$0x8] %vm2215, %v2198
        %2220 = vst.msk [vmem:[#allocation4 + $0x20] sm:$0x8] %vm2215, %v2200
        %2221 = vst.msk [vmem:[#allocation4 + $0x28] sm:$0x8] %vm2215, %v2202
        %2222 = vst.msk [vmem:[#allocation4 + $0x30] sm:$0x8] %vm2215, %v2204
        %2223 = vst.msk [vmem:[#allocation4 + $0x38] sm:$0x8] %vm2215, %v2206
        %v2224 = vrot.slane %v2175, 3
        %v2225 = vrot.slane %v2176, 2
        %v2226 = vsel %vm949, %v2225, %v2224
        %v2227 = vrot.slane %v2177, 1
        %v2228 = vsel %vm952, %v2227, %v2226
        %v2229 = vsel %vm955, %v2178, %v2228
        %v2230 = vrot.slane %v2179, 7
        %v2231 = vsel %vm958, %v2230, %v2229
        %v2232 = vrot.slane %v2180, 6
        %v2233 = vsel %vm961, %v2232, %v2231
        %v2234 = vrot.slane %v2181, 5
        %v2235 = vsel %vm964, %v2234, %v2233
        %v2236 = vrot.slane %v2182, 4
        %v2237 = vsel %vm967, %v2236, %v2235
        %2238 = vrot.lane.b32.xlu0 %v2237, 64
        %v2239 = vpop.permute.xlu0 %2238
        %v2240 = vsel %vm464, %v2239, 0
        %2242 = vmatpush.msra.mxu0 0.0
        %2243 = vmatpush.msra.mxu0 0.0
        %2244 = vmatpush.msra.mxu0 0.0
        %2245 = vmatpush.msra.mxu0 0.0
        %2246 = vmatpush.msra.mxu0 0.0
        %2247 = vmatpush.msra.mxu0 0.0
        %2248 = vmatpush.msra.mxu0 0.0
        %2249 = vmatpush.msra.mxu0 0.0
        %2250 = vmatpush.msra.mxu0 0.0
        %2251 = vmatpush.msra.mxu0 0.0
        %2252 = vmatpush.msra.mxu0 0.0
        %2253 = vmatpush.msra.mxu0 0.0
        %2254 = vmatpush.msra.mxu0 %v459
        %2255 = vmatpush.msra.mxu0 %v458
        %2256 = vmatpush.msra.mxu0 %v457
        %2257 = vmatpush.msra.mxu0 %v456
        %2258 = vmatmul.f32.gmra.mxu0 %v2240
        %v2259 = vpop.f32.mrf.mxu0
        %v2260 = vadd.f32 0.0, %v2259
        %2261 = vdwg.mxu0
        %v2263 = vrot.slane %v2260, 4
        %v2264 = vrot.slane %v2260, 5
        %v2265 = vrot.slane %v2260, 6
        %v2266 = vrot.slane %v2260, 7
        %v2267 = vrot.slane %v2260, 1
        %v2268 = vrot.slane %v2260, 2
        %v2269 = vrot.slane %v2260, 3
        %v2278 = vadd.f32 %v507, %v2263
        %v2279 = vadd.f32 %v510, %v2264
        %v2280 = vadd.f32 %v513, %v2265
        %v2281 = vadd.f32 %v516, %v2266
        %v2282 = vadd.f32 %v519, %v2260
        %v2283 = vadd.f32 %v522, %v2267
        %v2284 = vadd.f32 %v525, %v2268
        %v2285 = vadd.f32 %v528, %v2269
        %v2286 = vxor.u32 %v2278, 2147483648
        %v2287 = vxor.u32 %v2279, 2147483648
        %v2288 = vxor.u32 %v2280, 2147483648
        %v2289 = vxor.u32 %v2281, 2147483648
        %v2290 = vxor.u32 %v2282, 2147483648
        %v2291 = vxor.u32 %v2283, 2147483648
        %v2292 = vxor.u32 %v2284, 2147483648
        %v2293 = vxor.u32 %v2285, 2147483648
        %v2294 = vmul.f32 %v2286, 1.442695
        %v2295 = vpow.pop %v2294
        %v2296 = vmul.f32 %v2287, 1.442695
        %v2297 = vpow.pop %v2296
        %v2298 = vmul.f32 %v2288, 1.442695
        %v2299 = vpow.pop %v2298
        %v2300 = vmul.f32 %v2289, 1.442695
        %v2301 = vpow.pop %v2300
        %v2302 = vmul.f32 %v2290, 1.442695
        %v2303 = vpow.pop %v2302
        %v2304 = vmul.f32 %v2291, 1.442695
        %v2305 = vpow.pop %v2304
        %v2306 = vmul.f32 %v2292, 1.442695
        %v2307 = vpow.pop %v2306
        %v2308 = vmul.f32 %v2293, 1.442695
        %v2309 = vpow.pop %v2308
        %v2310 = vadd.f32 %v2295, 1.0
        %v2311 = vadd.f32 %v2297, 1.0
        %v2312 = vadd.f32 %v2299, 1.0
        %v2313 = vadd.f32 %v2301, 1.0
        %v2314 = vadd.f32 %v2303, 1.0
        %v2315 = vadd.f32 %v2305, 1.0
        %v2316 = vadd.f32 %v2307, 1.0
        %v2317 = vadd.f32 %v2309, 1.0
        %v2318 = vrcp.pop %v2310
        %v2319 = vmul.f32 %v2310, %v2318
        %v2320 = vsub.f32 1.0, %v2319
        %v2321 = vmul.f32 %v2318, %v2320
        %v2322 = vadd.f32 %v2318, %v2321
        %vm2323 = vweird.f32 %v2310
        %vm2324 = vweird.f32 %v2318
        %vm2325 = vmor %vm2323, %vm2324
        %v2326 = vsel %vm2325, %v2318, %v2322
        %v2327 = vand.u32 2147483647, %v2310
        %vm2328 = vcmp.eq.f32.partialorder %v2327, 8.507059e+37
        %v2329 = vand.u32 %v2310, 2147483648
        %v2330 = vor.u32 1.1754944e-38, %v2329
        %v2331 = vsel %vm2328, %v2330, %v2326
        %v2332 = vmul.f32 1.0, %v2331
        %v2333 = vrcp.pop %v2311
        %v2334 = vmul.f32 %v2311, %v2333
        %v2335 = vsub.f32 1.0, %v2334
        %v2336 = vmul.f32 %v2333, %v2335
        %v2337 = vadd.f32 %v2333, %v2336
        %vm2338 = vweird.f32 %v2311
        %vm2339 = vweird.f32 %v2333
        %vm2340 = vmor %vm2338, %vm2339
        %v2341 = vsel %vm2340, %v2333, %v2337
        %v2342 = vand.u32 2147483647, %v2311
        %vm2343 = vcmp.eq.f32.partialorder %v2342, 8.507059e+37
        %v2344 = vand.u32 %v2311, 2147483648
        %v2345 = vor.u32 1.1754944e-38, %v2344
        %v2346 = vsel %vm2343, %v2345, %v2341
        %v2347 = vmul.f32 1.0, %v2346
        %v2348 = vrcp.pop %v2312
        %v2349 = vmul.f32 %v2312, %v2348
        %v2350 = vsub.f32 1.0, %v2349
        %v2351 = vmul.f32 %v2348, %v2350
        %v2352 = vadd.f32 %v2348, %v2351
        %vm2353 = vweird.f32 %v2312
        %vm2354 = vweird.f32 %v2348
        %vm2355 = vmor %vm2353, %vm2354
        %v2356 = vsel %vm2355, %v2348, %v2352
        %v2357 = vand.u32 2147483647, %v2312
        %vm2358 = vcmp.eq.f32.partialorder %v2357, 8.507059e+37
        %v2359 = vand.u32 %v2312, 2147483648
        %v2360 = vor.u32 1.1754944e-38, %v2359
        %v2361 = vsel %vm2358, %v2360, %v2356
        %v2362 = vmul.f32 1.0, %v2361
        %v2363 = vrcp.pop %v2313
        %v2364 = vmul.f32 %v2313, %v2363
        %v2365 = vsub.f32 1.0, %v2364
        %v2366 = vmul.f32 %v2363, %v2365
        %v2367 = vadd.f32 %v2363, %v2366
        %vm2368 = vweird.f32 %v2313
        %vm2369 = vweird.f32 %v2363
        %vm2370 = vmor %vm2368, %vm2369
        %v2371 = vsel %vm2370, %v2363, %v2367
        %v2372 = vand.u32 2147483647, %v2313
        %vm2373 = vcmp.eq.f32.partialorder %v2372, 8.507059e+37
        %v2374 = vand.u32 %v2313, 2147483648
        %v2375 = vor.u32 1.1754944e-38, %v2374
        %v2376 = vsel %vm2373, %v2375, %v2371
        %v2377 = vmul.f32 1.0, %v2376
        %v2378 = vrcp.pop %v2314
        %v2379 = vmul.f32 %v2314, %v2378
        %v2380 = vsub.f32 1.0, %v2379
        %v2381 = vmul.f32 %v2378, %v2380
        %v2382 = vadd.f32 %v2378, %v2381
        %vm2383 = vweird.f32 %v2314
        %vm2384 = vweird.f32 %v2378
        %vm2385 = vmor %vm2383, %vm2384
        %v2386 = vsel %vm2385, %v2378, %v2382
        %v2387 = vand.u32 2147483647, %v2314
        %vm2388 = vcmp.eq.f32.partialorder %v2387, 8.507059e+37
        %v2389 = vand.u32 %v2314, 2147483648
        %v2390 = vor.u32 1.1754944e-38, %v2389
        %v2391 = vsel %vm2388, %v2390, %v2386
        %v2392 = vmul.f32 1.0, %v2391
        %v2393 = vrcp.pop %v2315
        %v2394 = vmul.f32 %v2315, %v2393
        %v2395 = vsub.f32 1.0, %v2394
        %v2396 = vmul.f32 %v2393, %v2395
        %v2397 = vadd.f32 %v2393, %v2396
        %vm2398 = vweird.f32 %v2315
        %vm2399 = vweird.f32 %v2393
        %vm2400 = vmor %vm2398, %vm2399
        %v2401 = vsel %vm2400, %v2393, %v2397
        %v2402 = vand.u32 2147483647, %v2315
        %vm2403 = vcmp.eq.f32.partialorder %v2402, 8.507059e+37
        %v2404 = vand.u32 %v2315, 2147483648
        %v2405 = vor.u32 1.1754944e-38, %v2404
        %v2406 = vsel %vm2403, %v2405, %v2401
        %v2407 = vmul.f32 1.0, %v2406
        %v2408 = vrcp.pop %v2316
        %v2409 = vmul.f32 %v2316, %v2408
        %v2410 = vsub.f32 1.0, %v2409
        %v2411 = vmul.f32 %v2408, %v2410
        %v2412 = vadd.f32 %v2408, %v2411
        %vm2413 = vweird.f32 %v2316
        %vm2414 = vweird.f32 %v2408
        %vm2415 = vmor %vm2413, %vm2414
        %v2416 = vsel %vm2415, %v2408, %v2412
        %v2417 = vand.u32 2147483647, %v2316
        %vm2418 = vcmp.eq.f32.partialorder %v2417, 8.507059e+37
        %v2419 = vand.u32 %v2316, 2147483648
        %v2420 = vor.u32 1.1754944e-38, %v2419
        %v2421 = vsel %vm2418, %v2420, %v2416
        %v2422 = vmul.f32 1.0, %v2421
        %v2423 = vrcp.pop %v2317
        %v2424 = vmul.f32 %v2317, %v2423
        %v2425 = vsub.f32 1.0, %v2424
        %v2426 = vmul.f32 %v2423, %v2425
        %v2427 = vadd.f32 %v2423, %v2426
        %vm2428 = vweird.f32 %v2317
        %vm2429 = vweird.f32 %v2423
        %vm2430 = vmor %vm2428, %vm2429
        %v2431 = vsel %vm2430, %v2423, %v2427
        %v2432 = vand.u32 2147483647, %v2317
        %vm2433 = vcmp.eq.f32.partialorder %v2432, 8.507059e+37
        %v2434 = vand.u32 %v2317, 2147483648
        %v2435 = vor.u32 1.1754944e-38, %v2434
        %v2436 = vsel %vm2433, %v2435, %v2431
        %v2437 = vmul.f32 1.0, %v2436
        %v2438 = vtanh.pop %v2278
        %v2439 = vtanh.pop %v2279
        %v2440 = vtanh.pop %v2280
        %v2441 = vtanh.pop %v2281
        %v2442 = vtanh.pop %v2282
        %v2443 = vtanh.pop %v2283
        %v2444 = vtanh.pop %v2284
        %v2445 = vtanh.pop %v2285
        %v2454 = vrot.slane %v2127, 7
        %v2455 = vrot.slane %v2128, 7
        %v2456 = vrot.slane %v2129, 7
        %v2457 = vrot.slane %v2130, 7
        %v2458 = vrot.slane %v2131, 7
        %v2459 = vrot.slane %v2132, 7
        %v2460 = vrot.slane %v2133, 7
        %v2461 = vrot.slane %v2134, 7
        %v2470 = vmul.f32 %v2332, %v2454
        %v2471 = vmul.f32 %v2347, %v2455
        %v2472 = vmul.f32 %v2362, %v2456
        %v2473 = vmul.f32 %v2377, %v2457
        %v2474 = vmul.f32 %v2392, %v2458
        %v2475 = vmul.f32 %v2407, %v2459
        %v2476 = vmul.f32 %v2422, %v2460
        %v2477 = vmul.f32 %v2437, %v2461
        %2486 = vrot.lane.b32.xlu0 %v2438, 32
        %v2487 = vpop.permute.xlu0 %2486
        %2488 = vrot.lane.b32.xlu0 %v2439, 32
        %v2489 = vpop.permute.xlu0 %2488
        %2490 = vrot.lane.b32.xlu0 %v2440, 32
        %v2491 = vpop.permute.xlu0 %2490
        %2492 = vrot.lane.b32.xlu0 %v2441, 32
        %v2493 = vpop.permute.xlu0 %2492
        %2494 = vrot.lane.b32.xlu0 %v2442, 32
        %v2495 = vpop.permute.xlu0 %2494
        %2496 = vrot.lane.b32.xlu0 %v2443, 32
        %v2497 = vpop.permute.xlu0 %2496
        %2498 = vrot.lane.b32.xlu0 %v2444, 32
        %v2499 = vpop.permute.xlu0 %2498
        %2500 = vrot.lane.b32.xlu0 %v2445, 32
        %v2501 = vpop.permute.xlu0 %2500
        %v2510 = vmul.f32 %v2332, %v2487
        %v2511 = vmul.f32 %v2347, %v2489
        %v2512 = vmul.f32 %v2362, %v2491
        %v2513 = vmul.f32 %v2377, %v2493
        %v2514 = vmul.f32 %v2392, %v2495
        %v2515 = vmul.f32 %v2407, %v2497
        %v2516 = vmul.f32 %v2422, %v2499
        %v2517 = vmul.f32 %v2437, %v2501
        %2526 = vrot.lane.b32.xlu0 %v2510, 32
        %v2527 = vpop.permute.xlu0 %2526
        %2528 = vrot.lane.b32.xlu0 %v2511, 32
        %v2529 = vpop.permute.xlu0 %2528
        %2530 = vrot.lane.b32.xlu0 %v2512, 32
        %v2531 = vpop.permute.xlu0 %2530
        %2532 = vrot.lane.b32.xlu0 %v2513, 32
        %v2533 = vpop.permute.xlu0 %2532
        %2534 = vrot.lane.b32.xlu0 %v2514, 32
        %v2535 = vpop.permute.xlu0 %2534
        %2536 = vrot.lane.b32.xlu0 %v2515, 32
        %v2537 = vpop.permute.xlu0 %2536
        %2538 = vrot.lane.b32.xlu0 %v2516, 32
        %v2539 = vpop.permute.xlu0 %2538
        %2540 = vrot.lane.b32.xlu0 %v2517, 32
        %v2541 = vpop.permute.xlu0 %2540
        %v2550 = vadd.f32 %v2470, %v2527
        %v2551 = vadd.f32 %v2471, %v2529
        %v2552 = vadd.f32 %v2472, %v2531
        %v2553 = vadd.f32 %v2473, %v2533
        %v2554 = vadd.f32 %v2474, %v2535
        %v2555 = vadd.f32 %v2475, %v2537
        %v2556 = vadd.f32 %v2476, %v2539
        %v2557 = vadd.f32 %v2477, %v2541
        %v2558 = vtanh.pop %v2550
        %v2559 = vtanh.pop %v2551
        %v2560 = vtanh.pop %v2552
        %v2561 = vtanh.pop %v2553
        %v2562 = vtanh.pop %v2554
        %v2563 = vtanh.pop %v2555
        %v2564 = vtanh.pop %v2556
        %v2565 = vtanh.pop %v2557
        %2574 = vrot.lane.b32.xlu0 %v2558, 32
        %v2575 = vpop.permute.xlu0 %2574
        %2576 = vrot.lane.b32.xlu0 %v2559, 32
        %v2577 = vpop.permute.xlu0 %2576
        %2578 = vrot.lane.b32.xlu0 %v2560, 32
        %v2579 = vpop.permute.xlu0 %2578
        %2580 = vrot.lane.b32.xlu0 %v2561, 32
        %v2581 = vpop.permute.xlu0 %2580
        %2582 = vrot.lane.b32.xlu0 %v2562, 32
        %v2583 = vpop.permute.xlu0 %2582
        %2584 = vrot.lane.b32.xlu0 %v2563, 32
        %v2585 = vpop.permute.xlu0 %2584
        %2586 = vrot.lane.b32.xlu0 %v2564, 32
        %v2587 = vpop.permute.xlu0 %2586
        %2588 = vrot.lane.b32.xlu0 %v2565, 32
        %v2589 = vpop.permute.xlu0 %2588
        %v2598 = vmul.f32 %v2332, %v2575
        %v2599 = vmul.f32 %v2347, %v2577
        %v2600 = vmul.f32 %v2362, %v2579
        %v2601 = vmul.f32 %v2377, %v2581
        %v2602 = vmul.f32 %v2392, %v2583
        %v2603 = vmul.f32 %v2407, %v2585
        %v2604 = vmul.f32 %v2422, %v2587
        %v2605 = vmul.f32 %v2437, %v2589
        %2614 = vrot.lane.b32.xlu0 %v2598, 64
        %v2615 = vpop.permute.xlu0 %2614
        %2616 = vrot.lane.b32.xlu0 %v2599, 64
        %v2617 = vpop.permute.xlu0 %2616
        %2618 = vrot.lane.b32.xlu0 %v2600, 64
        %v2619 = vpop.permute.xlu0 %2618
        %2620 = vrot.lane.b32.xlu0 %v2601, 64
        %v2621 = vpop.permute.xlu0 %2620
        %2622 = vrot.lane.b32.xlu0 %v2602, 64
        %v2623 = vpop.permute.xlu0 %2622
        %2624 = vrot.lane.b32.xlu0 %v2603, 64
        %v2625 = vpop.permute.xlu0 %2624
        %2626 = vrot.lane.b32.xlu0 %v2604, 64
        %v2627 = vpop.permute.xlu0 %2626
        %2628 = vrot.lane.b32.xlu0 %v2605, 64
        %v2629 = vpop.permute.xlu0 %2628
        %vm2638 = vcmask 258052
        %2639 = vst.msk [vmem:[#allocation4] sm:$0x10] %vm2638, %v2615
        %2640 = vst.msk [vmem:[#allocation4 + $0x8] sm:$0x10] %vm2638, %v2617
        %2641 = vst.msk [vmem:[#allocation4 + $0x10] sm:$0x10] %vm2638, %v2619
        %2642 = vst.msk [vmem:[#allocation4 + $0x18] sm:$0x10] %vm2638, %v2621
        %2643 = vst.msk [vmem:[#allocation4 + $0x20] sm:$0x10] %vm2638, %v2623
        %2644 = vst.msk [vmem:[#allocation4 + $0x28] sm:$0x10] %vm2638, %v2625
        %2645 = vst.msk [vmem:[#allocation4 + $0x30] sm:$0x10] %vm2638, %v2627
        %2646 = vst.msk [vmem:[#allocation4 + $0x38] sm:$0x10] %vm2638, %v2629
        %v2647 = vrot.slane %v2598, 4
        %v2648 = vrot.slane %v2599, 3
        %v2649 = vsel %vm949, %v2648, %v2647
        %v2650 = vrot.slane %v2600, 2
        %v2651 = vsel %vm952, %v2650, %v2649
        %v2652 = vrot.slane %v2601, 1
        %v2653 = vsel %vm955, %v2652, %v2651
        %v2654 = vsel %vm958, %v2602, %v2653
        %v2655 = vrot.slane %v2603, 7
        %v2656 = vsel %vm961, %v2655, %v2654
        %v2657 = vrot.slane %v2604, 6
        %v2658 = vsel %vm964, %v2657, %v2656
        %v2659 = vrot.slane %v2605, 5
        %v2660 = vsel %vm967, %v2659, %v2658
        %2661 = vrot.lane.b32.xlu0 %v2660, 64
        %v2662 = vpop.permute.xlu0 %2661
        %v2663 = vsel %vm464, %v2662, 0
        %2665 = vmatpush.msra.mxu0 0.0
        %2666 = vmatpush.msra.mxu0 0.0
        %2667 = vmatpush.msra.mxu0 0.0
        %2668 = vmatpush.msra.mxu0 0.0
        %2669 = vmatpush.msra.mxu0 0.0
        %2670 = vmatpush.msra.mxu0 0.0
        %2671 = vmatpush.msra.mxu0 0.0
        %2672 = vmatpush.msra.mxu0 0.0
        %2673 = vmatpush.msra.mxu0 0.0
        %2674 = vmatpush.msra.mxu0 0.0
        %2675 = vmatpush.msra.mxu0 0.0
        %2676 = vmatpush.msra.mxu0 0.0
        %2677 = vmatpush.msra.mxu0 %v459
        %2678 = vmatpush.msra.mxu0 %v458
        %2679 = vmatpush.msra.mxu0 %v457
        %2680 = vmatpush.msra.mxu0 %v456
        %2681 = vmatmul.f32.gmra.mxu0 %v2663
        %v2682 = vpop.f32.mrf.mxu0
        %v2683 = vadd.f32 0.0, %v2682
        %2684 = vdwg.mxu0
        %v2686 = vrot.slane %v2683, 3
        %v2687 = vrot.slane %v2683, 4
        %v2688 = vrot.slane %v2683, 5
        %v2689 = vrot.slane %v2683, 6
        %v2690 = vrot.slane %v2683, 7
        %v2691 = vrot.slane %v2683, 1
        %v2692 = vrot.slane %v2683, 2
        %v2701 = vadd.f32 %v507, %v2686
        %v2702 = vadd.f32 %v510, %v2687
        %v2703 = vadd.f32 %v513, %v2688
        %v2704 = vadd.f32 %v516, %v2689
        %v2705 = vadd.f32 %v519, %v2690
        %v2706 = vadd.f32 %v522, %v2683
        %v2707 = vadd.f32 %v525, %v2691
        %v2708 = vadd.f32 %v528, %v2692
        %v2709 = vxor.u32 %v2701, 2147483648
        %v2710 = vxor.u32 %v2702, 2147483648
        %v2711 = vxor.u32 %v2703, 2147483648
        %v2712 = vxor.u32 %v2704, 2147483648
        %v2713 = vxor.u32 %v2705, 2147483648
        %v2714 = vxor.u32 %v2706, 2147483648
        %v2715 = vxor.u32 %v2707, 2147483648
        %v2716 = vxor.u32 %v2708, 2147483648
        %v2717 = vmul.f32 %v2709, 1.442695
        %v2718 = vpow.pop %v2717
        %v2719 = vmul.f32 %v2710, 1.442695
        %v2720 = vpow.pop %v2719
        %v2721 = vmul.f32 %v2711, 1.442695
        %v2722 = vpow.pop %v2721
        %v2723 = vmul.f32 %v2712, 1.442695
        %v2724 = vpow.pop %v2723
        %v2725 = vmul.f32 %v2713, 1.442695
        %v2726 = vpow.pop %v2725
        %v2727 = vmul.f32 %v2714, 1.442695
        %v2728 = vpow.pop %v2727
        %v2729 = vmul.f32 %v2715, 1.442695
        %v2730 = vpow.pop %v2729
        %v2731 = vmul.f32 %v2716, 1.442695
        %v2732 = vpow.pop %v2731
        %v2733 = vadd.f32 %v2718, 1.0
        %v2734 = vadd.f32 %v2720, 1.0
        %v2735 = vadd.f32 %v2722, 1.0
        %v2736 = vadd.f32 %v2724, 1.0
        %v2737 = vadd.f32 %v2726, 1.0
        %v2738 = vadd.f32 %v2728, 1.0
        %v2739 = vadd.f32 %v2730, 1.0
        %v2740 = vadd.f32 %v2732, 1.0
        %v2741 = vrcp.pop %v2733
        %v2742 = vmul.f32 %v2733, %v2741
        %v2743 = vsub.f32 1.0, %v2742
        %v2744 = vmul.f32 %v2741, %v2743
        %v2745 = vadd.f32 %v2741, %v2744
        %vm2746 = vweird.f32 %v2733
        %vm2747 = vweird.f32 %v2741
        %vm2748 = vmor %vm2746, %vm2747
        %v2749 = vsel %vm2748, %v2741, %v2745
        %v2750 = vand.u32 2147483647, %v2733
        %vm2751 = vcmp.eq.f32.partialorder %v2750, 8.507059e+37
        %v2752 = vand.u32 %v2733, 2147483648
        %v2753 = vor.u32 1.1754944e-38, %v2752
        %v2754 = vsel %vm2751, %v2753, %v2749
        %v2755 = vmul.f32 1.0, %v2754
        %v2756 = vrcp.pop %v2734
        %v2757 = vmul.f32 %v2734, %v2756
        %v2758 = vsub.f32 1.0, %v2757
        %v2759 = vmul.f32 %v2756, %v2758
        %v2760 = vadd.f32 %v2756, %v2759
        %vm2761 = vweird.f32 %v2734
        %vm2762 = vweird.f32 %v2756
        %vm2763 = vmor %vm2761, %vm2762
        %v2764 = vsel %vm2763, %v2756, %v2760
        %v2765 = vand.u32 2147483647, %v2734
        %vm2766 = vcmp.eq.f32.partialorder %v2765, 8.507059e+37
        %v2767 = vand.u32 %v2734, 2147483648
        %v2768 = vor.u32 1.1754944e-38, %v2767
        %v2769 = vsel %vm2766, %v2768, %v2764
        %v2770 = vmul.f32 1.0, %v2769
        %v2771 = vrcp.pop %v2735
        %v2772 = vmul.f32 %v2735, %v2771
        %v2773 = vsub.f32 1.0, %v2772
        %v2774 = vmul.f32 %v2771, %v2773
        %v2775 = vadd.f32 %v2771, %v2774
        %vm2776 = vweird.f32 %v2735
        %vm2777 = vweird.f32 %v2771
        %vm2778 = vmor %vm2776, %vm2777
        %v2779 = vsel %vm2778, %v2771, %v2775
        %v2780 = vand.u32 2147483647, %v2735
        %vm2781 = vcmp.eq.f32.partialorder %v2780, 8.507059e+37
        %v2782 = vand.u32 %v2735, 2147483648
        %v2783 = vor.u32 1.1754944e-38, %v2782
        %v2784 = vsel %vm2781, %v2783, %v2779
        %v2785 = vmul.f32 1.0, %v2784
        %v2786 = vrcp.pop %v2736
        %v2787 = vmul.f32 %v2736, %v2786
        %v2788 = vsub.f32 1.0, %v2787
        %v2789 = vmul.f32 %v2786, %v2788
        %v2790 = vadd.f32 %v2786, %v2789
        %vm2791 = vweird.f32 %v2736
        %vm2792 = vweird.f32 %v2786
        %vm2793 = vmor %vm2791, %vm2792
        %v2794 = vsel %vm2793, %v2786, %v2790
        %v2795 = vand.u32 2147483647, %v2736
        %vm2796 = vcmp.eq.f32.partialorder %v2795, 8.507059e+37
        %v2797 = vand.u32 %v2736, 2147483648
        %v2798 = vor.u32 1.1754944e-38, %v2797
        %v2799 = vsel %vm2796, %v2798, %v2794
        %v2800 = vmul.f32 1.0, %v2799
        %v2801 = vrcp.pop %v2737
        %v2802 = vmul.f32 %v2737, %v2801
        %v2803 = vsub.f32 1.0, %v2802
        %v2804 = vmul.f32 %v2801, %v2803
        %v2805 = vadd.f32 %v2801, %v2804
        %vm2806 = vweird.f32 %v2737
        %vm2807 = vweird.f32 %v2801
        %vm2808 = vmor %vm2806, %vm2807
        %v2809 = vsel %vm2808, %v2801, %v2805
        %v2810 = vand.u32 2147483647, %v2737
        %vm2811 = vcmp.eq.f32.partialorder %v2810, 8.507059e+37
        %v2812 = vand.u32 %v2737, 2147483648
        %v2813 = vor.u32 1.1754944e-38, %v2812
        %v2814 = vsel %vm2811, %v2813, %v2809
        %v2815 = vmul.f32 1.0, %v2814
        %v2816 = vrcp.pop %v2738
        %v2817 = vmul.f32 %v2738, %v2816
        %v2818 = vsub.f32 1.0, %v2817
        %v2819 = vmul.f32 %v2816, %v2818
        %v2820 = vadd.f32 %v2816, %v2819
        %vm2821 = vweird.f32 %v2738
        %vm2822 = vweird.f32 %v2816
        %vm2823 = vmor %vm2821, %vm2822
        %v2824 = vsel %vm2823, %v2816, %v2820
        %v2825 = vand.u32 2147483647, %v2738
        %vm2826 = vcmp.eq.f32.partialorder %v2825, 8.507059e+37
        %v2827 = vand.u32 %v2738, 2147483648
        %v2828 = vor.u32 1.1754944e-38, %v2827
        %v2829 = vsel %vm2826, %v2828, %v2824
        %v2830 = vmul.f32 1.0, %v2829
        %v2831 = vrcp.pop %v2739
        %v2832 = vmul.f32 %v2739, %v2831
        %v2833 = vsub.f32 1.0, %v2832
        %v2834 = vmul.f32 %v2831, %v2833
        %v2835 = vadd.f32 %v2831, %v2834
        %vm2836 = vweird.f32 %v2739
        %vm2837 = vweird.f32 %v2831
        %vm2838 = vmor %vm2836, %vm2837
        %v2839 = vsel %vm2838, %v2831, %v2835
        %v2840 = vand.u32 2147483647, %v2739
        %vm2841 = vcmp.eq.f32.partialorder %v2840, 8.507059e+37
        %v2842 = vand.u32 %v2739, 2147483648
        %v2843 = vor.u32 1.1754944e-38, %v2842
        %v2844 = vsel %vm2841, %v2843, %v2839
        %v2845 = vmul.f32 1.0, %v2844
        %v2846 = vrcp.pop %v2740
        %v2847 = vmul.f32 %v2740, %v2846
        %v2848 = vsub.f32 1.0, %v2847
        %v2849 = vmul.f32 %v2846, %v2848
        %v2850 = vadd.f32 %v2846, %v2849
        %vm2851 = vweird.f32 %v2740
        %vm2852 = vweird.f32 %v2846
        %vm2853 = vmor %vm2851, %vm2852
        %v2854 = vsel %vm2853, %v2846, %v2850
        %v2855 = vand.u32 2147483647, %v2740
        %vm2856 = vcmp.eq.f32.partialorder %v2855, 8.507059e+37
        %v2857 = vand.u32 %v2740, 2147483648
        %v2858 = vor.u32 1.1754944e-38, %v2857
        %v2859 = vsel %vm2856, %v2858, %v2854
        %v2860 = vmul.f32 1.0, %v2859
        %v2861 = vtanh.pop %v2701
        %v2862 = vtanh.pop %v2702
        %v2863 = vtanh.pop %v2703
        %v2864 = vtanh.pop %v2704
        %v2865 = vtanh.pop %v2705
        %v2866 = vtanh.pop %v2706
        %v2867 = vtanh.pop %v2707
        %v2868 = vtanh.pop %v2708
        %v2877 = vrot.slane %v2550, 7
        %v2878 = vrot.slane %v2551, 7
        %v2879 = vrot.slane %v2552, 7
        %v2880 = vrot.slane %v2553, 7
        %v2881 = vrot.slane %v2554, 7
        %v2882 = vrot.slane %v2555, 7
        %v2883 = vrot.slane %v2556, 7
        %v2884 = vrot.slane %v2557, 7
        %v2893 = vmul.f32 %v2755, %v2877
        %v2894 = vmul.f32 %v2770, %v2878
        %v2895 = vmul.f32 %v2785, %v2879
        %v2896 = vmul.f32 %v2800, %v2880
        %v2897 = vmul.f32 %v2815, %v2881
        %v2898 = vmul.f32 %v2830, %v2882
        %v2899 = vmul.f32 %v2845, %v2883
        %v2900 = vmul.f32 %v2860, %v2884
        %2909 = vrot.lane.b32.xlu0 %v2861, 32
        %v2910 = vpop.permute.xlu0 %2909
        %2911 = vrot.lane.b32.xlu0 %v2862, 32
        %v2912 = vpop.permute.xlu0 %2911
        %2913 = vrot.lane.b32.xlu0 %v2863, 32
        %v2914 = vpop.permute.xlu0 %2913
        %2915 = vrot.lane.b32.xlu0 %v2864, 32
        %v2916 = vpop.permute.xlu0 %2915
        %2917 = vrot.lane.b32.xlu0 %v2865, 32
        %v2918 = vpop.permute.xlu0 %2917
        %2919 = vrot.lane.b32.xlu0 %v2866, 32
        %v2920 = vpop.permute.xlu0 %2919
        %2921 = vrot.lane.b32.xlu0 %v2867, 32
        %v2922 = vpop.permute.xlu0 %2921
        %2923 = vrot.lane.b32.xlu0 %v2868, 32
        %v2924 = vpop.permute.xlu0 %2923
        %v2933 = vmul.f32 %v2755, %v2910
        %v2934 = vmul.f32 %v2770, %v2912
        %v2935 = vmul.f32 %v2785, %v2914
        %v2936 = vmul.f32 %v2800, %v2916
        %v2937 = vmul.f32 %v2815, %v2918
        %v2938 = vmul.f32 %v2830, %v2920
        %v2939 = vmul.f32 %v2845, %v2922
        %v2940 = vmul.f32 %v2860, %v2924
        %2949 = vrot.lane.b32.xlu0 %v2933, 32
        %v2950 = vpop.permute.xlu0 %2949
        %2951 = vrot.lane.b32.xlu0 %v2934, 32
        %v2952 = vpop.permute.xlu0 %2951
        %2953 = vrot.lane.b32.xlu0 %v2935, 32
        %v2954 = vpop.permute.xlu0 %2953
        %2955 = vrot.lane.b32.xlu0 %v2936, 32
        %v2956 = vpop.permute.xlu0 %2955
        %2957 = vrot.lane.b32.xlu0 %v2937, 32
        %v2958 = vpop.permute.xlu0 %2957
        %2959 = vrot.lane.b32.xlu0 %v2938, 32
        %v2960 = vpop.permute.xlu0 %2959
        %2961 = vrot.lane.b32.xlu0 %v2939, 32
        %v2962 = vpop.permute.xlu0 %2961
        %2963 = vrot.lane.b32.xlu0 %v2940, 32
        %v2964 = vpop.permute.xlu0 %2963
        %v2973 = vadd.f32 %v2893, %v2950
        %v2974 = vadd.f32 %v2894, %v2952
        %v2975 = vadd.f32 %v2895, %v2954
        %v2976 = vadd.f32 %v2896, %v2956
        %v2977 = vadd.f32 %v2897, %v2958
        %v2978 = vadd.f32 %v2898, %v2960
        %v2979 = vadd.f32 %v2899, %v2962
        %v2980 = vadd.f32 %v2900, %v2964
        %v2981 = vtanh.pop %v2973
        %v2982 = vtanh.pop %v2974
        %v2983 = vtanh.pop %v2975
        %v2984 = vtanh.pop %v2976
        %v2985 = vtanh.pop %v2977
        %v2986 = vtanh.pop %v2978
        %v2987 = vtanh.pop %v2979
        %v2988 = vtanh.pop %v2980
        %2997 = vrot.lane.b32.xlu0 %v2981, 32
        %v2998 = vpop.permute.xlu0 %2997
        %2999 = vrot.lane.b32.xlu0 %v2982, 32
        %v3000 = vpop.permute.xlu0 %2999
        %3001 = vrot.lane.b32.xlu0 %v2983, 32
        %v3002 = vpop.permute.xlu0 %3001
        %3003 = vrot.lane.b32.xlu0 %v2984, 32
        %v3004 = vpop.permute.xlu0 %3003
        %3005 = vrot.lane.b32.xlu0 %v2985, 32
        %v3006 = vpop.permute.xlu0 %3005
        %3007 = vrot.lane.b32.xlu0 %v2986, 32
        %v3008 = vpop.permute.xlu0 %3007
        %3009 = vrot.lane.b32.xlu0 %v2987, 32
        %v3010 = vpop.permute.xlu0 %3009
        %3011 = vrot.lane.b32.xlu0 %v2988, 32
        %v3012 = vpop.permute.xlu0 %3011
        %v3021 = vmul.f32 %v2755, %v2998
        %v3022 = vmul.f32 %v2770, %v3000
        %v3023 = vmul.f32 %v2785, %v3002
        %v3024 = vmul.f32 %v2800, %v3004
        %v3025 = vmul.f32 %v2815, %v3006
        %v3026 = vmul.f32 %v2830, %v3008
        %v3027 = vmul.f32 %v2845, %v3010
        %v3028 = vmul.f32 %v2860, %v3012
        %3037 = vrot.lane.b32.xlu0 %v3021, 64
        %v3038 = vpop.permute.xlu0 %3037
        %3039 = vrot.lane.b32.xlu0 %v3022, 64
        %v3040 = vpop.permute.xlu0 %3039
        %3041 = vrot.lane.b32.xlu0 %v3023, 64
        %v3042 = vpop.permute.xlu0 %3041
        %3043 = vrot.lane.b32.xlu0 %v3024, 64
        %v3044 = vpop.permute.xlu0 %3043
        %3045 = vrot.lane.b32.xlu0 %v3025, 64
        %v3046 = vpop.permute.xlu0 %3045
        %3047 = vrot.lane.b32.xlu0 %v3026, 64
        %v3048 = vpop.permute.xlu0 %3047
        %3049 = vrot.lane.b32.xlu0 %v3027, 64
        %v3050 = vpop.permute.xlu0 %3049
        %3051 = vrot.lane.b32.xlu0 %v3028, 64
        %v3052 = vpop.permute.xlu0 %3051
        %vm3061 = vcmask 259077
        %3062 = vst.msk [vmem:[#allocation4] sm:$0x20] %vm3061, %v3038
        %3063 = vst.msk [vmem:[#allocation4 + $0x8] sm:$0x20] %vm3061, %v3040
        %3064 = vst.msk [vmem:[#allocation4 + $0x10] sm:$0x20] %vm3061, %v3042
        %3065 = vst.msk [vmem:[#allocation4 + $0x18] sm:$0x20] %vm3061, %v3044
        %3066 = vst.msk [vmem:[#allocation4 + $0x20] sm:$0x20] %vm3061, %v3046
        %3067 = vst.msk [vmem:[#allocation4 + $0x28] sm:$0x20] %vm3061, %v3048
        %3068 = vst.msk [vmem:[#allocation4 + $0x30] sm:$0x20] %vm3061, %v3050
        %3069 = vst.msk [vmem:[#allocation4 + $0x38] sm:$0x20] %vm3061, %v3052
        %v3070 = vrot.slane %v3021, 5
        %v3071 = vrot.slane %v3022, 4
        %v3072 = vsel %vm949, %v3071, %v3070
        %v3073 = vrot.slane %v3023, 3
        %v3074 = vsel %vm952, %v3073, %v3072
        %v3075 = vrot.slane %v3024, 2
        %v3076 = vsel %vm955, %v3075, %v3074
        %v3077 = vrot.slane %v3025, 1
        %v3078 = vsel %vm958, %v3077, %v3076
        %v3079 = vsel %vm961, %v3026, %v3078
        %v3080 = vrot.slane %v3027, 7
        %v3081 = vsel %vm964, %v3080, %v3079
        %v3082 = vrot.slane %v3028, 6
        %v3083 = vsel %vm967, %v3082, %v3081
        %3084 = vrot.lane.b32.xlu0 %v3083, 64
        %v3085 = vpop.permute.xlu0 %3084
        %v3086 = vsel %vm464, %v3085, 0
        %3088 = vmatpush.msra.mxu0 0.0
        %3089 = vmatpush.msra.mxu0 0.0
        %3090 = vmatpush.msra.mxu0 0.0
        %3091 = vmatpush.msra.mxu0 0.0
        %3092 = vmatpush.msra.mxu0 0.0
        %3093 = vmatpush.msra.mxu0 0.0
        %3094 = vmatpush.msra.mxu0 0.0
        %3095 = vmatpush.msra.mxu0 0.0
        %3096 = vmatpush.msra.mxu0 0.0
        %3097 = vmatpush.msra.mxu0 0.0
        %3098 = vmatpush.msra.mxu0 0.0
        %3099 = vmatpush.msra.mxu0 0.0
        %3100 = vmatpush.msra.mxu0 %v459
        %3101 = vmatpush.msra.mxu0 %v458
        %3102 = vmatpush.msra.mxu0 %v457
        %3103 = vmatpush.msra.mxu0 %v456
        %3104 = vmatmul.f32.gmra.mxu0 %v3086
        %v3105 = vpop.f32.mrf.mxu0
        %v3106 = vadd.f32 0.0, %v3105
        %3107 = vdwg.mxu0
        %v3109 = vrot.slane %v3106, 2
        %v3110 = vrot.slane %v3106, 3
        %v3111 = vrot.slane %v3106, 4
        %v3112 = vrot.slane %v3106, 5
        %v3113 = vrot.slane %v3106, 6
        %v3114 = vrot.slane %v3106, 7
        %v3115 = vrot.slane %v3106, 1
        %v3124 = vadd.f32 %v507, %v3109
        %v3125 = vadd.f32 %v510, %v3110
        %v3126 = vadd.f32 %v513, %v3111
        %v3127 = vadd.f32 %v516, %v3112
        %v3128 = vadd.f32 %v519, %v3113
        %v3129 = vadd.f32 %v522, %v3114
        %v3130 = vadd.f32 %v525, %v3106
        %v3131 = vadd.f32 %v528, %v3115
        %v3132 = vxor.u32 %v3124, 2147483648
        %v3133 = vxor.u32 %v3125, 2147483648
        %v3134 = vxor.u32 %v3126, 2147483648
        %v3135 = vxor.u32 %v3127, 2147483648
        %v3136 = vxor.u32 %v3128, 2147483648
        %v3137 = vxor.u32 %v3129, 2147483648
        %v3138 = vxor.u32 %v3130, 2147483648
        %v3139 = vxor.u32 %v3131, 2147483648
        %v3140 = vmul.f32 %v3132, 1.442695
        %v3141 = vpow.pop %v3140
        %v3142 = vmul.f32 %v3133, 1.442695
        %v3143 = vpow.pop %v3142
        %v3144 = vmul.f32 %v3134, 1.442695
        %v3145 = vpow.pop %v3144
        %v3146 = vmul.f32 %v3135, 1.442695
        %v3147 = vpow.pop %v3146
        %v3148 = vmul.f32 %v3136, 1.442695
        %v3149 = vpow.pop %v3148
        %v3150 = vmul.f32 %v3137, 1.442695
        %v3151 = vpow.pop %v3150
        %v3152 = vmul.f32 %v3138, 1.442695
        %v3153 = vpow.pop %v3152
        %v3154 = vmul.f32 %v3139, 1.442695
        %v3155 = vpow.pop %v3154
        %v3156 = vadd.f32 %v3141, 1.0
        %v3157 = vadd.f32 %v3143, 1.0
        %v3158 = vadd.f32 %v3145, 1.0
        %v3159 = vadd.f32 %v3147, 1.0
        %v3160 = vadd.f32 %v3149, 1.0
        %v3161 = vadd.f32 %v3151, 1.0
        %v3162 = vadd.f32 %v3153, 1.0
        %v3163 = vadd.f32 %v3155, 1.0
        %v3164 = vrcp.pop %v3156
        %v3165 = vmul.f32 %v3156, %v3164
        %v3166 = vsub.f32 1.0, %v3165
        %v3167 = vmul.f32 %v3164, %v3166
        %v3168 = vadd.f32 %v3164, %v3167
        %vm3169 = vweird.f32 %v3156
        %vm3170 = vweird.f32 %v3164
        %vm3171 = vmor %vm3169, %vm3170
        %v3172 = vsel %vm3171, %v3164, %v3168
        %v3173 = vand.u32 2147483647, %v3156
        %vm3174 = vcmp.eq.f32.partialorder %v3173, 8.507059e+37
        %v3175 = vand.u32 %v3156, 2147483648
        %v3176 = vor.u32 1.1754944e-38, %v3175
        %v3177 = vsel %vm3174, %v3176, %v3172
        %v3178 = vmul.f32 1.0, %v3177
        %v3179 = vrcp.pop %v3157
        %v3180 = vmul.f32 %v3157, %v3179
        %v3181 = vsub.f32 1.0, %v3180
        %v3182 = vmul.f32 %v3179, %v3181
        %v3183 = vadd.f32 %v3179, %v3182
        %vm3184 = vweird.f32 %v3157
        %vm3185 = vweird.f32 %v3179
        %vm3186 = vmor %vm3184, %vm3185
        %v3187 = vsel %vm3186, %v3179, %v3183
        %v3188 = vand.u32 2147483647, %v3157
        %vm3189 = vcmp.eq.f32.partialorder %v3188, 8.507059e+37
        %v3190 = vand.u32 %v3157, 2147483648
        %v3191 = vor.u32 1.1754944e-38, %v3190
        %v3192 = vsel %vm3189, %v3191, %v3187
        %v3193 = vmul.f32 1.0, %v3192
        %v3194 = vrcp.pop %v3158
        %v3195 = vmul.f32 %v3158, %v3194
        %v3196 = vsub.f32 1.0, %v3195
        %v3197 = vmul.f32 %v3194, %v3196
        %v3198 = vadd.f32 %v3194, %v3197
        %vm3199 = vweird.f32 %v3158
        %vm3200 = vweird.f32 %v3194
        %vm3201 = vmor %vm3199, %vm3200
        %v3202 = vsel %vm3201, %v3194, %v3198
        %v3203 = vand.u32 2147483647, %v3158
        %vm3204 = vcmp.eq.f32.partialorder %v3203, 8.507059e+37
        %v3205 = vand.u32 %v3158, 2147483648
        %v3206 = vor.u32 1.1754944e-38, %v3205
        %v3207 = vsel %vm3204, %v3206, %v3202
        %v3208 = vmul.f32 1.0, %v3207
        %v3209 = vrcp.pop %v3159
        %v3210 = vmul.f32 %v3159, %v3209
        %v3211 = vsub.f32 1.0, %v3210
        %v3212 = vmul.f32 %v3209, %v3211
        %v3213 = vadd.f32 %v3209, %v3212
        %vm3214 = vweird.f32 %v3159
        %vm3215 = vweird.f32 %v3209
        %vm3216 = vmor %vm3214, %vm3215
        %v3217 = vsel %vm3216, %v3209, %v3213
        %v3218 = vand.u32 2147483647, %v3159
        %vm3219 = vcmp.eq.f32.partialorder %v3218, 8.507059e+37
        %v3220 = vand.u32 %v3159, 2147483648
        %v3221 = vor.u32 1.1754944e-38, %v3220
        %v3222 = vsel %vm3219, %v3221, %v3217
        %v3223 = vmul.f32 1.0, %v3222
        %v3224 = vrcp.pop %v3160
        %v3225 = vmul.f32 %v3160, %v3224
        %v3226 = vsub.f32 1.0, %v3225
        %v3227 = vmul.f32 %v3224, %v3226
        %v3228 = vadd.f32 %v3224, %v3227
        %vm3229 = vweird.f32 %v3160
        %vm3230 = vweird.f32 %v3224
        %vm3231 = vmor %vm3229, %vm3230
        %v3232 = vsel %vm3231, %v3224, %v3228
        %v3233 = vand.u32 2147483647, %v3160
        %vm3234 = vcmp.eq.f32.partialorder %v3233, 8.507059e+37
        %v3235 = vand.u32 %v3160, 2147483648
        %v3236 = vor.u32 1.1754944e-38, %v3235
        %v3237 = vsel %vm3234, %v3236, %v3232
        %v3238 = vmul.f32 1.0, %v3237
        %v3239 = vrcp.pop %v3161
        %v3240 = vmul.f32 %v3161, %v3239
        %v3241 = vsub.f32 1.0, %v3240
        %v3242 = vmul.f32 %v3239, %v3241
        %v3243 = vadd.f32 %v3239, %v3242
        %vm3244 = vweird.f32 %v3161
        %vm3245 = vweird.f32 %v3239
        %vm3246 = vmor %vm3244, %vm3245
        %v3247 = vsel %vm3246, %v3239, %v3243
        %v3248 = vand.u32 2147483647, %v3161
        %vm3249 = vcmp.eq.f32.partialorder %v3248, 8.507059e+37
        %v3250 = vand.u32 %v3161, 2147483648
        %v3251 = vor.u32 1.1754944e-38, %v3250
        %v3252 = vsel %vm3249, %v3251, %v3247
        %v3253 = vmul.f32 1.0, %v3252
        %v3254 = vrcp.pop %v3162
        %v3255 = vmul.f32 %v3162, %v3254
        %v3256 = vsub.f32 1.0, %v3255
        %v3257 = vmul.f32 %v3254, %v3256
        %v3258 = vadd.f32 %v3254, %v3257
        %vm3259 = vweird.f32 %v3162
        %vm3260 = vweird.f32 %v3254
        %vm3261 = vmor %vm3259, %vm3260
        %v3262 = vsel %vm3261, %v3254, %v3258
        %v3263 = vand.u32 2147483647, %v3162
        %vm3264 = vcmp.eq.f32.partialorder %v3263, 8.507059e+37
        %v3265 = vand.u32 %v3162, 2147483648
        %v3266 = vor.u32 1.1754944e-38, %v3265
        %v3267 = vsel %vm3264, %v3266, %v3262
        %v3268 = vmul.f32 1.0, %v3267
        %v3269 = vrcp.pop %v3163
        %v3270 = vmul.f32 %v3163, %v3269
        %v3271 = vsub.f32 1.0, %v3270
        %v3272 = vmul.f32 %v3269, %v3271
        %v3273 = vadd.f32 %v3269, %v3272
        %vm3274 = vweird.f32 %v3163
        %vm3275 = vweird.f32 %v3269
        %vm3276 = vmor %vm3274, %vm3275
        %v3277 = vsel %vm3276, %v3269, %v3273
        %v3278 = vand.u32 2147483647, %v3163
        %vm3279 = vcmp.eq.f32.partialorder %v3278, 8.507059e+37
        %v3280 = vand.u32 %v3163, 2147483648
        %v3281 = vor.u32 1.1754944e-38, %v3280
        %v3282 = vsel %vm3279, %v3281, %v3277
        %v3283 = vmul.f32 1.0, %v3282
        %v3284 = vtanh.pop %v3124
        %v3285 = vtanh.pop %v3125
        %v3286 = vtanh.pop %v3126
        %v3287 = vtanh.pop %v3127
        %v3288 = vtanh.pop %v3128
        %v3289 = vtanh.pop %v3129
        %v3290 = vtanh.pop %v3130
        %v3291 = vtanh.pop %v3131
        %v3300 = vrot.slane %v2973, 7
        %v3301 = vrot.slane %v2974, 7
        %v3302 = vrot.slane %v2975, 7
        %v3303 = vrot.slane %v2976, 7
        %v3304 = vrot.slane %v2977, 7
        %v3305 = vrot.slane %v2978, 7
        %v3306 = vrot.slane %v2979, 7
        %v3307 = vrot.slane %v2980, 7
        %v3316 = vmul.f32 %v3178, %v3300
        %v3317 = vmul.f32 %v3193, %v3301
        %v3318 = vmul.f32 %v3208, %v3302
        %v3319 = vmul.f32 %v3223, %v3303
        %v3320 = vmul.f32 %v3238, %v3304
        %v3321 = vmul.f32 %v3253, %v3305
        %v3322 = vmul.f32 %v3268, %v3306
        %v3323 = vmul.f32 %v3283, %v3307
        %3332 = vrot.lane.b32.xlu0 %v3284, 32
        %v3333 = vpop.permute.xlu0 %3332
        %3334 = vrot.lane.b32.xlu0 %v3285, 32
        %v3335 = vpop.permute.xlu0 %3334
        %3336 = vrot.lane.b32.xlu0 %v3286, 32
        %v3337 = vpop.permute.xlu0 %3336
        %3338 = vrot.lane.b32.xlu0 %v3287, 32
        %v3339 = vpop.permute.xlu0 %3338
        %3340 = vrot.lane.b32.xlu0 %v3288, 32
        %v3341 = vpop.permute.xlu0 %3340
        %3342 = vrot.lane.b32.xlu0 %v3289, 32
        %v3343 = vpop.permute.xlu0 %3342
        %3344 = vrot.lane.b32.xlu0 %v3290, 32
        %v3345 = vpop.permute.xlu0 %3344
        %3346 = vrot.lane.b32.xlu0 %v3291, 32
        %v3347 = vpop.permute.xlu0 %3346
        %v3356 = vmul.f32 %v3178, %v3333
        %v3357 = vmul.f32 %v3193, %v3335
        %v3358 = vmul.f32 %v3208, %v3337
        %v3359 = vmul.f32 %v3223, %v3339
        %v3360 = vmul.f32 %v3238, %v3341
        %v3361 = vmul.f32 %v3253, %v3343
        %v3362 = vmul.f32 %v3268, %v3345
        %v3363 = vmul.f32 %v3283, %v3347
        %3372 = vrot.lane.b32.xlu0 %v3356, 32
        %v3373 = vpop.permute.xlu0 %3372
        %3374 = vrot.lane.b32.xlu0 %v3357, 32
        %v3375 = vpop.permute.xlu0 %3374
        %3376 = vrot.lane.b32.xlu0 %v3358, 32
        %v3377 = vpop.permute.xlu0 %3376
        %3378 = vrot.lane.b32.xlu0 %v3359, 32
        %v3379 = vpop.permute.xlu0 %3378
        %3380 = vrot.lane.b32.xlu0 %v3360, 32
        %v3381 = vpop.permute.xlu0 %3380
        %3382 = vrot.lane.b32.xlu0 %v3361, 32
        %v3383 = vpop.permute.xlu0 %3382
        %3384 = vrot.lane.b32.xlu0 %v3362, 32
        %v3385 = vpop.permute.xlu0 %3384
        %3386 = vrot.lane.b32.xlu0 %v3363, 32
        %v3387 = vpop.permute.xlu0 %3386
        %v3396 = vadd.f32 %v3316, %v3373
        %v3397 = vadd.f32 %v3317, %v3375
        %v3398 = vadd.f32 %v3318, %v3377
        %v3399 = vadd.f32 %v3319, %v3379
        %v3400 = vadd.f32 %v3320, %v3381
        %v3401 = vadd.f32 %v3321, %v3383
        %v3402 = vadd.f32 %v3322, %v3385
        %v3403 = vadd.f32 %v3323, %v3387
        %v3404 = vtanh.pop %v3396
        %v3405 = vtanh.pop %v3397
        %v3406 = vtanh.pop %v3398
        %v3407 = vtanh.pop %v3399
        %v3408 = vtanh.pop %v3400
        %v3409 = vtanh.pop %v3401
        %v3410 = vtanh.pop %v3402
        %v3411 = vtanh.pop %v3403
        %3420 = vrot.lane.b32.xlu0 %v3404, 32
        %v3421 = vpop.permute.xlu0 %3420
        %3422 = vrot.lane.b32.xlu0 %v3405, 32
        %v3423 = vpop.permute.xlu0 %3422
        %3424 = vrot.lane.b32.xlu0 %v3406, 32
        %v3425 = vpop.permute.xlu0 %3424
        %3426 = vrot.lane.b32.xlu0 %v3407, 32
        %v3427 = vpop.permute.xlu0 %3426
        %3428 = vrot.lane.b32.xlu0 %v3408, 32
        %v3429 = vpop.permute.xlu0 %3428
        %3430 = vrot.lane.b32.xlu0 %v3409, 32
        %v3431 = vpop.permute.xlu0 %3430
        %3432 = vrot.lane.b32.xlu0 %v3410, 32
        %v3433 = vpop.permute.xlu0 %3432
        %3434 = vrot.lane.b32.xlu0 %v3411, 32
        %v3435 = vpop.permute.xlu0 %3434
        %v3444 = vmul.f32 %v3178, %v3421
        %v3445 = vmul.f32 %v3193, %v3423
        %v3446 = vmul.f32 %v3208, %v3425
        %v3447 = vmul.f32 %v3223, %v3427
        %v3448 = vmul.f32 %v3238, %v3429
        %v3449 = vmul.f32 %v3253, %v3431
        %v3450 = vmul.f32 %v3268, %v3433
        %v3451 = vmul.f32 %v3283, %v3435
        %3460 = vrot.lane.b32.xlu0 %v3444, 64
        %v3461 = vpop.permute.xlu0 %3460
        %3462 = vrot.lane.b32.xlu0 %v3445, 64
        %v3463 = vpop.permute.xlu0 %3462
        %3464 = vrot.lane.b32.xlu0 %v3446, 64
        %v3465 = vpop.permute.xlu0 %3464
        %3466 = vrot.lane.b32.xlu0 %v3447, 64
        %v3467 = vpop.permute.xlu0 %3466
        %3468 = vrot.lane.b32.xlu0 %v3448, 64
        %v3469 = vpop.permute.xlu0 %3468
        %3470 = vrot.lane.b32.xlu0 %v3449, 64
        %v3471 = vpop.permute.xlu0 %3470
        %3472 = vrot.lane.b32.xlu0 %v3450, 64
        %v3473 = vpop.permute.xlu0 %3472
        %3474 = vrot.lane.b32.xlu0 %v3451, 64
        %v3475 = vpop.permute.xlu0 %3474
        %vm3484 = vcmask 260102
        %3485 = vst.msk [vmem:[#allocation4] sm:$0x40] %vm3484, %v3461
        %3486 = vst.msk [vmem:[#allocation4 + $0x8] sm:$0x40] %vm3484, %v3463
        %3487 = vst.msk [vmem:[#allocation4 + $0x10] sm:$0x40] %vm3484, %v3465
        %3488 = vst.msk [vmem:[#allocation4 + $0x18] sm:$0x40] %vm3484, %v3467
        %3489 = vst.msk [vmem:[#allocation4 + $0x20] sm:$0x40] %vm3484, %v3469
        %3490 = vst.msk [vmem:[#allocation4 + $0x28] sm:$0x40] %vm3484, %v3471
        %3491 = vst.msk [vmem:[#allocation4 + $0x30] sm:$0x40] %vm3484, %v3473
        %3492 = vst.msk [vmem:[#allocation4 + $0x38] sm:$0x40] %vm3484, %v3475
        %v3493 = vrot.slane %v3444, 6
        %v3494 = vrot.slane %v3445, 5
        %v3495 = vsel %vm949, %v3494, %v3493
        %v3496 = vrot.slane %v3446, 4
        %v3497 = vsel %vm952, %v3496, %v3495
        %v3498 = vrot.slane %v3447, 3
        %v3499 = vsel %vm955, %v3498, %v3497
        %v3500 = vrot.slane %v3448, 2
        %v3501 = vsel %vm958, %v3500, %v3499
        %v3502 = vrot.slane %v3449, 1
        %v3503 = vsel %vm961, %v3502, %v3501
        %v3504 = vsel %vm964, %v3450, %v3503
        %v3505 = vrot.slane %v3451, 7
        %v3506 = vsel %vm967, %v3505, %v3504
        %3507 = vrot.lane.b32.xlu0 %v3506, 64
        %v3508 = vpop.permute.xlu0 %3507
        %v3509 = vsel %vm464, %v3508, 0
        %3511 = vmatpush.msra.mxu0 0.0
        %3512 = vmatpush.msra.mxu0 0.0
        %3513 = vmatpush.msra.mxu0 0.0
        %3514 = vmatpush.msra.mxu0 0.0
        %3515 = vmatpush.msra.mxu0 0.0
        %3516 = vmatpush.msra.mxu0 0.0
        %3517 = vmatpush.msra.mxu0 0.0
        %3518 = vmatpush.msra.mxu0 0.0
        %3519 = vmatpush.msra.mxu0 0.0
        %3520 = vmatpush.msra.mxu0 0.0
        %3521 = vmatpush.msra.mxu0 0.0
        %3522 = vmatpush.msra.mxu0 0.0
        %3523 = vmatpush.msra.mxu0 %v459
        %3524 = vmatpush.msra.mxu0 %v458
        %3525 = vmatpush.msra.mxu0 %v457
        %3526 = vmatpush.msra.mxu0 %v456
        %3527 = vmatmul.f32.gmra.mxu0 %v3509
        %v3528 = vpop.f32.mrf.mxu0
        %v3529 = vadd.f32 0.0, %v3528
        %3530 = vdwg.mxu0
        %v3532 = vrot.slane %v3529, 1
        %v3533 = vrot.slane %v3529, 2
        %v3534 = vrot.slane %v3529, 3
        %v3535 = vrot.slane %v3529, 4
        %v3536 = vrot.slane %v3529, 5
        %v3537 = vrot.slane %v3529, 6
        %v3538 = vrot.slane %v3529, 7
        %v3547 = vadd.f32 %v507, %v3532
        %v3548 = vadd.f32 %v510, %v3533
        %v3549 = vadd.f32 %v513, %v3534
        %v3550 = vadd.f32 %v516, %v3535
        %v3551 = vadd.f32 %v519, %v3536
        %v3552 = vadd.f32 %v522, %v3537
        %v3553 = vadd.f32 %v525, %v3538
        %v3554 = vadd.f32 %v528, %v3529
        %v3555 = vxor.u32 %v3547, 2147483648
        %v3556 = vxor.u32 %v3548, 2147483648
        %v3557 = vxor.u32 %v3549, 2147483648
        %v3558 = vxor.u32 %v3550, 2147483648
        %v3559 = vxor.u32 %v3551, 2147483648
        %v3560 = vxor.u32 %v3552, 2147483648
        %v3561 = vxor.u32 %v3553, 2147483648
        %v3562 = vxor.u32 %v3554, 2147483648
        %v3563 = vmul.f32 %v3555, 1.442695
        %v3564 = vpow.pop %v3563
        %v3565 = vmul.f32 %v3556, 1.442695
        %v3566 = vpow.pop %v3565
        %v3567 = vmul.f32 %v3557, 1.442695
        %v3568 = vpow.pop %v3567
        %v3569 = vmul.f32 %v3558, 1.442695
        %v3570 = vpow.pop %v3569
        %v3571 = vmul.f32 %v3559, 1.442695
        %v3572 = vpow.pop %v3571
        %v3573 = vmul.f32 %v3560, 1.442695
        %v3574 = vpow.pop %v3573
        %v3575 = vmul.f32 %v3561, 1.442695
        %v3576 = vpow.pop %v3575
        %v3577 = vmul.f32 %v3562, 1.442695
        %v3578 = vpow.pop %v3577
        %v3579 = vadd.f32 %v3564, 1.0
        %v3580 = vadd.f32 %v3566, 1.0
        %v3581 = vadd.f32 %v3568, 1.0
        %v3582 = vadd.f32 %v3570, 1.0
        %v3583 = vadd.f32 %v3572, 1.0
        %v3584 = vadd.f32 %v3574, 1.0
        %v3585 = vadd.f32 %v3576, 1.0
        %v3586 = vadd.f32 %v3578, 1.0
        %v3587 = vrcp.pop %v3579
        %v3588 = vmul.f32 %v3579, %v3587
        %v3589 = vsub.f32 1.0, %v3588
        %v3590 = vmul.f32 %v3587, %v3589
        %v3591 = vadd.f32 %v3587, %v3590
        %vm3592 = vweird.f32 %v3579
        %vm3593 = vweird.f32 %v3587
        %vm3594 = vmor %vm3592, %vm3593
        %v3595 = vsel %vm3594, %v3587, %v3591
        %v3596 = vand.u32 2147483647, %v3579
        %vm3597 = vcmp.eq.f32.partialorder %v3596, 8.507059e+37
        %v3598 = vand.u32 %v3579, 2147483648
        %v3599 = vor.u32 1.1754944e-38, %v3598
        %v3600 = vsel %vm3597, %v3599, %v3595
        %v3601 = vmul.f32 1.0, %v3600
        %v3602 = vrcp.pop %v3580
        %v3603 = vmul.f32 %v3580, %v3602
        %v3604 = vsub.f32 1.0, %v3603
        %v3605 = vmul.f32 %v3602, %v3604
        %v3606 = vadd.f32 %v3602, %v3605
        %vm3607 = vweird.f32 %v3580
        %vm3608 = vweird.f32 %v3602
        %vm3609 = vmor %vm3607, %vm3608
        %v3610 = vsel %vm3609, %v3602, %v3606
        %v3611 = vand.u32 2147483647, %v3580
        %vm3612 = vcmp.eq.f32.partialorder %v3611, 8.507059e+37
        %v3613 = vand.u32 %v3580, 2147483648
        %v3614 = vor.u32 1.1754944e-38, %v3613
        %v3615 = vsel %vm3612, %v3614, %v3610
        %v3616 = vmul.f32 1.0, %v3615
        %v3617 = vrcp.pop %v3581
        %v3618 = vmul.f32 %v3581, %v3617
        %v3619 = vsub.f32 1.0, %v3618
        %v3620 = vmul.f32 %v3617, %v3619
        %v3621 = vadd.f32 %v3617, %v3620
        %vm3622 = vweird.f32 %v3581
        %vm3623 = vweird.f32 %v3617
        %vm3624 = vmor %vm3622, %vm3623
        %v3625 = vsel %vm3624, %v3617, %v3621
        %v3626 = vand.u32 2147483647, %v3581
        %vm3627 = vcmp.eq.f32.partialorder %v3626, 8.507059e+37
        %v3628 = vand.u32 %v3581, 2147483648
        %v3629 = vor.u32 1.1754944e-38, %v3628
        %v3630 = vsel %vm3627, %v3629, %v3625
        %v3631 = vmul.f32 1.0, %v3630
        %v3632 = vrcp.pop %v3582
        %v3633 = vmul.f32 %v3582, %v3632
        %v3634 = vsub.f32 1.0, %v3633
        %v3635 = vmul.f32 %v3632, %v3634
        %v3636 = vadd.f32 %v3632, %v3635
        %vm3637 = vweird.f32 %v3582
        %vm3638 = vweird.f32 %v3632
        %vm3639 = vmor %vm3637, %vm3638
        %v3640 = vsel %vm3639, %v3632, %v3636
        %v3641 = vand.u32 2147483647, %v3582
        %vm3642 = vcmp.eq.f32.partialorder %v3641, 8.507059e+37
        %v3643 = vand.u32 %v3582, 2147483648
        %v3644 = vor.u32 1.1754944e-38, %v3643
        %v3645 = vsel %vm3642, %v3644, %v3640
        %v3646 = vmul.f32 1.0, %v3645
        %v3647 = vrcp.pop %v3583
        %v3648 = vmul.f32 %v3583, %v3647
        %v3649 = vsub.f32 1.0, %v3648
        %v3650 = vmul.f32 %v3647, %v3649
        %v3651 = vadd.f32 %v3647, %v3650
        %vm3652 = vweird.f32 %v3583
        %vm3653 = vweird.f32 %v3647
        %vm3654 = vmor %vm3652, %vm3653
        %v3655 = vsel %vm3654, %v3647, %v3651
        %v3656 = vand.u32 2147483647, %v3583
        %vm3657 = vcmp.eq.f32.partialorder %v3656, 8.507059e+37
        %v3658 = vand.u32 %v3583, 2147483648
        %v3659 = vor.u32 1.1754944e-38, %v3658
        %v3660 = vsel %vm3657, %v3659, %v3655
        %v3661 = vmul.f32 1.0, %v3660
        %v3662 = vrcp.pop %v3584
        %v3663 = vmul.f32 %v3584, %v3662
        %v3664 = vsub.f32 1.0, %v3663
        %v3665 = vmul.f32 %v3662, %v3664
        %v3666 = vadd.f32 %v3662, %v3665
        %vm3667 = vweird.f32 %v3584
        %vm3668 = vweird.f32 %v3662
        %vm3669 = vmor %vm3667, %vm3668
        %v3670 = vsel %vm3669, %v3662, %v3666
        %v3671 = vand.u32 2147483647, %v3584
        %vm3672 = vcmp.eq.f32.partialorder %v3671, 8.507059e+37
        %v3673 = vand.u32 %v3584, 2147483648
        %v3674 = vor.u32 1.1754944e-38, %v3673
        %v3675 = vsel %vm3672, %v3674, %v3670
        %v3676 = vmul.f32 1.0, %v3675
        %v3677 = vrcp.pop %v3585
        %v3678 = vmul.f32 %v3585, %v3677
        %v3679 = vsub.f32 1.0, %v3678
        %v3680 = vmul.f32 %v3677, %v3679
        %v3681 = vadd.f32 %v3677, %v3680
        %vm3682 = vweird.f32 %v3585
        %vm3683 = vweird.f32 %v3677
        %vm3684 = vmor %vm3682, %vm3683
        %v3685 = vsel %vm3684, %v3677, %v3681
        %v3686 = vand.u32 2147483647, %v3585
        %vm3687 = vcmp.eq.f32.partialorder %v3686, 8.507059e+37
        %v3688 = vand.u32 %v3585, 2147483648
        %v3689 = vor.u32 1.1754944e-38, %v3688
        %v3690 = vsel %vm3687, %v3689, %v3685
        %v3691 = vmul.f32 1.0, %v3690
        %v3692 = vrcp.pop %v3586
        %v3693 = vmul.f32 %v3586, %v3692
        %v3694 = vsub.f32 1.0, %v3693
        %v3695 = vmul.f32 %v3692, %v3694
        %v3696 = vadd.f32 %v3692, %v3695
        %vm3697 = vweird.f32 %v3586
        %vm3698 = vweird.f32 %v3692
        %vm3699 = vmor %vm3697, %vm3698
        %v3700 = vsel %vm3699, %v3692, %v3696
        %v3701 = vand.u32 2147483647, %v3586
        %vm3702 = vcmp.eq.f32.partialorder %v3701, 8.507059e+37
        %v3703 = vand.u32 %v3586, 2147483648
        %v3704 = vor.u32 1.1754944e-38, %v3703
        %v3705 = vsel %vm3702, %v3704, %v3700
        %v3706 = vmul.f32 1.0, %v3705
        %v3707 = vtanh.pop %v3547
        %v3708 = vtanh.pop %v3548
        %v3709 = vtanh.pop %v3549
        %v3710 = vtanh.pop %v3550
        %v3711 = vtanh.pop %v3551
        %v3712 = vtanh.pop %v3552
        %v3713 = vtanh.pop %v3553
        %v3714 = vtanh.pop %v3554
        %v3723 = vrot.slane %v3396, 7
        %v3724 = vrot.slane %v3397, 7
        %v3725 = vrot.slane %v3398, 7
        %v3726 = vrot.slane %v3399, 7
        %v3727 = vrot.slane %v3400, 7
        %v3728 = vrot.slane %v3401, 7
        %v3729 = vrot.slane %v3402, 7
        %v3730 = vrot.slane %v3403, 7
        %v3739 = vmul.f32 %v3601, %v3723
        %v3740 = vmul.f32 %v3616, %v3724
        %v3741 = vmul.f32 %v3631, %v3725
        %v3742 = vmul.f32 %v3646, %v3726
        %v3743 = vmul.f32 %v3661, %v3727
        %v3744 = vmul.f32 %v3676, %v3728
        %v3745 = vmul.f32 %v3691, %v3729
        %v3746 = vmul.f32 %v3706, %v3730
        %3755 = vrot.lane.b32.xlu0 %v3707, 32
        %v3756 = vpop.permute.xlu0 %3755
        %3757 = vrot.lane.b32.xlu0 %v3708, 32
        %v3758 = vpop.permute.xlu0 %3757
        %3759 = vrot.lane.b32.xlu0 %v3709, 32
        %v3760 = vpop.permute.xlu0 %3759
        %3761 = vrot.lane.b32.xlu0 %v3710, 32
        %v3762 = vpop.permute.xlu0 %3761
        %3763 = vrot.lane.b32.xlu0 %v3711, 32
        %v3764 = vpop.permute.xlu0 %3763
        %3765 = vrot.lane.b32.xlu0 %v3712, 32
        %v3766 = vpop.permute.xlu0 %3765
        %3767 = vrot.lane.b32.xlu0 %v3713, 32
        %v3768 = vpop.permute.xlu0 %3767
        %3769 = vrot.lane.b32.xlu0 %v3714, 32
        %v3770 = vpop.permute.xlu0 %3769
        %v3779 = vmul.f32 %v3601, %v3756
        %v3780 = vmul.f32 %v3616, %v3758
        %v3781 = vmul.f32 %v3631, %v3760
        %v3782 = vmul.f32 %v3646, %v3762
        %v3783 = vmul.f32 %v3661, %v3764
        %v3784 = vmul.f32 %v3676, %v3766
        %v3785 = vmul.f32 %v3691, %v3768
        %v3786 = vmul.f32 %v3706, %v3770
        %3795 = vrot.lane.b32.xlu0 %v3779, 32
        %v3796 = vpop.permute.xlu0 %3795
        %3797 = vrot.lane.b32.xlu0 %v3780, 32
        %v3798 = vpop.permute.xlu0 %3797
        %3799 = vrot.lane.b32.xlu0 %v3781, 32
        %v3800 = vpop.permute.xlu0 %3799
        %3801 = vrot.lane.b32.xlu0 %v3782, 32
        %v3802 = vpop.permute.xlu0 %3801
        %3803 = vrot.lane.b32.xlu0 %v3783, 32
        %v3804 = vpop.permute.xlu0 %3803
        %3805 = vrot.lane.b32.xlu0 %v3784, 32
        %v3806 = vpop.permute.xlu0 %3805
        %3807 = vrot.lane.b32.xlu0 %v3785, 32
        %v3808 = vpop.permute.xlu0 %3807
        %3809 = vrot.lane.b32.xlu0 %v3786, 32
        %v3810 = vpop.permute.xlu0 %3809
        %v3819 = vadd.f32 %v3739, %v3796
        %v3820 = vadd.f32 %v3740, %v3798
        %v3821 = vadd.f32 %v3741, %v3800
        %v3822 = vadd.f32 %v3742, %v3802
        %v3823 = vadd.f32 %v3743, %v3804
        %v3824 = vadd.f32 %v3744, %v3806
        %v3825 = vadd.f32 %v3745, %v3808
        %v3826 = vadd.f32 %v3746, %v3810
        %v3827 = vtanh.pop %v3819
        %v3828 = vtanh.pop %v3820
        %v3829 = vtanh.pop %v3821
        %v3830 = vtanh.pop %v3822
        %v3831 = vtanh.pop %v3823
        %v3832 = vtanh.pop %v3824
        %v3833 = vtanh.pop %v3825
        %v3834 = vtanh.pop %v3826
        %3843 = vrot.lane.b32.xlu0 %v3827, 32
        %v3844 = vpop.permute.xlu0 %3843
        %3845 = vrot.lane.b32.xlu0 %v3828, 32
        %v3846 = vpop.permute.xlu0 %3845
        %3847 = vrot.lane.b32.xlu0 %v3829, 32
        %v3848 = vpop.permute.xlu0 %3847
        %3849 = vrot.lane.b32.xlu0 %v3830, 32
        %v3850 = vpop.permute.xlu0 %3849
        %3851 = vrot.lane.b32.xlu0 %v3831, 32
        %v3852 = vpop.permute.xlu0 %3851
        %3853 = vrot.lane.b32.xlu0 %v3832, 32
        %v3854 = vpop.permute.xlu0 %3853
        %3855 = vrot.lane.b32.xlu0 %v3833, 32
        %v3856 = vpop.permute.xlu0 %3855
        %3857 = vrot.lane.b32.xlu0 %v3834, 32
        %v3858 = vpop.permute.xlu0 %3857
        %v3867 = vmul.f32 %v3601, %v3844
        %v3868 = vmul.f32 %v3616, %v3846
        %v3869 = vmul.f32 %v3631, %v3848
        %v3870 = vmul.f32 %v3646, %v3850
        %v3871 = vmul.f32 %v3661, %v3852
        %v3872 = vmul.f32 %v3676, %v3854
        %v3873 = vmul.f32 %v3691, %v3856
        %v3874 = vmul.f32 %v3706, %v3858
        %3883 = vrot.lane.b32.xlu0 %v3867, 64
        %v3884 = vpop.permute.xlu0 %3883
        %3885 = vrot.lane.b32.xlu0 %v3868, 64
        %v3886 = vpop.permute.xlu0 %3885
        %3887 = vrot.lane.b32.xlu0 %v3869, 64
        %v3888 = vpop.permute.xlu0 %3887
        %3889 = vrot.lane.b32.xlu0 %v3870, 64
        %v3890 = vpop.permute.xlu0 %3889
        %3891 = vrot.lane.b32.xlu0 %v3871, 64
        %v3892 = vpop.permute.xlu0 %3891
        %3893 = vrot.lane.b32.xlu0 %v3872, 64
        %v3894 = vpop.permute.xlu0 %3893
        %3895 = vrot.lane.b32.xlu0 %v3873, 64
        %v3896 = vpop.permute.xlu0 %3895
        %3897 = vrot.lane.b32.xlu0 %v3874, 64
        %v3898 = vpop.permute.xlu0 %3897
        %vm3907 = vcmask 261127
        %3908 = vst.msk [vmem:[#allocation4] sm:$0x80] %vm3907, %v3884
        %3909 = vst.msk [vmem:[#allocation4 + $0x8] sm:$0x80] %vm3907, %v3886
        %3910 = vst.msk [vmem:[#allocation4 + $0x10] sm:$0x80] %vm3907, %v3888
        %3911 = vst.msk [vmem:[#allocation4 + $0x18] sm:$0x80] %vm3907, %v3890
        %3912 = vst.msk [vmem:[#allocation4 + $0x20] sm:$0x80] %vm3907, %v3892
        %3913 = vst.msk [vmem:[#allocation4 + $0x28] sm:$0x80] %vm3907, %v3894
        %3914 = vst.msk [vmem:[#allocation4 + $0x30] sm:$0x80] %vm3907, %v3896
        %3915 = vst.msk [vmem:[#allocation4 + $0x38] sm:$0x80] %vm3907, %v3898
        %v3916 = vrot.slane %v3868, 7
        %v3917 = vrot.slane %v3869, 6
        %v3918 = vsel %vm949, %v3917, %v3916
        %v3919 = vrot.slane %v3870, 5
        %v3920 = vsel %vm952, %v3919, %v3918
        %v3921 = vrot.slane %v3871, 4
        %v3922 = vsel %vm955, %v3921, %v3920
        %v3923 = vrot.slane %v3872, 3
        %v3924 = vsel %vm958, %v3923, %v3922
        %v3925 = vrot.slane %v3873, 2
        %v3926 = vsel %vm961, %v3925, %v3924
        %v3927 = vrot.slane %v3874, 1
        %v3928 = vsel %vm964, %v3927, %v3926
        %3929 = vrot.lane.b32.xlu0 %v3928, 64
        %v3930 = vpop.permute.xlu0 %3929
        %3932 = vst.msk [vmem:[#allocation2 - $0x7] sm:$0x80] %vm3907, %v3884
        %vm3933 = vcmask 260096
        %3934 = vst.msk [vmem:[#allocation2 + $0x1] sm:$0x7f] %vm3933, %v3930
        %v3943 = vrot.slane %v3820, 7
        %v3944 = vrot.slane %v3821, 6
        %v3945 = vsel %vm949, %v3944, %v3943
        %v3946 = vrot.slane %v3822, 5
        %v3947 = vsel %vm952, %v3946, %v3945
        %v3948 = vrot.slane %v3823, 4
        %v3949 = vsel %vm955, %v3948, %v3947
        %v3950 = vrot.slane %v3824, 3
        %v3951 = vsel %vm958, %v3950, %v3949
        %v3952 = vrot.slane %v3825, 2
        %v3953 = vsel %vm961, %v3952, %v3951
        %v3954 = vrot.slane %v3826, 1
        %v3955 = vsel %vm964, %v3954, %v3953
        %3956 = vrot.lane.b32.xlu0 %v3819, 96
        %v3957 = vpop.permute.xlu0 %3956
        %3958 = vrot.lane.b32.xlu0 %v3955, 96
        %v3959 = vpop.permute.xlu0 %3958
        %3962 = vst.msk [vmem:[#allocation3 - $0x7] sm:$0x80] %vm3907, %v3957
        %3963 = vst.msk [vmem:[#allocation3 + $0x1] sm:$0x7f] %vm3933, %v3959
        %v3964 = vld [vmem:[#allocation4] sm:$0xff]
        %v3965 = vld [vmem:[#allocation4 + $0x8] sm:$0xff]
        %v3966 = vld [vmem:[#allocation4 + $0x10] sm:$0xff]
        %v3967 = vld [vmem:[#allocation4 + $0x18] sm:$0xff]
        %v3968 = vld [vmem:[#allocation4 + $0x20] sm:$0xff]
        %v3969 = vld [vmem:[#allocation4 + $0x28] sm:$0xff]
        %v3970 = vld [vmem:[#allocation4 + $0x30] sm:$0xff]
        %v3971 = vld [vmem:[#allocation4 + $0x38] sm:$0xff]
        %v3972 = vld [vmem:[#allocation11] sm:$0xff]
        %v3973 = vld [vmem:[#allocation11 + $0x8] sm:$0xff]
        %v3974 = vld [vmem:[#allocation11 + $0x10] sm:$0xff]
        %v3975 = vld [vmem:[#allocation11 + $0x18] sm:$0xff]
        %v3976 = vld [vmem:[#allocation13] sm:$0xff]
        %v3977 = vld [vmem:[#allocation13 + $0x8] sm:$0xff]
        %v3978 = vld [vmem:[#allocation13 + $0x10] sm:$0xff]
        %v3979 = vld [vmem:[#allocation13 + $0x18] sm:$0xff]
        %v3980 = vld [vmem:[%s6] sm:$0x1]
        %v3982 = vperm.slane %v3980, 0
        %v3985 = vsel %vm464, %v3964, 0
        %v3988 = vsel %vm464, %v3965, 0
        %v3991 = vsel %vm464, %v3966, 0
        %v3994 = vsel %vm464, %v3967, 0
        %v3997 = vsel %vm464, %v3968, 0
        %v4000 = vsel %vm464, %v3969, 0
        %v4003 = vsel %vm464, %v3970, 0
        %v4006 = vsel %vm464, %v3971, 0
        %4008 = vmatpush.msra.mxu0 0.0
        %4009 = vmatpush.msra.mxu0 0.0
        %4010 = vmatpush.msra.mxu0 0.0
        %4011 = vmatpush.msra.mxu0 0.0
        %4012 = vmatpush.msra.mxu0 0.0
        %4013 = vmatpush.msra.mxu0 0.0
        %4014 = vmatpush.msra.mxu0 0.0
        %4015 = vmatpush.msra.mxu0 0.0
        %4016 = vmatpush.msra.mxu0 0.0
        %4017 = vmatpush.msra.mxu0 0.0
        %4018 = vmatpush.msra.mxu0 0.0
        %4019 = vmatpush.msra.mxu0 0.0
        %4020 = vmatpush.msra.mxu0 %v3975
        %4021 = vmatpush.msra.mxu0 %v3974
        %4022 = vmatpush.msra.mxu0 %v3973
        %4023 = vmatpush.msra.mxu0 %v3972
        %4024 = vmatmul.f32.gmra.mxu0 %v3985
        %v4025 = vpop.f32.mrf.mxu0
        %v4026 = vadd.f32 %v3982, %v4025
        %4027 = vmatmul.f32.gmra.mxu0 %v3988
        %v4028 = vpop.f32.mrf.mxu0
        %v4029 = vadd.f32 %v3982, %v4028
        %4030 = vmatmul.f32.gmra.mxu0 %v3991
        %v4031 = vpop.f32.mrf.mxu0
        %v4032 = vadd.f32 %v3982, %v4031
        %4033 = vmatmul.f32.gmra.mxu0 %v3994
        %v4034 = vpop.f32.mrf.mxu0
        %v4035 = vadd.f32 %v3982, %v4034
        %4036 = vmatmul.f32.gmra.mxu0 %v3997
        %v4037 = vpop.f32.mrf.mxu0
        %v4038 = vadd.f32 %v3982, %v4037
        %4039 = vmatmul.f32.gmra.mxu0 %v4000
        %v4040 = vpop.f32.mrf.mxu0
        %v4041 = vadd.f32 %v3982, %v4040
        %4042 = vmatmul.f32.gmra.mxu0 %v4003
        %v4043 = vpop.f32.mrf.mxu0
        %v4044 = vadd.f32 %v3982, %v4043
        %4045 = vmatmul.f32.gmra.mxu0 %v4006
        %v4046 = vpop.f32.mrf.mxu0
        %v4047 = vadd.f32 %v3982, %v4046
        %4048 = vdwg.mxu0
        %s4049 = scalar_lea.vmem [#allocation2], 8
        %v4050 = vld [vmem:[%s4049] sm:$0xff]
        %s4051 = scalar_lea.vmem [#allocation3], 8
        %v4052 = vld [vmem:[%s4051] sm:$0xff]
        %v4054 = vsel %vm464, %v4050, 0
        %4056 = vmatpush.msra.mxu0 0.0
        %4057 = vmatpush.msra.mxu0 0.0
        %4058 = vmatpush.msra.mxu0 0.0
        %4059 = vmatpush.msra.mxu0 0.0
        %4060 = vmatpush.msra.mxu0 0.0
        %4061 = vmatpush.msra.mxu0 0.0
        %4062 = vmatpush.msra.mxu0 0.0
        %4063 = vmatpush.msra.mxu0 0.0
        %4064 = vmatpush.msra.mxu0 0.0
        %4065 = vmatpush.msra.mxu0 0.0
        %4066 = vmatpush.msra.mxu0 0.0
        %4067 = vmatpush.msra.mxu0 0.0
        %4068 = vmatpush.msra.mxu0 %v3979
        %4069 = vmatpush.msra.mxu0 %v3978
        %4070 = vmatpush.msra.mxu0 %v3977
        %4071 = vmatpush.msra.mxu0 %v3976
        %4072 = vmatmul.f32.gmra.mxu0 %v4054
        %v4073 = vpop.f32.mrf.mxu0
        %v4074 = vadd.f32 0.0, %v4073
        %4075 = vdwg.mxu0
        %v4077 = vrot.slane %v4074, 1
        %v4078 = vrot.slane %v4074, 2
        %v4079 = vrot.slane %v4074, 3
        %v4080 = vrot.slane %v4074, 4
        %v4081 = vrot.slane %v4074, 5
        %v4082 = vrot.slane %v4074, 6
        %v4083 = vrot.slane %v4074, 7
        %v4092 = vadd.f32 %v4026, %v4074
        %v4093 = vadd.f32 %v4029, %v4077
        %v4094 = vadd.f32 %v4032, %v4078
        %v4095 = vadd.f32 %v4035, %v4079
        %v4096 = vadd.f32 %v4038, %v4080
        %v4097 = vadd.f32 %v4041, %v4081
        %v4098 = vadd.f32 %v4044, %v4082
        %v4099 = vadd.f32 %v4047, %v4083
        %v4100 = vxor.u32 %v4092, 2147483648
        %v4101 = vxor.u32 %v4093, 2147483648
        %v4102 = vxor.u32 %v4094, 2147483648
        %v4103 = vxor.u32 %v4095, 2147483648
        %v4104 = vxor.u32 %v4096, 2147483648
        %v4105 = vxor.u32 %v4097, 2147483648
        %v4106 = vxor.u32 %v4098, 2147483648
        %v4107 = vxor.u32 %v4099, 2147483648
        %v4108 = vmul.f32 %v4100, 1.442695
        %v4109 = vpow.pop %v4108
        %v4110 = vmul.f32 %v4101, 1.442695
        %v4111 = vpow.pop %v4110
        %v4112 = vmul.f32 %v4102, 1.442695
        %v4113 = vpow.pop %v4112
        %v4114 = vmul.f32 %v4103, 1.442695
        %v4115 = vpow.pop %v4114
        %v4116 = vmul.f32 %v4104, 1.442695
        %v4117 = vpow.pop %v4116
        %v4118 = vmul.f32 %v4105, 1.442695
        %v4119 = vpow.pop %v4118
        %v4120 = vmul.f32 %v4106, 1.442695
        %v4121 = vpow.pop %v4120
        %v4122 = vmul.f32 %v4107, 1.442695
        %v4123 = vpow.pop %v4122
        %v4124 = vadd.f32 %v4109, 1.0
        %v4125 = vadd.f32 %v4111, 1.0
        %v4126 = vadd.f32 %v4113, 1.0
        %v4127 = vadd.f32 %v4115, 1.0
        %v4128 = vadd.f32 %v4117, 1.0
        %v4129 = vadd.f32 %v4119, 1.0
        %v4130 = vadd.f32 %v4121, 1.0
        %v4131 = vadd.f32 %v4123, 1.0
        %v4132 = vrcp.pop %v4124
        %v4133 = vmul.f32 %v4124, %v4132
        %v4134 = vsub.f32 1.0, %v4133
        %v4135 = vmul.f32 %v4132, %v4134
        %v4136 = vadd.f32 %v4132, %v4135
        %vm4137 = vweird.f32 %v4124
        %vm4138 = vweird.f32 %v4132
        %vm4139 = vmor %vm4137, %vm4138
        %v4140 = vsel %vm4139, %v4132, %v4136
        %v4141 = vand.u32 2147483647, %v4124
        %vm4142 = vcmp.eq.f32.partialorder %v4141, 8.507059e+37
        %v4143 = vand.u32 %v4124, 2147483648
        %v4144 = vor.u32 1.1754944e-38, %v4143
        %v4145 = vsel %vm4142, %v4144, %v4140
        %v4146 = vmul.f32 1.0, %v4145
        %v4147 = vrcp.pop %v4125
        %v4148 = vmul.f32 %v4125, %v4147
        %v4149 = vsub.f32 1.0, %v4148
        %v4150 = vmul.f32 %v4147, %v4149
        %v4151 = vadd.f32 %v4147, %v4150
        %vm4152 = vweird.f32 %v4125
        %vm4153 = vweird.f32 %v4147
        %vm4154 = vmor %vm4152, %vm4153
        %v4155 = vsel %vm4154, %v4147, %v4151
        %v4156 = vand.u32 2147483647, %v4125
        %vm4157 = vcmp.eq.f32.partialorder %v4156, 8.507059e+37
        %v4158 = vand.u32 %v4125, 2147483648
        %v4159 = vor.u32 1.1754944e-38, %v4158
        %v4160 = vsel %vm4157, %v4159, %v4155
        %v4161 = vmul.f32 1.0, %v4160
        %v4162 = vrcp.pop %v4126
        %v4163 = vmul.f32 %v4126, %v4162
        %v4164 = vsub.f32 1.0, %v4163
        %v4165 = vmul.f32 %v4162, %v4164
        %v4166 = vadd.f32 %v4162, %v4165
        %vm4167 = vweird.f32 %v4126
        %vm4168 = vweird.f32 %v4162
        %vm4169 = vmor %vm4167, %vm4168
        %v4170 = vsel %vm4169, %v4162, %v4166
        %v4171 = vand.u32 2147483647, %v4126
        %vm4172 = vcmp.eq.f32.partialorder %v4171, 8.507059e+37
        %v4173 = vand.u32 %v4126, 2147483648
        %v4174 = vor.u32 1.1754944e-38, %v4173
        %v4175 = vsel %vm4172, %v4174, %v4170
        %v4176 = vmul.f32 1.0, %v4175
        %v4177 = vrcp.pop %v4127
        %v4178 = vmul.f32 %v4127, %v4177
        %v4179 = vsub.f32 1.0, %v4178
        %v4180 = vmul.f32 %v4177, %v4179
        %v4181 = vadd.f32 %v4177, %v4180
        %vm4182 = vweird.f32 %v4127
        %vm4183 = vweird.f32 %v4177
        %vm4184 = vmor %vm4182, %vm4183
        %v4185 = vsel %vm4184, %v4177, %v4181
        %v4186 = vand.u32 2147483647, %v4127
        %vm4187 = vcmp.eq.f32.partialorder %v4186, 8.507059e+37
        %v4188 = vand.u32 %v4127, 2147483648
        %v4189 = vor.u32 1.1754944e-38, %v4188
        %v4190 = vsel %vm4187, %v4189, %v4185
        %v4191 = vmul.f32 1.0, %v4190
        %v4192 = vrcp.pop %v4128
        %v4193 = vmul.f32 %v4128, %v4192
        %v4194 = vsub.f32 1.0, %v4193
        %v4195 = vmul.f32 %v4192, %v4194
        %v4196 = vadd.f32 %v4192, %v4195
        %vm4197 = vweird.f32 %v4128
        %vm4198 = vweird.f32 %v4192
        %vm4199 = vmor %vm4197, %vm4198
        %v4200 = vsel %vm4199, %v4192, %v4196
        %v4201 = vand.u32 2147483647, %v4128
        %vm4202 = vcmp.eq.f32.partialorder %v4201, 8.507059e+37
        %v4203 = vand.u32 %v4128, 2147483648
        %v4204 = vor.u32 1.1754944e-38, %v4203
        %v4205 = vsel %vm4202, %v4204, %v4200
        %v4206 = vmul.f32 1.0, %v4205
        %v4207 = vrcp.pop %v4129
        %v4208 = vmul.f32 %v4129, %v4207
        %v4209 = vsub.f32 1.0, %v4208
        %v4210 = vmul.f32 %v4207, %v4209
        %v4211 = vadd.f32 %v4207, %v4210
        %vm4212 = vweird.f32 %v4129
        %vm4213 = vweird.f32 %v4207
        %vm4214 = vmor %vm4212, %vm4213
        %v4215 = vsel %vm4214, %v4207, %v4211
        %v4216 = vand.u32 2147483647, %v4129
        %vm4217 = vcmp.eq.f32.partialorder %v4216, 8.507059e+37
        %v4218 = vand.u32 %v4129, 2147483648
        %v4219 = vor.u32 1.1754944e-38, %v4218
        %v4220 = vsel %vm4217, %v4219, %v4215
        %v4221 = vmul.f32 1.0, %v4220
        %v4222 = vrcp.pop %v4130
        %v4223 = vmul.f32 %v4130, %v4222
        %v4224 = vsub.f32 1.0, %v4223
        %v4225 = vmul.f32 %v4222, %v4224
        %v4226 = vadd.f32 %v4222, %v4225
        %vm4227 = vweird.f32 %v4130
        %vm4228 = vweird.f32 %v4222
        %vm4229 = vmor %vm4227, %vm4228
        %v4230 = vsel %vm4229, %v4222, %v4226
        %v4231 = vand.u32 2147483647, %v4130
        %vm4232 = vcmp.eq.f32.partialorder %v4231, 8.507059e+37
        %v4233 = vand.u32 %v4130, 2147483648
        %v4234 = vor.u32 1.1754944e-38, %v4233
        %v4235 = vsel %vm4232, %v4234, %v4230
        %v4236 = vmul.f32 1.0, %v4235
        %v4237 = vrcp.pop %v4131
        %v4238 = vmul.f32 %v4131, %v4237
        %v4239 = vsub.f32 1.0, %v4238
        %v4240 = vmul.f32 %v4237, %v4239
        %v4241 = vadd.f32 %v4237, %v4240
        %vm4242 = vweird.f32 %v4131
        %vm4243 = vweird.f32 %v4237
        %vm4244 = vmor %vm4242, %vm4243
        %v4245 = vsel %vm4244, %v4237, %v4241
        %v4246 = vand.u32 2147483647, %v4131
        %vm4247 = vcmp.eq.f32.partialorder %v4246, 8.507059e+37
        %v4248 = vand.u32 %v4131, 2147483648
        %v4249 = vor.u32 1.1754944e-38, %v4248
        %v4250 = vsel %vm4247, %v4249, %v4245
        %v4251 = vmul.f32 1.0, %v4250
        %v4252 = vtanh.pop %v4092
        %v4253 = vtanh.pop %v4093
        %v4254 = vtanh.pop %v4094
        %v4255 = vtanh.pop %v4095
        %v4256 = vtanh.pop %v4096
        %v4257 = vtanh.pop %v4097
        %v4258 = vtanh.pop %v4098
        %v4259 = vtanh.pop %v4099
        %v4261 = vrot.slane %v4052, 1
        %v4262 = vrot.slane %v4052, 2
        %v4263 = vrot.slane %v4052, 3
        %v4264 = vrot.slane %v4052, 4
        %v4265 = vrot.slane %v4052, 5
        %v4266 = vrot.slane %v4052, 6
        %v4267 = vrot.slane %v4052, 7
        %4268 = vrot.lane.b32.xlu0 %v4052, 32
        %v4269 = vpop.permute.xlu0 %4268
        %4270 = vrot.lane.b32.xlu0 %v4261, 32
        %v4271 = vpop.permute.xlu0 %4270
        %4272 = vrot.lane.b32.xlu0 %v4262, 32
        %v4273 = vpop.permute.xlu0 %4272
        %4274 = vrot.lane.b32.xlu0 %v4263, 32
        %v4275 = vpop.permute.xlu0 %4274
        %4276 = vrot.lane.b32.xlu0 %v4264, 32
        %v4277 = vpop.permute.xlu0 %4276
        %4278 = vrot.lane.b32.xlu0 %v4265, 32
        %v4279 = vpop.permute.xlu0 %4278
        %4280 = vrot.lane.b32.xlu0 %v4266, 32
        %v4281 = vpop.permute.xlu0 %4280
        %4282 = vrot.lane.b32.xlu0 %v4267, 32
        %v4283 = vpop.permute.xlu0 %4282
        %v4292 = vmul.f32 %v4146, %v4269
        %v4293 = vmul.f32 %v4161, %v4271
        %v4294 = vmul.f32 %v4176, %v4273
        %v4295 = vmul.f32 %v4191, %v4275
        %v4296 = vmul.f32 %v4206, %v4277
        %v4297 = vmul.f32 %v4221, %v4279
        %v4298 = vmul.f32 %v4236, %v4281
        %v4299 = vmul.f32 %v4251, %v4283
        %4308 = vrot.lane.b32.xlu0 %v4252, 32
        %v4309 = vpop.permute.xlu0 %4308
        %4310 = vrot.lane.b32.xlu0 %v4253, 32
        %v4311 = vpop.permute.xlu0 %4310
        %4312 = vrot.lane.b32.xlu0 %v4254, 32
        %v4313 = vpop.permute.xlu0 %4312
        %4314 = vrot.lane.b32.xlu0 %v4255, 32
        %v4315 = vpop.permute.xlu0 %4314
        %4316 = vrot.lane.b32.xlu0 %v4256, 32
        %v4317 = vpop.permute.xlu0 %4316
        %4318 = vrot.lane.b32.xlu0 %v4257, 32
        %v4319 = vpop.permute.xlu0 %4318
        %4320 = vrot.lane.b32.xlu0 %v4258, 32
        %v4321 = vpop.permute.xlu0 %4320
        %4322 = vrot.lane.b32.xlu0 %v4259, 32
        %v4323 = vpop.permute.xlu0 %4322
        %v4332 = vmul.f32 %v4146, %v4309
        %v4333 = vmul.f32 %v4161, %v4311
        %v4334 = vmul.f32 %v4176, %v4313
        %v4335 = vmul.f32 %v4191, %v4315
        %v4336 = vmul.f32 %v4206, %v4317
        %v4337 = vmul.f32 %v4221, %v4319
        %v4338 = vmul.f32 %v4236, %v4321
        %v4339 = vmul.f32 %v4251, %v4323
        %4348 = vrot.lane.b32.xlu0 %v4332, 32
        %v4349 = vpop.permute.xlu0 %4348
        %4350 = vrot.lane.b32.xlu0 %v4333, 32
        %v4351 = vpop.permute.xlu0 %4350
        %4352 = vrot.lane.b32.xlu0 %v4334, 32
        %v4353 = vpop.permute.xlu0 %4352
        %4354 = vrot.lane.b32.xlu0 %v4335, 32
        %v4355 = vpop.permute.xlu0 %4354
        %4356 = vrot.lane.b32.xlu0 %v4336, 32
        %v4357 = vpop.permute.xlu0 %4356
        %4358 = vrot.lane.b32.xlu0 %v4337, 32
        %v4359 = vpop.permute.xlu0 %4358
        %4360 = vrot.lane.b32.xlu0 %v4338, 32
        %v4361 = vpop.permute.xlu0 %4360
        %4362 = vrot.lane.b32.xlu0 %v4339, 32
        %v4363 = vpop.permute.xlu0 %4362
        %v4372 = vadd.f32 %v4292, %v4349
        %v4373 = vadd.f32 %v4293, %v4351
        %v4374 = vadd.f32 %v4294, %v4353
        %v4375 = vadd.f32 %v4295, %v4355
        %v4376 = vadd.f32 %v4296, %v4357
        %v4377 = vadd.f32 %v4297, %v4359
        %v4378 = vadd.f32 %v4298, %v4361
        %v4379 = vadd.f32 %v4299, %v4363
        %v4380 = vtanh.pop %v4372
        %v4381 = vtanh.pop %v4373
        %v4382 = vtanh.pop %v4374
        %v4383 = vtanh.pop %v4375
        %v4384 = vtanh.pop %v4376
        %v4385 = vtanh.pop %v4377
        %v4386 = vtanh.pop %v4378
        %v4387 = vtanh.pop %v4379
        %4396 = vrot.lane.b32.xlu0 %v4380, 32
        %v4397 = vpop.permute.xlu0 %4396
        %4398 = vrot.lane.b32.xlu0 %v4381, 32
        %v4399 = vpop.permute.xlu0 %4398
        %4400 = vrot.lane.b32.xlu0 %v4382, 32
        %v4401 = vpop.permute.xlu0 %4400
        %4402 = vrot.lane.b32.xlu0 %v4383, 32
        %v4403 = vpop.permute.xlu0 %4402
        %4404 = vrot.lane.b32.xlu0 %v4384, 32
        %v4405 = vpop.permute.xlu0 %4404
        %4406 = vrot.lane.b32.xlu0 %v4385, 32
        %v4407 = vpop.permute.xlu0 %4406
        %4408 = vrot.lane.b32.xlu0 %v4386, 32
        %v4409 = vpop.permute.xlu0 %4408
        %4410 = vrot.lane.b32.xlu0 %v4387, 32
        %v4411 = vpop.permute.xlu0 %4410
        %v4420 = vmul.f32 %v4146, %v4397
        %v4421 = vmul.f32 %v4161, %v4399
        %v4422 = vmul.f32 %v4176, %v4401
        %v4423 = vmul.f32 %v4191, %v4403
        %v4424 = vmul.f32 %v4206, %v4405
        %v4425 = vmul.f32 %v4221, %v4407
        %v4426 = vmul.f32 %v4236, %v4409
        %v4427 = vmul.f32 %v4251, %v4411
        %4436 = vrot.lane.b32.xlu0 %v4420, 64
        %v4437 = vpop.permute.xlu0 %4436
        %4438 = vrot.lane.b32.xlu0 %v4421, 64
        %v4439 = vpop.permute.xlu0 %4438
        %4440 = vrot.lane.b32.xlu0 %v4422, 64
        %v4441 = vpop.permute.xlu0 %4440
        %4442 = vrot.lane.b32.xlu0 %v4423, 64
        %v4443 = vpop.permute.xlu0 %4442
        %4444 = vrot.lane.b32.xlu0 %v4424, 64
        %v4445 = vpop.permute.xlu0 %4444
        %4446 = vrot.lane.b32.xlu0 %v4425, 64
        %v4447 = vpop.permute.xlu0 %4446
        %4448 = vrot.lane.b32.xlu0 %v4426, 64
        %v4449 = vpop.permute.xlu0 %4448
        %4450 = vrot.lane.b32.xlu0 %v4427, 64
        %v4451 = vpop.permute.xlu0 %4450
        %4460 = vst.msk [vmem:[#allocation4] sm:$0x1] %vm939, %v4437
        %4461 = vst.msk [vmem:[#allocation4 + $0x8] sm:$0x1] %vm939, %v4439
        %4462 = vst.msk [vmem:[#allocation4 + $0x10] sm:$0x1] %vm939, %v4441
        %4463 = vst.msk [vmem:[#allocation4 + $0x18] sm:$0x1] %vm939, %v4443
        %4464 = vst.msk [vmem:[#allocation4 + $0x20] sm:$0x1] %vm939, %v4445
        %4465 = vst.msk [vmem:[#allocation4 + $0x28] sm:$0x1] %vm939, %v4447
        %4466 = vst.msk [vmem:[#allocation4 + $0x30] sm:$0x1] %vm939, %v4449
        %4467 = vst.msk [vmem:[#allocation4 + $0x38] sm:$0x1] %vm939, %v4451
        %v4468 = vrot.slane %v4421, 7
        %v4469 = vsel %vm949, %v4468, %v4420
        %v4470 = vrot.slane %v4422, 6
        %v4471 = vsel %vm952, %v4470, %v4469
        %v4472 = vrot.slane %v4423, 5
        %v4473 = vsel %vm955, %v4472, %v4471
        %v4474 = vrot.slane %v4424, 4
        %v4475 = vsel %vm958, %v4474, %v4473
        %v4476 = vrot.slane %v4425, 3
        %v4477 = vsel %vm961, %v4476, %v4475
        %v4478 = vrot.slane %v4426, 2
        %v4479 = vsel %vm964, %v4478, %v4477
        %v4480 = vrot.slane %v4427, 1
        %v4481 = vsel %vm967, %v4480, %v4479
        %4482 = vrot.lane.b32.xlu0 %v4481, 64
        %v4483 = vpop.permute.xlu0 %4482
        %v4484 = vsel %vm464, %v4483, 0
        %4486 = vmatpush.msra.mxu0 0.0
        %4487 = vmatpush.msra.mxu0 0.0
        %4488 = vmatpush.msra.mxu0 0.0
        %4489 = vmatpush.msra.mxu0 0.0
        %4490 = vmatpush.msra.mxu0 0.0
        %4491 = vmatpush.msra.mxu0 0.0
        %4492 = vmatpush.msra.mxu0 0.0
        %4493 = vmatpush.msra.mxu0 0.0
        %4494 = vmatpush.msra.mxu0 0.0
        %4495 = vmatpush.msra.mxu0 0.0
        %4496 = vmatpush.msra.mxu0 0.0
        %4497 = vmatpush.msra.mxu0 0.0
        %4498 = vmatpush.msra.mxu0 %v3979
        %4499 = vmatpush.msra.mxu0 %v3978
        %4500 = vmatpush.msra.mxu0 %v3977
        %4501 = vmatpush.msra.mxu0 %v3976
        %4502 = vmatmul.f32.gmra.mxu0 %v4484
        %v4503 = vpop.f32.mrf.mxu0
        %v4504 = vadd.f32 0.0, %v4503
        %4505 = vdwg.mxu0
        %v4507 = vrot.slane %v4504, 7
        %v4508 = vrot.slane %v4504, 1
        %v4509 = vrot.slane %v4504, 2
        %v4510 = vrot.slane %v4504, 3
        %v4511 = vrot.slane %v4504, 4
        %v4512 = vrot.slane %v4504, 5
        %v4513 = vrot.slane %v4504, 6
        %v4522 = vadd.f32 %v4026, %v4507
        %v4523 = vadd.f32 %v4029, %v4504
        %v4524 = vadd.f32 %v4032, %v4508
        %v4525 = vadd.f32 %v4035, %v4509
        %v4526 = vadd.f32 %v4038, %v4510
        %v4527 = vadd.f32 %v4041, %v4511
        %v4528 = vadd.f32 %v4044, %v4512
        %v4529 = vadd.f32 %v4047, %v4513
        %v4530 = vxor.u32 %v4522, 2147483648
        %v4531 = vxor.u32 %v4523, 2147483648
        %v4532 = vxor.u32 %v4524, 2147483648
        %v4533 = vxor.u32 %v4525, 2147483648
        %v4534 = vxor.u32 %v4526, 2147483648
        %v4535 = vxor.u32 %v4527, 2147483648
        %v4536 = vxor.u32 %v4528, 2147483648
        %v4537 = vxor.u32 %v4529, 2147483648
        %v4538 = vmul.f32 %v4530, 1.442695
        %v4539 = vpow.pop %v4538
        %v4540 = vmul.f32 %v4531, 1.442695
        %v4541 = vpow.pop %v4540
        %v4542 = vmul.f32 %v4532, 1.442695
        %v4543 = vpow.pop %v4542
        %v4544 = vmul.f32 %v4533, 1.442695
        %v4545 = vpow.pop %v4544
        %v4546 = vmul.f32 %v4534, 1.442695
        %v4547 = vpow.pop %v4546
        %v4548 = vmul.f32 %v4535, 1.442695
        %v4549 = vpow.pop %v4548
        %v4550 = vmul.f32 %v4536, 1.442695
        %v4551 = vpow.pop %v4550
        %v4552 = vmul.f32 %v4537, 1.442695
        %v4553 = vpow.pop %v4552
        %v4554 = vadd.f32 %v4539, 1.0
        %v4555 = vadd.f32 %v4541, 1.0
        %v4556 = vadd.f32 %v4543, 1.0
        %v4557 = vadd.f32 %v4545, 1.0
        %v4558 = vadd.f32 %v4547, 1.0
        %v4559 = vadd.f32 %v4549, 1.0
        %v4560 = vadd.f32 %v4551, 1.0
        %v4561 = vadd.f32 %v4553, 1.0
        %v4562 = vrcp.pop %v4554
        %v4563 = vmul.f32 %v4554, %v4562
        %v4564 = vsub.f32 1.0, %v4563
        %v4565 = vmul.f32 %v4562, %v4564
        %v4566 = vadd.f32 %v4562, %v4565
        %vm4567 = vweird.f32 %v4554
        %vm4568 = vweird.f32 %v4562
        %vm4569 = vmor %vm4567, %vm4568
        %v4570 = vsel %vm4569, %v4562, %v4566
        %v4571 = vand.u32 2147483647, %v4554
        %vm4572 = vcmp.eq.f32.partialorder %v4571, 8.507059e+37
        %v4573 = vand.u32 %v4554, 2147483648
        %v4574 = vor.u32 1.1754944e-38, %v4573
        %v4575 = vsel %vm4572, %v4574, %v4570
        %v4576 = vmul.f32 1.0, %v4575
        %v4577 = vrcp.pop %v4555
        %v4578 = vmul.f32 %v4555, %v4577
        %v4579 = vsub.f32 1.0, %v4578
        %v4580 = vmul.f32 %v4577, %v4579
        %v4581 = vadd.f32 %v4577, %v4580
        %vm4582 = vweird.f32 %v4555
        %vm4583 = vweird.f32 %v4577
        %vm4584 = vmor %vm4582, %vm4583
        %v4585 = vsel %vm4584, %v4577, %v4581
        %v4586 = vand.u32 2147483647, %v4555
        %vm4587 = vcmp.eq.f32.partialorder %v4586, 8.507059e+37
        %v4588 = vand.u32 %v4555, 2147483648
        %v4589 = vor.u32 1.1754944e-38, %v4588
        %v4590 = vsel %vm4587, %v4589, %v4585
        %v4591 = vmul.f32 1.0, %v4590
        %v4592 = vrcp.pop %v4556
        %v4593 = vmul.f32 %v4556, %v4592
        %v4594 = vsub.f32 1.0, %v4593
        %v4595 = vmul.f32 %v4592, %v4594
        %v4596 = vadd.f32 %v4592, %v4595
        %vm4597 = vweird.f32 %v4556
        %vm4598 = vweird.f32 %v4592
        %vm4599 = vmor %vm4597, %vm4598
        %v4600 = vsel %vm4599, %v4592, %v4596
        %v4601 = vand.u32 2147483647, %v4556
        %vm4602 = vcmp.eq.f32.partialorder %v4601, 8.507059e+37
        %v4603 = vand.u32 %v4556, 2147483648
        %v4604 = vor.u32 1.1754944e-38, %v4603
        %v4605 = vsel %vm4602, %v4604, %v4600
        %v4606 = vmul.f32 1.0, %v4605
        %v4607 = vrcp.pop %v4557
        %v4608 = vmul.f32 %v4557, %v4607
        %v4609 = vsub.f32 1.0, %v4608
        %v4610 = vmul.f32 %v4607, %v4609
        %v4611 = vadd.f32 %v4607, %v4610
        %vm4612 = vweird.f32 %v4557
        %vm4613 = vweird.f32 %v4607
        %vm4614 = vmor %vm4612, %vm4613
        %v4615 = vsel %vm4614, %v4607, %v4611
        %v4616 = vand.u32 2147483647, %v4557
        %vm4617 = vcmp.eq.f32.partialorder %v4616, 8.507059e+37
        %v4618 = vand.u32 %v4557, 2147483648
        %v4619 = vor.u32 1.1754944e-38, %v4618
        %v4620 = vsel %vm4617, %v4619, %v4615
        %v4621 = vmul.f32 1.0, %v4620
        %v4622 = vrcp.pop %v4558
        %v4623 = vmul.f32 %v4558, %v4622
        %v4624 = vsub.f32 1.0, %v4623
        %v4625 = vmul.f32 %v4622, %v4624
        %v4626 = vadd.f32 %v4622, %v4625
        %vm4627 = vweird.f32 %v4558
        %vm4628 = vweird.f32 %v4622
        %vm4629 = vmor %vm4627, %vm4628
        %v4630 = vsel %vm4629, %v4622, %v4626
        %v4631 = vand.u32 2147483647, %v4558
        %vm4632 = vcmp.eq.f32.partialorder %v4631, 8.507059e+37
        %v4633 = vand.u32 %v4558, 2147483648
        %v4634 = vor.u32 1.1754944e-38, %v4633
        %v4635 = vsel %vm4632, %v4634, %v4630
        %v4636 = vmul.f32 1.0, %v4635
        %v4637 = vrcp.pop %v4559
        %v4638 = vmul.f32 %v4559, %v4637
        %v4639 = vsub.f32 1.0, %v4638
        %v4640 = vmul.f32 %v4637, %v4639
        %v4641 = vadd.f32 %v4637, %v4640
        %vm4642 = vweird.f32 %v4559
        %vm4643 = vweird.f32 %v4637
        %vm4644 = vmor %vm4642, %vm4643
        %v4645 = vsel %vm4644, %v4637, %v4641
        %v4646 = vand.u32 2147483647, %v4559
        %vm4647 = vcmp.eq.f32.partialorder %v4646, 8.507059e+37
        %v4648 = vand.u32 %v4559, 2147483648
        %v4649 = vor.u32 1.1754944e-38, %v4648
        %v4650 = vsel %vm4647, %v4649, %v4645
        %v4651 = vmul.f32 1.0, %v4650
        %v4652 = vrcp.pop %v4560
        %v4653 = vmul.f32 %v4560, %v4652
        %v4654 = vsub.f32 1.0, %v4653
        %v4655 = vmul.f32 %v4652, %v4654
        %v4656 = vadd.f32 %v4652, %v4655
        %vm4657 = vweird.f32 %v4560
        %vm4658 = vweird.f32 %v4652
        %vm4659 = vmor %vm4657, %vm4658
        %v4660 = vsel %vm4659, %v4652, %v4656
        %v4661 = vand.u32 2147483647, %v4560
        %vm4662 = vcmp.eq.f32.partialorder %v4661, 8.507059e+37
        %v4663 = vand.u32 %v4560, 2147483648
        %v4664 = vor.u32 1.1754944e-38, %v4663
        %v4665 = vsel %vm4662, %v4664, %v4660
        %v4666 = vmul.f32 1.0, %v4665
        %v4667 = vrcp.pop %v4561
        %v4668 = vmul.f32 %v4561, %v4667
        %v4669 = vsub.f32 1.0, %v4668
        %v4670 = vmul.f32 %v4667, %v4669
        %v4671 = vadd.f32 %v4667, %v4670
        %vm4672 = vweird.f32 %v4561
        %vm4673 = vweird.f32 %v4667
        %vm4674 = vmor %vm4672, %vm4673
        %v4675 = vsel %vm4674, %v4667, %v4671
        %v4676 = vand.u32 2147483647, %v4561
        %vm4677 = vcmp.eq.f32.partialorder %v4676, 8.507059e+37
        %v4678 = vand.u32 %v4561, 2147483648
        %v4679 = vor.u32 1.1754944e-38, %v4678
        %v4680 = vsel %vm4677, %v4679, %v4675
        %v4681 = vmul.f32 1.0, %v4680
        %v4682 = vtanh.pop %v4522
        %v4683 = vtanh.pop %v4523
        %v4684 = vtanh.pop %v4524
        %v4685 = vtanh.pop %v4525
        %v4686 = vtanh.pop %v4526
        %v4687 = vtanh.pop %v4527
        %v4688 = vtanh.pop %v4528
        %v4689 = vtanh.pop %v4529
        %v4698 = vrot.slane %v4372, 7
        %v4699 = vrot.slane %v4373, 7
        %v4700 = vrot.slane %v4374, 7
        %v4701 = vrot.slane %v4375, 7
        %v4702 = vrot.slane %v4376, 7
        %v4703 = vrot.slane %v4377, 7
        %v4704 = vrot.slane %v4378, 7
        %v4705 = vrot.slane %v4379, 7
        %v4714 = vmul.f32 %v4576, %v4698
        %v4715 = vmul.f32 %v4591, %v4699
        %v4716 = vmul.f32 %v4606, %v4700
        %v4717 = vmul.f32 %v4621, %v4701
        %v4718 = vmul.f32 %v4636, %v4702
        %v4719 = vmul.f32 %v4651, %v4703
        %v4720 = vmul.f32 %v4666, %v4704
        %v4721 = vmul.f32 %v4681, %v4705
        %4730 = vrot.lane.b32.xlu0 %v4682, 32
        %v4731 = vpop.permute.xlu0 %4730
        %4732 = vrot.lane.b32.xlu0 %v4683, 32
        %v4733 = vpop.permute.xlu0 %4732
        %4734 = vrot.lane.b32.xlu0 %v4684, 32
        %v4735 = vpop.permute.xlu0 %4734
        %4736 = vrot.lane.b32.xlu0 %v4685, 32
        %v4737 = vpop.permute.xlu0 %4736
        %4738 = vrot.lane.b32.xlu0 %v4686, 32
        %v4739 = vpop.permute.xlu0 %4738
        %4740 = vrot.lane.b32.xlu0 %v4687, 32
        %v4741 = vpop.permute.xlu0 %4740
        %4742 = vrot.lane.b32.xlu0 %v4688, 32
        %v4743 = vpop.permute.xlu0 %4742
        %4744 = vrot.lane.b32.xlu0 %v4689, 32
        %v4745 = vpop.permute.xlu0 %4744
        %v4754 = vmul.f32 %v4576, %v4731
        %v4755 = vmul.f32 %v4591, %v4733
        %v4756 = vmul.f32 %v4606, %v4735
        %v4757 = vmul.f32 %v4621, %v4737
        %v4758 = vmul.f32 %v4636, %v4739
        %v4759 = vmul.f32 %v4651, %v4741
        %v4760 = vmul.f32 %v4666, %v4743
        %v4761 = vmul.f32 %v4681, %v4745
        %4770 = vrot.lane.b32.xlu0 %v4754, 32
        %v4771 = vpop.permute.xlu0 %4770
        %4772 = vrot.lane.b32.xlu0 %v4755, 32
        %v4773 = vpop.permute.xlu0 %4772
        %4774 = vrot.lane.b32.xlu0 %v4756, 32
        %v4775 = vpop.permute.xlu0 %4774
        %4776 = vrot.lane.b32.xlu0 %v4757, 32
        %v4777 = vpop.permute.xlu0 %4776
        %4778 = vrot.lane.b32.xlu0 %v4758, 32
        %v4779 = vpop.permute.xlu0 %4778
        %4780 = vrot.lane.b32.xlu0 %v4759, 32
        %v4781 = vpop.permute.xlu0 %4780
        %4782 = vrot.lane.b32.xlu0 %v4760, 32
        %v4783 = vpop.permute.xlu0 %4782
        %4784 = vrot.lane.b32.xlu0 %v4761, 32
        %v4785 = vpop.permute.xlu0 %4784
        %v4794 = vadd.f32 %v4714, %v4771
        %v4795 = vadd.f32 %v4715, %v4773
        %v4796 = vadd.f32 %v4716, %v4775
        %v4797 = vadd.f32 %v4717, %v4777
        %v4798 = vadd.f32 %v4718, %v4779
        %v4799 = vadd.f32 %v4719, %v4781
        %v4800 = vadd.f32 %v4720, %v4783
        %v4801 = vadd.f32 %v4721, %v4785
        %v4802 = vtanh.pop %v4794
        %v4803 = vtanh.pop %v4795
        %v4804 = vtanh.pop %v4796
        %v4805 = vtanh.pop %v4797
        %v4806 = vtanh.pop %v4798
        %v4807 = vtanh.pop %v4799
        %v4808 = vtanh.pop %v4800
        %v4809 = vtanh.pop %v4801
        %4818 = vrot.lane.b32.xlu0 %v4802, 32
        %v4819 = vpop.permute.xlu0 %4818
        %4820 = vrot.lane.b32.xlu0 %v4803, 32
        %v4821 = vpop.permute.xlu0 %4820
        %4822 = vrot.lane.b32.xlu0 %v4804, 32
        %v4823 = vpop.permute.xlu0 %4822
        %4824 = vrot.lane.b32.xlu0 %v4805, 32
        %v4825 = vpop.permute.xlu0 %4824
        %4826 = vrot.lane.b32.xlu0 %v4806, 32
        %v4827 = vpop.permute.xlu0 %4826
        %4828 = vrot.lane.b32.xlu0 %v4807, 32
        %v4829 = vpop.permute.xlu0 %4828
        %4830 = vrot.lane.b32.xlu0 %v4808, 32
        %v4831 = vpop.permute.xlu0 %4830
        %4832 = vrot.lane.b32.xlu0 %v4809, 32
        %v4833 = vpop.permute.xlu0 %4832
        %v4842 = vmul.f32 %v4576, %v4819
        %v4843 = vmul.f32 %v4591, %v4821
        %v4844 = vmul.f32 %v4606, %v4823
        %v4845 = vmul.f32 %v4621, %v4825
        %v4846 = vmul.f32 %v4636, %v4827
        %v4847 = vmul.f32 %v4651, %v4829
        %v4848 = vmul.f32 %v4666, %v4831
        %v4849 = vmul.f32 %v4681, %v4833
        %4858 = vrot.lane.b32.xlu0 %v4842, 64
        %v4859 = vpop.permute.xlu0 %4858
        %4860 = vrot.lane.b32.xlu0 %v4843, 64
        %v4861 = vpop.permute.xlu0 %4860
        %4862 = vrot.lane.b32.xlu0 %v4844, 64
        %v4863 = vpop.permute.xlu0 %4862
        %4864 = vrot.lane.b32.xlu0 %v4845, 64
        %v4865 = vpop.permute.xlu0 %4864
        %4866 = vrot.lane.b32.xlu0 %v4846, 64
        %v4867 = vpop.permute.xlu0 %4866
        %4868 = vrot.lane.b32.xlu0 %v4847, 64
        %v4869 = vpop.permute.xlu0 %4868
        %4870 = vrot.lane.b32.xlu0 %v4848, 64
        %v4871 = vpop.permute.xlu0 %4870
        %4872 = vrot.lane.b32.xlu0 %v4849, 64
        %v4873 = vpop.permute.xlu0 %4872
        %4882 = vst.msk [vmem:[#allocation4] sm:$0x2] %vm1369, %v4859
        %4883 = vst.msk [vmem:[#allocation4 + $0x8] sm:$0x2] %vm1369, %v4861
        %4884 = vst.msk [vmem:[#allocation4 + $0x10] sm:$0x2] %vm1369, %v4863
        %4885 = vst.msk [vmem:[#allocation4 + $0x18] sm:$0x2] %vm1369, %v4865
        %4886 = vst.msk [vmem:[#allocation4 + $0x20] sm:$0x2] %vm1369, %v4867
        %4887 = vst.msk [vmem:[#allocation4 + $0x28] sm:$0x2] %vm1369, %v4869
        %4888 = vst.msk [vmem:[#allocation4 + $0x30] sm:$0x2] %vm1369, %v4871
        %4889 = vst.msk [vmem:[#allocation4 + $0x38] sm:$0x2] %vm1369, %v4873
        %v4890 = vrot.slane %v4842, 1
        %v4891 = vsel %vm949, %v4843, %v4890
        %v4892 = vrot.slane %v4844, 7
        %v4893 = vsel %vm952, %v4892, %v4891
        %v4894 = vrot.slane %v4845, 6
        %v4895 = vsel %vm955, %v4894, %v4893
        %v4896 = vrot.slane %v4846, 5
        %v4897 = vsel %vm958, %v4896, %v4895
        %v4898 = vrot.slane %v4847, 4
        %v4899 = vsel %vm961, %v4898, %v4897
        %v4900 = vrot.slane %v4848, 3
        %v4901 = vsel %vm964, %v4900, %v4899
        %v4902 = vrot.slane %v4849, 2
        %v4903 = vsel %vm967, %v4902, %v4901
        %4904 = vrot.lane.b32.xlu0 %v4903, 64
        %v4905 = vpop.permute.xlu0 %4904
        %v4906 = vsel %vm464, %v4905, 0
        %4908 = vmatpush.msra.mxu0 0.0
        %4909 = vmatpush.msra.mxu0 0.0
        %4910 = vmatpush.msra.mxu0 0.0
        %4911 = vmatpush.msra.mxu0 0.0
        %4912 = vmatpush.msra.mxu0 0.0
        %4913 = vmatpush.msra.mxu0 0.0
        %4914 = vmatpush.msra.mxu0 0.0
        %4915 = vmatpush.msra.mxu0 0.0
        %4916 = vmatpush.msra.mxu0 0.0
        %4917 = vmatpush.msra.mxu0 0.0
        %4918 = vmatpush.msra.mxu0 0.0
        %4919 = vmatpush.msra.mxu0 0.0
        %4920 = vmatpush.msra.mxu0 %v3979
        %4921 = vmatpush.msra.mxu0 %v3978
        %4922 = vmatpush.msra.mxu0 %v3977
        %4923 = vmatpush.msra.mxu0 %v3976
        %4924 = vmatmul.f32.gmra.mxu0 %v4906
        %v4925 = vpop.f32.mrf.mxu0
        %v4926 = vadd.f32 0.0, %v4925
        %4927 = vdwg.mxu0
        %v4929 = vrot.slane %v4926, 6
        %v4930 = vrot.slane %v4926, 7
        %v4931 = vrot.slane %v4926, 1
        %v4932 = vrot.slane %v4926, 2
        %v4933 = vrot.slane %v4926, 3
        %v4934 = vrot.slane %v4926, 4
        %v4935 = vrot.slane %v4926, 5
        %v4944 = vadd.f32 %v4026, %v4929
        %v4945 = vadd.f32 %v4029, %v4930
        %v4946 = vadd.f32 %v4032, %v4926
        %v4947 = vadd.f32 %v4035, %v4931
        %v4948 = vadd.f32 %v4038, %v4932
        %v4949 = vadd.f32 %v4041, %v4933
        %v4950 = vadd.f32 %v4044, %v4934
        %v4951 = vadd.f32 %v4047, %v4935
        %v4952 = vxor.u32 %v4944, 2147483648
        %v4953 = vxor.u32 %v4945, 2147483648
        %v4954 = vxor.u32 %v4946, 2147483648
        %v4955 = vxor.u32 %v4947, 2147483648
        %v4956 = vxor.u32 %v4948, 2147483648
        %v4957 = vxor.u32 %v4949, 2147483648
        %v4958 = vxor.u32 %v4950, 2147483648
        %v4959 = vxor.u32 %v4951, 2147483648
        %v4960 = vmul.f32 %v4952, 1.442695
        %v4961 = vpow.pop %v4960
        %v4962 = vmul.f32 %v4953, 1.442695
        %v4963 = vpow.pop %v4962
        %v4964 = vmul.f32 %v4954, 1.442695
        %v4965 = vpow.pop %v4964
        %v4966 = vmul.f32 %v4955, 1.442695
        %v4967 = vpow.pop %v4966
        %v4968 = vmul.f32 %v4956, 1.442695
        %v4969 = vpow.pop %v4968
        %v4970 = vmul.f32 %v4957, 1.442695
        %v4971 = vpow.pop %v4970
        %v4972 = vmul.f32 %v4958, 1.442695
        %v4973 = vpow.pop %v4972
        %v4974 = vmul.f32 %v4959, 1.442695
        %v4975 = vpow.pop %v4974
        %v4976 = vadd.f32 %v4961, 1.0
        %v4977 = vadd.f32 %v4963, 1.0
        %v4978 = vadd.f32 %v4965, 1.0
        %v4979 = vadd.f32 %v4967, 1.0
        %v4980 = vadd.f32 %v4969, 1.0
        %v4981 = vadd.f32 %v4971, 1.0
        %v4982 = vadd.f32 %v4973, 1.0
        %v4983 = vadd.f32 %v4975, 1.0
        %v4984 = vrcp.pop %v4976
        %v4985 = vmul.f32 %v4976, %v4984
        %v4986 = vsub.f32 1.0, %v4985
        %v4987 = vmul.f32 %v4984, %v4986
        %v4988 = vadd.f32 %v4984, %v4987
        %vm4989 = vweird.f32 %v4976
        %vm4990 = vweird.f32 %v4984
        %vm4991 = vmor %vm4989, %vm4990
        %v4992 = vsel %vm4991, %v4984, %v4988
        %v4993 = vand.u32 2147483647, %v4976
        %vm4994 = vcmp.eq.f32.partialorder %v4993, 8.507059e+37
        %v4995 = vand.u32 %v4976, 2147483648
        %v4996 = vor.u32 1.1754944e-38, %v4995
        %v4997 = vsel %vm4994, %v4996, %v4992
        %v4998 = vmul.f32 1.0, %v4997
        %v4999 = vrcp.pop %v4977
        %v5000 = vmul.f32 %v4977, %v4999
        %v5001 = vsub.f32 1.0, %v5000
        %v5002 = vmul.f32 %v4999, %v5001
        %v5003 = vadd.f32 %v4999, %v5002
        %vm5004 = vweird.f32 %v4977
        %vm5005 = vweird.f32 %v4999
        %vm5006 = vmor %vm5004, %vm5005
        %v5007 = vsel %vm5006, %v4999, %v5003
        %v5008 = vand.u32 2147483647, %v4977
        %vm5009 = vcmp.eq.f32.partialorder %v5008, 8.507059e+37
        %v5010 = vand.u32 %v4977, 2147483648
        %v5011 = vor.u32 1.1754944e-38, %v5010
        %v5012 = vsel %vm5009, %v5011, %v5007
        %v5013 = vmul.f32 1.0, %v5012
        %v5014 = vrcp.pop %v4978
        %v5015 = vmul.f32 %v4978, %v5014
        %v5016 = vsub.f32 1.0, %v5015
        %v5017 = vmul.f32 %v5014, %v5016
        %v5018 = vadd.f32 %v5014, %v5017
        %vm5019 = vweird.f32 %v4978
        %vm5020 = vweird.f32 %v5014
        %vm5021 = vmor %vm5019, %vm5020
        %v5022 = vsel %vm5021, %v5014, %v5018
        %v5023 = vand.u32 2147483647, %v4978
        %vm5024 = vcmp.eq.f32.partialorder %v5023, 8.507059e+37
        %v5025 = vand.u32 %v4978, 2147483648
        %v5026 = vor.u32 1.1754944e-38, %v5025
        %v5027 = vsel %vm5024, %v5026, %v5022
        %v5028 = vmul.f32 1.0, %v5027
        %v5029 = vrcp.pop %v4979
        %v5030 = vmul.f32 %v4979, %v5029
        %v5031 = vsub.f32 1.0, %v5030
        %v5032 = vmul.f32 %v5029, %v5031
        %v5033 = vadd.f32 %v5029, %v5032
        %vm5034 = vweird.f32 %v4979
        %vm5035 = vweird.f32 %v5029
        %vm5036 = vmor %vm5034, %vm5035
        %v5037 = vsel %vm5036, %v5029, %v5033
        %v5038 = vand.u32 2147483647, %v4979
        %vm5039 = vcmp.eq.f32.partialorder %v5038, 8.507059e+37
        %v5040 = vand.u32 %v4979, 2147483648
        %v5041 = vor.u32 1.1754944e-38, %v5040
        %v5042 = vsel %vm5039, %v5041, %v5037
        %v5043 = vmul.f32 1.0, %v5042
        %v5044 = vrcp.pop %v4980
        %v5045 = vmul.f32 %v4980, %v5044
        %v5046 = vsub.f32 1.0, %v5045
        %v5047 = vmul.f32 %v5044, %v5046
        %v5048 = vadd.f32 %v5044, %v5047
        %vm5049 = vweird.f32 %v4980
        %vm5050 = vweird.f32 %v5044
        %vm5051 = vmor %vm5049, %vm5050
        %v5052 = vsel %vm5051, %v5044, %v5048
        %v5053 = vand.u32 2147483647, %v4980
        %vm5054 = vcmp.eq.f32.partialorder %v5053, 8.507059e+37
        %v5055 = vand.u32 %v4980, 2147483648
        %v5056 = vor.u32 1.1754944e-38, %v5055
        %v5057 = vsel %vm5054, %v5056, %v5052
        %v5058 = vmul.f32 1.0, %v5057
        %v5059 = vrcp.pop %v4981
        %v5060 = vmul.f32 %v4981, %v5059
        %v5061 = vsub.f32 1.0, %v5060
        %v5062 = vmul.f32 %v5059, %v5061
        %v5063 = vadd.f32 %v5059, %v5062
        %vm5064 = vweird.f32 %v4981
        %vm5065 = vweird.f32 %v5059
        %vm5066 = vmor %vm5064, %vm5065
        %v5067 = vsel %vm5066, %v5059, %v5063
        %v5068 = vand.u32 2147483647, %v4981
        %vm5069 = vcmp.eq.f32.partialorder %v5068, 8.507059e+37
        %v5070 = vand.u32 %v4981, 2147483648
        %v5071 = vor.u32 1.1754944e-38, %v5070
        %v5072 = vsel %vm5069, %v5071, %v5067
        %v5073 = vmul.f32 1.0, %v5072
        %v5074 = vrcp.pop %v4982
        %v5075 = vmul.f32 %v4982, %v5074
        %v5076 = vsub.f32 1.0, %v5075
        %v5077 = vmul.f32 %v5074, %v5076
        %v5078 = vadd.f32 %v5074, %v5077
        %vm5079 = vweird.f32 %v4982
        %vm5080 = vweird.f32 %v5074
        %vm5081 = vmor %vm5079, %vm5080
        %v5082 = vsel %vm5081, %v5074, %v5078
        %v5083 = vand.u32 2147483647, %v4982
        %vm5084 = vcmp.eq.f32.partialorder %v5083, 8.507059e+37
        %v5085 = vand.u32 %v4982, 2147483648
        %v5086 = vor.u32 1.1754944e-38, %v5085
        %v5087 = vsel %vm5084, %v5086, %v5082
        %v5088 = vmul.f32 1.0, %v5087
        %v5089 = vrcp.pop %v4983
        %v5090 = vmul.f32 %v4983, %v5089
        %v5091 = vsub.f32 1.0, %v5090
        %v5092 = vmul.f32 %v5089, %v5091
        %v5093 = vadd.f32 %v5089, %v5092
        %vm5094 = vweird.f32 %v4983
        %vm5095 = vweird.f32 %v5089
        %vm5096 = vmor %vm5094, %vm5095
        %v5097 = vsel %vm5096, %v5089, %v5093
        %v5098 = vand.u32 2147483647, %v4983
        %vm5099 = vcmp.eq.f32.partialorder %v5098, 8.507059e+37
        %v5100 = vand.u32 %v4983, 2147483648
        %v5101 = vor.u32 1.1754944e-38, %v5100
        %v5102 = vsel %vm5099, %v5101, %v5097
        %v5103 = vmul.f32 1.0, %v5102
        %v5104 = vtanh.pop %v4944
        %v5105 = vtanh.pop %v4945
        %v5106 = vtanh.pop %v4946
        %v5107 = vtanh.pop %v4947
        %v5108 = vtanh.pop %v4948
        %v5109 = vtanh.pop %v4949
        %v5110 = vtanh.pop %v4950
        %v5111 = vtanh.pop %v4951
        %v5120 = vrot.slane %v4794, 7
        %v5121 = vrot.slane %v4795, 7
        %v5122 = vrot.slane %v4796, 7
        %v5123 = vrot.slane %v4797, 7
        %v5124 = vrot.slane %v4798, 7
        %v5125 = vrot.slane %v4799, 7
        %v5126 = vrot.slane %v4800, 7
        %v5127 = vrot.slane %v4801, 7
        %v5136 = vmul.f32 %v4998, %v5120
        %v5137 = vmul.f32 %v5013, %v5121
        %v5138 = vmul.f32 %v5028, %v5122
        %v5139 = vmul.f32 %v5043, %v5123
        %v5140 = vmul.f32 %v5058, %v5124
        %v5141 = vmul.f32 %v5073, %v5125
        %v5142 = vmul.f32 %v5088, %v5126
        %v5143 = vmul.f32 %v5103, %v5127
        %5152 = vrot.lane.b32.xlu0 %v5104, 32
        %v5153 = vpop.permute.xlu0 %5152
        %5154 = vrot.lane.b32.xlu0 %v5105, 32
        %v5155 = vpop.permute.xlu0 %5154
        %5156 = vrot.lane.b32.xlu0 %v5106, 32
        %v5157 = vpop.permute.xlu0 %5156
        %5158 = vrot.lane.b32.xlu0 %v5107, 32
        %v5159 = vpop.permute.xlu0 %5158
        %5160 = vrot.lane.b32.xlu0 %v5108, 32
        %v5161 = vpop.permute.xlu0 %5160
        %5162 = vrot.lane.b32.xlu0 %v5109, 32
        %v5163 = vpop.permute.xlu0 %5162
        %5164 = vrot.lane.b32.xlu0 %v5110, 32
        %v5165 = vpop.permute.xlu0 %5164
        %5166 = vrot.lane.b32.xlu0 %v5111, 32
        %v5167 = vpop.permute.xlu0 %5166
        %v5176 = vmul.f32 %v4998, %v5153
        %v5177 = vmul.f32 %v5013, %v5155
        %v5178 = vmul.f32 %v5028, %v5157
        %v5179 = vmul.f32 %v5043, %v5159
        %v5180 = vmul.f32 %v5058, %v5161
        %v5181 = vmul.f32 %v5073, %v5163
        %v5182 = vmul.f32 %v5088, %v5165
        %v5183 = vmul.f32 %v5103, %v5167
        %5192 = vrot.lane.b32.xlu0 %v5176, 32
        %v5193 = vpop.permute.xlu0 %5192
        %5194 = vrot.lane.b32.xlu0 %v5177, 32
        %v5195 = vpop.permute.xlu0 %5194
        %5196 = vrot.lane.b32.xlu0 %v5178, 32
        %v5197 = vpop.permute.xlu0 %5196
        %5198 = vrot.lane.b32.xlu0 %v5179, 32
        %v5199 = vpop.permute.xlu0 %5198
        %5200 = vrot.lane.b32.xlu0 %v5180, 32
        %v5201 = vpop.permute.xlu0 %5200
        %5202 = vrot.lane.b32.xlu0 %v5181, 32
        %v5203 = vpop.permute.xlu0 %5202
        %5204 = vrot.lane.b32.xlu0 %v5182, 32
        %v5205 = vpop.permute.xlu0 %5204
        %5206 = vrot.lane.b32.xlu0 %v5183, 32
        %v5207 = vpop.permute.xlu0 %5206
        %v5216 = vadd.f32 %v5136, %v5193
        %v5217 = vadd.f32 %v5137, %v5195
        %v5218 = vadd.f32 %v5138, %v5197
        %v5219 = vadd.f32 %v5139, %v5199
        %v5220 = vadd.f32 %v5140, %v5201
        %v5221 = vadd.f32 %v5141, %v5203
        %v5222 = vadd.f32 %v5142, %v5205
        %v5223 = vadd.f32 %v5143, %v5207
        %v5224 = vtanh.pop %v5216
        %v5225 = vtanh.pop %v5217
        %v5226 = vtanh.pop %v5218
        %v5227 = vtanh.pop %v5219
        %v5228 = vtanh.pop %v5220
        %v5229 = vtanh.pop %v5221
        %v5230 = vtanh.pop %v5222
        %v5231 = vtanh.pop %v5223
        %5240 = vrot.lane.b32.xlu0 %v5224, 32
        %v5241 = vpop.permute.xlu0 %5240
        %5242 = vrot.lane.b32.xlu0 %v5225, 32
        %v5243 = vpop.permute.xlu0 %5242
        %5244 = vrot.lane.b32.xlu0 %v5226, 32
        %v5245 = vpop.permute.xlu0 %5244
        %5246 = vrot.lane.b32.xlu0 %v5227, 32
        %v5247 = vpop.permute.xlu0 %5246
        %5248 = vrot.lane.b32.xlu0 %v5228, 32
        %v5249 = vpop.permute.xlu0 %5248
        %5250 = vrot.lane.b32.xlu0 %v5229, 32
        %v5251 = vpop.permute.xlu0 %5250
        %5252 = vrot.lane.b32.xlu0 %v5230, 32
        %v5253 = vpop.permute.xlu0 %5252
        %5254 = vrot.lane.b32.xlu0 %v5231, 32
        %v5255 = vpop.permute.xlu0 %5254
        %v5264 = vmul.f32 %v4998, %v5241
        %v5265 = vmul.f32 %v5013, %v5243
        %v5266 = vmul.f32 %v5028, %v5245
        %v5267 = vmul.f32 %v5043, %v5247
        %v5268 = vmul.f32 %v5058, %v5249
        %v5269 = vmul.f32 %v5073, %v5251
        %v5270 = vmul.f32 %v5088, %v5253
        %v5271 = vmul.f32 %v5103, %v5255
        %5280 = vrot.lane.b32.xlu0 %v5264, 64
        %v5281 = vpop.permute.xlu0 %5280
        %5282 = vrot.lane.b32.xlu0 %v5265, 64
        %v5283 = vpop.permute.xlu0 %5282
        %5284 = vrot.lane.b32.xlu0 %v5266, 64
        %v5285 = vpop.permute.xlu0 %5284
        %5286 = vrot.lane.b32.xlu0 %v5267, 64
        %v5287 = vpop.permute.xlu0 %5286
        %5288 = vrot.lane.b32.xlu0 %v5268, 64
        %v5289 = vpop.permute.xlu0 %5288
        %5290 = vrot.lane.b32.xlu0 %v5269, 64
        %v5291 = vpop.permute.xlu0 %5290
        %5292 = vrot.lane.b32.xlu0 %v5270, 64
        %v5293 = vpop.permute.xlu0 %5292
        %5294 = vrot.lane.b32.xlu0 %v5271, 64
        %v5295 = vpop.permute.xlu0 %5294
        %5304 = vst.msk [vmem:[#allocation4] sm:$0x4] %vm1792, %v5281
        %5305 = vst.msk [vmem:[#allocation4 + $0x8] sm:$0x4] %vm1792, %v5283
        %5306 = vst.msk [vmem:[#allocation4 + $0x10] sm:$0x4] %vm1792, %v5285
        %5307 = vst.msk [vmem:[#allocation4 + $0x18] sm:$0x4] %vm1792, %v5287
        %5308 = vst.msk [vmem:[#allocation4 + $0x20] sm:$0x4] %vm1792, %v5289
        %5309 = vst.msk [vmem:[#allocation4 + $0x28] sm:$0x4] %vm1792, %v5291
        %5310 = vst.msk [vmem:[#allocation4 + $0x30] sm:$0x4] %vm1792, %v5293
        %5311 = vst.msk [vmem:[#allocation4 + $0x38] sm:$0x4] %vm1792, %v5295
        %v5312 = vrot.slane %v5264, 2
        %v5313 = vrot.slane %v5265, 1
        %v5314 = vsel %vm949, %v5313, %v5312
        %v5315 = vsel %vm952, %v5266, %v5314
        %v5316 = vrot.slane %v5267, 7
        %v5317 = vsel %vm955, %v5316, %v5315
        %v5318 = vrot.slane %v5268, 6
        %v5319 = vsel %vm958, %v5318, %v5317
        %v5320 = vrot.slane %v5269, 5
        %v5321 = vsel %vm961, %v5320, %v5319
        %v5322 = vrot.slane %v5270, 4
        %v5323 = vsel %vm964, %v5322, %v5321
        %v5324 = vrot.slane %v5271, 3
        %v5325 = vsel %vm967, %v5324, %v5323
        %5326 = vrot.lane.b32.xlu0 %v5325, 64
        %v5327 = vpop.permute.xlu0 %5326
        %v5328 = vsel %vm464, %v5327, 0
        %5330 = vmatpush.msra.mxu0 0.0
        %5331 = vmatpush.msra.mxu0 0.0
        %5332 = vmatpush.msra.mxu0 0.0
        %5333 = vmatpush.msra.mxu0 0.0
        %5334 = vmatpush.msra.mxu0 0.0
        %5335 = vmatpush.msra.mxu0 0.0
        %5336 = vmatpush.msra.mxu0 0.0
        %5337 = vmatpush.msra.mxu0 0.0
        %5338 = vmatpush.msra.mxu0 0.0
        %5339 = vmatpush.msra.mxu0 0.0
        %5340 = vmatpush.msra.mxu0 0.0
        %5341 = vmatpush.msra.mxu0 0.0
        %5342 = vmatpush.msra.mxu0 %v3979
        %5343 = vmatpush.msra.mxu0 %v3978
        %5344 = vmatpush.msra.mxu0 %v3977
        %5345 = vmatpush.msra.mxu0 %v3976
        %5346 = vmatmul.f32.gmra.mxu0 %v5328
        %v5347 = vpop.f32.mrf.mxu0
        %v5348 = vadd.f32 0.0, %v5347
        %5349 = vdwg.mxu0
        %v5351 = vrot.slane %v5348, 5
        %v5352 = vrot.slane %v5348, 6
        %v5353 = vrot.slane %v5348, 7
        %v5354 = vrot.slane %v5348, 1
        %v5355 = vrot.slane %v5348, 2
        %v5356 = vrot.slane %v5348, 3
        %v5357 = vrot.slane %v5348, 4
        %v5366 = vadd.f32 %v4026, %v5351
        %v5367 = vadd.f32 %v4029, %v5352
        %v5368 = vadd.f32 %v4032, %v5353
        %v5369 = vadd.f32 %v4035, %v5348
        %v5370 = vadd.f32 %v4038, %v5354
        %v5371 = vadd.f32 %v4041, %v5355
        %v5372 = vadd.f32 %v4044, %v5356
        %v5373 = vadd.f32 %v4047, %v5357
        %v5374 = vxor.u32 %v5366, 2147483648
        %v5375 = vxor.u32 %v5367, 2147483648
        %v5376 = vxor.u32 %v5368, 2147483648
        %v5377 = vxor.u32 %v5369, 2147483648
        %v5378 = vxor.u32 %v5370, 2147483648
        %v5379 = vxor.u32 %v5371, 2147483648
        %v5380 = vxor.u32 %v5372, 2147483648
        %v5381 = vxor.u32 %v5373, 2147483648
        %v5382 = vmul.f32 %v5374, 1.442695
        %v5383 = vpow.pop %v5382
        %v5384 = vmul.f32 %v5375, 1.442695
        %v5385 = vpow.pop %v5384
        %v5386 = vmul.f32 %v5376, 1.442695
        %v5387 = vpow.pop %v5386
        %v5388 = vmul.f32 %v5377, 1.442695
        %v5389 = vpow.pop %v5388
        %v5390 = vmul.f32 %v5378, 1.442695
        %v5391 = vpow.pop %v5390
        %v5392 = vmul.f32 %v5379, 1.442695
        %v5393 = vpow.pop %v5392
        %v5394 = vmul.f32 %v5380, 1.442695
        %v5395 = vpow.pop %v5394
        %v5396 = vmul.f32 %v5381, 1.442695
        %v5397 = vpow.pop %v5396
        %v5398 = vadd.f32 %v5383, 1.0
        %v5399 = vadd.f32 %v5385, 1.0
        %v5400 = vadd.f32 %v5387, 1.0
        %v5401 = vadd.f32 %v5389, 1.0
        %v5402 = vadd.f32 %v5391, 1.0
        %v5403 = vadd.f32 %v5393, 1.0
        %v5404 = vadd.f32 %v5395, 1.0
        %v5405 = vadd.f32 %v5397, 1.0
        %v5406 = vrcp.pop %v5398
        %v5407 = vmul.f32 %v5398, %v5406
        %v5408 = vsub.f32 1.0, %v5407
        %v5409 = vmul.f32 %v5406, %v5408
        %v5410 = vadd.f32 %v5406, %v5409
        %vm5411 = vweird.f32 %v5398
        %vm5412 = vweird.f32 %v5406
        %vm5413 = vmor %vm5411, %vm5412
        %v5414 = vsel %vm5413, %v5406, %v5410
        %v5415 = vand.u32 2147483647, %v5398
        %vm5416 = vcmp.eq.f32.partialorder %v5415, 8.507059e+37
        %v5417 = vand.u32 %v5398, 2147483648
        %v5418 = vor.u32 1.1754944e-38, %v5417
        %v5419 = vsel %vm5416, %v5418, %v5414
        %v5420 = vmul.f32 1.0, %v5419
        %v5421 = vrcp.pop %v5399
        %v5422 = vmul.f32 %v5399, %v5421
        %v5423 = vsub.f32 1.0, %v5422
        %v5424 = vmul.f32 %v5421, %v5423
        %v5425 = vadd.f32 %v5421, %v5424
        %vm5426 = vweird.f32 %v5399
        %vm5427 = vweird.f32 %v5421
        %vm5428 = vmor %vm5426, %vm5427
        %v5429 = vsel %vm5428, %v5421, %v5425
        %v5430 = vand.u32 2147483647, %v5399
        %vm5431 = vcmp.eq.f32.partialorder %v5430, 8.507059e+37
        %v5432 = vand.u32 %v5399, 2147483648
        %v5433 = vor.u32 1.1754944e-38, %v5432
        %v5434 = vsel %vm5431, %v5433, %v5429
        %v5435 = vmul.f32 1.0, %v5434
        %v5436 = vrcp.pop %v5400
        %v5437 = vmul.f32 %v5400, %v5436
        %v5438 = vsub.f32 1.0, %v5437
        %v5439 = vmul.f32 %v5436, %v5438
        %v5440 = vadd.f32 %v5436, %v5439
        %vm5441 = vweird.f32 %v5400
        %vm5442 = vweird.f32 %v5436
        %vm5443 = vmor %vm5441, %vm5442
        %v5444 = vsel %vm5443, %v5436, %v5440
        %v5445 = vand.u32 2147483647, %v5400
        %vm5446 = vcmp.eq.f32.partialorder %v5445, 8.507059e+37
        %v5447 = vand.u32 %v5400, 2147483648
        %v5448 = vor.u32 1.1754944e-38, %v5447
        %v5449 = vsel %vm5446, %v5448, %v5444
        %v5450 = vmul.f32 1.0, %v5449
        %v5451 = vrcp.pop %v5401
        %v5452 = vmul.f32 %v5401, %v5451
        %v5453 = vsub.f32 1.0, %v5452
        %v5454 = vmul.f32 %v5451, %v5453
        %v5455 = vadd.f32 %v5451, %v5454
        %vm5456 = vweird.f32 %v5401
        %vm5457 = vweird.f32 %v5451
        %vm5458 = vmor %vm5456, %vm5457
        %v5459 = vsel %vm5458, %v5451, %v5455
        %v5460 = vand.u32 2147483647, %v5401
        %vm5461 = vcmp.eq.f32.partialorder %v5460, 8.507059e+37
        %v5462 = vand.u32 %v5401, 2147483648
        %v5463 = vor.u32 1.1754944e-38, %v5462
        %v5464 = vsel %vm5461, %v5463, %v5459
        %v5465 = vmul.f32 1.0, %v5464
        %v5466 = vrcp.pop %v5402
        %v5467 = vmul.f32 %v5402, %v5466
        %v5468 = vsub.f32 1.0, %v5467
        %v5469 = vmul.f32 %v5466, %v5468
        %v5470 = vadd.f32 %v5466, %v5469
        %vm5471 = vweird.f32 %v5402
        %vm5472 = vweird.f32 %v5466
        %vm5473 = vmor %vm5471, %vm5472
        %v5474 = vsel %vm5473, %v5466, %v5470
        %v5475 = vand.u32 2147483647, %v5402
        %vm5476 = vcmp.eq.f32.partialorder %v5475, 8.507059e+37
        %v5477 = vand.u32 %v5402, 2147483648
        %v5478 = vor.u32 1.1754944e-38, %v5477
        %v5479 = vsel %vm5476, %v5478, %v5474
        %v5480 = vmul.f32 1.0, %v5479
        %v5481 = vrcp.pop %v5403
        %v5482 = vmul.f32 %v5403, %v5481
        %v5483 = vsub.f32 1.0, %v5482
        %v5484 = vmul.f32 %v5481, %v5483
        %v5485 = vadd.f32 %v5481, %v5484
        %vm5486 = vweird.f32 %v5403
        %vm5487 = vweird.f32 %v5481
        %vm5488 = vmor %vm5486, %vm5487
        %v5489 = vsel %vm5488, %v5481, %v5485
        %v5490 = vand.u32 2147483647, %v5403
        %vm5491 = vcmp.eq.f32.partialorder %v5490, 8.507059e+37
        %v5492 = vand.u32 %v5403, 2147483648
        %v5493 = vor.u32 1.1754944e-38, %v5492
        %v5494 = vsel %vm5491, %v5493, %v5489
        %v5495 = vmul.f32 1.0, %v5494
        %v5496 = vrcp.pop %v5404
        %v5497 = vmul.f32 %v5404, %v5496
        %v5498 = vsub.f32 1.0, %v5497
        %v5499 = vmul.f32 %v5496, %v5498
        %v5500 = vadd.f32 %v5496, %v5499
        %vm5501 = vweird.f32 %v5404
        %vm5502 = vweird.f32 %v5496
        %vm5503 = vmor %vm5501, %vm5502
        %v5504 = vsel %vm5503, %v5496, %v5500
        %v5505 = vand.u32 2147483647, %v5404
        %vm5506 = vcmp.eq.f32.partialorder %v5505, 8.507059e+37
        %v5507 = vand.u32 %v5404, 2147483648
        %v5508 = vor.u32 1.1754944e-38, %v5507
        %v5509 = vsel %vm5506, %v5508, %v5504
        %v5510 = vmul.f32 1.0, %v5509
        %v5511 = vrcp.pop %v5405
        %v5512 = vmul.f32 %v5405, %v5511
        %v5513 = vsub.f32 1.0, %v5512
        %v5514 = vmul.f32 %v5511, %v5513
        %v5515 = vadd.f32 %v5511, %v5514
        %vm5516 = vweird.f32 %v5405
        %vm5517 = vweird.f32 %v5511
        %vm5518 = vmor %vm5516, %vm5517
        %v5519 = vsel %vm5518, %v5511, %v5515
        %v5520 = vand.u32 2147483647, %v5405
        %vm5521 = vcmp.eq.f32.partialorder %v5520, 8.507059e+37
        %v5522 = vand.u32 %v5405, 2147483648
        %v5523 = vor.u32 1.1754944e-38, %v5522
        %v5524 = vsel %vm5521, %v5523, %v5519
        %v5525 = vmul.f32 1.0, %v5524
        %v5526 = vtanh.pop %v5366
        %v5527 = vtanh.pop %v5367
        %v5528 = vtanh.pop %v5368
        %v5529 = vtanh.pop %v5369
        %v5530 = vtanh.pop %v5370
        %v5531 = vtanh.pop %v5371
        %v5532 = vtanh.pop %v5372
        %v5533 = vtanh.pop %v5373
        %v5542 = vrot.slane %v5216, 7
        %v5543 = vrot.slane %v5217, 7
        %v5544 = vrot.slane %v5218, 7
        %v5545 = vrot.slane %v5219, 7
        %v5546 = vrot.slane %v5220, 7
        %v5547 = vrot.slane %v5221, 7
        %v5548 = vrot.slane %v5222, 7
        %v5549 = vrot.slane %v5223, 7
        %v5558 = vmul.f32 %v5420, %v5542
        %v5559 = vmul.f32 %v5435, %v5543
        %v5560 = vmul.f32 %v5450, %v5544
        %v5561 = vmul.f32 %v5465, %v5545
        %v5562 = vmul.f32 %v5480, %v5546
        %v5563 = vmul.f32 %v5495, %v5547
        %v5564 = vmul.f32 %v5510, %v5548
        %v5565 = vmul.f32 %v5525, %v5549
        %5574 = vrot.lane.b32.xlu0 %v5526, 32
        %v5575 = vpop.permute.xlu0 %5574
        %5576 = vrot.lane.b32.xlu0 %v5527, 32
        %v5577 = vpop.permute.xlu0 %5576
        %5578 = vrot.lane.b32.xlu0 %v5528, 32
        %v5579 = vpop.permute.xlu0 %5578
        %5580 = vrot.lane.b32.xlu0 %v5529, 32
        %v5581 = vpop.permute.xlu0 %5580
        %5582 = vrot.lane.b32.xlu0 %v5530, 32
        %v5583 = vpop.permute.xlu0 %5582
        %5584 = vrot.lane.b32.xlu0 %v5531, 32
        %v5585 = vpop.permute.xlu0 %5584
        %5586 = vrot.lane.b32.xlu0 %v5532, 32
        %v5587 = vpop.permute.xlu0 %5586
        %5588 = vrot.lane.b32.xlu0 %v5533, 32
        %v5589 = vpop.permute.xlu0 %5588
        %v5598 = vmul.f32 %v5420, %v5575
        %v5599 = vmul.f32 %v5435, %v5577
        %v5600 = vmul.f32 %v5450, %v5579
        %v5601 = vmul.f32 %v5465, %v5581
        %v5602 = vmul.f32 %v5480, %v5583
        %v5603 = vmul.f32 %v5495, %v5585
        %v5604 = vmul.f32 %v5510, %v5587
        %v5605 = vmul.f32 %v5525, %v5589
        %5614 = vrot.lane.b32.xlu0 %v5598, 32
        %v5615 = vpop.permute.xlu0 %5614
        %5616 = vrot.lane.b32.xlu0 %v5599, 32
        %v5617 = vpop.permute.xlu0 %5616
        %5618 = vrot.lane.b32.xlu0 %v5600, 32
        %v5619 = vpop.permute.xlu0 %5618
        %5620 = vrot.lane.b32.xlu0 %v5601, 32
        %v5621 = vpop.permute.xlu0 %5620
        %5622 = vrot.lane.b32.xlu0 %v5602, 32
        %v5623 = vpop.permute.xlu0 %5622
        %5624 = vrot.lane.b32.xlu0 %v5603, 32
        %v5625 = vpop.permute.xlu0 %5624
        %5626 = vrot.lane.b32.xlu0 %v5604, 32
        %v5627 = vpop.permute.xlu0 %5626
        %5628 = vrot.lane.b32.xlu0 %v5605, 32
        %v5629 = vpop.permute.xlu0 %5628
        %v5638 = vadd.f32 %v5558, %v5615
        %v5639 = vadd.f32 %v5559, %v5617
        %v5640 = vadd.f32 %v5560, %v5619
        %v5641 = vadd.f32 %v5561, %v5621
        %v5642 = vadd.f32 %v5562, %v5623
        %v5643 = vadd.f32 %v5563, %v5625
        %v5644 = vadd.f32 %v5564, %v5627
        %v5645 = vadd.f32 %v5565, %v5629
        %v5646 = vtanh.pop %v5638
        %v5647 = vtanh.pop %v5639
        %v5648 = vtanh.pop %v5640
        %v5649 = vtanh.pop %v5641
        %v5650 = vtanh.pop %v5642
        %v5651 = vtanh.pop %v5643
        %v5652 = vtanh.pop %v5644
        %v5653 = vtanh.pop %v5645
        %5662 = vrot.lane.b32.xlu0 %v5646, 32
        %v5663 = vpop.permute.xlu0 %5662
        %5664 = vrot.lane.b32.xlu0 %v5647, 32
        %v5665 = vpop.permute.xlu0 %5664
        %5666 = vrot.lane.b32.xlu0 %v5648, 32
        %v5667 = vpop.permute.xlu0 %5666
        %5668 = vrot.lane.b32.xlu0 %v5649, 32
        %v5669 = vpop.permute.xlu0 %5668
        %5670 = vrot.lane.b32.xlu0 %v5650, 32
        %v5671 = vpop.permute.xlu0 %5670
        %5672 = vrot.lane.b32.xlu0 %v5651, 32
        %v5673 = vpop.permute.xlu0 %5672
        %5674 = vrot.lane.b32.xlu0 %v5652, 32
        %v5675 = vpop.permute.xlu0 %5674
        %5676 = vrot.lane.b32.xlu0 %v5653, 32
        %v5677 = vpop.permute.xlu0 %5676
        %v5686 = vmul.f32 %v5420, %v5663
        %v5687 = vmul.f32 %v5435, %v5665
        %v5688 = vmul.f32 %v5450, %v5667
        %v5689 = vmul.f32 %v5465, %v5669
        %v5690 = vmul.f32 %v5480, %v5671
        %v5691 = vmul.f32 %v5495, %v5673
        %v5692 = vmul.f32 %v5510, %v5675
        %v5693 = vmul.f32 %v5525, %v5677
        %5702 = vrot.lane.b32.xlu0 %v5686, 64
        %v5703 = vpop.permute.xlu0 %5702
        %5704 = vrot.lane.b32.xlu0 %v5687, 64
        %v5705 = vpop.permute.xlu0 %5704
        %5706 = vrot.lane.b32.xlu0 %v5688, 64
        %v5707 = vpop.permute.xlu0 %5706
        %5708 = vrot.lane.b32.xlu0 %v5689, 64
        %v5709 = vpop.permute.xlu0 %5708
        %5710 = vrot.lane.b32.xlu0 %v5690, 64
        %v5711 = vpop.permute.xlu0 %5710
        %5712 = vrot.lane.b32.xlu0 %v5691, 64
        %v5713 = vpop.permute.xlu0 %5712
        %5714 = vrot.lane.b32.xlu0 %v5692, 64
        %v5715 = vpop.permute.xlu0 %5714
        %5716 = vrot.lane.b32.xlu0 %v5693, 64
        %v5717 = vpop.permute.xlu0 %5716
        %5726 = vst.msk [vmem:[#allocation4] sm:$0x8] %vm2215, %v5703
        %5727 = vst.msk [vmem:[#allocation4 + $0x8] sm:$0x8] %vm2215, %v5705
        %5728 = vst.msk [vmem:[#allocation4 + $0x10] sm:$0x8] %vm2215, %v5707
        %5729 = vst.msk [vmem:[#allocation4 + $0x18] sm:$0x8] %vm2215, %v5709
        %5730 = vst.msk [vmem:[#allocation4 + $0x20] sm:$0x8] %vm2215, %v5711
        %5731 = vst.msk [vmem:[#allocation4 + $0x28] sm:$0x8] %vm2215, %v5713
        %5732 = vst.msk [vmem:[#allocation4 + $0x30] sm:$0x8] %vm2215, %v5715
        %5733 = vst.msk [vmem:[#allocation4 + $0x38] sm:$0x8] %vm2215, %v5717
        %v5734 = vrot.slane %v5686, 3
        %v5735 = vrot.slane %v5687, 2
        %v5736 = vsel %vm949, %v5735, %v5734
        %v5737 = vrot.slane %v5688, 1
        %v5738 = vsel %vm952, %v5737, %v5736
        %v5739 = vsel %vm955, %v5689, %v5738
        %v5740 = vrot.slane %v5690, 7
        %v5741 = vsel %vm958, %v5740, %v5739
        %v5742 = vrot.slane %v5691, 6
        %v5743 = vsel %vm961, %v5742, %v5741
        %v5744 = vrot.slane %v5692, 5
        %v5745 = vsel %vm964, %v5744, %v5743
        %v5746 = vrot.slane %v5693, 4
        %v5747 = vsel %vm967, %v5746, %v5745
        %5748 = vrot.lane.b32.xlu0 %v5747, 64
        %v5749 = vpop.permute.xlu0 %5748
        %v5750 = vsel %vm464, %v5749, 0
        %5752 = vmatpush.msra.mxu0 0.0
        %5753 = vmatpush.msra.mxu0 0.0
        %5754 = vmatpush.msra.mxu0 0.0
        %5755 = vmatpush.msra.mxu0 0.0
        %5756 = vmatpush.msra.mxu0 0.0
        %5757 = vmatpush.msra.mxu0 0.0
        %5758 = vmatpush.msra.mxu0 0.0
        %5759 = vmatpush.msra.mxu0 0.0
        %5760 = vmatpush.msra.mxu0 0.0
        %5761 = vmatpush.msra.mxu0 0.0
        %5762 = vmatpush.msra.mxu0 0.0
        %5763 = vmatpush.msra.mxu0 0.0
        %5764 = vmatpush.msra.mxu0 %v3979
        %5765 = vmatpush.msra.mxu0 %v3978
        %5766 = vmatpush.msra.mxu0 %v3977
        %5767 = vmatpush.msra.mxu0 %v3976
        %5768 = vmatmul.f32.gmra.mxu0 %v5750
        %v5769 = vpop.f32.mrf.mxu0
        %v5770 = vadd.f32 0.0, %v5769
        %5771 = vdwg.mxu0
        %v5773 = vrot.slane %v5770, 4
        %v5774 = vrot.slane %v5770, 5
        %v5775 = vrot.slane %v5770, 6
        %v5776 = vrot.slane %v5770, 7
        %v5777 = vrot.slane %v5770, 1
        %v5778 = vrot.slane %v5770, 2
        %v5779 = vrot.slane %v5770, 3
        %v5788 = vadd.f32 %v4026, %v5773
        %v5789 = vadd.f32 %v4029, %v5774
        %v5790 = vadd.f32 %v4032, %v5775
        %v5791 = vadd.f32 %v4035, %v5776
        %v5792 = vadd.f32 %v4038, %v5770
        %v5793 = vadd.f32 %v4041, %v5777
        %v5794 = vadd.f32 %v4044, %v5778
        %v5795 = vadd.f32 %v4047, %v5779
        %v5796 = vxor.u32 %v5788, 2147483648
        %v5797 = vxor.u32 %v5789, 2147483648
        %v5798 = vxor.u32 %v5790, 2147483648
        %v5799 = vxor.u32 %v5791, 2147483648
        %v5800 = vxor.u32 %v5792, 2147483648
        %v5801 = vxor.u32 %v5793, 2147483648
        %v5802 = vxor.u32 %v5794, 2147483648
        %v5803 = vxor.u32 %v5795, 2147483648
        %v5804 = vmul.f32 %v5796, 1.442695
        %v5805 = vpow.pop %v5804
        %v5806 = vmul.f32 %v5797, 1.442695
        %v5807 = vpow.pop %v5806
        %v5808 = vmul.f32 %v5798, 1.442695
        %v5809 = vpow.pop %v5808
        %v5810 = vmul.f32 %v5799, 1.442695
        %v5811 = vpow.pop %v5810
        %v5812 = vmul.f32 %v5800, 1.442695
        %v5813 = vpow.pop %v5812
        %v5814 = vmul.f32 %v5801, 1.442695
        %v5815 = vpow.pop %v5814
        %v5816 = vmul.f32 %v5802, 1.442695
        %v5817 = vpow.pop %v5816
        %v5818 = vmul.f32 %v5803, 1.442695
        %v5819 = vpow.pop %v5818
        %v5820 = vadd.f32 %v5805, 1.0
        %v5821 = vadd.f32 %v5807, 1.0
        %v5822 = vadd.f32 %v5809, 1.0
        %v5823 = vadd.f32 %v5811, 1.0
        %v5824 = vadd.f32 %v5813, 1.0
        %v5825 = vadd.f32 %v5815, 1.0
        %v5826 = vadd.f32 %v5817, 1.0
        %v5827 = vadd.f32 %v5819, 1.0
        %v5828 = vrcp.pop %v5820
        %v5829 = vmul.f32 %v5820, %v5828
        %v5830 = vsub.f32 1.0, %v5829
        %v5831 = vmul.f32 %v5828, %v5830
        %v5832 = vadd.f32 %v5828, %v5831
        %vm5833 = vweird.f32 %v5820
        %vm5834 = vweird.f32 %v5828
        %vm5835 = vmor %vm5833, %vm5834
        %v5836 = vsel %vm5835, %v5828, %v5832
        %v5837 = vand.u32 2147483647, %v5820
        %vm5838 = vcmp.eq.f32.partialorder %v5837, 8.507059e+37
        %v5839 = vand.u32 %v5820, 2147483648
        %v5840 = vor.u32 1.1754944e-38, %v5839
        %v5841 = vsel %vm5838, %v5840, %v5836
        %v5842 = vmul.f32 1.0, %v5841
        %v5843 = vrcp.pop %v5821
        %v5844 = vmul.f32 %v5821, %v5843
        %v5845 = vsub.f32 1.0, %v5844
        %v5846 = vmul.f32 %v5843, %v5845
        %v5847 = vadd.f32 %v5843, %v5846
        %vm5848 = vweird.f32 %v5821
        %vm5849 = vweird.f32 %v5843
        %vm5850 = vmor %vm5848, %vm5849
        %v5851 = vsel %vm5850, %v5843, %v5847
        %v5852 = vand.u32 2147483647, %v5821
        %vm5853 = vcmp.eq.f32.partialorder %v5852, 8.507059e+37
        %v5854 = vand.u32 %v5821, 2147483648
        %v5855 = vor.u32 1.1754944e-38, %v5854
        %v5856 = vsel %vm5853, %v5855, %v5851
        %v5857 = vmul.f32 1.0, %v5856
        %v5858 = vrcp.pop %v5822
        %v5859 = vmul.f32 %v5822, %v5858
        %v5860 = vsub.f32 1.0, %v5859
        %v5861 = vmul.f32 %v5858, %v5860
        %v5862 = vadd.f32 %v5858, %v5861
        %vm5863 = vweird.f32 %v5822
        %vm5864 = vweird.f32 %v5858
        %vm5865 = vmor %vm5863, %vm5864
        %v5866 = vsel %vm5865, %v5858, %v5862
        %v5867 = vand.u32 2147483647, %v5822
        %vm5868 = vcmp.eq.f32.partialorder %v5867, 8.507059e+37
        %v5869 = vand.u32 %v5822, 2147483648
        %v5870 = vor.u32 1.1754944e-38, %v5869
        %v5871 = vsel %vm5868, %v5870, %v5866
        %v5872 = vmul.f32 1.0, %v5871
        %v5873 = vrcp.pop %v5823
        %v5874 = vmul.f32 %v5823, %v5873
        %v5875 = vsub.f32 1.0, %v5874
        %v5876 = vmul.f32 %v5873, %v5875
        %v5877 = vadd.f32 %v5873, %v5876
        %vm5878 = vweird.f32 %v5823
        %vm5879 = vweird.f32 %v5873
        %vm5880 = vmor %vm5878, %vm5879
        %v5881 = vsel %vm5880, %v5873, %v5877
        %v5882 = vand.u32 2147483647, %v5823
        %vm5883 = vcmp.eq.f32.partialorder %v5882, 8.507059e+37
        %v5884 = vand.u32 %v5823, 2147483648
        %v5885 = vor.u32 1.1754944e-38, %v5884
        %v5886 = vsel %vm5883, %v5885, %v5881
        %v5887 = vmul.f32 1.0, %v5886
        %v5888 = vrcp.pop %v5824
        %v5889 = vmul.f32 %v5824, %v5888
        %v5890 = vsub.f32 1.0, %v5889
        %v5891 = vmul.f32 %v5888, %v5890
        %v5892 = vadd.f32 %v5888, %v5891
        %vm5893 = vweird.f32 %v5824
        %vm5894 = vweird.f32 %v5888
        %vm5895 = vmor %vm5893, %vm5894
        %v5896 = vsel %vm5895, %v5888, %v5892
        %v5897 = vand.u32 2147483647, %v5824
        %vm5898 = vcmp.eq.f32.partialorder %v5897, 8.507059e+37
        %v5899 = vand.u32 %v5824, 2147483648
        %v5900 = vor.u32 1.1754944e-38, %v5899
        %v5901 = vsel %vm5898, %v5900, %v5896
        %v5902 = vmul.f32 1.0, %v5901
        %v5903 = vrcp.pop %v5825
        %v5904 = vmul.f32 %v5825, %v5903
        %v5905 = vsub.f32 1.0, %v5904
        %v5906 = vmul.f32 %v5903, %v5905
        %v5907 = vadd.f32 %v5903, %v5906
        %vm5908 = vweird.f32 %v5825
        %vm5909 = vweird.f32 %v5903
        %vm5910 = vmor %vm5908, %vm5909
        %v5911 = vsel %vm5910, %v5903, %v5907
        %v5912 = vand.u32 2147483647, %v5825
        %vm5913 = vcmp.eq.f32.partialorder %v5912, 8.507059e+37
        %v5914 = vand.u32 %v5825, 2147483648
        %v5915 = vor.u32 1.1754944e-38, %v5914
        %v5916 = vsel %vm5913, %v5915, %v5911
        %v5917 = vmul.f32 1.0, %v5916
        %v5918 = vrcp.pop %v5826
        %v5919 = vmul.f32 %v5826, %v5918
        %v5920 = vsub.f32 1.0, %v5919
        %v5921 = vmul.f32 %v5918, %v5920
        %v5922 = vadd.f32 %v5918, %v5921
        %vm5923 = vweird.f32 %v5826
        %vm5924 = vweird.f32 %v5918
        %vm5925 = vmor %vm5923, %vm5924
        %v5926 = vsel %vm5925, %v5918, %v5922
        %v5927 = vand.u32 2147483647, %v5826
        %vm5928 = vcmp.eq.f32.partialorder %v5927, 8.507059e+37
        %v5929 = vand.u32 %v5826, 2147483648
        %v5930 = vor.u32 1.1754944e-38, %v5929
        %v5931 = vsel %vm5928, %v5930, %v5926
        %v5932 = vmul.f32 1.0, %v5931
        %v5933 = vrcp.pop %v5827
        %v5934 = vmul.f32 %v5827, %v5933
        %v5935 = vsub.f32 1.0, %v5934
        %v5936 = vmul.f32 %v5933, %v5935
        %v5937 = vadd.f32 %v5933, %v5936
        %vm5938 = vweird.f32 %v5827
        %vm5939 = vweird.f32 %v5933
        %vm5940 = vmor %vm5938, %vm5939
        %v5941 = vsel %vm5940, %v5933, %v5937
        %v5942 = vand.u32 2147483647, %v5827
        %vm5943 = vcmp.eq.f32.partialorder %v5942, 8.507059e+37
        %v5944 = vand.u32 %v5827, 2147483648
        %v5945 = vor.u32 1.1754944e-38, %v5944
        %v5946 = vsel %vm5943, %v5945, %v5941
        %v5947 = vmul.f32 1.0, %v5946
        %v5948 = vtanh.pop %v5788
        %v5949 = vtanh.pop %v5789
        %v5950 = vtanh.pop %v5790
        %v5951 = vtanh.pop %v5791
        %v5952 = vtanh.pop %v5792
        %v5953 = vtanh.pop %v5793
        %v5954 = vtanh.pop %v5794
        %v5955 = vtanh.pop %v5795
        %v5964 = vrot.slane %v5638, 7
        %v5965 = vrot.slane %v5639, 7
        %v5966 = vrot.slane %v5640, 7
        %v5967 = vrot.slane %v5641, 7
        %v5968 = vrot.slane %v5642, 7
        %v5969 = vrot.slane %v5643, 7
        %v5970 = vrot.slane %v5644, 7
        %v5971 = vrot.slane %v5645, 7
        %v5980 = vmul.f32 %v5842, %v5964
        %v5981 = vmul.f32 %v5857, %v5965
        %v5982 = vmul.f32 %v5872, %v5966
        %v5983 = vmul.f32 %v5887, %v5967
        %v5984 = vmul.f32 %v5902, %v5968
        %v5985 = vmul.f32 %v5917, %v5969
        %v5986 = vmul.f32 %v5932, %v5970
        %v5987 = vmul.f32 %v5947, %v5971
        %5996 = vrot.lane.b32.xlu0 %v5948, 32
        %v5997 = vpop.permute.xlu0 %5996
        %5998 = vrot.lane.b32.xlu0 %v5949, 32
        %v5999 = vpop.permute.xlu0 %5998
        %6000 = vrot.lane.b32.xlu0 %v5950, 32
        %v6001 = vpop.permute.xlu0 %6000
        %6002 = vrot.lane.b32.xlu0 %v5951, 32
        %v6003 = vpop.permute.xlu0 %6002
        %6004 = vrot.lane.b32.xlu0 %v5952, 32
        %v6005 = vpop.permute.xlu0 %6004
        %6006 = vrot.lane.b32.xlu0 %v5953, 32
        %v6007 = vpop.permute.xlu0 %6006
        %6008 = vrot.lane.b32.xlu0 %v5954, 32
        %v6009 = vpop.permute.xlu0 %6008
        %6010 = vrot.lane.b32.xlu0 %v5955, 32
        %v6011 = vpop.permute.xlu0 %6010
        %v6020 = vmul.f32 %v5842, %v5997
        %v6021 = vmul.f32 %v5857, %v5999
        %v6022 = vmul.f32 %v5872, %v6001
        %v6023 = vmul.f32 %v5887, %v6003
        %v6024 = vmul.f32 %v5902, %v6005
        %v6025 = vmul.f32 %v5917, %v6007
        %v6026 = vmul.f32 %v5932, %v6009
        %v6027 = vmul.f32 %v5947, %v6011
        %6036 = vrot.lane.b32.xlu0 %v6020, 32
        %v6037 = vpop.permute.xlu0 %6036
        %6038 = vrot.lane.b32.xlu0 %v6021, 32
        %v6039 = vpop.permute.xlu0 %6038
        %6040 = vrot.lane.b32.xlu0 %v6022, 32
        %v6041 = vpop.permute.xlu0 %6040
        %6042 = vrot.lane.b32.xlu0 %v6023, 32
        %v6043 = vpop.permute.xlu0 %6042
        %6044 = vrot.lane.b32.xlu0 %v6024, 32
        %v6045 = vpop.permute.xlu0 %6044
        %6046 = vrot.lane.b32.xlu0 %v6025, 32
        %v6047 = vpop.permute.xlu0 %6046
        %6048 = vrot.lane.b32.xlu0 %v6026, 32
        %v6049 = vpop.permute.xlu0 %6048
        %6050 = vrot.lane.b32.xlu0 %v6027, 32
        %v6051 = vpop.permute.xlu0 %6050
        %v6060 = vadd.f32 %v5980, %v6037
        %v6061 = vadd.f32 %v5981, %v6039
        %v6062 = vadd.f32 %v5982, %v6041
        %v6063 = vadd.f32 %v5983, %v6043
        %v6064 = vadd.f32 %v5984, %v6045
        %v6065 = vadd.f32 %v5985, %v6047
        %v6066 = vadd.f32 %v5986, %v6049
        %v6067 = vadd.f32 %v5987, %v6051
        %v6068 = vtanh.pop %v6060
        %v6069 = vtanh.pop %v6061
        %v6070 = vtanh.pop %v6062
        %v6071 = vtanh.pop %v6063
        %v6072 = vtanh.pop %v6064
        %v6073 = vtanh.pop %v6065
        %v6074 = vtanh.pop %v6066
        %v6075 = vtanh.pop %v6067
        %6084 = vrot.lane.b32.xlu0 %v6068, 32
        %v6085 = vpop.permute.xlu0 %6084
        %6086 = vrot.lane.b32.xlu0 %v6069, 32
        %v6087 = vpop.permute.xlu0 %6086
        %6088 = vrot.lane.b32.xlu0 %v6070, 32
        %v6089 = vpop.permute.xlu0 %6088
        %6090 = vrot.lane.b32.xlu0 %v6071, 32
        %v6091 = vpop.permute.xlu0 %6090
        %6092 = vrot.lane.b32.xlu0 %v6072, 32
        %v6093 = vpop.permute.xlu0 %6092
        %6094 = vrot.lane.b32.xlu0 %v6073, 32
        %v6095 = vpop.permute.xlu0 %6094
        %6096 = vrot.lane.b32.xlu0 %v6074, 32
        %v6097 = vpop.permute.xlu0 %6096
        %6098 = vrot.lane.b32.xlu0 %v6075, 32
        %v6099 = vpop.permute.xlu0 %6098
        %v6108 = vmul.f32 %v5842, %v6085
        %v6109 = vmul.f32 %v5857, %v6087
        %v6110 = vmul.f32 %v5872, %v6089
        %v6111 = vmul.f32 %v5887, %v6091
        %v6112 = vmul.f32 %v5902, %v6093
        %v6113 = vmul.f32 %v5917, %v6095
        %v6114 = vmul.f32 %v5932, %v6097
        %v6115 = vmul.f32 %v5947, %v6099
        %6124 = vrot.lane.b32.xlu0 %v6108, 64
        %v6125 = vpop.permute.xlu0 %6124
        %6126 = vrot.lane.b32.xlu0 %v6109, 64
        %v6127 = vpop.permute.xlu0 %6126
        %6128 = vrot.lane.b32.xlu0 %v6110, 64
        %v6129 = vpop.permute.xlu0 %6128
        %6130 = vrot.lane.b32.xlu0 %v6111, 64
        %v6131 = vpop.permute.xlu0 %6130
        %6132 = vrot.lane.b32.xlu0 %v6112, 64
        %v6133 = vpop.permute.xlu0 %6132
        %6134 = vrot.lane.b32.xlu0 %v6113, 64
        %v6135 = vpop.permute.xlu0 %6134
        %6136 = vrot.lane.b32.xlu0 %v6114, 64
        %v6137 = vpop.permute.xlu0 %6136
        %6138 = vrot.lane.b32.xlu0 %v6115, 64
        %v6139 = vpop.permute.xlu0 %6138
        %6148 = vst.msk [vmem:[#allocation4] sm:$0x10] %vm2638, %v6125
        %6149 = vst.msk [vmem:[#allocation4 + $0x8] sm:$0x10] %vm2638, %v6127
        %6150 = vst.msk [vmem:[#allocation4 + $0x10] sm:$0x10] %vm2638, %v6129
        %6151 = vst.msk [vmem:[#allocation4 + $0x18] sm:$0x10] %vm2638, %v6131
        %6152 = vst.msk [vmem:[#allocation4 + $0x20] sm:$0x10] %vm2638, %v6133
        %6153 = vst.msk [vmem:[#allocation4 + $0x28] sm:$0x10] %vm2638, %v6135
        %6154 = vst.msk [vmem:[#allocation4 + $0x30] sm:$0x10] %vm2638, %v6137
        %6155 = vst.msk [vmem:[#allocation4 + $0x38] sm:$0x10] %vm2638, %v6139
        %v6156 = vrot.slane %v6108, 4
        %v6157 = vrot.slane %v6109, 3
        %v6158 = vsel %vm949, %v6157, %v6156
        %v6159 = vrot.slane %v6110, 2
        %v6160 = vsel %vm952, %v6159, %v6158
        %v6161 = vrot.slane %v6111, 1
        %v6162 = vsel %vm955, %v6161, %v6160
        %v6163 = vsel %vm958, %v6112, %v6162
        %v6164 = vrot.slane %v6113, 7
        %v6165 = vsel %vm961, %v6164, %v6163
        %v6166 = vrot.slane %v6114, 6
        %v6167 = vsel %vm964, %v6166, %v6165
        %v6168 = vrot.slane %v6115, 5
        %v6169 = vsel %vm967, %v6168, %v6167
        %6170 = vrot.lane.b32.xlu0 %v6169, 64
        %v6171 = vpop.permute.xlu0 %6170
        %v6172 = vsel %vm464, %v6171, 0
        %6174 = vmatpush.msra.mxu0 0.0
        %6175 = vmatpush.msra.mxu0 0.0
        %6176 = vmatpush.msra.mxu0 0.0
        %6177 = vmatpush.msra.mxu0 0.0
        %6178 = vmatpush.msra.mxu0 0.0
        %6179 = vmatpush.msra.mxu0 0.0
        %6180 = vmatpush.msra.mxu0 0.0
        %6181 = vmatpush.msra.mxu0 0.0
        %6182 = vmatpush.msra.mxu0 0.0
        %6183 = vmatpush.msra.mxu0 0.0
        %6184 = vmatpush.msra.mxu0 0.0
        %6185 = vmatpush.msra.mxu0 0.0
        %6186 = vmatpush.msra.mxu0 %v3979
        %6187 = vmatpush.msra.mxu0 %v3978
        %6188 = vmatpush.msra.mxu0 %v3977
        %6189 = vmatpush.msra.mxu0 %v3976
        %6190 = vmatmul.f32.gmra.mxu0 %v6172
        %v6191 = vpop.f32.mrf.mxu0
        %v6192 = vadd.f32 0.0, %v6191
        %6193 = vdwg.mxu0
        %v6195 = vrot.slane %v6192, 3
        %v6196 = vrot.slane %v6192, 4
        %v6197 = vrot.slane %v6192, 5
        %v6198 = vrot.slane %v6192, 6
        %v6199 = vrot.slane %v6192, 7
        %v6200 = vrot.slane %v6192, 1
        %v6201 = vrot.slane %v6192, 2
        %v6210 = vadd.f32 %v4026, %v6195
        %v6211 = vadd.f32 %v4029, %v6196
        %v6212 = vadd.f32 %v4032, %v6197
        %v6213 = vadd.f32 %v4035, %v6198
        %v6214 = vadd.f32 %v4038, %v6199
        %v6215 = vadd.f32 %v4041, %v6192
        %v6216 = vadd.f32 %v4044, %v6200
        %v6217 = vadd.f32 %v4047, %v6201
        %v6218 = vxor.u32 %v6210, 2147483648
        %v6219 = vxor.u32 %v6211, 2147483648
        %v6220 = vxor.u32 %v6212, 2147483648
        %v6221 = vxor.u32 %v6213, 2147483648
        %v6222 = vxor.u32 %v6214, 2147483648
        %v6223 = vxor.u32 %v6215, 2147483648
        %v6224 = vxor.u32 %v6216, 2147483648
        %v6225 = vxor.u32 %v6217, 2147483648
        %v6226 = vmul.f32 %v6218, 1.442695
        %v6227 = vpow.pop %v6226
        %v6228 = vmul.f32 %v6219, 1.442695
        %v6229 = vpow.pop %v6228
        %v6230 = vmul.f32 %v6220, 1.442695
        %v6231 = vpow.pop %v6230
        %v6232 = vmul.f32 %v6221, 1.442695
        %v6233 = vpow.pop %v6232
        %v6234 = vmul.f32 %v6222, 1.442695
        %v6235 = vpow.pop %v6234
        %v6236 = vmul.f32 %v6223, 1.442695
        %v6237 = vpow.pop %v6236
        %v6238 = vmul.f32 %v6224, 1.442695
        %v6239 = vpow.pop %v6238
        %v6240 = vmul.f32 %v6225, 1.442695
        %v6241 = vpow.pop %v6240
        %v6242 = vadd.f32 %v6227, 1.0
        %v6243 = vadd.f32 %v6229, 1.0
        %v6244 = vadd.f32 %v6231, 1.0
        %v6245 = vadd.f32 %v6233, 1.0
        %v6246 = vadd.f32 %v6235, 1.0
        %v6247 = vadd.f32 %v6237, 1.0
        %v6248 = vadd.f32 %v6239, 1.0
        %v6249 = vadd.f32 %v6241, 1.0
        %v6250 = vrcp.pop %v6242
        %v6251 = vmul.f32 %v6242, %v6250
        %v6252 = vsub.f32 1.0, %v6251
        %v6253 = vmul.f32 %v6250, %v6252
        %v6254 = vadd.f32 %v6250, %v6253
        %vm6255 = vweird.f32 %v6242
        %vm6256 = vweird.f32 %v6250
        %vm6257 = vmor %vm6255, %vm6256
        %v6258 = vsel %vm6257, %v6250, %v6254
        %v6259 = vand.u32 2147483647, %v6242
        %vm6260 = vcmp.eq.f32.partialorder %v6259, 8.507059e+37
        %v6261 = vand.u32 %v6242, 2147483648
        %v6262 = vor.u32 1.1754944e-38, %v6261
        %v6263 = vsel %vm6260, %v6262, %v6258
        %v6264 = vmul.f32 1.0, %v6263
        %v6265 = vrcp.pop %v6243
        %v6266 = vmul.f32 %v6243, %v6265
        %v6267 = vsub.f32 1.0, %v6266
        %v6268 = vmul.f32 %v6265, %v6267
        %v6269 = vadd.f32 %v6265, %v6268
        %vm6270 = vweird.f32 %v6243
        %vm6271 = vweird.f32 %v6265
        %vm6272 = vmor %vm6270, %vm6271
        %v6273 = vsel %vm6272, %v6265, %v6269
        %v6274 = vand.u32 2147483647, %v6243
        %vm6275 = vcmp.eq.f32.partialorder %v6274, 8.507059e+37
        %v6276 = vand.u32 %v6243, 2147483648
        %v6277 = vor.u32 1.1754944e-38, %v6276
        %v6278 = vsel %vm6275, %v6277, %v6273
        %v6279 = vmul.f32 1.0, %v6278
        %v6280 = vrcp.pop %v6244
        %v6281 = vmul.f32 %v6244, %v6280
        %v6282 = vsub.f32 1.0, %v6281
        %v6283 = vmul.f32 %v6280, %v6282
        %v6284 = vadd.f32 %v6280, %v6283
        %vm6285 = vweird.f32 %v6244
        %vm6286 = vweird.f32 %v6280
        %vm6287 = vmor %vm6285, %vm6286
        %v6288 = vsel %vm6287, %v6280, %v6284
        %v6289 = vand.u32 2147483647, %v6244
        %vm6290 = vcmp.eq.f32.partialorder %v6289, 8.507059e+37
        %v6291 = vand.u32 %v6244, 2147483648
        %v6292 = vor.u32 1.1754944e-38, %v6291
        %v6293 = vsel %vm6290, %v6292, %v6288
        %v6294 = vmul.f32 1.0, %v6293
        %v6295 = vrcp.pop %v6245
        %v6296 = vmul.f32 %v6245, %v6295
        %v6297 = vsub.f32 1.0, %v6296
        %v6298 = vmul.f32 %v6295, %v6297
        %v6299 = vadd.f32 %v6295, %v6298
        %vm6300 = vweird.f32 %v6245
        %vm6301 = vweird.f32 %v6295
        %vm6302 = vmor %vm6300, %vm6301
        %v6303 = vsel %vm6302, %v6295, %v6299
        %v6304 = vand.u32 2147483647, %v6245
        %vm6305 = vcmp.eq.f32.partialorder %v6304, 8.507059e+37
        %v6306 = vand.u32 %v6245, 2147483648
        %v6307 = vor.u32 1.1754944e-38, %v6306
        %v6308 = vsel %vm6305, %v6307, %v6303
        %v6309 = vmul.f32 1.0, %v6308
        %v6310 = vrcp.pop %v6246
        %v6311 = vmul.f32 %v6246, %v6310
        %v6312 = vsub.f32 1.0, %v6311
        %v6313 = vmul.f32 %v6310, %v6312
        %v6314 = vadd.f32 %v6310, %v6313
        %vm6315 = vweird.f32 %v6246
        %vm6316 = vweird.f32 %v6310
        %vm6317 = vmor %vm6315, %vm6316
        %v6318 = vsel %vm6317, %v6310, %v6314
        %v6319 = vand.u32 2147483647, %v6246
        %vm6320 = vcmp.eq.f32.partialorder %v6319, 8.507059e+37
        %v6321 = vand.u32 %v6246, 2147483648
        %v6322 = vor.u32 1.1754944e-38, %v6321
        %v6323 = vsel %vm6320, %v6322, %v6318
        %v6324 = vmul.f32 1.0, %v6323
        %v6325 = vrcp.pop %v6247
        %v6326 = vmul.f32 %v6247, %v6325
        %v6327 = vsub.f32 1.0, %v6326
        %v6328 = vmul.f32 %v6325, %v6327
        %v6329 = vadd.f32 %v6325, %v6328
        %vm6330 = vweird.f32 %v6247
        %vm6331 = vweird.f32 %v6325
        %vm6332 = vmor %vm6330, %vm6331
        %v6333 = vsel %vm6332, %v6325, %v6329
        %v6334 = vand.u32 2147483647, %v6247
        %vm6335 = vcmp.eq.f32.partialorder %v6334, 8.507059e+37
        %v6336 = vand.u32 %v6247, 2147483648
        %v6337 = vor.u32 1.1754944e-38, %v6336
        %v6338 = vsel %vm6335, %v6337, %v6333
        %v6339 = vmul.f32 1.0, %v6338
        %v6340 = vrcp.pop %v6248
        %v6341 = vmul.f32 %v6248, %v6340
        %v6342 = vsub.f32 1.0, %v6341
        %v6343 = vmul.f32 %v6340, %v6342
        %v6344 = vadd.f32 %v6340, %v6343
        %vm6345 = vweird.f32 %v6248
        %vm6346 = vweird.f32 %v6340
        %vm6347 = vmor %vm6345, %vm6346
        %v6348 = vsel %vm6347, %v6340, %v6344
        %v6349 = vand.u32 2147483647, %v6248
        %vm6350 = vcmp.eq.f32.partialorder %v6349, 8.507059e+37
        %v6351 = vand.u32 %v6248, 2147483648
        %v6352 = vor.u32 1.1754944e-38, %v6351
        %v6353 = vsel %vm6350, %v6352, %v6348
        %v6354 = vmul.f32 1.0, %v6353
        %v6355 = vrcp.pop %v6249
        %v6356 = vmul.f32 %v6249, %v6355
        %v6357 = vsub.f32 1.0, %v6356
        %v6358 = vmul.f32 %v6355, %v6357
        %v6359 = vadd.f32 %v6355, %v6358
        %vm6360 = vweird.f32 %v6249
        %vm6361 = vweird.f32 %v6355
        %vm6362 = vmor %vm6360, %vm6361
        %v6363 = vsel %vm6362, %v6355, %v6359
        %v6364 = vand.u32 2147483647, %v6249
        %vm6365 = vcmp.eq.f32.partialorder %v6364, 8.507059e+37
        %v6366 = vand.u32 %v6249, 2147483648
        %v6367 = vor.u32 1.1754944e-38, %v6366
        %v6368 = vsel %vm6365, %v6367, %v6363
        %v6369 = vmul.f32 1.0, %v6368
        %v6370 = vtanh.pop %v6210
        %v6371 = vtanh.pop %v6211
        %v6372 = vtanh.pop %v6212
        %v6373 = vtanh.pop %v6213
        %v6374 = vtanh.pop %v6214
        %v6375 = vtanh.pop %v6215
        %v6376 = vtanh.pop %v6216
        %v6377 = vtanh.pop %v6217
        %v6386 = vrot.slane %v6060, 7
        %v6387 = vrot.slane %v6061, 7
        %v6388 = vrot.slane %v6062, 7
        %v6389 = vrot.slane %v6063, 7
        %v6390 = vrot.slane %v6064, 7
        %v6391 = vrot.slane %v6065, 7
        %v6392 = vrot.slane %v6066, 7
        %v6393 = vrot.slane %v6067, 7
        %v6402 = vmul.f32 %v6264, %v6386
        %v6403 = vmul.f32 %v6279, %v6387
        %v6404 = vmul.f32 %v6294, %v6388
        %v6405 = vmul.f32 %v6309, %v6389
        %v6406 = vmul.f32 %v6324, %v6390
        %v6407 = vmul.f32 %v6339, %v6391
        %v6408 = vmul.f32 %v6354, %v6392
        %v6409 = vmul.f32 %v6369, %v6393
        %6418 = vrot.lane.b32.xlu0 %v6370, 32
        %v6419 = vpop.permute.xlu0 %6418
        %6420 = vrot.lane.b32.xlu0 %v6371, 32
        %v6421 = vpop.permute.xlu0 %6420
        %6422 = vrot.lane.b32.xlu0 %v6372, 32
        %v6423 = vpop.permute.xlu0 %6422
        %6424 = vrot.lane.b32.xlu0 %v6373, 32
        %v6425 = vpop.permute.xlu0 %6424
        %6426 = vrot.lane.b32.xlu0 %v6374, 32
        %v6427 = vpop.permute.xlu0 %6426
        %6428 = vrot.lane.b32.xlu0 %v6375, 32
        %v6429 = vpop.permute.xlu0 %6428
        %6430 = vrot.lane.b32.xlu0 %v6376, 32
        %v6431 = vpop.permute.xlu0 %6430
        %6432 = vrot.lane.b32.xlu0 %v6377, 32
        %v6433 = vpop.permute.xlu0 %6432
        %v6442 = vmul.f32 %v6264, %v6419
        %v6443 = vmul.f32 %v6279, %v6421
        %v6444 = vmul.f32 %v6294, %v6423
        %v6445 = vmul.f32 %v6309, %v6425
        %v6446 = vmul.f32 %v6324, %v6427
        %v6447 = vmul.f32 %v6339, %v6429
        %v6448 = vmul.f32 %v6354, %v6431
        %v6449 = vmul.f32 %v6369, %v6433
        %6458 = vrot.lane.b32.xlu0 %v6442, 32
        %v6459 = vpop.permute.xlu0 %6458
        %6460 = vrot.lane.b32.xlu0 %v6443, 32
        %v6461 = vpop.permute.xlu0 %6460
        %6462 = vrot.lane.b32.xlu0 %v6444, 32
        %v6463 = vpop.permute.xlu0 %6462
        %6464 = vrot.lane.b32.xlu0 %v6445, 32
        %v6465 = vpop.permute.xlu0 %6464
        %6466 = vrot.lane.b32.xlu0 %v6446, 32
        %v6467 = vpop.permute.xlu0 %6466
        %6468 = vrot.lane.b32.xlu0 %v6447, 32
        %v6469 = vpop.permute.xlu0 %6468
        %6470 = vrot.lane.b32.xlu0 %v6448, 32
        %v6471 = vpop.permute.xlu0 %6470
        %6472 = vrot.lane.b32.xlu0 %v6449, 32
        %v6473 = vpop.permute.xlu0 %6472
        %v6482 = vadd.f32 %v6402, %v6459
        %v6483 = vadd.f32 %v6403, %v6461
        %v6484 = vadd.f32 %v6404, %v6463
        %v6485 = vadd.f32 %v6405, %v6465
        %v6486 = vadd.f32 %v6406, %v6467
        %v6487 = vadd.f32 %v6407, %v6469
        %v6488 = vadd.f32 %v6408, %v6471
        %v6489 = vadd.f32 %v6409, %v6473
        %v6490 = vtanh.pop %v6482
        %v6491 = vtanh.pop %v6483
        %v6492 = vtanh.pop %v6484
        %v6493 = vtanh.pop %v6485
        %v6494 = vtanh.pop %v6486
        %v6495 = vtanh.pop %v6487
        %v6496 = vtanh.pop %v6488
        %v6497 = vtanh.pop %v6489
        %6506 = vrot.lane.b32.xlu0 %v6490, 32
        %v6507 = vpop.permute.xlu0 %6506
        %6508 = vrot.lane.b32.xlu0 %v6491, 32
        %v6509 = vpop.permute.xlu0 %6508
        %6510 = vrot.lane.b32.xlu0 %v6492, 32
        %v6511 = vpop.permute.xlu0 %6510
        %6512 = vrot.lane.b32.xlu0 %v6493, 32
        %v6513 = vpop.permute.xlu0 %6512
        %6514 = vrot.lane.b32.xlu0 %v6494, 32
        %v6515 = vpop.permute.xlu0 %6514
        %6516 = vrot.lane.b32.xlu0 %v6495, 32
        %v6517 = vpop.permute.xlu0 %6516
        %6518 = vrot.lane.b32.xlu0 %v6496, 32
        %v6519 = vpop.permute.xlu0 %6518
        %6520 = vrot.lane.b32.xlu0 %v6497, 32
        %v6521 = vpop.permute.xlu0 %6520
        %v6530 = vmul.f32 %v6264, %v6507
        %v6531 = vmul.f32 %v6279, %v6509
        %v6532 = vmul.f32 %v6294, %v6511
        %v6533 = vmul.f32 %v6309, %v6513
        %v6534 = vmul.f32 %v6324, %v6515
        %v6535 = vmul.f32 %v6339, %v6517
        %v6536 = vmul.f32 %v6354, %v6519
        %v6537 = vmul.f32 %v6369, %v6521
        %6546 = vrot.lane.b32.xlu0 %v6530, 64
        %v6547 = vpop.permute.xlu0 %6546
        %6548 = vrot.lane.b32.xlu0 %v6531, 64
        %v6549 = vpop.permute.xlu0 %6548
        %6550 = vrot.lane.b32.xlu0 %v6532, 64
        %v6551 = vpop.permute.xlu0 %6550
        %6552 = vrot.lane.b32.xlu0 %v6533, 64
        %v6553 = vpop.permute.xlu0 %6552
        %6554 = vrot.lane.b32.xlu0 %v6534, 64
        %v6555 = vpop.permute.xlu0 %6554
        %6556 = vrot.lane.b32.xlu0 %v6535, 64
        %v6557 = vpop.permute.xlu0 %6556
        %6558 = vrot.lane.b32.xlu0 %v6536, 64
        %v6559 = vpop.permute.xlu0 %6558
        %6560 = vrot.lane.b32.xlu0 %v6537, 64
        %v6561 = vpop.permute.xlu0 %6560
        %6570 = vst.msk [vmem:[#allocation4] sm:$0x20] %vm3061, %v6547
        %6571 = vst.msk [vmem:[#allocation4 + $0x8] sm:$0x20] %vm3061, %v6549
        %6572 = vst.msk [vmem:[#allocation4 + $0x10] sm:$0x20] %vm3061, %v6551
        %6573 = vst.msk [vmem:[#allocation4 + $0x18] sm:$0x20] %vm3061, %v6553
        %6574 = vst.msk [vmem:[#allocation4 + $0x20] sm:$0x20] %vm3061, %v6555
        %6575 = vst.msk [vmem:[#allocation4 + $0x28] sm:$0x20] %vm3061, %v6557
        %6576 = vst.msk [vmem:[#allocation4 + $0x30] sm:$0x20] %vm3061, %v6559
        %6577 = vst.msk [vmem:[#allocation4 + $0x38] sm:$0x20] %vm3061, %v6561
        %v6578 = vrot.slane %v6530, 5
        %v6579 = vrot.slane %v6531, 4
        %v6580 = vsel %vm949, %v6579, %v6578
        %v6581 = vrot.slane %v6532, 3
        %v6582 = vsel %vm952, %v6581, %v6580
        %v6583 = vrot.slane %v6533, 2
        %v6584 = vsel %vm955, %v6583, %v6582
        %v6585 = vrot.slane %v6534, 1
        %v6586 = vsel %vm958, %v6585, %v6584
        %v6587 = vsel %vm961, %v6535, %v6586
        %v6588 = vrot.slane %v6536, 7
        %v6589 = vsel %vm964, %v6588, %v6587
        %v6590 = vrot.slane %v6537, 6
        %v6591 = vsel %vm967, %v6590, %v6589
        %6592 = vrot.lane.b32.xlu0 %v6591, 64
        %v6593 = vpop.permute.xlu0 %6592
        %v6594 = vsel %vm464, %v6593, 0
        %6596 = vmatpush.msra.mxu0 0.0
        %6597 = vmatpush.msra.mxu0 0.0
        %6598 = vmatpush.msra.mxu0 0.0
        %6599 = vmatpush.msra.mxu0 0.0
        %6600 = vmatpush.msra.mxu0 0.0
        %6601 = vmatpush.msra.mxu0 0.0
        %6602 = vmatpush.msra.mxu0 0.0
        %6603 = vmatpush.msra.mxu0 0.0
        %6604 = vmatpush.msra.mxu0 0.0
        %6605 = vmatpush.msra.mxu0 0.0
        %6606 = vmatpush.msra.mxu0 0.0
        %6607 = vmatpush.msra.mxu0 0.0
        %6608 = vmatpush.msra.mxu0 %v3979
        %6609 = vmatpush.msra.mxu0 %v3978
        %6610 = vmatpush.msra.mxu0 %v3977
        %6611 = vmatpush.msra.mxu0 %v3976
        %6612 = vmatmul.f32.gmra.mxu0 %v6594
        %v6613 = vpop.f32.mrf.mxu0
        %v6614 = vadd.f32 0.0, %v6613
        %6615 = vdwg.mxu0
        %v6617 = vrot.slane %v6614, 2
        %v6618 = vrot.slane %v6614, 3
        %v6619 = vrot.slane %v6614, 4
        %v6620 = vrot.slane %v6614, 5
        %v6621 = vrot.slane %v6614, 6
        %v6622 = vrot.slane %v6614, 7
        %v6623 = vrot.slane %v6614, 1
        %v6632 = vadd.f32 %v4026, %v6617
        %v6633 = vadd.f32 %v4029, %v6618
        %v6634 = vadd.f32 %v4032, %v6619
        %v6635 = vadd.f32 %v4035, %v6620
        %v6636 = vadd.f32 %v4038, %v6621
        %v6637 = vadd.f32 %v4041, %v6622
        %v6638 = vadd.f32 %v4044, %v6614
        %v6639 = vadd.f32 %v4047, %v6623
        %v6640 = vxor.u32 %v6632, 2147483648
        %v6641 = vxor.u32 %v6633, 2147483648
        %v6642 = vxor.u32 %v6634, 2147483648
        %v6643 = vxor.u32 %v6635, 2147483648
        %v6644 = vxor.u32 %v6636, 2147483648
        %v6645 = vxor.u32 %v6637, 2147483648
        %v6646 = vxor.u32 %v6638, 2147483648
        %v6647 = vxor.u32 %v6639, 2147483648
        %v6648 = vmul.f32 %v6640, 1.442695
        %v6649 = vpow.pop %v6648
        %v6650 = vmul.f32 %v6641, 1.442695
        %v6651 = vpow.pop %v6650
        %v6652 = vmul.f32 %v6642, 1.442695
        %v6653 = vpow.pop %v6652
        %v6654 = vmul.f32 %v6643, 1.442695
        %v6655 = vpow.pop %v6654
        %v6656 = vmul.f32 %v6644, 1.442695
        %v6657 = vpow.pop %v6656
        %v6658 = vmul.f32 %v6645, 1.442695
        %v6659 = vpow.pop %v6658
        %v6660 = vmul.f32 %v6646, 1.442695
        %v6661 = vpow.pop %v6660
        %v6662 = vmul.f32 %v6647, 1.442695
        %v6663 = vpow.pop %v6662
        %v6664 = vadd.f32 %v6649, 1.0
        %v6665 = vadd.f32 %v6651, 1.0
        %v6666 = vadd.f32 %v6653, 1.0
        %v6667 = vadd.f32 %v6655, 1.0
        %v6668 = vadd.f32 %v6657, 1.0
        %v6669 = vadd.f32 %v6659, 1.0
        %v6670 = vadd.f32 %v6661, 1.0
        %v6671 = vadd.f32 %v6663, 1.0
        %v6672 = vrcp.pop %v6664
        %v6673 = vmul.f32 %v6664, %v6672
        %v6674 = vsub.f32 1.0, %v6673
        %v6675 = vmul.f32 %v6672, %v6674
        %v6676 = vadd.f32 %v6672, %v6675
        %vm6677 = vweird.f32 %v6664
        %vm6678 = vweird.f32 %v6672
        %vm6679 = vmor %vm6677, %vm6678
        %v6680 = vsel %vm6679, %v6672, %v6676
        %v6681 = vand.u32 2147483647, %v6664
        %vm6682 = vcmp.eq.f32.partialorder %v6681, 8.507059e+37
        %v6683 = vand.u32 %v6664, 2147483648
        %v6684 = vor.u32 1.1754944e-38, %v6683
        %v6685 = vsel %vm6682, %v6684, %v6680
        %v6686 = vmul.f32 1.0, %v6685
        %v6687 = vrcp.pop %v6665
        %v6688 = vmul.f32 %v6665, %v6687
        %v6689 = vsub.f32 1.0, %v6688
        %v6690 = vmul.f32 %v6687, %v6689
        %v6691 = vadd.f32 %v6687, %v6690
        %vm6692 = vweird.f32 %v6665
        %vm6693 = vweird.f32 %v6687
        %vm6694 = vmor %vm6692, %vm6693
        %v6695 = vsel %vm6694, %v6687, %v6691
        %v6696 = vand.u32 2147483647, %v6665
        %vm6697 = vcmp.eq.f32.partialorder %v6696, 8.507059e+37
        %v6698 = vand.u32 %v6665, 2147483648
        %v6699 = vor.u32 1.1754944e-38, %v6698
        %v6700 = vsel %vm6697, %v6699, %v6695
        %v6701 = vmul.f32 1.0, %v6700
        %v6702 = vrcp.pop %v6666
        %v6703 = vmul.f32 %v6666, %v6702
        %v6704 = vsub.f32 1.0, %v6703
        %v6705 = vmul.f32 %v6702, %v6704
        %v6706 = vadd.f32 %v6702, %v6705
        %vm6707 = vweird.f32 %v6666
        %vm6708 = vweird.f32 %v6702
        %vm6709 = vmor %vm6707, %vm6708
        %v6710 = vsel %vm6709, %v6702, %v6706
        %v6711 = vand.u32 2147483647, %v6666
        %vm6712 = vcmp.eq.f32.partialorder %v6711, 8.507059e+37
        %v6713 = vand.u32 %v6666, 2147483648
        %v6714 = vor.u32 1.1754944e-38, %v6713
        %v6715 = vsel %vm6712, %v6714, %v6710
        %v6716 = vmul.f32 1.0, %v6715
        %v6717 = vrcp.pop %v6667
        %v6718 = vmul.f32 %v6667, %v6717
        %v6719 = vsub.f32 1.0, %v6718
        %v6720 = vmul.f32 %v6717, %v6719
        %v6721 = vadd.f32 %v6717, %v6720
        %vm6722 = vweird.f32 %v6667
        %vm6723 = vweird.f32 %v6717
        %vm6724 = vmor %vm6722, %vm6723
        %v6725 = vsel %vm6724, %v6717, %v6721
        %v6726 = vand.u32 2147483647, %v6667
        %vm6727 = vcmp.eq.f32.partialorder %v6726, 8.507059e+37
        %v6728 = vand.u32 %v6667, 2147483648
        %v6729 = vor.u32 1.1754944e-38, %v6728
        %v6730 = vsel %vm6727, %v6729, %v6725
        %v6731 = vmul.f32 1.0, %v6730
        %v6732 = vrcp.pop %v6668
        %v6733 = vmul.f32 %v6668, %v6732
        %v6734 = vsub.f32 1.0, %v6733
        %v6735 = vmul.f32 %v6732, %v6734
        %v6736 = vadd.f32 %v6732, %v6735
        %vm6737 = vweird.f32 %v6668
        %vm6738 = vweird.f32 %v6732
        %vm6739 = vmor %vm6737, %vm6738
        %v6740 = vsel %vm6739, %v6732, %v6736
        %v6741 = vand.u32 2147483647, %v6668
        %vm6742 = vcmp.eq.f32.partialorder %v6741, 8.507059e+37
        %v6743 = vand.u32 %v6668, 2147483648
        %v6744 = vor.u32 1.1754944e-38, %v6743
        %v6745 = vsel %vm6742, %v6744, %v6740
        %v6746 = vmul.f32 1.0, %v6745
        %v6747 = vrcp.pop %v6669
        %v6748 = vmul.f32 %v6669, %v6747
        %v6749 = vsub.f32 1.0, %v6748
        %v6750 = vmul.f32 %v6747, %v6749
        %v6751 = vadd.f32 %v6747, %v6750
        %vm6752 = vweird.f32 %v6669
        %vm6753 = vweird.f32 %v6747
        %vm6754 = vmor %vm6752, %vm6753
        %v6755 = vsel %vm6754, %v6747, %v6751
        %v6756 = vand.u32 2147483647, %v6669
        %vm6757 = vcmp.eq.f32.partialorder %v6756, 8.507059e+37
        %v6758 = vand.u32 %v6669, 2147483648
        %v6759 = vor.u32 1.1754944e-38, %v6758
        %v6760 = vsel %vm6757, %v6759, %v6755
        %v6761 = vmul.f32 1.0, %v6760
        %v6762 = vrcp.pop %v6670
        %v6763 = vmul.f32 %v6670, %v6762
        %v6764 = vsub.f32 1.0, %v6763
        %v6765 = vmul.f32 %v6762, %v6764
        %v6766 = vadd.f32 %v6762, %v6765
        %vm6767 = vweird.f32 %v6670
        %vm6768 = vweird.f32 %v6762
        %vm6769 = vmor %vm6767, %vm6768
        %v6770 = vsel %vm6769, %v6762, %v6766
        %v6771 = vand.u32 2147483647, %v6670
        %vm6772 = vcmp.eq.f32.partialorder %v6771, 8.507059e+37
        %v6773 = vand.u32 %v6670, 2147483648
        %v6774 = vor.u32 1.1754944e-38, %v6773
        %v6775 = vsel %vm6772, %v6774, %v6770
        %v6776 = vmul.f32 1.0, %v6775
        %v6777 = vrcp.pop %v6671
        %v6778 = vmul.f32 %v6671, %v6777
        %v6779 = vsub.f32 1.0, %v6778
        %v6780 = vmul.f32 %v6777, %v6779
        %v6781 = vadd.f32 %v6777, %v6780
        %vm6782 = vweird.f32 %v6671
        %vm6783 = vweird.f32 %v6777
        %vm6784 = vmor %vm6782, %vm6783
        %v6785 = vsel %vm6784, %v6777, %v6781
        %v6786 = vand.u32 2147483647, %v6671
        %vm6787 = vcmp.eq.f32.partialorder %v6786, 8.507059e+37
        %v6788 = vand.u32 %v6671, 2147483648
        %v6789 = vor.u32 1.1754944e-38, %v6788
        %v6790 = vsel %vm6787, %v6789, %v6785
        %v6791 = vmul.f32 1.0, %v6790
        %v6792 = vtanh.pop %v6632
        %v6793 = vtanh.pop %v6633
        %v6794 = vtanh.pop %v6634
        %v6795 = vtanh.pop %v6635
        %v6796 = vtanh.pop %v6636
        %v6797 = vtanh.pop %v6637
        %v6798 = vtanh.pop %v6638
        %v6799 = vtanh.pop %v6639
        %v6808 = vrot.slane %v6482, 7
        %v6809 = vrot.slane %v6483, 7
        %v6810 = vrot.slane %v6484, 7
        %v6811 = vrot.slane %v6485, 7
        %v6812 = vrot.slane %v6486, 7
        %v6813 = vrot.slane %v6487, 7
        %v6814 = vrot.slane %v6488, 7
        %v6815 = vrot.slane %v6489, 7
        %v6824 = vmul.f32 %v6686, %v6808
        %v6825 = vmul.f32 %v6701, %v6809
        %v6826 = vmul.f32 %v6716, %v6810
        %v6827 = vmul.f32 %v6731, %v6811
        %v6828 = vmul.f32 %v6746, %v6812
        %v6829 = vmul.f32 %v6761, %v6813
        %v6830 = vmul.f32 %v6776, %v6814
        %v6831 = vmul.f32 %v6791, %v6815
        %6840 = vrot.lane.b32.xlu0 %v6792, 32
        %v6841 = vpop.permute.xlu0 %6840
        %6842 = vrot.lane.b32.xlu0 %v6793, 32
        %v6843 = vpop.permute.xlu0 %6842
        %6844 = vrot.lane.b32.xlu0 %v6794, 32
        %v6845 = vpop.permute.xlu0 %6844
        %6846 = vrot.lane.b32.xlu0 %v6795, 32
        %v6847 = vpop.permute.xlu0 %6846
        %6848 = vrot.lane.b32.xlu0 %v6796, 32
        %v6849 = vpop.permute.xlu0 %6848
        %6850 = vrot.lane.b32.xlu0 %v6797, 32
        %v6851 = vpop.permute.xlu0 %6850
        %6852 = vrot.lane.b32.xlu0 %v6798, 32
        %v6853 = vpop.permute.xlu0 %6852
        %6854 = vrot.lane.b32.xlu0 %v6799, 32
        %v6855 = vpop.permute.xlu0 %6854
        %v6864 = vmul.f32 %v6686, %v6841
        %v6865 = vmul.f32 %v6701, %v6843
        %v6866 = vmul.f32 %v6716, %v6845
        %v6867 = vmul.f32 %v6731, %v6847
        %v6868 = vmul.f32 %v6746, %v6849
        %v6869 = vmul.f32 %v6761, %v6851
        %v6870 = vmul.f32 %v6776, %v6853
        %v6871 = vmul.f32 %v6791, %v6855
        %6880 = vrot.lane.b32.xlu0 %v6864, 32
        %v6881 = vpop.permute.xlu0 %6880
        %6882 = vrot.lane.b32.xlu0 %v6865, 32
        %v6883 = vpop.permute.xlu0 %6882
        %6884 = vrot.lane.b32.xlu0 %v6866, 32
        %v6885 = vpop.permute.xlu0 %6884
        %6886 = vrot.lane.b32.xlu0 %v6867, 32
        %v6887 = vpop.permute.xlu0 %6886
        %6888 = vrot.lane.b32.xlu0 %v6868, 32
        %v6889 = vpop.permute.xlu0 %6888
        %6890 = vrot.lane.b32.xlu0 %v6869, 32
        %v6891 = vpop.permute.xlu0 %6890
        %6892 = vrot.lane.b32.xlu0 %v6870, 32
        %v6893 = vpop.permute.xlu0 %6892
        %6894 = vrot.lane.b32.xlu0 %v6871, 32
        %v6895 = vpop.permute.xlu0 %6894
        %v6904 = vadd.f32 %v6824, %v6881
        %v6905 = vadd.f32 %v6825, %v6883
        %v6906 = vadd.f32 %v6826, %v6885
        %v6907 = vadd.f32 %v6827, %v6887
        %v6908 = vadd.f32 %v6828, %v6889
        %v6909 = vadd.f32 %v6829, %v6891
        %v6910 = vadd.f32 %v6830, %v6893
        %v6911 = vadd.f32 %v6831, %v6895
        %v6912 = vtanh.pop %v6904
        %v6913 = vtanh.pop %v6905
        %v6914 = vtanh.pop %v6906
        %v6915 = vtanh.pop %v6907
        %v6916 = vtanh.pop %v6908
        %v6917 = vtanh.pop %v6909
        %v6918 = vtanh.pop %v6910
        %v6919 = vtanh.pop %v6911
        %6928 = vrot.lane.b32.xlu0 %v6912, 32
        %v6929 = vpop.permute.xlu0 %6928
        %6930 = vrot.lane.b32.xlu0 %v6913, 32
        %v6931 = vpop.permute.xlu0 %6930
        %6932 = vrot.lane.b32.xlu0 %v6914, 32
        %v6933 = vpop.permute.xlu0 %6932
        %6934 = vrot.lane.b32.xlu0 %v6915, 32
        %v6935 = vpop.permute.xlu0 %6934
        %6936 = vrot.lane.b32.xlu0 %v6916, 32
        %v6937 = vpop.permute.xlu0 %6936
        %6938 = vrot.lane.b32.xlu0 %v6917, 32
        %v6939 = vpop.permute.xlu0 %6938
        %6940 = vrot.lane.b32.xlu0 %v6918, 32
        %v6941 = vpop.permute.xlu0 %6940
        %6942 = vrot.lane.b32.xlu0 %v6919, 32
        %v6943 = vpop.permute.xlu0 %6942
        %v6952 = vmul.f32 %v6686, %v6929
        %v6953 = vmul.f32 %v6701, %v6931
        %v6954 = vmul.f32 %v6716, %v6933
        %v6955 = vmul.f32 %v6731, %v6935
        %v6956 = vmul.f32 %v6746, %v6937
        %v6957 = vmul.f32 %v6761, %v6939
        %v6958 = vmul.f32 %v6776, %v6941
        %v6959 = vmul.f32 %v6791, %v6943
        %6968 = vrot.lane.b32.xlu0 %v6952, 64
        %v6969 = vpop.permute.xlu0 %6968
        %6970 = vrot.lane.b32.xlu0 %v6953, 64
        %v6971 = vpop.permute.xlu0 %6970
        %6972 = vrot.lane.b32.xlu0 %v6954, 64
        %v6973 = vpop.permute.xlu0 %6972
        %6974 = vrot.lane.b32.xlu0 %v6955, 64
        %v6975 = vpop.permute.xlu0 %6974
        %6976 = vrot.lane.b32.xlu0 %v6956, 64
        %v6977 = vpop.permute.xlu0 %6976
        %6978 = vrot.lane.b32.xlu0 %v6957, 64
        %v6979 = vpop.permute.xlu0 %6978
        %6980 = vrot.lane.b32.xlu0 %v6958, 64
        %v6981 = vpop.permute.xlu0 %6980
        %6982 = vrot.lane.b32.xlu0 %v6959, 64
        %v6983 = vpop.permute.xlu0 %6982
        %6992 = vst.msk [vmem:[#allocation4] sm:$0x40] %vm3484, %v6969
        %6993 = vst.msk [vmem:[#allocation4 + $0x8] sm:$0x40] %vm3484, %v6971
        %6994 = vst.msk [vmem:[#allocation4 + $0x10] sm:$0x40] %vm3484, %v6973
        %6995 = vst.msk [vmem:[#allocation4 + $0x18] sm:$0x40] %vm3484, %v6975
        %6996 = vst.msk [vmem:[#allocation4 + $0x20] sm:$0x40] %vm3484, %v6977
        %6997 = vst.msk [vmem:[#allocation4 + $0x28] sm:$0x40] %vm3484, %v6979
        %6998 = vst.msk [vmem:[#allocation4 + $0x30] sm:$0x40] %vm3484, %v6981
        %6999 = vst.msk [vmem:[#allocation4 + $0x38] sm:$0x40] %vm3484, %v6983
        %v7000 = vrot.slane %v6952, 6
        %v7001 = vrot.slane %v6953, 5
        %v7002 = vsel %vm949, %v7001, %v7000
        %v7003 = vrot.slane %v6954, 4
        %v7004 = vsel %vm952, %v7003, %v7002
        %v7005 = vrot.slane %v6955, 3
        %v7006 = vsel %vm955, %v7005, %v7004
        %v7007 = vrot.slane %v6956, 2
        %v7008 = vsel %vm958, %v7007, %v7006
        %v7009 = vrot.slane %v6957, 1
        %v7010 = vsel %vm961, %v7009, %v7008
        %v7011 = vsel %vm964, %v6958, %v7010
        %v7012 = vrot.slane %v6959, 7
        %v7013 = vsel %vm967, %v7012, %v7011
        %7014 = vrot.lane.b32.xlu0 %v7013, 64
        %v7015 = vpop.permute.xlu0 %7014
        %v7016 = vsel %vm464, %v7015, 0
        %7018 = vmatpush.msra.mxu0 0.0
        %7019 = vmatpush.msra.mxu0 0.0
        %7020 = vmatpush.msra.mxu0 0.0
        %7021 = vmatpush.msra.mxu0 0.0
        %7022 = vmatpush.msra.mxu0 0.0
        %7023 = vmatpush.msra.mxu0 0.0
        %7024 = vmatpush.msra.mxu0 0.0
        %7025 = vmatpush.msra.mxu0 0.0
        %7026 = vmatpush.msra.mxu0 0.0
        %7027 = vmatpush.msra.mxu0 0.0
        %7028 = vmatpush.msra.mxu0 0.0
        %7029 = vmatpush.msra.mxu0 0.0
        %7030 = vmatpush.msra.mxu0 %v3979
        %7031 = vmatpush.msra.mxu0 %v3978
        %7032 = vmatpush.msra.mxu0 %v3977
        %7033 = vmatpush.msra.mxu0 %v3976
        %7034 = vmatmul.f32.gmra.mxu0 %v7016
        %v7035 = vpop.f32.mrf.mxu0
        %v7036 = vadd.f32 0.0, %v7035
        %7037 = vdwg.mxu0
        %v7039 = vrot.slane %v7036, 1
        %v7040 = vrot.slane %v7036, 2
        %v7041 = vrot.slane %v7036, 3
        %v7042 = vrot.slane %v7036, 4
        %v7043 = vrot.slane %v7036, 5
        %v7044 = vrot.slane %v7036, 6
        %v7045 = vrot.slane %v7036, 7
        %v7054 = vadd.f32 %v4026, %v7039
        %v7055 = vadd.f32 %v4029, %v7040
        %v7056 = vadd.f32 %v4032, %v7041
        %v7057 = vadd.f32 %v4035, %v7042
        %v7058 = vadd.f32 %v4038, %v7043
        %v7059 = vadd.f32 %v4041, %v7044
        %v7060 = vadd.f32 %v4044, %v7045
        %v7061 = vadd.f32 %v4047, %v7036
        %v7062 = vxor.u32 %v7054, 2147483648
        %v7063 = vxor.u32 %v7055, 2147483648
        %v7064 = vxor.u32 %v7056, 2147483648
        %v7065 = vxor.u32 %v7057, 2147483648
        %v7066 = vxor.u32 %v7058, 2147483648
        %v7067 = vxor.u32 %v7059, 2147483648
        %v7068 = vxor.u32 %v7060, 2147483648
        %v7069 = vxor.u32 %v7061, 2147483648
        %v7070 = vmul.f32 %v7062, 1.442695
        %v7071 = vpow.pop %v7070
        %v7072 = vmul.f32 %v7063, 1.442695
        %v7073 = vpow.pop %v7072
        %v7074 = vmul.f32 %v7064, 1.442695
        %v7075 = vpow.pop %v7074
        %v7076 = vmul.f32 %v7065, 1.442695
        %v7077 = vpow.pop %v7076
        %v7078 = vmul.f32 %v7066, 1.442695
        %v7079 = vpow.pop %v7078
        %v7080 = vmul.f32 %v7067, 1.442695
        %v7081 = vpow.pop %v7080
        %v7082 = vmul.f32 %v7068, 1.442695
        %v7083 = vpow.pop %v7082
        %v7084 = vmul.f32 %v7069, 1.442695
        %v7085 = vpow.pop %v7084
        %v7086 = vadd.f32 %v7071, 1.0
        %v7087 = vadd.f32 %v7073, 1.0
        %v7088 = vadd.f32 %v7075, 1.0
        %v7089 = vadd.f32 %v7077, 1.0
        %v7090 = vadd.f32 %v7079, 1.0
        %v7091 = vadd.f32 %v7081, 1.0
        %v7092 = vadd.f32 %v7083, 1.0
        %v7093 = vadd.f32 %v7085, 1.0
        %v7094 = vrcp.pop %v7086
        %v7095 = vmul.f32 %v7086, %v7094
        %v7096 = vsub.f32 1.0, %v7095
        %v7097 = vmul.f32 %v7094, %v7096
        %v7098 = vadd.f32 %v7094, %v7097
        %vm7099 = vweird.f32 %v7086
        %vm7100 = vweird.f32 %v7094
        %vm7101 = vmor %vm7099, %vm7100
        %v7102 = vsel %vm7101, %v7094, %v7098
        %v7103 = vand.u32 2147483647, %v7086
        %vm7104 = vcmp.eq.f32.partialorder %v7103, 8.507059e+37
        %v7105 = vand.u32 %v7086, 2147483648
        %v7106 = vor.u32 1.1754944e-38, %v7105
        %v7107 = vsel %vm7104, %v7106, %v7102
        %v7108 = vmul.f32 1.0, %v7107
        %v7109 = vrcp.pop %v7087
        %v7110 = vmul.f32 %v7087, %v7109
        %v7111 = vsub.f32 1.0, %v7110
        %v7112 = vmul.f32 %v7109, %v7111
        %v7113 = vadd.f32 %v7109, %v7112
        %vm7114 = vweird.f32 %v7087
        %vm7115 = vweird.f32 %v7109
        %vm7116 = vmor %vm7114, %vm7115
        %v7117 = vsel %vm7116, %v7109, %v7113
        %v7118 = vand.u32 2147483647, %v7087
        %vm7119 = vcmp.eq.f32.partialorder %v7118, 8.507059e+37
        %v7120 = vand.u32 %v7087, 2147483648
        %v7121 = vor.u32 1.1754944e-38, %v7120
        %v7122 = vsel %vm7119, %v7121, %v7117
        %v7123 = vmul.f32 1.0, %v7122
        %v7124 = vrcp.pop %v7088
        %v7125 = vmul.f32 %v7088, %v7124
        %v7126 = vsub.f32 1.0, %v7125
        %v7127 = vmul.f32 %v7124, %v7126
        %v7128 = vadd.f32 %v7124, %v7127
        %vm7129 = vweird.f32 %v7088
        %vm7130 = vweird.f32 %v7124
        %vm7131 = vmor %vm7129, %vm7130
        %v7132 = vsel %vm7131, %v7124, %v7128
        %v7133 = vand.u32 2147483647, %v7088
        %vm7134 = vcmp.eq.f32.partialorder %v7133, 8.507059e+37
        %v7135 = vand.u32 %v7088, 2147483648
        %v7136 = vor.u32 1.1754944e-38, %v7135
        %v7137 = vsel %vm7134, %v7136, %v7132
        %v7138 = vmul.f32 1.0, %v7137
        %v7139 = vrcp.pop %v7089
        %v7140 = vmul.f32 %v7089, %v7139
        %v7141 = vsub.f32 1.0, %v7140
        %v7142 = vmul.f32 %v7139, %v7141
        %v7143 = vadd.f32 %v7139, %v7142
        %vm7144 = vweird.f32 %v7089
        %vm7145 = vweird.f32 %v7139
        %vm7146 = vmor %vm7144, %vm7145
        %v7147 = vsel %vm7146, %v7139, %v7143
        %v7148 = vand.u32 2147483647, %v7089
        %vm7149 = vcmp.eq.f32.partialorder %v7148, 8.507059e+37
        %v7150 = vand.u32 %v7089, 2147483648
        %v7151 = vor.u32 1.1754944e-38, %v7150
        %v7152 = vsel %vm7149, %v7151, %v7147
        %v7153 = vmul.f32 1.0, %v7152
        %v7154 = vrcp.pop %v7090
        %v7155 = vmul.f32 %v7090, %v7154
        %v7156 = vsub.f32 1.0, %v7155
        %v7157 = vmul.f32 %v7154, %v7156
        %v7158 = vadd.f32 %v7154, %v7157
        %vm7159 = vweird.f32 %v7090
        %vm7160 = vweird.f32 %v7154
        %vm7161 = vmor %vm7159, %vm7160
        %v7162 = vsel %vm7161, %v7154, %v7158
        %v7163 = vand.u32 2147483647, %v7090
        %vm7164 = vcmp.eq.f32.partialorder %v7163, 8.507059e+37
        %v7165 = vand.u32 %v7090, 2147483648
        %v7166 = vor.u32 1.1754944e-38, %v7165
        %v7167 = vsel %vm7164, %v7166, %v7162
        %v7168 = vmul.f32 1.0, %v7167
        %v7169 = vrcp.pop %v7091
        %v7170 = vmul.f32 %v7091, %v7169
        %v7171 = vsub.f32 1.0, %v7170
        %v7172 = vmul.f32 %v7169, %v7171
        %v7173 = vadd.f32 %v7169, %v7172
        %vm7174 = vweird.f32 %v7091
        %vm7175 = vweird.f32 %v7169
        %vm7176 = vmor %vm7174, %vm7175
        %v7177 = vsel %vm7176, %v7169, %v7173
        %v7178 = vand.u32 2147483647, %v7091
        %vm7179 = vcmp.eq.f32.partialorder %v7178, 8.507059e+37
        %v7180 = vand.u32 %v7091, 2147483648
        %v7181 = vor.u32 1.1754944e-38, %v7180
        %v7182 = vsel %vm7179, %v7181, %v7177
        %v7183 = vmul.f32 1.0, %v7182
        %v7184 = vrcp.pop %v7092
        %v7185 = vmul.f32 %v7092, %v7184
        %v7186 = vsub.f32 1.0, %v7185
        %v7187 = vmul.f32 %v7184, %v7186
        %v7188 = vadd.f32 %v7184, %v7187
        %vm7189 = vweird.f32 %v7092
        %vm7190 = vweird.f32 %v7184
        %vm7191 = vmor %vm7189, %vm7190
        %v7192 = vsel %vm7191, %v7184, %v7188
        %v7193 = vand.u32 2147483647, %v7092
        %vm7194 = vcmp.eq.f32.partialorder %v7193, 8.507059e+37
        %v7195 = vand.u32 %v7092, 2147483648
        %v7196 = vor.u32 1.1754944e-38, %v7195
        %v7197 = vsel %vm7194, %v7196, %v7192
        %v7198 = vmul.f32 1.0, %v7197
        %v7199 = vrcp.pop %v7093
        %v7200 = vmul.f32 %v7093, %v7199
        %v7201 = vsub.f32 1.0, %v7200
        %v7202 = vmul.f32 %v7199, %v7201
        %v7203 = vadd.f32 %v7199, %v7202
        %vm7204 = vweird.f32 %v7093
        %vm7205 = vweird.f32 %v7199
        %vm7206 = vmor %vm7204, %vm7205
        %v7207 = vsel %vm7206, %v7199, %v7203
        %v7208 = vand.u32 2147483647, %v7093
        %vm7209 = vcmp.eq.f32.partialorder %v7208, 8.507059e+37
        %v7210 = vand.u32 %v7093, 2147483648
        %v7211 = vor.u32 1.1754944e-38, %v7210
        %v7212 = vsel %vm7209, %v7211, %v7207
        %v7213 = vmul.f32 1.0, %v7212
        %v7214 = vtanh.pop %v7054
        %v7215 = vtanh.pop %v7055
        %v7216 = vtanh.pop %v7056
        %v7217 = vtanh.pop %v7057
        %v7218 = vtanh.pop %v7058
        %v7219 = vtanh.pop %v7059
        %v7220 = vtanh.pop %v7060
        %v7221 = vtanh.pop %v7061
        %v7230 = vrot.slane %v6904, 7
        %v7231 = vrot.slane %v6905, 7
        %v7232 = vrot.slane %v6906, 7
        %v7233 = vrot.slane %v6907, 7
        %v7234 = vrot.slane %v6908, 7
        %v7235 = vrot.slane %v6909, 7
        %v7236 = vrot.slane %v6910, 7
        %v7237 = vrot.slane %v6911, 7
        %v7246 = vmul.f32 %v7108, %v7230
        %v7247 = vmul.f32 %v7123, %v7231
        %v7248 = vmul.f32 %v7138, %v7232
        %v7249 = vmul.f32 %v7153, %v7233
        %v7250 = vmul.f32 %v7168, %v7234
        %v7251 = vmul.f32 %v7183, %v7235
        %v7252 = vmul.f32 %v7198, %v7236
        %v7253 = vmul.f32 %v7213, %v7237
        %7262 = vrot.lane.b32.xlu0 %v7214, 32
        %v7263 = vpop.permute.xlu0 %7262
        %7264 = vrot.lane.b32.xlu0 %v7215, 32
        %v7265 = vpop.permute.xlu0 %7264
        %7266 = vrot.lane.b32.xlu0 %v7216, 32
        %v7267 = vpop.permute.xlu0 %7266
        %7268 = vrot.lane.b32.xlu0 %v7217, 32
        %v7269 = vpop.permute.xlu0 %7268
        %7270 = vrot.lane.b32.xlu0 %v7218, 32
        %v7271 = vpop.permute.xlu0 %7270
        %7272 = vrot.lane.b32.xlu0 %v7219, 32
        %v7273 = vpop.permute.xlu0 %7272
        %7274 = vrot.lane.b32.xlu0 %v7220, 32
        %v7275 = vpop.permute.xlu0 %7274
        %7276 = vrot.lane.b32.xlu0 %v7221, 32
        %v7277 = vpop.permute.xlu0 %7276
        %v7286 = vmul.f32 %v7108, %v7263
        %v7287 = vmul.f32 %v7123, %v7265
        %v7288 = vmul.f32 %v7138, %v7267
        %v7289 = vmul.f32 %v7153, %v7269
        %v7290 = vmul.f32 %v7168, %v7271
        %v7291 = vmul.f32 %v7183, %v7273
        %v7292 = vmul.f32 %v7198, %v7275
        %v7293 = vmul.f32 %v7213, %v7277
        %7302 = vrot.lane.b32.xlu0 %v7286, 32
        %v7303 = vpop.permute.xlu0 %7302
        %7304 = vrot.lane.b32.xlu0 %v7287, 32
        %v7305 = vpop.permute.xlu0 %7304
        %7306 = vrot.lane.b32.xlu0 %v7288, 32
        %v7307 = vpop.permute.xlu0 %7306
        %7308 = vrot.lane.b32.xlu0 %v7289, 32
        %v7309 = vpop.permute.xlu0 %7308
        %7310 = vrot.lane.b32.xlu0 %v7290, 32
        %v7311 = vpop.permute.xlu0 %7310
        %7312 = vrot.lane.b32.xlu0 %v7291, 32
        %v7313 = vpop.permute.xlu0 %7312
        %7314 = vrot.lane.b32.xlu0 %v7292, 32
        %v7315 = vpop.permute.xlu0 %7314
        %7316 = vrot.lane.b32.xlu0 %v7293, 32
        %v7317 = vpop.permute.xlu0 %7316
        %v7326 = vadd.f32 %v7246, %v7303
        %v7327 = vadd.f32 %v7247, %v7305
        %v7328 = vadd.f32 %v7248, %v7307
        %v7329 = vadd.f32 %v7249, %v7309
        %v7330 = vadd.f32 %v7250, %v7311
        %v7331 = vadd.f32 %v7251, %v7313
        %v7332 = vadd.f32 %v7252, %v7315
        %v7333 = vadd.f32 %v7253, %v7317
        %v7334 = vtanh.pop %v7326
        %v7335 = vtanh.pop %v7327
        %v7336 = vtanh.pop %v7328
        %v7337 = vtanh.pop %v7329
        %v7338 = vtanh.pop %v7330
        %v7339 = vtanh.pop %v7331
        %v7340 = vtanh.pop %v7332
        %v7341 = vtanh.pop %v7333
        %7350 = vrot.lane.b32.xlu0 %v7334, 32
        %v7351 = vpop.permute.xlu0 %7350
        %7352 = vrot.lane.b32.xlu0 %v7335, 32
        %v7353 = vpop.permute.xlu0 %7352
        %7354 = vrot.lane.b32.xlu0 %v7336, 32
        %v7355 = vpop.permute.xlu0 %7354
        %7356 = vrot.lane.b32.xlu0 %v7337, 32
        %v7357 = vpop.permute.xlu0 %7356
        %7358 = vrot.lane.b32.xlu0 %v7338, 32
        %v7359 = vpop.permute.xlu0 %7358
        %7360 = vrot.lane.b32.xlu0 %v7339, 32
        %v7361 = vpop.permute.xlu0 %7360
        %7362 = vrot.lane.b32.xlu0 %v7340, 32
        %v7363 = vpop.permute.xlu0 %7362
        %7364 = vrot.lane.b32.xlu0 %v7341, 32
        %v7365 = vpop.permute.xlu0 %7364
        %v7374 = vmul.f32 %v7108, %v7351
        %v7375 = vmul.f32 %v7123, %v7353
        %v7376 = vmul.f32 %v7138, %v7355
        %v7377 = vmul.f32 %v7153, %v7357
        %v7378 = vmul.f32 %v7168, %v7359
        %v7379 = vmul.f32 %v7183, %v7361
        %v7380 = vmul.f32 %v7198, %v7363
        %v7381 = vmul.f32 %v7213, %v7365
        %7390 = vrot.lane.b32.xlu0 %v7374, 64
        %v7391 = vpop.permute.xlu0 %7390
        %7392 = vrot.lane.b32.xlu0 %v7375, 64
        %v7393 = vpop.permute.xlu0 %7392
        %7394 = vrot.lane.b32.xlu0 %v7376, 64
        %v7395 = vpop.permute.xlu0 %7394
        %7396 = vrot.lane.b32.xlu0 %v7377, 64
        %v7397 = vpop.permute.xlu0 %7396
        %7398 = vrot.lane.b32.xlu0 %v7378, 64
        %v7399 = vpop.permute.xlu0 %7398
        %7400 = vrot.lane.b32.xlu0 %v7379, 64
        %v7401 = vpop.permute.xlu0 %7400
        %7402 = vrot.lane.b32.xlu0 %v7380, 64
        %v7403 = vpop.permute.xlu0 %7402
        %7404 = vrot.lane.b32.xlu0 %v7381, 64
        %v7405 = vpop.permute.xlu0 %7404
        %7414 = vst.msk [vmem:[#allocation4] sm:$0x80] %vm3907, %v7391
        %7415 = vst.msk [vmem:[#allocation4 + $0x8] sm:$0x80] %vm3907, %v7393
        %7416 = vst.msk [vmem:[#allocation4 + $0x10] sm:$0x80] %vm3907, %v7395
        %7417 = vst.msk [vmem:[#allocation4 + $0x18] sm:$0x80] %vm3907, %v7397
        %7418 = vst.msk [vmem:[#allocation4 + $0x20] sm:$0x80] %vm3907, %v7399
        %7419 = vst.msk [vmem:[#allocation4 + $0x28] sm:$0x80] %vm3907, %v7401
        %7420 = vst.msk [vmem:[#allocation4 + $0x30] sm:$0x80] %vm3907, %v7403
        %7421 = vst.msk [vmem:[#allocation4 + $0x38] sm:$0x80] %vm3907, %v7405
        %v7422 = vrot.slane %v7375, 7
        %v7423 = vrot.slane %v7376, 6
        %v7424 = vsel %vm949, %v7423, %v7422
        %v7425 = vrot.slane %v7377, 5
        %v7426 = vsel %vm952, %v7425, %v7424
        %v7427 = vrot.slane %v7378, 4
        %v7428 = vsel %vm955, %v7427, %v7426
        %v7429 = vrot.slane %v7379, 3
        %v7430 = vsel %vm958, %v7429, %v7428
        %v7431 = vrot.slane %v7380, 2
        %v7432 = vsel %vm961, %v7431, %v7430
        %v7433 = vrot.slane %v7381, 1
        %v7434 = vsel %vm964, %v7433, %v7432
        %7435 = vrot.lane.b32.xlu0 %v7434, 64
        %v7436 = vpop.permute.xlu0 %7435
        %7438 = vst.msk [vmem:[%s4049 - $0x7] sm:$0x80] %vm3907, %v7391
        %7439 = vst.msk [vmem:[%s4049 + $0x1] sm:$0x7f] %vm3933, %v7436
        %v7448 = vrot.slane %v7327, 7
        %v7449 = vrot.slane %v7328, 6
        %v7450 = vsel %vm949, %v7449, %v7448
        %v7451 = vrot.slane %v7329, 5
        %v7452 = vsel %vm952, %v7451, %v7450
        %v7453 = vrot.slane %v7330, 4
        %v7454 = vsel %vm955, %v7453, %v7452
        %v7455 = vrot.slane %v7331, 3
        %v7456 = vsel %vm958, %v7455, %v7454
        %v7457 = vrot.slane %v7332, 2
        %v7458 = vsel %vm961, %v7457, %v7456
        %v7459 = vrot.slane %v7333, 1
        %v7460 = vsel %vm964, %v7459, %v7458
        %7461 = vrot.lane.b32.xlu0 %v7326, 96
        %v7462 = vpop.permute.xlu0 %7461
        %7463 = vrot.lane.b32.xlu0 %v7460, 96
        %v7464 = vpop.permute.xlu0 %7463
        %7467 = vst.msk [vmem:[%s4051 - $0x7] sm:$0x80] %vm3907, %v7462
        %7468 = vst.msk [vmem:[%s4051 + $0x1] sm:$0x7f] %vm3933, %v7464
        %v7469 = vld [vmem:[#allocation4] sm:$0xff]
        %v7470 = vld [vmem:[#allocation4 + $0x8] sm:$0xff]
        %v7471 = vld [vmem:[#allocation4 + $0x10] sm:$0xff]
        %v7472 = vld [vmem:[#allocation4 + $0x18] sm:$0xff]
        %v7473 = vld [vmem:[#allocation4 + $0x20] sm:$0xff]
        %v7474 = vld [vmem:[#allocation4 + $0x28] sm:$0xff]
        %v7475 = vld [vmem:[#allocation4 + $0x30] sm:$0xff]
        %v7476 = vld [vmem:[#allocation4 + $0x38] sm:$0xff]
        %v7477 = vld [vmem:[#allocation14] sm:$0xff]
        %v7478 = vld [vmem:[#allocation14 + $0x8] sm:$0xff]
        %v7479 = vld [vmem:[#allocation14 + $0x10] sm:$0xff]
        %v7480 = vld [vmem:[#allocation14 + $0x18] sm:$0xff]
        %v7481 = vld [vmem:[%s8] sm:$0x1]
        %v7483 = vperm.slane %v7481, 0
        %v7486 = vsel %vm464, %v7469, 0
        %v7489 = vsel %vm464, %v7470, 0
        %v7492 = vsel %vm464, %v7471, 0
        %v7495 = vsel %vm464, %v7472, 0
        %v7498 = vsel %vm464, %v7473, 0
        %v7501 = vsel %vm464, %v7474, 0
        %v7504 = vsel %vm464, %v7475, 0
        %v7507 = vsel %vm464, %v7476, 0
        %7509 = vmatpush.msra.mxu0 0.0
        %7510 = vmatpush.msra.mxu0 0.0
        %7511 = vmatpush.msra.mxu0 0.0
        %7512 = vmatpush.msra.mxu0 0.0
        %7513 = vmatpush.msra.mxu0 0.0
        %7514 = vmatpush.msra.mxu0 0.0
        %7515 = vmatpush.msra.mxu0 0.0
        %7516 = vmatpush.msra.mxu0 0.0
        %7517 = vmatpush.msra.mxu0 0.0
        %7518 = vmatpush.msra.mxu0 0.0
        %7519 = vmatpush.msra.mxu0 0.0
        %7520 = vmatpush.msra.mxu0 0.0
        %7521 = vmatpush.msra.mxu0 %v7480
        %7522 = vmatpush.msra.mxu0 %v7479
        %7523 = vmatpush.msra.mxu0 %v7478
        %7524 = vmatpush.msra.mxu0 %v7477
        %7525 = vmatmul.f32.gmra.mxu0 %v7486
        %v7526 = vpop.f32.mrf.mxu0
        %v7527 = vadd.f32 %v7483, %v7526
        %7528 = vmatmul.f32.gmra.mxu0 %v7489
        %v7529 = vpop.f32.mrf.mxu0
        %v7530 = vadd.f32 %v7483, %v7529
        %7531 = vmatmul.f32.gmra.mxu0 %v7492
        %v7532 = vpop.f32.mrf.mxu0
        %v7533 = vadd.f32 %v7483, %v7532
        %7534 = vmatmul.f32.gmra.mxu0 %v7495
        %v7535 = vpop.f32.mrf.mxu0
        %v7536 = vadd.f32 %v7483, %v7535
        %7537 = vmatmul.f32.gmra.mxu0 %v7498
        %v7538 = vpop.f32.mrf.mxu0
        %v7539 = vadd.f32 %v7483, %v7538
        %7540 = vmatmul.f32.gmra.mxu0 %v7501
        %v7541 = vpop.f32.mrf.mxu0
        %v7542 = vadd.f32 %v7483, %v7541
        %7543 = vmatmul.f32.gmra.mxu0 %v7504
        %v7544 = vpop.f32.mrf.mxu0
        %v7545 = vadd.f32 %v7483, %v7544
        %7546 = vmatmul.f32.gmra.mxu0 %v7507
        %v7547 = vpop.f32.mrf.mxu0
        %v7548 = vadd.f32 %v7483, %v7547
        %7549 = vdwg.mxu0
        %7550 = vst [vmem:[%s434] sm:$0xff] %v7527
        %7551 = vst [vmem:[%s434 + $0x8] sm:$0xff] %v7530
        %7552 = vst [vmem:[%s434 + $0x10] sm:$0xff] %v7533
        %7553 = vst [vmem:[%s434 + $0x18] sm:$0xff] %v7536
        %7554 = vst [vmem:[%s434 + $0x20] sm:$0xff] %v7539
        %7555 = vst [vmem:[%s434 + $0x28] sm:$0xff] %v7542
        %7556 = vst [vmem:[%s434 + $0x30] sm:$0xff] %v7545
        %7557 = vst [vmem:[%s434 + $0x38] sm:$0xff] %v7548
        %s7558 = sand.u32 %s231, 1
        %s7559 = scalar_lea.sflag [#allocation7], %s7558
        %s7560 = sand.u32 %s231, 1
        %s7561 = smul.addr %s7560, 64
        %s7562 = scalar_lea.vmem [#allocation16], %s7561
        // Predicated region
        $region85: #{tpu_custom_call.1} parent=55 // pred_check
          %p7563 = pneg %p241
        $region86: #{tpu_custom_call.1} parent=55 // pred_check_branch
          %7565 = sbr.rel (%p7563) target = $region88
        $region87: #{tpu_custom_call.1} parent=55 // pred_region
          %7567 = vsyncadd %s7559, 0
          %s7568 = smul.addr %s29, 8
          %s7569 = scalar_lea.hbm %s9, %s7568
          %s7570 = sshll.u32 %s7562, 4
          %s7571 = int_to_ptr.vmem [resolvable:$true] %s7570
          %s7572 = sshll.u32 %s7569, 4
          %s7573 = int_to_ptr.hbm [resolvable:$true] %s7572
          %7578 = dma.vmem_to_hbm [thread:$0]  %s7571, 1024, %s7573, %s7559, 128, 384, 8
        $region88: #{tpu_custom_call.1} parent=55 // pred_fallthru
          _
      $region56: #{tpu_custom_call.1} parent=5 // pred_fallthru
        _
      %p7579 = scmp.le.s32.totalorder 2, %s24
      // Predicated region
      $region89: #{tpu_custom_call.1} parent=5 // pred_check
        %p7580 = pneg %p7579
      $region90: #{tpu_custom_call.1} parent=5 // pred_check_branch
        %7582 = sbr.rel (%p7580) target = $region92
      $region91: #{tpu_custom_call.1} parent=5 // pred_region
        %s7583 = ssub.s32 %s24, 2
        // Predicated region
        $region93: #{tpu_custom_call.1} parent=91 // pred_check
          %p7584 = pneg %p247
        $region94: #{tpu_custom_call.1} parent=91 // pred_check_branch
          %7586 = sbr.rel (%p7584) target = $region96
        $region95: #{tpu_custom_call.1} parent=91 // pred_region
          %s7587 = sand.u32 %s232, 1
          %s7588 = scalar_lea.sflag [#allocation7], %s7587
          %s7589 = sand.u32 %s232, 1
          %s7590 = smul.addr %s7589, 64
          %s7591 = scalar_lea.vmem [#allocation16], %s7590
          %7593 = dma.done %s7588, 1024
        $region96: #{tpu_custom_call.1} parent=91 // pred_fallthru
          _
      $region92: #{tpu_custom_call.1} parent=5 // pred_fallthru
        _
    $region6: #{tpu_custom_call.1} parent=1 // loop_footer
      %s28 = sadd.s32 1, %s24
    $region7: #{tpu_custom_call.1} parent=1 // loop_footer_branch
      %23 = sbr.rel target = $region3
    $region8: #{tpu_custom_call.1} parent=1 // loop_exit
      _
    %7594 = vsyncpa [#allocation6], 1
    %s7595 = scalar_lea.sflag [#allocation6], 1
    %7596 = vsyncpa %s7595, 1
    %7597 = vsyncpa [#allocation9], 1
    %7598 = vsyncpa [#allocation12], 1
    %7599 = vsyncpa [#allocation15], 1
    %7600 = vsyncpa [#allocation7], 1
    %s7601 = scalar_lea.sflag [#allocation7], 1
    %7602 = vsyncpa %s7601, 1

</llo_original>
